<compile_context>
chip_gen: v7x
topology: tpu7x:2x2x1
jax: 0.10.0
libtpu: 0.0.40
codegen_flags: <defaults>
</compile_context>

<pallas_src>
import jax
import jax.numpy as jnp
from jax import lax
from jax.experimental import pallas as pl
from jax.experimental.pallas import tpu as pltpu

BLOCK_SIZE = 16                      # max sequence length
EMBED_DIM = 288                      # n_embd
N_HEAD = 12
HEAD_SIZE = EMBED_DIM // N_HEAD      # 24
FF_DIM = 4 * EMBED_DIM               # 1152
LN_EPS = 1e-5


def _layer_norm(x, g, b):
    """f32 LayerNorm over the last axis (biased variance, eps=1e-5)."""
    mu = jnp.mean(x, axis=-1, keepdims=True)
    xc = x - mu
    var = jnp.mean(xc * xc, axis=-1, keepdims=True)
    return xc * lax.rsqrt(var + LN_EPS) * g + b


def _block_kernel(x_ref, ln1w_ref, ln1b_ref, wqkv_ref, wproj_ref, bproj_ref,
                  ln2w_ref, ln2b_ref, w1_ref, b1_ref, w2_ref, b2_ref, o_ref):
    """One batch element per grid step: full transformer Block forward."""
    x = x_ref[0].astype(jnp.float32)                      # (T, C)
    T, C = x.shape
    H, hs = N_HEAD, HEAD_SIZE

    # ---------------- LayerNorm 1 ----------------
    xn = _layer_norm(x, ln1w_ref[...], ln1b_ref[...])     # (T, C) f32

    # ------- fused QKV: single lane-dense (T,C)@(C,3C) bf16 matmul, f32 accum -------
    qkv = jnp.dot(xn.astype(jnp.bfloat16), wqkv_ref[...],
                  preferred_element_type=jnp.float32)      # (T, 3C) f32

    # Causal mask (tril buffer equivalent), built once.
    row = lax.broadcasted_iota(jnp.int32, (T, T), 0)
    col = lax.broadcasted_iota(jnp.int32, (T, T), 1)
    causal = col <= row

    # ------- per-head attention (tiny (T,T) work, static unrolled loop) -------
    head_outs = []
    for h in range(H):
        lo = h * hs
        q = qkv[:, lo:lo + hs].astype(jnp.bfloat16)                  # (T, hs); scale folded in W_q
        k = qkv[:, C + lo:C + lo + hs].astype(jnp.bfloat16)          # (T, hs)
        v = qkv[:, 2 * C + lo:2 * C + lo + hs].astype(jnp.bfloat16)  # (T, hs)

        # q @ k.T without materializing a transpose (contract on feature dim of both).
        s = lax.dot_general(q, k, (((1,), (1,)), ((), ())),
                            preferred_element_type=jnp.float32)      # (T, T) f32
        s = jnp.where(causal, s, -jnp.inf)
        m = jnp.max(s, axis=-1, keepdims=True)
        p = jnp.exp(s - m)
        p = p * pl.reciprocal(jnp.sum(p, axis=-1, keepdims=True), approx=True)
        # (attention dropout skipped: eval mode)
        head_outs.append(jnp.dot(p.astype(jnp.bfloat16), v,
                                 preferred_element_type=jnp.float32))  # (T, hs) f32

    # ------- fused concat-heads + output projection: one (T,C)@(C,C) matmul -------
    cat = jnp.concatenate(head_outs, axis=-1).astype(jnp.bfloat16)     # (T, C)
    sa = jnp.dot(cat, wproj_ref[...],
                 preferred_element_type=jnp.float32) + bproj_ref[...]  # (T, C) f32
    # (proj dropout skipped: eval mode)

    x1 = x + sa                                            # residual 1 (f32)

    # ---------------- LayerNorm 2 + FeedForward ----------------
    xn2 = _layer_norm(x1, ln2w_ref[...], ln2b_ref[...])
    h1 = jnp.dot(xn2.astype(jnp.bfloat16), w1_ref[...],
                 preferred_element_type=jnp.float32) + b1_ref[...]     # (T, 4C)
    h1 = jnp.maximum(h1, 0.0)                                          # ReLU (f32)
    ff = jnp.dot(h1.astype(jnp.bfloat16), w2_ref[...],
                 preferred_element_type=jnp.float32) + b2_ref[...]     # (T, C)
    # (ffn dropout skipped: eval mode)

    o_ref[0] = (x1 + ff).astype(o_ref.dtype)               # residual 2


@jax.jit
def transformer_block(x, ln1_w, ln1_b, w_qkv, w_proj, b_proj,
                      ln2_w, ln2_b, w1, b1, w2, b2):
    """x: (B,T,C) f32.  Weights pre-packed by pack_params (bf16 matmul weights, f32 rest)."""
    B, T, C = x.shape
    F = w1.shape[1]
    const2 = lambda b: (0, 0)
    return pl.pallas_call(
        _block_kernel,
        out_shape=jax.ShapeDtypeStruct((B, T, C), x.dtype),
        grid_spec=pltpu.PrefetchScalarGridSpec(
            num_scalar_prefetch=0,
            grid=(B,),
            in_specs=[
                pl.BlockSpec((1, T, C), lambda b: (b, 0, 0)),   # x: one batch row
                pl.BlockSpec((1, C), const2),                   # ln1 gamma
                pl.BlockSpec((1, C), const2),                   # ln1 beta
                pl.BlockSpec((C, 3 * C), const2),               # fused W_qkv (bf16)
                pl.BlockSpec((C, C), const2),                   # W_proj^T (bf16)
                pl.BlockSpec((1, C), const2),                   # proj bias
                pl.BlockSpec((1, C), const2),                   # ln2 gamma
                pl.BlockSpec((1, C), const2),                   # ln2 beta
                pl.BlockSpec((C, F), const2),                   # FFN W1^T (bf16)
                pl.BlockSpec((1, F), const2),                   # FFN b1
                pl.BlockSpec((F, C), const2),                   # FFN W2^T (bf16)
                pl.BlockSpec((1, C), const2),                   # FFN b2
            ],
            out_specs=pl.BlockSpec((1, T, C), lambda b: (b, 0, 0)),
        ),
        compiler_params=pltpu.CompilerParams(
            dimension_semantics=("parallel",),
            vmem_limit_bytes=32 * 1024 * 1024),
    )(x, ln1_w, ln1_b, w_qkv, w_proj, b_proj, ln2_w, ln2_b, w1, b1, w2, b2)


def pack_params(wq, wk, wv, w_proj_t, b_proj, ln1_w, ln1_b, ln2_w, ln2_b, w1, b1, w2, b2):
    """Fuse per-head Q/K/V weights, fold the score scale into W_q, cast matmul weights to bf16."""
    H, C, hs = wq.shape
    scale = C ** -0.5          # NOTE: reference scales by embedding_dim, not head_size
    stack = lambda w: jnp.moveaxis(w, 0, 1).reshape(C, H * hs)   # (H,C,hs) -> (C, H*hs)
    w_qkv = jnp.concatenate([stack(wq) * scale, stack(wk), stack(wv)],
                            axis=1).astype(jnp.bfloat16)          # (C, 3C)
    return (ln1_w.reshape(1, C), ln1_b.reshape(1, C),
            w_qkv,
            w_proj_t.astype(jnp.bfloat16), b_proj.reshape(1, C),
            ln2_w.reshape(1, C), ln2_b.reshape(1, C),
            w1.astype(jnp.bfloat16), b1.reshape(1, -1),
            w2.astype(jnp.bfloat16), b2.reshape(1, C))


def _reference(x, wq, wk, wv, w_proj_t, b_proj, ln1_w, ln1_b, ln2_w, ln2_b, w1, b1, w2, b2):
    """Pure-JAX f32 reference mirroring the PyTorch Block forward (eval mode)."""
    B, T, C = x.shape
    H = wq.shape[0]

    def ln(y, g, b):
        mu = y.mean(-1, keepdims=True)
        var = ((y - mu) ** 2).mean(-1, keepdims=True)
        return (y - mu) / jnp.sqrt(var + LN_EPS) * g + b

    xn = ln(x, ln1_w, ln1_b)
    mask = jnp.tril(jnp.ones((T, T), bool))
    heads = []
    for h in range(H):
        q = xn @ wq[h]
        k = xn @ wk[h]
        v = xn @ wv[h]
        s = jnp.einsum("btd,bsd->bts", q, k) * (C ** -0.5)
        s = jnp.where(mask[None], s, -jnp.inf)
        p = jax.nn.softmax(s, axis=-1)
        heads.append(jnp.einsum("bts,bsd->btd", p, v))
    sa = jnp.concatenate(heads, axis=-1) @ w_proj_t + b_proj
    x1 = x + sa
    xn2 = ln(x1, ln2_w, ln2_b)
    ff = jnp.maximum(xn2 @ w1 + b1, 0.0) @ w2 + b2
    return x1 + ff


if __name__ == "__main__":
    key = jax.random.PRNGKey(0)
    ks = jax.random.split(key, 16)

    B, T, C, H, hs, F = 2, BLOCK_SIZE, EMBED_DIM, N_HEAD, HEAD_SIZE, FF_DIM

    bi = 1.0 / (C ** 0.5)
    bf = 1.0 / (F ** 0.5)
    wq = jax.random.uniform(ks[0], (H, C, hs), jnp.float32, -bi, bi)
    wk = jax.random.uniform(ks[1], (H, C, hs), jnp.float32, -bi, bi)
    wv = jax.random.uniform(ks[2], (H, C, hs), jnp.float32, -bi, bi)
    w_proj_t = jax.random.uniform(ks[3], (C, C), jnp.float32, -bi, bi)   # proj.weight^T
    b_proj = jax.random.uniform(ks[4], (C,), jnp.float32, -bi, bi)
    ln1_w = 1.0 + 0.1 * jax.random.uniform(ks[5], (C,), jnp.float32, -1.0, 1.0)
    ln1_b = 0.1 * jax.random.uniform(ks[6], (C,), jnp.float32, -1.0, 1.0)
    ln2_w = 1.0 + 0.1 * jax.random.uniform(ks[7], (C,), jnp.float32, -1.0, 1.0)
    ln2_b = 0.1 * jax.random.uniform(ks[8], (C,), jnp.float32, -1.0, 1.0)
    w1 = jax.random.uniform(ks[9], (C, F), jnp.float32, -bi, bi)         # ffwd lin1 weight^T
    b1 = jax.random.uniform(ks[10], (F,), jnp.float32, -bi, bi)
    w2 = jax.random.uniform(ks[11], (F, C), jnp.float32, -bf, bf)        # ffwd lin2 weight^T
    b2 = jax.random.uniform(ks[12], (C,), jnp.float32, -bf, bf)

    x = jax.random.normal(ks[13], (B, T, C), jnp.float32)

    packed = pack_params(wq, wk, wv, w_proj_t, b_proj,
                         ln1_w, ln1_b, ln2_w, ln2_b, w1, b1, w2, b2)
    out = transformer_block(x, *packed)
    out = jax.block_until_ready(out)

    ref = _reference(x, wq, wk, wv, w_proj_t, b_proj,
                     ln1_w, ln1_b, ln2_w, ln2_b, w1, b1, w2, b2)
    assert out.shape == (B, T, C)
    max_err = float(jnp.max(jnp.abs(out - ref)))
    assert jnp.allclose(out, ref, atol=3e-2, rtol=3e-2), max_err

    print("KERNEL_OK")
</pallas_src>

<mosaic_0001>
module attributes {stable_mosaic.version = 11 : i64} {
  func.func @_block_kernel(%arg0: i32, %arg1: memref<1x16x288xf32, #tpu.memory_space<vmem>>, %arg2: memref<1x288xf32, #tpu.memory_space<vmem>>, %arg3: memref<1x288xf32, #tpu.memory_space<vmem>>, %arg4: memref<288x864xbf16, #tpu.memory_space<vmem>>, %arg5: memref<288x288xbf16, #tpu.memory_space<vmem>>, %arg6: memref<1x288xf32, #tpu.memory_space<vmem>>, %arg7: memref<1x288xf32, #tpu.memory_space<vmem>>, %arg8: memref<1x288xf32, #tpu.memory_space<vmem>>, %arg9: memref<288x1152xbf16, #tpu.memory_space<vmem>>, %arg10: memref<1x1152xf32, #tpu.memory_space<vmem>>, %arg11: memref<1152x288xbf16, #tpu.memory_space<vmem>>, %arg12: memref<1x288xf32, #tpu.memory_space<vmem>>, %arg13: memref<1x16x288xf32, #tpu.memory_space<vmem>>) attributes {dimension_semantics = [#tpu.dimension_semantics<parallel>], iteration_bounds = array<i64: 2>, scalar_prefetch = 0 : i64, scratch_operands = 0 : i64, tpu.core_type = #tpu.core_type<tc>, window_params = [{transform_indices = @transform_0, window_bounds = array<i64: 1, 16, 288>}, {pipeline_mode = #tpu.pipeline_mode<synchronous>, transform_indices = @transform_1, window_bounds = array<i64: 1, 288>}, {pipeline_mode = #tpu.pipeline_mode<synchronous>, transform_indices = @transform_2, window_bounds = array<i64: 1, 288>}, {pipeline_mode = #tpu.pipeline_mode<synchronous>, transform_indices = @transform_3, window_bounds = array<i64: 288, 864>}, {pipeline_mode = #tpu.pipeline_mode<synchronous>, transform_indices = @transform_4, window_bounds = array<i64: 288, 288>}, {pipeline_mode = #tpu.pipeline_mode<synchronous>, transform_indices = @transform_5, window_bounds = array<i64: 1, 288>}, {pipeline_mode = #tpu.pipeline_mode<synchronous>, transform_indices = @transform_6, window_bounds = array<i64: 1, 288>}, {pipeline_mode = #tpu.pipeline_mode<synchronous>, transform_indices = @transform_7, window_bounds = array<i64: 1, 288>}, {pipeline_mode = #tpu.pipeline_mode<synchronous>, transform_indices = @transform_8, window_bounds = array<i64: 288, 1152>}, {pipeline_mode = #tpu.pipeline_mode<synchronous>, transform_indices = @transform_9, window_bounds = array<i64: 1, 1152>}, {pipeline_mode = #tpu.pipeline_mode<synchronous>, transform_indices = @transform_10, window_bounds = array<i64: 1152, 288>}, {pipeline_mode = #tpu.pipeline_mode<synchronous>, transform_indices = @transform_11, window_bounds = array<i64: 1, 288>}, {transform_indices = @transform_12, window_bounds = array<i64: 1, 16, 288>}]} {
    %c0 = arith.constant 0 : index
    %c0_0 = arith.constant 0 : index
    %c0_1 = arith.constant 0 : index
    %0 = vector.load %arg1[%c0, %c0_0, %c0_1] : memref<1x16x288xf32, #tpu.memory_space<vmem>>, vector<1x16x288xf32>
    %1 = vector.shape_cast %0 : vector<1x16x288xf32> to vector<16x288xf32>
    %c0_2 = arith.constant 0 : index
    %c0_3 = arith.constant 0 : index
    %2 = vector.load %arg2[%c0_2, %c0_3] : memref<1x288xf32, #tpu.memory_space<vmem>>, vector<1x288xf32>
    %c0_4 = arith.constant 0 : index
    %c0_5 = arith.constant 0 : index
    %3 = vector.load %arg3[%c0_4, %c0_5] : memref<1x288xf32, #tpu.memory_space<vmem>>, vector<1x288xf32>
    %cst = arith.constant dense<0.000000e+00> : vector<16xf32>
    %4 = vector.multi_reduction <add>, %1, %cst [1] : vector<16x288xf32> to vector<16xf32>
    %5 = vector.shape_cast %4 : vector<16xf32> to vector<16x1xf32>
    %cst_6 = arith.constant 2.880000e+02 : f32
    %6 = vector.broadcast %cst_6 : f32 to vector<16x1xf32>
    %7 = arith.divf %5, %6 : vector<16x1xf32>
    %8 = vector.broadcast %7 : vector<16x1xf32> to vector<16x288xf32>
    %9 = arith.subf %1, %8 : vector<16x288xf32>
    %10 = arith.mulf %9, %9 : vector<16x288xf32>
    %cst_7 = arith.constant dense<0.000000e+00> : vector<16xf32>
    %11 = vector.multi_reduction <add>, %10, %cst_7 [1] : vector<16x288xf32> to vector<16xf32>
    %12 = vector.shape_cast %11 : vector<16xf32> to vector<16x1xf32>
    %cst_8 = arith.constant 2.880000e+02 : f32
    %13 = vector.broadcast %cst_8 : f32 to vector<16x1xf32>
    %14 = arith.divf %12, %13 : vector<16x1xf32>
    %cst_9 = arith.constant 9.99999974E-6 : f32
    %15 = vector.broadcast %cst_9 : f32 to vector<16x1xf32>
    %16 = arith.addf %14, %15 : vector<16x1xf32>
    %17 = math.rsqrt %16 : vector<16x1xf32>
    %18 = vector.broadcast %17 : vector<16x1xf32> to vector<16x288xf32>
    %19 = arith.mulf %9, %18 : vector<16x288xf32>
    %20 = vector.broadcast %2 : vector<1x288xf32> to vector<16x288xf32>
    %21 = arith.mulf %19, %20 : vector<16x288xf32>
    %22 = vector.broadcast %3 : vector<1x288xf32> to vector<16x288xf32>
    %23 = arith.addf %21, %22 : vector<16x288xf32>
    %24 = arith.truncf %23 : vector<16x288xf32> to vector<16x288xbf16>
    %c0_10 = arith.constant 0 : index
    %c0_11 = arith.constant 0 : index
    %25 = vector.load %arg4[%c0_10, %c0_11] : memref<288x864xbf16, #tpu.memory_space<vmem>>, vector<288x864xbf16>
    %cst_12 = arith.constant dense<0.000000e+00> : vector<16x864xf32>
    %26 = tpu.matmul %24, %25, %cst_12 {dimension_numbers = #tpu.dot_dimension_numbers<[1], [0], [0], [1], [0, 0, 1, 1], [], []>} : vector<16x288xbf16>, vector<288x864xbf16>, vector<16x864xf32> -> vector<16x864xf32>
    %27 = tpu.iota {dimensions = array<i32: 0>} : vector<16x16xi32>
    %28 = tpu.iota {dimensions = array<i32: 1>} : vector<16x16xi32>
    %29 = arith.cmpi sle, %28, %27 : vector<16x16xi32>
    %30 = vector.extract_strided_slice %26 {offsets = [0, 0], sizes = [16, 24], strides = [1, 1]} : vector<16x864xf32> to vector<16x24xf32>
    %31 = arith.truncf %30 : vector<16x24xf32> to vector<16x24xbf16>
    %32 = vector.extract_strided_slice %26 {offsets = [0, 288], sizes = [16, 24], strides = [1, 1]} : vector<16x864xf32> to vector<16x24xf32>
    %33 = arith.truncf %32 : vector<16x24xf32> to vector<16x24xbf16>
    %34 = vector.extract_strided_slice %26 {offsets = [0, 576], sizes = [16, 24], strides = [1, 1]} : vector<16x864xf32> to vector<16x24xf32>
    %35 = arith.truncf %34 : vector<16x24xf32> to vector<16x24xbf16>
    %cst_13 = arith.constant dense<0.000000e+00> : vector<16x16xf32>
    %36 = tpu.matmul %31, %33, %cst_13 {dimension_numbers = #tpu.dot_dimension_numbers<[1], [1], [0], [0], [0, 0, 1, 0], [], []>} : vector<16x24xbf16>, vector<16x24xbf16>, vector<16x16xf32> -> vector<16x16xf32>
    %cst_14 = arith.constant 0xFF800000 : f32
    %37 = vector.broadcast %cst_14 : f32 to vector<16x16xf32>
    %38 = arith.select %29, %36, %37 : vector<16x16xi1>, vector<16x16xf32>
    %cst_15 = arith.constant dense<0xFF800000> : vector<16xf32>
    %39 = vector.multi_reduction <maximumf>, %38, %cst_15 [1] : vector<16x16xf32> to vector<16xf32>
    %40 = vector.shape_cast %39 : vector<16xf32> to vector<16x1xf32>
    %41 = vector.broadcast %40 : vector<16x1xf32> to vector<16x16xf32>
    %42 = arith.subf %38, %41 : vector<16x16xf32>
    %43 = math.exp %42 : vector<16x16xf32>
    %cst_16 = arith.constant dense<0.000000e+00> : vector<16xf32>
    %44 = vector.multi_reduction <add>, %43, %cst_16 [1] : vector<16x16xf32> to vector<16xf32>
    %45 = vector.shape_cast %44 : vector<16xf32> to vector<16x1xf32>
    %46 = tpu.reciprocal %45 {approx = true} : vector<16x1xf32> -> vector<16x1xf32>
    %47 = vector.broadcast %46 : vector<16x1xf32> to vector<16x16xf32>
    %48 = arith.mulf %43, %47 : vector<16x16xf32>
    %49 = arith.truncf %48 : vector<16x16xf32> to vector<16x16xbf16>
    %cst_17 = arith.constant dense<0.000000e+00> : vector<16x24xf32>
    %50 = tpu.matmul %49, %35, %cst_17 {dimension_numbers = #tpu.dot_dimension_numbers<[1], [0], [0], [1], [0, 0, 1, 1], [], []>} : vector<16x16xbf16>, vector<16x24xbf16>, vector<16x24xf32> -> vector<16x24xf32>
    %51 = vector.extract_strided_slice %26 {offsets = [0, 24], sizes = [16, 24], strides = [1, 1]} : vector<16x864xf32> to vector<16x24xf32>
    %52 = arith.truncf %51 : vector<16x24xf32> to vector<16x24xbf16>
    %53 = vector.extract_strided_slice %26 {offsets = [0, 312], sizes = [16, 24], strides = [1, 1]} : vector<16x864xf32> to vector<16x24xf32>
    %54 = arith.truncf %53 : vector<16x24xf32> to vector<16x24xbf16>
    %55 = vector.extract_strided_slice %26 {offsets = [0, 600], sizes = [16, 24], strides = [1, 1]} : vector<16x864xf32> to vector<16x24xf32>
    %56 = arith.truncf %55 : vector<16x24xf32> to vector<16x24xbf16>
    %cst_18 = arith.constant dense<0.000000e+00> : vector<16x16xf32>
    %57 = tpu.matmul %52, %54, %cst_18 {dimension_numbers = #tpu.dot_dimension_numbers<[1], [1], [0], [0], [0, 0, 1, 0], [], []>} : vector<16x24xbf16>, vector<16x24xbf16>, vector<16x16xf32> -> vector<16x16xf32>
    %cst_19 = arith.constant 0xFF800000 : f32
    %58 = vector.broadcast %cst_19 : f32 to vector<16x16xf32>
    %59 = arith.select %29, %57, %58 : vector<16x16xi1>, vector<16x16xf32>
    %cst_20 = arith.constant dense<0xFF800000> : vector<16xf32>
    %60 = vector.multi_reduction <maximumf>, %59, %cst_20 [1] : vector<16x16xf32> to vector<16xf32>
    %61 = vector.shape_cast %60 : vector<16xf32> to vector<16x1xf32>
    %62 = vector.broadcast %61 : vector<16x1xf32> to vector<16x16xf32>
    %63 = arith.subf %59, %62 : vector<16x16xf32>
    %64 = math.exp %63 : vector<16x16xf32>
    %cst_21 = arith.constant dense<0.000000e+00> : vector<16xf32>
    %65 = vector.multi_reduction <add>, %64, %cst_21 [1] : vector<16x16xf32> to vector<16xf32>
    %66 = vector.shape_cast %65 : vector<16xf32> to vector<16x1xf32>
    %67 = tpu.reciprocal %66 {approx = true} : vector<16x1xf32> -> vector<16x1xf32>
    %68 = vector.broadcast %67 : vector<16x1xf32> to vector<16x16xf32>
    %69 = arith.mulf %64, %68 : vector<16x16xf32>
    %70 = arith.truncf %69 : vector<16x16xf32> to vector<16x16xbf16>
    %cst_22 = arith.constant dense<0.000000e+00> : vector<16x24xf32>
    %71 = tpu.matmul %70, %56, %cst_22 {dimension_numbers = #tpu.dot_dimension_numbers<[1], [0], [0], [1], [0, 0, 1, 1], [], []>} : vector<16x16xbf16>, vector<16x24xbf16>, vector<16x24xf32> -> vector<16x24xf32>
    %72 = vector.extract_strided_slice %26 {offsets = [0, 48], sizes = [16, 24], strides = [1, 1]} : vector<16x864xf32> to vector<16x24xf32>
    %73 = arith.truncf %72 : vector<16x24xf32> to vector<16x24xbf16>
    %74 = vector.extract_strided_slice %26 {offsets = [0, 336], sizes = [16, 24], strides = [1, 1]} : vector<16x864xf32> to vector<16x24xf32>
    %75 = arith.truncf %74 : vector<16x24xf32> to vector<16x24xbf16>
    %76 = vector.extract_strided_slice %26 {offsets = [0, 624], sizes = [16, 24], strides = [1, 1]} : vector<16x864xf32> to vector<16x24xf32>
    %77 = arith.truncf %76 : vector<16x24xf32> to vector<16x24xbf16>
    %cst_23 = arith.constant dense<0.000000e+00> : vector<16x16xf32>
    %78 = tpu.matmul %73, %75, %cst_23 {dimension_numbers = #tpu.dot_dimension_numbers<[1], [1], [0], [0], [0, 0, 1, 0], [], []>} : vector<16x24xbf16>, vector<16x24xbf16>, vector<16x16xf32> -> vector<16x16xf32>
    %cst_24 = arith.constant 0xFF800000 : f32
    %79 = vector.broadcast %cst_24 : f32 to vector<16x16xf32>
    %80 = arith.select %29, %78, %79 : vector<16x16xi1>, vector<16x16xf32>
    %cst_25 = arith.constant dense<0xFF800000> : vector<16xf32>
    %81 = vector.multi_reduction <maximumf>, %80, %cst_25 [1] : vector<16x16xf32> to vector<16xf32>
    %82 = vector.shape_cast %81 : vector<16xf32> to vector<16x1xf32>
    %83 = vector.broadcast %82 : vector<16x1xf32> to vector<16x16xf32>
    %84 = arith.subf %80, %83 : vector<16x16xf32>
    %85 = math.exp %84 : vector<16x16xf32>
    %cst_26 = arith.constant dense<0.000000e+00> : vector<16xf32>
    %86 = vector.multi_reduction <add>, %85, %cst_26 [1] : vector<16x16xf32> to vector<16xf32>
    %87 = vector.shape_cast %86 : vector<16xf32> to vector<16x1xf32>
    %88 = tpu.reciprocal %87 {approx = true} : vector<16x1xf32> -> vector<16x1xf32>
    %89 = vector.broadcast %88 : vector<16x1xf32> to vector<16x16xf32>
    %90 = arith.mulf %85, %89 : vector<16x16xf32>
    %91 = arith.truncf %90 : vector<16x16xf32> to vector<16x16xbf16>
    %cst_27 = arith.constant dense<0.000000e+00> : vector<16x24xf32>
    %92 = tpu.matmul %91, %77, %cst_27 {dimension_numbers = #tpu.dot_dimension_numbers<[1], [0], [0], [1], [0, 0, 1, 1], [], []>} : vector<16x16xbf16>, vector<16x24xbf16>, vector<16x24xf32> -> vector<16x24xf32>
    %93 = vector.extract_strided_slice %26 {offsets = [0, 72], sizes = [16, 24], strides = [1, 1]} : vector<16x864xf32> to vector<16x24xf32>
    %94 = arith.truncf %93 : vector<16x24xf32> to vector<16x24xbf16>
    %95 = vector.extract_strided_slice %26 {offsets = [0, 360], sizes = [16, 24], strides = [1, 1]} : vector<16x864xf32> to vector<16x24xf32>
    %96 = arith.truncf %95 : vector<16x24xf32> to vector<16x24xbf16>
    %97 = vector.extract_strided_slice %26 {offsets = [0, 648], sizes = [16, 24], strides = [1, 1]} : vector<16x864xf32> to vector<16x24xf32>
    %98 = arith.truncf %97 : vector<16x24xf32> to vector<16x24xbf16>
    %cst_28 = arith.constant dense<0.000000e+00> : vector<16x16xf32>
    %99 = tpu.matmul %94, %96, %cst_28 {dimension_numbers = #tpu.dot_dimension_numbers<[1], [1], [0], [0], [0, 0, 1, 0], [], []>} : vector<16x24xbf16>, vector<16x24xbf16>, vector<16x16xf32> -> vector<16x16xf32>
    %cst_29 = arith.constant 0xFF800000 : f32
    %100 = vector.broadcast %cst_29 : f32 to vector<16x16xf32>
    %101 = arith.select %29, %99, %100 : vector<16x16xi1>, vector<16x16xf32>
    %cst_30 = arith.constant dense<0xFF800000> : vector<16xf32>
    %102 = vector.multi_reduction <maximumf>, %101, %cst_30 [1] : vector<16x16xf32> to vector<16xf32>
    %103 = vector.shape_cast %102 : vector<16xf32> to vector<16x1xf32>
    %104 = vector.broadcast %103 : vector<16x1xf32> to vector<16x16xf32>
    %105 = arith.subf %101, %104 : vector<16x16xf32>
    %106 = math.exp %105 : vector<16x16xf32>
    %cst_31 = arith.constant dense<0.000000e+00> : vector<16xf32>
    %107 = vector.multi_reduction <add>, %106, %cst_31 [1] : vector<16x16xf32> to vector<16xf32>
    %108 = vector.shape_cast %107 : vector<16xf32> to vector<16x1xf32>
    %109 = tpu.reciprocal %108 {approx = true} : vector<16x1xf32> -> vector<16x1xf32>
    %110 = vector.broadcast %109 : vector<16x1xf32> to vector<16x16xf32>
    %111 = arith.mulf %106, %110 : vector<16x16xf32>
    %112 = arith.truncf %111 : vector<16x16xf32> to vector<16x16xbf16>
    %cst_32 = arith.constant dense<0.000000e+00> : vector<16x24xf32>
    %113 = tpu.matmul %112, %98, %cst_32 {dimension_numbers = #tpu.dot_dimension_numbers<[1], [0], [0], [1], [0, 0, 1, 1], [], []>} : vector<16x16xbf16>, vector<16x24xbf16>, vector<16x24xf32> -> vector<16x24xf32>
    %114 = vector.extract_strided_slice %26 {offsets = [0, 96], sizes = [16, 24], strides = [1, 1]} : vector<16x864xf32> to vector<16x24xf32>
    %115 = arith.truncf %114 : vector<16x24xf32> to vector<16x24xbf16>
    %116 = vector.extract_strided_slice %26 {offsets = [0, 384], sizes = [16, 24], strides = [1, 1]} : vector<16x864xf32> to vector<16x24xf32>
    %117 = arith.truncf %116 : vector<16x24xf32> to vector<16x24xbf16>
    %118 = vector.extract_strided_slice %26 {offsets = [0, 672], sizes = [16, 24], strides = [1, 1]} : vector<16x864xf32> to vector<16x24xf32>
    %119 = arith.truncf %118 : vector<16x24xf32> to vector<16x24xbf16>
    %cst_33 = arith.constant dense<0.000000e+00> : vector<16x16xf32>
    %120 = tpu.matmul %115, %117, %cst_33 {dimension_numbers = #tpu.dot_dimension_numbers<[1], [1], [0], [0], [0, 0, 1, 0], [], []>} : vector<16x24xbf16>, vector<16x24xbf16>, vector<16x16xf32> -> vector<16x16xf32>
    %cst_34 = arith.constant 0xFF800000 : f32
    %121 = vector.broadcast %cst_34 : f32 to vector<16x16xf32>
    %122 = arith.select %29, %120, %121 : vector<16x16xi1>, vector<16x16xf32>
    %cst_35 = arith.constant dense<0xFF800000> : vector<16xf32>
    %123 = vector.multi_reduction <maximumf>, %122, %cst_35 [1] : vector<16x16xf32> to vector<16xf32>
    %124 = vector.shape_cast %123 : vector<16xf32> to vector<16x1xf32>
    %125 = vector.broadcast %124 : vector<16x1xf32> to vector<16x16xf32>
    %126 = arith.subf %122, %125 : vector<16x16xf32>
    %127 = math.exp %126 : vector<16x16xf32>
    %cst_36 = arith.constant dense<0.000000e+00> : vector<16xf32>
    %128 = vector.multi_reduction <add>, %127, %cst_36 [1] : vector<16x16xf32> to vector<16xf32>
    %129 = vector.shape_cast %128 : vector<16xf32> to vector<16x1xf32>
    %130 = tpu.reciprocal %129 {approx = true} : vector<16x1xf32> -> vector<16x1xf32>
    %131 = vector.broadcast %130 : vector<16x1xf32> to vector<16x16xf32>
    %132 = arith.mulf %127, %131 : vector<16x16xf32>
    %133 = arith.truncf %132 : vector<16x16xf32> to vector<16x16xbf16>
    %cst_37 = arith.constant dense<0.000000e+00> : vector<16x24xf32>
    %134 = tpu.matmul %133, %119, %cst_37 {dimension_numbers = #tpu.dot_dimension_numbers<[1], [0], [0], [1], [0, 0, 1, 1], [], []>} : vector<16x16xbf16>, vector<16x24xbf16>, vector<16x24xf32> -> vector<16x24xf32>
    %135 = vector.extract_strided_slice %26 {offsets = [0, 120], sizes = [16, 24], strides = [1, 1]} : vector<16x864xf32> to vector<16x24xf32>
    %136 = arith.truncf %135 : vector<16x24xf32> to vector<16x24xbf16>
    %137 = vector.extract_strided_slice %26 {offsets = [0, 408], sizes = [16, 24], strides = [1, 1]} : vector<16x864xf32> to vector<16x24xf32>
    %138 = arith.truncf %137 : vector<16x24xf32> to vector<16x24xbf16>
    %139 = vector.extract_strided_slice %26 {offsets = [0, 696], sizes = [16, 24], strides = [1, 1]} : vector<16x864xf32> to vector<16x24xf32>
    %140 = arith.truncf %139 : vector<16x24xf32> to vector<16x24xbf16>
    %cst_38 = arith.constant dense<0.000000e+00> : vector<16x16xf32>
    %141 = tpu.matmul %136, %138, %cst_38 {dimension_numbers = #tpu.dot_dimension_numbers<[1], [1], [0], [0], [0, 0, 1, 0], [], []>} : vector<16x24xbf16>, vector<16x24xbf16>, vector<16x16xf32> -> vector<16x16xf32>
    %cst_39 = arith.constant 0xFF800000 : f32
    %142 = vector.broadcast %cst_39 : f32 to vector<16x16xf32>
    %143 = arith.select %29, %141, %142 : vector<16x16xi1>, vector<16x16xf32>
    %cst_40 = arith.constant dense<0xFF800000> : vector<16xf32>
    %144 = vector.multi_reduction <maximumf>, %143, %cst_40 [1] : vector<16x16xf32> to vector<16xf32>
    %145 = vector.shape_cast %144 : vector<16xf32> to vector<16x1xf32>
    %146 = vector.broadcast %145 : vector<16x1xf32> to vector<16x16xf32>
    %147 = arith.subf %143, %146 : vector<16x16xf32>
    %148 = math.exp %147 : vector<16x16xf32>
    %cst_41 = arith.constant dense<0.000000e+00> : vector<16xf32>
    %149 = vector.multi_reduction <add>, %148, %cst_41 [1] : vector<16x16xf32> to vector<16xf32>
    %150 = vector.shape_cast %149 : vector<16xf32> to vector<16x1xf32>
    %151 = tpu.reciprocal %150 {approx = true} : vector<16x1xf32> -> vector<16x1xf32>
    %152 = vector.broadcast %151 : vector<16x1xf32> to vector<16x16xf32>
    %153 = arith.mulf %148, %152 : vector<16x16xf32>
    %154 = arith.truncf %153 : vector<16x16xf32> to vector<16x16xbf16>
    %cst_42 = arith.constant dense<0.000000e+00> : vector<16x24xf32>
    %155 = tpu.matmul %154, %140, %cst_42 {dimension_numbers = #tpu.dot_dimension_numbers<[1], [0], [0], [1], [0, 0, 1, 1], [], []>} : vector<16x16xbf16>, vector<16x24xbf16>, vector<16x24xf32> -> vector<16x24xf32>
    %156 = vector.extract_strided_slice %26 {offsets = [0, 144], sizes = [16, 24], strides = [1, 1]} : vector<16x864xf32> to vector<16x24xf32>
    %157 = arith.truncf %156 : vector<16x24xf32> to vector<16x24xbf16>
    %158 = vector.extract_strided_slice %26 {offsets = [0, 432], sizes = [16, 24], strides = [1, 1]} : vector<16x864xf32> to vector<16x24xf32>
    %159 = arith.truncf %158 : vector<16x24xf32> to vector<16x24xbf16>
    %160 = vector.extract_strided_slice %26 {offsets = [0, 720], sizes = [16, 24], strides = [1, 1]} : vector<16x864xf32> to vector<16x24xf32>
    %161 = arith.truncf %160 : vector<16x24xf32> to vector<16x24xbf16>
    %cst_43 = arith.constant dense<0.000000e+00> : vector<16x16xf32>
    %162 = tpu.matmul %157, %159, %cst_43 {dimension_numbers = #tpu.dot_dimension_numbers<[1], [1], [0], [0], [0, 0, 1, 0], [], []>} : vector<16x24xbf16>, vector<16x24xbf16>, vector<16x16xf32> -> vector<16x16xf32>
    %cst_44 = arith.constant 0xFF800000 : f32
    %163 = vector.broadcast %cst_44 : f32 to vector<16x16xf32>
    %164 = arith.select %29, %162, %163 : vector<16x16xi1>, vector<16x16xf32>
    %cst_45 = arith.constant dense<0xFF800000> : vector<16xf32>
    %165 = vector.multi_reduction <maximumf>, %164, %cst_45 [1] : vector<16x16xf32> to vector<16xf32>
    %166 = vector.shape_cast %165 : vector<16xf32> to vector<16x1xf32>
    %167 = vector.broadcast %166 : vector<16x1xf32> to vector<16x16xf32>
    %168 = arith.subf %164, %167 : vector<16x16xf32>
    %169 = math.exp %168 : vector<16x16xf32>
    %cst_46 = arith.constant dense<0.000000e+00> : vector<16xf32>
    %170 = vector.multi_reduction <add>, %169, %cst_46 [1] : vector<16x16xf32> to vector<16xf32>
    %171 = vector.shape_cast %170 : vector<16xf32> to vector<16x1xf32>
    %172 = tpu.reciprocal %171 {approx = true} : vector<16x1xf32> -> vector<16x1xf32>
    %173 = vector.broadcast %172 : vector<16x1xf32> to vector<16x16xf32>
    %174 = arith.mulf %169, %173 : vector<16x16xf32>
    %175 = arith.truncf %174 : vector<16x16xf32> to vector<16x16xbf16>
    %cst_47 = arith.constant dense<0.000000e+00> : vector<16x24xf32>
    %176 = tpu.matmul %175, %161, %cst_47 {dimension_numbers = #tpu.dot_dimension_numbers<[1], [0], [0], [1], [0, 0, 1, 1], [], []>} : vector<16x16xbf16>, vector<16x24xbf16>, vector<16x24xf32> -> vector<16x24xf32>
    %177 = vector.extract_strided_slice %26 {offsets = [0, 168], sizes = [16, 24], strides = [1, 1]} : vector<16x864xf32> to vector<16x24xf32>
    %178 = arith.truncf %177 : vector<16x24xf32> to vector<16x24xbf16>
    %179 = vector.extract_strided_slice %26 {offsets = [0, 456], sizes = [16, 24], strides = [1, 1]} : vector<16x864xf32> to vector<16x24xf32>
    %180 = arith.truncf %179 : vector<16x24xf32> to vector<16x24xbf16>
    %181 = vector.extract_strided_slice %26 {offsets = [0, 744], sizes = [16, 24], strides = [1, 1]} : vector<16x864xf32> to vector<16x24xf32>
    %182 = arith.truncf %181 : vector<16x24xf32> to vector<16x24xbf16>
    %cst_48 = arith.constant dense<0.000000e+00> : vector<16x16xf32>
    %183 = tpu.matmul %178, %180, %cst_48 {dimension_numbers = #tpu.dot_dimension_numbers<[1], [1], [0], [0], [0, 0, 1, 0], [], []>} : vector<16x24xbf16>, vector<16x24xbf16>, vector<16x16xf32> -> vector<16x16xf32>
    %cst_49 = arith.constant 0xFF800000 : f32
    %184 = vector.broadcast %cst_49 : f32 to vector<16x16xf32>
    %185 = arith.select %29, %183, %184 : vector<16x16xi1>, vector<16x16xf32>
    %cst_50 = arith.constant dense<0xFF800000> : vector<16xf32>
    %186 = vector.multi_reduction <maximumf>, %185, %cst_50 [1] : vector<16x16xf32> to vector<16xf32>
    %187 = vector.shape_cast %186 : vector<16xf32> to vector<16x1xf32>
    %188 = vector.broadcast %187 : vector<16x1xf32> to vector<16x16xf32>
    %189 = arith.subf %185, %188 : vector<16x16xf32>
    %190 = math.exp %189 : vector<16x16xf32>
    %cst_51 = arith.constant dense<0.000000e+00> : vector<16xf32>
    %191 = vector.multi_reduction <add>, %190, %cst_51 [1] : vector<16x16xf32> to vector<16xf32>
    %192 = vector.shape_cast %191 : vector<16xf32> to vector<16x1xf32>
    %193 = tpu.reciprocal %192 {approx = true} : vector<16x1xf32> -> vector<16x1xf32>
    %194 = vector.broadcast %193 : vector<16x1xf32> to vector<16x16xf32>
    %195 = arith.mulf %190, %194 : vector<16x16xf32>
    %196 = arith.truncf %195 : vector<16x16xf32> to vector<16x16xbf16>
    %cst_52 = arith.constant dense<0.000000e+00> : vector<16x24xf32>
    %197 = tpu.matmul %196, %182, %cst_52 {dimension_numbers = #tpu.dot_dimension_numbers<[1], [0], [0], [1], [0, 0, 1, 1], [], []>} : vector<16x16xbf16>, vector<16x24xbf16>, vector<16x24xf32> -> vector<16x24xf32>
    %198 = vector.extract_strided_slice %26 {offsets = [0, 192], sizes = [16, 24], strides = [1, 1]} : vector<16x864xf32> to vector<16x24xf32>
    %199 = arith.truncf %198 : vector<16x24xf32> to vector<16x24xbf16>
    %200 = vector.extract_strided_slice %26 {offsets = [0, 480], sizes = [16, 24], strides = [1, 1]} : vector<16x864xf32> to vector<16x24xf32>
    %201 = arith.truncf %200 : vector<16x24xf32> to vector<16x24xbf16>
    %202 = vector.extract_strided_slice %26 {offsets = [0, 768], sizes = [16, 24], strides = [1, 1]} : vector<16x864xf32> to vector<16x24xf32>
    %203 = arith.truncf %202 : vector<16x24xf32> to vector<16x24xbf16>
    %cst_53 = arith.constant dense<0.000000e+00> : vector<16x16xf32>
    %204 = tpu.matmul %199, %201, %cst_53 {dimension_numbers = #tpu.dot_dimension_numbers<[1], [1], [0], [0], [0, 0, 1, 0], [], []>} : vector<16x24xbf16>, vector<16x24xbf16>, vector<16x16xf32> -> vector<16x16xf32>
    %cst_54 = arith.constant 0xFF800000 : f32
    %205 = vector.broadcast %cst_54 : f32 to vector<16x16xf32>
    %206 = arith.select %29, %204, %205 : vector<16x16xi1>, vector<16x16xf32>
    %cst_55 = arith.constant dense<0xFF800000> : vector<16xf32>
    %207 = vector.multi_reduction <maximumf>, %206, %cst_55 [1] : vector<16x16xf32> to vector<16xf32>
    %208 = vector.shape_cast %207 : vector<16xf32> to vector<16x1xf32>
    %209 = vector.broadcast %208 : vector<16x1xf32> to vector<16x16xf32>
    %210 = arith.subf %206, %209 : vector<16x16xf32>
    %211 = math.exp %210 : vector<16x16xf32>
    %cst_56 = arith.constant dense<0.000000e+00> : vector<16xf32>
    %212 = vector.multi_reduction <add>, %211, %cst_56 [1] : vector<16x16xf32> to vector<16xf32>
    %213 = vector.shape_cast %212 : vector<16xf32> to vector<16x1xf32>
    %214 = tpu.reciprocal %213 {approx = true} : vector<16x1xf32> -> vector<16x1xf32>
    %215 = vector.broadcast %214 : vector<16x1xf32> to vector<16x16xf32>
    %216 = arith.mulf %211, %215 : vector<16x16xf32>
    %217 = arith.truncf %216 : vector<16x16xf32> to vector<16x16xbf16>
    %cst_57 = arith.constant dense<0.000000e+00> : vector<16x24xf32>
    %218 = tpu.matmul %217, %203, %cst_57 {dimension_numbers = #tpu.dot_dimension_numbers<[1], [0], [0], [1], [0, 0, 1, 1], [], []>} : vector<16x16xbf16>, vector<16x24xbf16>, vector<16x24xf32> -> vector<16x24xf32>
    %219 = vector.extract_strided_slice %26 {offsets = [0, 216], sizes = [16, 24], strides = [1, 1]} : vector<16x864xf32> to vector<16x24xf32>
    %220 = arith.truncf %219 : vector<16x24xf32> to vector<16x24xbf16>
    %221 = vector.extract_strided_slice %26 {offsets = [0, 504], sizes = [16, 24], strides = [1, 1]} : vector<16x864xf32> to vector<16x24xf32>
    %222 = arith.truncf %221 : vector<16x24xf32> to vector<16x24xbf16>
    %223 = vector.extract_strided_slice %26 {offsets = [0, 792], sizes = [16, 24], strides = [1, 1]} : vector<16x864xf32> to vector<16x24xf32>
    %224 = arith.truncf %223 : vector<16x24xf32> to vector<16x24xbf16>
    %cst_58 = arith.constant dense<0.000000e+00> : vector<16x16xf32>
    %225 = tpu.matmul %220, %222, %cst_58 {dimension_numbers = #tpu.dot_dimension_numbers<[1], [1], [0], [0], [0, 0, 1, 0], [], []>} : vector<16x24xbf16>, vector<16x24xbf16>, vector<16x16xf32> -> vector<16x16xf32>
    %cst_59 = arith.constant 0xFF800000 : f32
    %226 = vector.broadcast %cst_59 : f32 to vector<16x16xf32>
    %227 = arith.select %29, %225, %226 : vector<16x16xi1>, vector<16x16xf32>
    %cst_60 = arith.constant dense<0xFF800000> : vector<16xf32>
    %228 = vector.multi_reduction <maximumf>, %227, %cst_60 [1] : vector<16x16xf32> to vector<16xf32>
    %229 = vector.shape_cast %228 : vector<16xf32> to vector<16x1xf32>
    %230 = vector.broadcast %229 : vector<16x1xf32> to vector<16x16xf32>
    %231 = arith.subf %227, %230 : vector<16x16xf32>
    %232 = math.exp %231 : vector<16x16xf32>
    %cst_61 = arith.constant dense<0.000000e+00> : vector<16xf32>
    %233 = vector.multi_reduction <add>, %232, %cst_61 [1] : vector<16x16xf32> to vector<16xf32>
    %234 = vector.shape_cast %233 : vector<16xf32> to vector<16x1xf32>
    %235 = tpu.reciprocal %234 {approx = true} : vector<16x1xf32> -> vector<16x1xf32>
    %236 = vector.broadcast %235 : vector<16x1xf32> to vector<16x16xf32>
    %237 = arith.mulf %232, %236 : vector<16x16xf32>
    %238 = arith.truncf %237 : vector<16x16xf32> to vector<16x16xbf16>
    %cst_62 = arith.constant dense<0.000000e+00> : vector<16x24xf32>
    %239 = tpu.matmul %238, %224, %cst_62 {dimension_numbers = #tpu.dot_dimension_numbers<[1], [0], [0], [1], [0, 0, 1, 1], [], []>} : vector<16x16xbf16>, vector<16x24xbf16>, vector<16x24xf32> -> vector<16x24xf32>
    %240 = vector.extract_strided_slice %26 {offsets = [0, 240], sizes = [16, 24], strides = [1, 1]} : vector<16x864xf32> to vector<16x24xf32>
    %241 = arith.truncf %240 : vector<16x24xf32> to vector<16x24xbf16>
    %242 = vector.extract_strided_slice %26 {offsets = [0, 528], sizes = [16, 24], strides = [1, 1]} : vector<16x864xf32> to vector<16x24xf32>
    %243 = arith.truncf %242 : vector<16x24xf32> to vector<16x24xbf16>
    %244 = vector.extract_strided_slice %26 {offsets = [0, 816], sizes = [16, 24], strides = [1, 1]} : vector<16x864xf32> to vector<16x24xf32>
    %245 = arith.truncf %244 : vector<16x24xf32> to vector<16x24xbf16>
    %cst_63 = arith.constant dense<0.000000e+00> : vector<16x16xf32>
    %246 = tpu.matmul %241, %243, %cst_63 {dimension_numbers = #tpu.dot_dimension_numbers<[1], [1], [0], [0], [0, 0, 1, 0], [], []>} : vector<16x24xbf16>, vector<16x24xbf16>, vector<16x16xf32> -> vector<16x16xf32>
    %cst_64 = arith.constant 0xFF800000 : f32
    %247 = vector.broadcast %cst_64 : f32 to vector<16x16xf32>
    %248 = arith.select %29, %246, %247 : vector<16x16xi1>, vector<16x16xf32>
    %cst_65 = arith.constant dense<0xFF800000> : vector<16xf32>
    %249 = vector.multi_reduction <maximumf>, %248, %cst_65 [1] : vector<16x16xf32> to vector<16xf32>
    %250 = vector.shape_cast %249 : vector<16xf32> to vector<16x1xf32>
    %251 = vector.broadcast %250 : vector<16x1xf32> to vector<16x16xf32>
    %252 = arith.subf %248, %251 : vector<16x16xf32>
    %253 = math.exp %252 : vector<16x16xf32>
    %cst_66 = arith.constant dense<0.000000e+00> : vector<16xf32>
    %254 = vector.multi_reduction <add>, %253, %cst_66 [1] : vector<16x16xf32> to vector<16xf32>
    %255 = vector.shape_cast %254 : vector<16xf32> to vector<16x1xf32>
    %256 = tpu.reciprocal %255 {approx = true} : vector<16x1xf32> -> vector<16x1xf32>
    %257 = vector.broadcast %256 : vector<16x1xf32> to vector<16x16xf32>
    %258 = arith.mulf %253, %257 : vector<16x16xf32>
    %259 = arith.truncf %258 : vector<16x16xf32> to vector<16x16xbf16>
    %cst_67 = arith.constant dense<0.000000e+00> : vector<16x24xf32>
    %260 = tpu.matmul %259, %245, %cst_67 {dimension_numbers = #tpu.dot_dimension_numbers<[1], [0], [0], [1], [0, 0, 1, 1], [], []>} : vector<16x16xbf16>, vector<16x24xbf16>, vector<16x24xf32> -> vector<16x24xf32>
    %261 = vector.extract_strided_slice %26 {offsets = [0, 264], sizes = [16, 24], strides = [1, 1]} : vector<16x864xf32> to vector<16x24xf32>
    %262 = arith.truncf %261 : vector<16x24xf32> to vector<16x24xbf16>
    %263 = vector.extract_strided_slice %26 {offsets = [0, 552], sizes = [16, 24], strides = [1, 1]} : vector<16x864xf32> to vector<16x24xf32>
    %264 = arith.truncf %263 : vector<16x24xf32> to vector<16x24xbf16>
    %265 = vector.extract_strided_slice %26 {offsets = [0, 840], sizes = [16, 24], strides = [1, 1]} : vector<16x864xf32> to vector<16x24xf32>
    %266 = arith.truncf %265 : vector<16x24xf32> to vector<16x24xbf16>
    %cst_68 = arith.constant dense<0.000000e+00> : vector<16x16xf32>
    %267 = tpu.matmul %262, %264, %cst_68 {dimension_numbers = #tpu.dot_dimension_numbers<[1], [1], [0], [0], [0, 0, 1, 0], [], []>} : vector<16x24xbf16>, vector<16x24xbf16>, vector<16x16xf32> -> vector<16x16xf32>
    %cst_69 = arith.constant 0xFF800000 : f32
    %268 = vector.broadcast %cst_69 : f32 to vector<16x16xf32>
    %269 = arith.select %29, %267, %268 : vector<16x16xi1>, vector<16x16xf32>
    %cst_70 = arith.constant dense<0xFF800000> : vector<16xf32>
    %270 = vector.multi_reduction <maximumf>, %269, %cst_70 [1] : vector<16x16xf32> to vector<16xf32>
    %271 = vector.shape_cast %270 : vector<16xf32> to vector<16x1xf32>
    %272 = vector.broadcast %271 : vector<16x1xf32> to vector<16x16xf32>
    %273 = arith.subf %269, %272 : vector<16x16xf32>
    %274 = math.exp %273 : vector<16x16xf32>
    %cst_71 = arith.constant dense<0.000000e+00> : vector<16xf32>
    %275 = vector.multi_reduction <add>, %274, %cst_71 [1] : vector<16x16xf32> to vector<16xf32>
    %276 = vector.shape_cast %275 : vector<16xf32> to vector<16x1xf32>
    %277 = tpu.reciprocal %276 {approx = true} : vector<16x1xf32> -> vector<16x1xf32>
    %278 = vector.broadcast %277 : vector<16x1xf32> to vector<16x16xf32>
    %279 = arith.mulf %274, %278 : vector<16x16xf32>
    %280 = arith.truncf %279 : vector<16x16xf32> to vector<16x16xbf16>
    %cst_72 = arith.constant dense<0.000000e+00> : vector<16x24xf32>
    %281 = tpu.matmul %280, %266, %cst_72 {dimension_numbers = #tpu.dot_dimension_numbers<[1], [0], [0], [1], [0, 0, 1, 1], [], []>} : vector<16x16xbf16>, vector<16x24xbf16>, vector<16x24xf32> -> vector<16x24xf32>
    %282 = tpu.concatenate %50, %71, %92, %113, %134, %155, %176, %197, %218, %239, %260, %281 in 1 : vector<16x24xf32>, vector<16x24xf32>, vector<16x24xf32>, vector<16x24xf32>, vector<16x24xf32>, vector<16x24xf32>, vector<16x24xf32>, vector<16x24xf32>, vector<16x24xf32>, vector<16x24xf32>, vector<16x24xf32>, vector<16x24xf32> -> vector<16x288xf32>
    %283 = arith.truncf %282 : vector<16x288xf32> to vector<16x288xbf16>
    %c0_73 = arith.constant 0 : index
    %c0_74 = arith.constant 0 : index
    %284 = vector.load %arg5[%c0_73, %c0_74] : memref<288x288xbf16, #tpu.memory_space<vmem>>, vector<288x288xbf16>
    %cst_75 = arith.constant dense<0.000000e+00> : vector<16x288xf32>
    %285 = tpu.matmul %283, %284, %cst_75 {dimension_numbers = #tpu.dot_dimension_numbers<[1], [0], [0], [1], [0, 0, 1, 1], [], []>} : vector<16x288xbf16>, vector<288x288xbf16>, vector<16x288xf32> -> vector<16x288xf32>
    %c0_76 = arith.constant 0 : index
    %c0_77 = arith.constant 0 : index
    %286 = vector.load %arg6[%c0_76, %c0_77] : memref<1x288xf32, #tpu.memory_space<vmem>>, vector<1x288xf32>
    %287 = vector.broadcast %286 : vector<1x288xf32> to vector<16x288xf32>
    %288 = arith.addf %285, %287 : vector<16x288xf32>
    %289 = arith.addf %1, %288 : vector<16x288xf32>
    %c0_78 = arith.constant 0 : index
    %c0_79 = arith.constant 0 : index
    %290 = vector.load %arg7[%c0_78, %c0_79] : memref<1x288xf32, #tpu.memory_space<vmem>>, vector<1x288xf32>
    %c0_80 = arith.constant 0 : index
    %c0_81 = arith.constant 0 : index
    %291 = vector.load %arg8[%c0_80, %c0_81] : memref<1x288xf32, #tpu.memory_space<vmem>>, vector<1x288xf32>
    %cst_82 = arith.constant dense<0.000000e+00> : vector<16xf32>
    %292 = vector.multi_reduction <add>, %289, %cst_82 [1] : vector<16x288xf32> to vector<16xf32>
    %293 = vector.shape_cast %292 : vector<16xf32> to vector<16x1xf32>
    %cst_83 = arith.constant 2.880000e+02 : f32
    %294 = vector.broadcast %cst_83 : f32 to vector<16x1xf32>
    %295 = arith.divf %293, %294 : vector<16x1xf32>
    %296 = vector.broadcast %295 : vector<16x1xf32> to vector<16x288xf32>
    %297 = arith.subf %289, %296 : vector<16x288xf32>
    %298 = arith.mulf %297, %297 : vector<16x288xf32>
    %cst_84 = arith.constant dense<0.000000e+00> : vector<16xf32>
    %299 = vector.multi_reduction <add>, %298, %cst_84 [1] : vector<16x288xf32> to vector<16xf32>
    %300 = vector.shape_cast %299 : vector<16xf32> to vector<16x1xf32>
    %cst_85 = arith.constant 2.880000e+02 : f32
    %301 = vector.broadcast %cst_85 : f32 to vector<16x1xf32>
    %302 = arith.divf %300, %301 : vector<16x1xf32>
    %cst_86 = arith.constant 9.99999974E-6 : f32
    %303 = vector.broadcast %cst_86 : f32 to vector<16x1xf32>
    %304 = arith.addf %302, %303 : vector<16x1xf32>
    %305 = math.rsqrt %304 : vector<16x1xf32>
    %306 = vector.broadcast %305 : vector<16x1xf32> to vector<16x288xf32>
    %307 = arith.mulf %297, %306 : vector<16x288xf32>
    %308 = vector.broadcast %290 : vector<1x288xf32> to vector<16x288xf32>
    %309 = arith.mulf %307, %308 : vector<16x288xf32>
    %310 = vector.broadcast %291 : vector<1x288xf32> to vector<16x288xf32>
    %311 = arith.addf %309, %310 : vector<16x288xf32>
    %312 = arith.truncf %311 : vector<16x288xf32> to vector<16x288xbf16>
    %c0_87 = arith.constant 0 : index
    %c0_88 = arith.constant 0 : index
    %313 = vector.load %arg9[%c0_87, %c0_88] : memref<288x1152xbf16, #tpu.memory_space<vmem>>, vector<288x1152xbf16>
    %cst_89 = arith.constant dense<0.000000e+00> : vector<16x1152xf32>
    %314 = tpu.matmul %312, %313, %cst_89 {dimension_numbers = #tpu.dot_dimension_numbers<[1], [0], [0], [1], [0, 0, 1, 1], [], []>} : vector<16x288xbf16>, vector<288x1152xbf16>, vector<16x1152xf32> -> vector<16x1152xf32>
    %c0_90 = arith.constant 0 : index
    %c0_91 = arith.constant 0 : index
    %315 = vector.load %arg10[%c0_90, %c0_91] : memref<1x1152xf32, #tpu.memory_space<vmem>>, vector<1x1152xf32>
    %316 = vector.broadcast %315 : vector<1x1152xf32> to vector<16x1152xf32>
    %317 = arith.addf %314, %316 : vector<16x1152xf32>
    %cst_92 = arith.constant 0.000000e+00 : f32
    %318 = vector.broadcast %cst_92 : f32 to vector<16x1152xf32>
    %319 = arith.maximumf %317, %318 : vector<16x1152xf32>
    %320 = arith.truncf %319 : vector<16x1152xf32> to vector<16x1152xbf16>
    %c0_93 = arith.constant 0 : index
    %c0_94 = arith.constant 0 : index
    %321 = vector.load %arg11[%c0_93, %c0_94] : memref<1152x288xbf16, #tpu.memory_space<vmem>>, vector<1152x288xbf16>
    %cst_95 = arith.constant dense<0.000000e+00> : vector<16x288xf32>
    %322 = tpu.matmul %320, %321, %cst_95 {dimension_numbers = #tpu.dot_dimension_numbers<[1], [0], [0], [1], [0, 0, 1, 1], [], []>} : vector<16x1152xbf16>, vector<1152x288xbf16>, vector<16x288xf32> -> vector<16x288xf32>
    %c0_96 = arith.constant 0 : index
    %c0_97 = arith.constant 0 : index
    %323 = vector.load %arg12[%c0_96, %c0_97] : memref<1x288xf32, #tpu.memory_space<vmem>>, vector<1x288xf32>
    %324 = vector.broadcast %323 : vector<1x288xf32> to vector<16x288xf32>
    %325 = arith.addf %322, %324 : vector<16x288xf32>
    %326 = arith.addf %289, %325 : vector<16x288xf32>
    %c0_98 = arith.constant 0 : index
    %c0_99 = arith.constant 0 : index
    %c0_100 = arith.constant 0 : index
    %327 = vector.load %arg13[%c0_98, %c0_99, %c0_100] : memref<1x16x288xf32, #tpu.memory_space<vmem>>, vector<1x16x288xf32>
    %328 = vector.shape_cast %327 : vector<1x16x288xf32> to vector<16x288xf32>
    %329 = vector.shape_cast %326 : vector<16x288xf32> to vector<1x16x288xf32>
    tpu.vector_store %arg13[%c0_98, %c0_99, %c0_100], %329 {strides = array<i32>} : memref<1x16x288xf32, #tpu.memory_space<vmem>>, vector<1x16x288xf32>,
    return
  }
  func.func @transform_0(%arg0: i32) -> (i32, i32, i32) {
    %c0_i32 = arith.constant 0 : i32
    %c0_i32_0 = arith.constant 0 : i32
    %c0_i32_1 = arith.constant 0 : i32
    return %arg0, %c0_i32, %c0_i32_0 : i32, i32, i32
  }
  func.func @transform_1(%arg0: i32) -> (i32, i32) {
    %c0_i32 = arith.constant 0 : i32
    %c0_i32_0 = arith.constant 0 : i32
    %c0_i32_1 = arith.constant 0 : i32
    return %c0_i32, %c0_i32_0 : i32, i32
  }
  func.func @transform_2(%arg0: i32) -> (i32, i32) {
    %c0_i32 = arith.constant 0 : i32
    %c0_i32_0 = arith.constant 0 : i32
    %c0_i32_1 = arith.constant 0 : i32
    return %c0_i32, %c0_i32_0 : i32, i32
  }
  func.func @transform_3(%arg0: i32) -> (i32, i32) {
    %c0_i32 = arith.constant 0 : i32
    %c0_i32_0 = arith.constant 0 : i32
    %c0_i32_1 = arith.constant 0 : i32
    return %c0_i32, %c0_i32_0 : i32, i32
  }
  func.func @transform_4(%arg0: i32) -> (i32, i32) {
    %c0_i32 = arith.constant 0 : i32
    %c0_i32_0 = arith.constant 0 : i32
    %c0_i32_1 = arith.constant 0 : i32
    return %c0_i32, %c0_i32_0 : i32, i32
  }
  func.func @transform_5(%arg0: i32) -> (i32, i32) {
    %c0_i32 = arith.constant 0 : i32
    %c0_i32_0 = arith.constant 0 : i32
    %c0_i32_1 = arith.constant 0 : i32
    return %c0_i32, %c0_i32_0 : i32, i32
  }
  func.func @transform_6(%arg0: i32) -> (i32, i32) {
    %c0_i32 = arith.constant 0 : i32
    %c0_i32_0 = arith.constant 0 : i32
    %c0_i32_1 = arith.constant 0 : i32
    return %c0_i32, %c0_i32_0 : i32, i32
  }
  func.func @transform_7(%arg0: i32) -> (i32, i32) {
    %c0_i32 = arith.constant 0 : i32
    %c0_i32_0 = arith.constant 0 : i32
    %c0_i32_1 = arith.constant 0 : i32
    return %c0_i32, %c0_i32_0 : i32, i32
  }
  func.func @transform_8(%arg0: i32) -> (i32, i32) {
    %c0_i32 = arith.constant 0 : i32
    %c0_i32_0 = arith.constant 0 : i32
    %c0_i32_1 = arith.constant 0 : i32
    return %c0_i32, %c0_i32_0 : i32, i32
  }
  func.func @transform_9(%arg0: i32) -> (i32, i32) {
    %c0_i32 = arith.constant 0 : i32
    %c0_i32_0 = arith.constant 0 : i32
    %c0_i32_1 = arith.constant 0 : i32
    return %c0_i32, %c0_i32_0 : i32, i32
  }
  func.func @transform_10(%arg0: i32) -> (i32, i32) {
    %c0_i32 = arith.constant 0 : i32
    %c0_i32_0 = arith.constant 0 : i32
    %c0_i32_1 = arith.constant 0 : i32
    return %c0_i32, %c0_i32_0 : i32, i32
  }
  func.func @transform_11(%arg0: i32) -> (i32, i32) {
    %c0_i32 = arith.constant 0 : i32
    %c0_i32_0 = arith.constant 0 : i32
    %c0_i32_1 = arith.constant 0 : i32
    return %c0_i32, %c0_i32_0 : i32, i32
  }
  func.func @transform_12(%arg0: i32) -> (i32, i32, i32) {
    %c0_i32 = arith.constant 0 : i32
    %c0_i32_0 = arith.constant 0 : i32
    %c0_i32_1 = arith.constant 0 : i32
    return %arg0, %c0_i32, %c0_i32_0 : i32, i32, i32
  }
}

</mosaic_0001>

<llo_original>
// kernel: transformer_block.1
$region0: #{transformer_block.1}
  #allocation0 [shape = 'u32[]', space=smem, size = 0x4, offset = 0x4, fixed_abs, tag = 'smem constant byte address 0x4 - core index']
  #allocation1 [shape = 'u32[144,128]{1,0:T(1,128)}', space=vmem, size = 0x12000, scoped, tag = 'internal scratch']
  %s0 = inlined_call_operand.vmem [shape: f32[2,16,288], index: 0, kind: input, shape index: {}]
  %s1 = inlined_call_operand.vmem [shape: f32[1,288], index: 1, kind: input, shape index: {}]
  %s2 = inlined_call_operand.vmem [shape: f32[1,288], index: 2, kind: input, shape index: {}]
  %s3 = inlined_call_operand.vmem [shape: bf16[288,864], index: 3, kind: input, shape index: {}]
  %s4 = inlined_call_operand.vmem [shape: bf16[288,288], index: 4, kind: input, shape index: {}]
  %s5 = inlined_call_operand.vmem [shape: f32[1,288], index: 5, kind: input, shape index: {}]
  %s6 = inlined_call_operand.vmem [shape: f32[1,288], index: 6, kind: input, shape index: {}]
  %s7 = inlined_call_operand.vmem [shape: f32[1,288], index: 7, kind: input, shape index: {}]
  %s8 = inlined_call_operand.vmem [shape: bf16[288,1152], index: 8, kind: input, shape index: {}]
  %s9 = inlined_call_operand.vmem [shape: f32[1,1152], index: 9, kind: input, shape index: {}]
  %s10 = inlined_call_operand.vmem [shape: bf16[1152,288], index: 10, kind: input, shape index: {}]
  %s11 = inlined_call_operand.vmem [shape: f32[1,288], index: 11, kind: input, shape index: {}]
  %s12 = inlined_call_operand.hbm [shape: f32[2,16,288], index: 12, kind: output, shape index: {}]
  %s13 = sld [smem:[#allocation0]]
  $region81: #{transformer_block.1} parent=0
    _
  %s15 = ssub.s32 1, %s13
  %s16 = scalar_select 0, %s15, %s13
  $region1: #{transformer_block.1} parent=0
    #allocation2 [shape = 'u8[49152]{0}', space=vmem, size = 0xc000, scoped, tag = 'output window, operand 0']
    #allocation3 [shape = 's32[2]{0}', space=sflag, size = 0x8, scoped, tag = 'scoped memory for transformer_block.1']
    %17 = vsyncpa [#allocation3], 0
    %s18 = scalar_lea.sflag [#allocation3], 1
    %19 = vsyncpa %s18, 0
    loop: start=0, step=1, limit=4
    $region2: #{transformer_block.1} parent=1 // loop_pre_header
      _
    $region3: #{transformer_block.1} parent=1 // loop_header
      %s21 = sphi 0, %s25
      %p22 = scmp.ge.s32.totalorder %s21, 4
      %s31 = sphi 0, %s33
      %s34 = sphi 0, %s31
      %s35 = sphi 0, %s34
      %s51 = sphi 0, %s35
      %s55 = sphi 0, %s55
      %s57 = sphi 0, %s55
      %s58 = sphi 0, %s57
      %s72 = sphi 0, %s58
      %s76 = sphi 0, %s76
      %s78 = sphi 0, %s76
      %s79 = sphi 0, %s78
      %s93 = sphi 0, %s79
      %s97 = sphi 0, %s97
      %s99 = sphi 0, %s97
      %s100 = sphi 0, %s99
      %s114 = sphi 0, %s100
      %s118 = sphi 0, %s118
      %s120 = sphi 0, %s118
      %s121 = sphi 0, %s120
      %s135 = sphi 0, %s121
      %s139 = sphi 0, %s139
      %s141 = sphi 0, %s139
      %s142 = sphi 0, %s141
      %s156 = sphi 0, %s142
      %s160 = sphi 0, %s160
      %s162 = sphi 0, %s160
      %s163 = sphi 0, %s162
      %s177 = sphi 0, %s163
      %s181 = sphi 0, %s181
      %s183 = sphi 0, %s181
      %s184 = sphi 0, %s183
      %s198 = sphi 0, %s184
      %s202 = sphi 0, %s202
      %s204 = sphi 0, %s202
      %s205 = sphi 0, %s204
      %s219 = sphi 0, %s205
      %s223 = sphi 0, %s223
      %s225 = sphi 0, %s223
      %s226 = sphi 0, %s225
      %s240 = sphi 0, %s226
      %s244 = sphi 0, %s244
      %s246 = sphi 0, %s244
      %s247 = sphi 0, %s246
      %s261 = sphi 0, %s247
      %s265 = sphi 0, %s265
      %s267 = sphi 0, %s265
      %s268 = sphi 0, %s267
      %s282 = sphi 0, %s268
      %s288 = sphi 0, %s290
      %s291 = sphi 0, %s288
      %s292 = sphi 0, %s291
      %s308 = sphi 0, %s292
    $region4: #{transformer_block.1} parent=1 // loop_header_branch
      %24 = sbr.rel (%p22) target = $region8
    $region5: #{transformer_block.1} parent=1 // loop_body
      %s26 = ssub.s32 %s21, 1
      %s27 = ssub.s32 %s21, 2
      %s28 = sadd.s32 %s21, 1
      %s29 = ssub.s32 %s21, %s28
      %p30 = scmp.eq.s32.totalorder %s29, 0
      %s32 = sadd.s32 %s31, 1
      %s33 = scalar_select %p30, %s31, %s32
      %p36 = pneg %p30
      %p37 = scmp.eq.s32.totalorder %s21, 1
      %p38 = por %p36, %p37
      %p39 = scmp.ne.s32.totalorder %s31, %s34
      %p40 = scmp.eq.s32.totalorder %s21, 0
      %p41 = por %p39, %p40
      %p42 = scmp.ne.s32.totalorder %s31, %s34
      %p43 = scmp.eq.s32.totalorder %s26, 1
      %p44 = por %p42, %p43
      %p45 = scmp.ne.s32.totalorder %s34, %s35
      %p46 = scmp.eq.s32.totalorder %s26, 0
      %p47 = por %p45, %p46
      %p48 = scmp.ne.s32.totalorder %s34, %s35
      %p49 = scmp.eq.s32.totalorder %s27, 1
      %p50 = por %p48, %p49
      %p52 = scmp.ne.s32.totalorder %s35, %s51
      %p53 = scmp.eq.s32.totalorder %s27, 0
      %p54 = por %p52, %p53
      %s56 = sadd.s32 %s55, 1
      %p59 = scmp.eq.s32.totalorder %s21, 1
      %p60 = scmp.ne.s32.totalorder %s55, %s57
      %p61 = scmp.eq.s32.totalorder %s21, 0
      %p62 = por %p60, %p61
      %p63 = scmp.ne.s32.totalorder %s55, %s57
      %p64 = scmp.eq.s32.totalorder %s26, 1
      %p65 = por %p63, %p64
      %p66 = scmp.ne.s32.totalorder %s57, %s58
      %p67 = scmp.eq.s32.totalorder %s26, 0
      %p68 = por %p66, %p67
      %p69 = scmp.ne.s32.totalorder %s57, %s58
      %p70 = scmp.eq.s32.totalorder %s27, 1
      %p71 = por %p69, %p70
      %p73 = scmp.ne.s32.totalorder %s58, %s72
      %p74 = scmp.eq.s32.totalorder %s27, 0
      %p75 = por %p73, %p74
      %s77 = sadd.s32 %s76, 1
      %p80 = scmp.eq.s32.totalorder %s21, 1
      %p81 = scmp.ne.s32.totalorder %s76, %s78
      %p82 = scmp.eq.s32.totalorder %s21, 0
      %p83 = por %p81, %p82
      %p84 = scmp.ne.s32.totalorder %s76, %s78
      %p85 = scmp.eq.s32.totalorder %s26, 1
      %p86 = por %p84, %p85
      %p87 = scmp.ne.s32.totalorder %s78, %s79
      %p88 = scmp.eq.s32.totalorder %s26, 0
      %p89 = por %p87, %p88
      %p90 = scmp.ne.s32.totalorder %s78, %s79
      %p91 = scmp.eq.s32.totalorder %s27, 1
      %p92 = por %p90, %p91
      %p94 = scmp.ne.s32.totalorder %s79, %s93
      %p95 = scmp.eq.s32.totalorder %s27, 0
      %p96 = por %p94, %p95
      %s98 = sadd.s32 %s97, 1
      %p101 = scmp.eq.s32.totalorder %s21, 1
      %p102 = scmp.ne.s32.totalorder %s97, %s99
      %p103 = scmp.eq.s32.totalorder %s21, 0
      %p104 = por %p102, %p103
      %p105 = scmp.ne.s32.totalorder %s97, %s99
      %p106 = scmp.eq.s32.totalorder %s26, 1
      %p107 = por %p105, %p106
      %p108 = scmp.ne.s32.totalorder %s99, %s100
      %p109 = scmp.eq.s32.totalorder %s26, 0
      %p110 = por %p108, %p109
      %p111 = scmp.ne.s32.totalorder %s99, %s100
      %p112 = scmp.eq.s32.totalorder %s27, 1
      %p113 = por %p111, %p112
      %p115 = scmp.ne.s32.totalorder %s100, %s114
      %p116 = scmp.eq.s32.totalorder %s27, 0
      %p117 = por %p115, %p116
      %s119 = sadd.s32 %s118, 1
      %p122 = scmp.eq.s32.totalorder %s21, 1
      %p123 = scmp.ne.s32.totalorder %s118, %s120
      %p124 = scmp.eq.s32.totalorder %s21, 0
      %p125 = por %p123, %p124
      %p126 = scmp.ne.s32.totalorder %s118, %s120
      %p127 = scmp.eq.s32.totalorder %s26, 1
      %p128 = por %p126, %p127
      %p129 = scmp.ne.s32.totalorder %s120, %s121
      %p130 = scmp.eq.s32.totalorder %s26, 0
      %p131 = por %p129, %p130
      %p132 = scmp.ne.s32.totalorder %s120, %s121
      %p133 = scmp.eq.s32.totalorder %s27, 1
      %p134 = por %p132, %p133
      %p136 = scmp.ne.s32.totalorder %s121, %s135
      %p137 = scmp.eq.s32.totalorder %s27, 0
      %p138 = por %p136, %p137
      %s140 = sadd.s32 %s139, 1
      %p143 = scmp.eq.s32.totalorder %s21, 1
      %p144 = scmp.ne.s32.totalorder %s139, %s141
      %p145 = scmp.eq.s32.totalorder %s21, 0
      %p146 = por %p144, %p145
      %p147 = scmp.ne.s32.totalorder %s139, %s141
      %p148 = scmp.eq.s32.totalorder %s26, 1
      %p149 = por %p147, %p148
      %p150 = scmp.ne.s32.totalorder %s141, %s142
      %p151 = scmp.eq.s32.totalorder %s26, 0
      %p152 = por %p150, %p151
      %p153 = scmp.ne.s32.totalorder %s141, %s142
      %p154 = scmp.eq.s32.totalorder %s27, 1
      %p155 = por %p153, %p154
      %p157 = scmp.ne.s32.totalorder %s142, %s156
      %p158 = scmp.eq.s32.totalorder %s27, 0
      %p159 = por %p157, %p158
      %s161 = sadd.s32 %s160, 1
      %p164 = scmp.eq.s32.totalorder %s21, 1
      %p165 = scmp.ne.s32.totalorder %s160, %s162
      %p166 = scmp.eq.s32.totalorder %s21, 0
      %p167 = por %p165, %p166
      %p168 = scmp.ne.s32.totalorder %s160, %s162
      %p169 = scmp.eq.s32.totalorder %s26, 1
      %p170 = por %p168, %p169
      %p171 = scmp.ne.s32.totalorder %s162, %s163
      %p172 = scmp.eq.s32.totalorder %s26, 0
      %p173 = por %p171, %p172
      %p174 = scmp.ne.s32.totalorder %s162, %s163
      %p175 = scmp.eq.s32.totalorder %s27, 1
      %p176 = por %p174, %p175
      %p178 = scmp.ne.s32.totalorder %s163, %s177
      %p179 = scmp.eq.s32.totalorder %s27, 0
      %p180 = por %p178, %p179
      %s182 = sadd.s32 %s181, 1
      %p185 = scmp.eq.s32.totalorder %s21, 1
      %p186 = scmp.ne.s32.totalorder %s181, %s183
      %p187 = scmp.eq.s32.totalorder %s21, 0
      %p188 = por %p186, %p187
      %p189 = scmp.ne.s32.totalorder %s181, %s183
      %p190 = scmp.eq.s32.totalorder %s26, 1
      %p191 = por %p189, %p190
      %p192 = scmp.ne.s32.totalorder %s183, %s184
      %p193 = scmp.eq.s32.totalorder %s26, 0
      %p194 = por %p192, %p193
      %p195 = scmp.ne.s32.totalorder %s183, %s184
      %p196 = scmp.eq.s32.totalorder %s27, 1
      %p197 = por %p195, %p196
      %p199 = scmp.ne.s32.totalorder %s184, %s198
      %p200 = scmp.eq.s32.totalorder %s27, 0
      %p201 = por %p199, %p200
      %s203 = sadd.s32 %s202, 1
      %p206 = scmp.eq.s32.totalorder %s21, 1
      %p207 = scmp.ne.s32.totalorder %s202, %s204
      %p208 = scmp.eq.s32.totalorder %s21, 0
      %p209 = por %p207, %p208
      %p210 = scmp.ne.s32.totalorder %s202, %s204
      %p211 = scmp.eq.s32.totalorder %s26, 1
      %p212 = por %p210, %p211
      %p213 = scmp.ne.s32.totalorder %s204, %s205
      %p214 = scmp.eq.s32.totalorder %s26, 0
      %p215 = por %p213, %p214
      %p216 = scmp.ne.s32.totalorder %s204, %s205
      %p217 = scmp.eq.s32.totalorder %s27, 1
      %p218 = por %p216, %p217
      %p220 = scmp.ne.s32.totalorder %s205, %s219
      %p221 = scmp.eq.s32.totalorder %s27, 0
      %p222 = por %p220, %p221
      %s224 = sadd.s32 %s223, 1
      %p227 = scmp.eq.s32.totalorder %s21, 1
      %p228 = scmp.ne.s32.totalorder %s223, %s225
      %p229 = scmp.eq.s32.totalorder %s21, 0
      %p230 = por %p228, %p229
      %p231 = scmp.ne.s32.totalorder %s223, %s225
      %p232 = scmp.eq.s32.totalorder %s26, 1
      %p233 = por %p231, %p232
      %p234 = scmp.ne.s32.totalorder %s225, %s226
      %p235 = scmp.eq.s32.totalorder %s26, 0
      %p236 = por %p234, %p235
      %p237 = scmp.ne.s32.totalorder %s225, %s226
      %p238 = scmp.eq.s32.totalorder %s27, 1
      %p239 = por %p237, %p238
      %p241 = scmp.ne.s32.totalorder %s226, %s240
      %p242 = scmp.eq.s32.totalorder %s27, 0
      %p243 = por %p241, %p242
      %s245 = sadd.s32 %s244, 1
      %p248 = scmp.eq.s32.totalorder %s21, 1
      %p249 = scmp.ne.s32.totalorder %s244, %s246
      %p250 = scmp.eq.s32.totalorder %s21, 0
      %p251 = por %p249, %p250
      %p252 = scmp.ne.s32.totalorder %s244, %s246
      %p253 = scmp.eq.s32.totalorder %s26, 1
      %p254 = por %p252, %p253
      %p255 = scmp.ne.s32.totalorder %s246, %s247
      %p256 = scmp.eq.s32.totalorder %s26, 0
      %p257 = por %p255, %p256
      %p258 = scmp.ne.s32.totalorder %s246, %s247
      %p259 = scmp.eq.s32.totalorder %s27, 1
      %p260 = por %p258, %p259
      %p262 = scmp.ne.s32.totalorder %s247, %s261
      %p263 = scmp.eq.s32.totalorder %s27, 0
      %p264 = por %p262, %p263
      %s266 = sadd.s32 %s265, 1
      %p269 = scmp.eq.s32.totalorder %s21, 1
      %p270 = scmp.ne.s32.totalorder %s265, %s267
      %p271 = scmp.eq.s32.totalorder %s21, 0
      %p272 = por %p270, %p271
      %p273 = scmp.ne.s32.totalorder %s265, %s267
      %p274 = scmp.eq.s32.totalorder %s26, 1
      %p275 = por %p273, %p274
      %p276 = scmp.ne.s32.totalorder %s267, %s268
      %p277 = scmp.eq.s32.totalorder %s26, 0
      %p278 = por %p276, %p277
      %p279 = scmp.ne.s32.totalorder %s267, %s268
      %p280 = scmp.eq.s32.totalorder %s27, 1
      %p281 = por %p279, %p280
      %p283 = scmp.ne.s32.totalorder %s268, %s282
      %p284 = scmp.eq.s32.totalorder %s27, 0
      %p285 = por %p283, %p284
      %s286 = ssub.s32 %s21, %s28
      %p287 = scmp.eq.s32.totalorder %s286, 0
      %s289 = sadd.s32 %s288, 1
      %s290 = scalar_select %p287, %s288, %s289
      %p293 = pneg %p287
      %p294 = scmp.eq.s32.totalorder %s21, 1
      %p295 = por %p293, %p294
      %p296 = scmp.ne.s32.totalorder %s288, %s291
      %p297 = scmp.eq.s32.totalorder %s21, 0
      %p298 = por %p296, %p297
      %p299 = scmp.ne.s32.totalorder %s288, %s291
      %p300 = scmp.eq.s32.totalorder %s26, 1
      %p301 = por %p299, %p300
      %p302 = scmp.ne.s32.totalorder %s291, %s292
      %p303 = scmp.eq.s32.totalorder %s26, 0
      %p304 = por %p302, %p303
      %p305 = scmp.ne.s32.totalorder %s291, %s292
      %p306 = scmp.eq.s32.totalorder %s27, 1
      %p307 = por %p305, %p306
      %p309 = scmp.ne.s32.totalorder %s292, %s308
      %p310 = scmp.eq.s32.totalorder %s27, 0
      %p311 = por %p309, %p310
      %p312 = scmp.le.s32.totalorder 1, %s21
      %p313 = scmp.lt.s32.totalorder %s21, 3
      %p314 = pnand %p312, %p313
      %p315 = pneg %p314
      // Predicated region
      $region9: #{transformer_block.1} parent=5 // pred_check
        _
      $region10: #{transformer_block.1} parent=5 // pred_check_branch
        %317 = sbr.rel (%p314) target = $region12
      $region11: #{transformer_block.1} parent=5 // pred_region
        %s318 = ssub.s32 %s21, 1
        // Predicated region
        $region13: #{transformer_block.1} parent=11 // pred_check
          %p319 = pneg %p68
        $region14: #{transformer_block.1} parent=11 // pred_check_branch
          %321 = sbr.rel (%p319) target = $region16
        $region15: #{transformer_block.1} parent=11 // pred_region
          _
        $region16: #{transformer_block.1} parent=11 // pred_fallthru
          _
        // Predicated region
        $region17: #{transformer_block.1} parent=11 // pred_check
          %p322 = pneg %p89
        $region18: #{transformer_block.1} parent=11 // pred_check_branch
          %324 = sbr.rel (%p322) target = $region20
        $region19: #{transformer_block.1} parent=11 // pred_region
          _
        $region20: #{transformer_block.1} parent=11 // pred_fallthru
          _
        // Predicated region
        $region21: #{transformer_block.1} parent=11 // pred_check
          %p325 = pneg %p110
        $region22: #{transformer_block.1} parent=11 // pred_check_branch
          %327 = sbr.rel (%p325) target = $region24
        $region23: #{transformer_block.1} parent=11 // pred_region
          _
        $region24: #{transformer_block.1} parent=11 // pred_fallthru
          _
        // Predicated region
        $region25: #{transformer_block.1} parent=11 // pred_check
          %p328 = pneg %p131
        $region26: #{transformer_block.1} parent=11 // pred_check_branch
          %330 = sbr.rel (%p328) target = $region28
        $region27: #{transformer_block.1} parent=11 // pred_region
          _
        $region28: #{transformer_block.1} parent=11 // pred_fallthru
          _
        // Predicated region
        $region29: #{transformer_block.1} parent=11 // pred_check
          %p331 = pneg %p152
        $region30: #{transformer_block.1} parent=11 // pred_check_branch
          %333 = sbr.rel (%p331) target = $region32
        $region31: #{transformer_block.1} parent=11 // pred_region
          _
        $region32: #{transformer_block.1} parent=11 // pred_fallthru
          _
        // Predicated region
        $region33: #{transformer_block.1} parent=11 // pred_check
          %p334 = pneg %p173
        $region34: #{transformer_block.1} parent=11 // pred_check_branch
          %336 = sbr.rel (%p334) target = $region36
        $region35: #{transformer_block.1} parent=11 // pred_region
          _
        $region36: #{transformer_block.1} parent=11 // pred_fallthru
          _
        // Predicated region
        $region37: #{transformer_block.1} parent=11 // pred_check
          %p337 = pneg %p194
        $region38: #{transformer_block.1} parent=11 // pred_check_branch
          %339 = sbr.rel (%p337) target = $region40
        $region39: #{transformer_block.1} parent=11 // pred_region
          _
        $region40: #{transformer_block.1} parent=11 // pred_fallthru
          _
        // Predicated region
        $region41: #{transformer_block.1} parent=11 // pred_check
          %p340 = pneg %p215
        $region42: #{transformer_block.1} parent=11 // pred_check_branch
          %342 = sbr.rel (%p340) target = $region44
        $region43: #{transformer_block.1} parent=11 // pred_region
          _
        $region44: #{transformer_block.1} parent=11 // pred_fallthru
          _
        // Predicated region
        $region45: #{transformer_block.1} parent=11 // pred_check
          %p343 = pneg %p236
        $region46: #{transformer_block.1} parent=11 // pred_check_branch
          %345 = sbr.rel (%p343) target = $region48
        $region47: #{transformer_block.1} parent=11 // pred_region
          _
        $region48: #{transformer_block.1} parent=11 // pred_fallthru
          _
        // Predicated region
        $region49: #{transformer_block.1} parent=11 // pred_check
          %p346 = pneg %p257
        $region50: #{transformer_block.1} parent=11 // pred_check_branch
          %348 = sbr.rel (%p346) target = $region52
        $region51: #{transformer_block.1} parent=11 // pred_region
          _
        $region52: #{transformer_block.1} parent=11 // pred_fallthru
          _
        // Predicated region
        $region53: #{transformer_block.1} parent=11 // pred_check
          %p349 = pneg %p278
        $region54: #{transformer_block.1} parent=11 // pred_check_branch
          %351 = sbr.rel (%p349) target = $region56
        $region55: #{transformer_block.1} parent=11 // pred_region
          _
        $region56: #{transformer_block.1} parent=11 // pred_fallthru
          _
      $region12: #{transformer_block.1} parent=5 // pred_fallthru
        _
      %p352 = scmp.lt.s32.totalorder %s21, 2
      // Predicated region
      $region57: #{transformer_block.1} parent=5 // pred_check
        %p353 = pneg %p352
      $region58: #{transformer_block.1} parent=5 // pred_check_branch
        %355 = sbr.rel (%p353) target = $region60
      $region59: #{transformer_block.1} parent=5 // pred_region
        // Predicated region
        $region61: #{transformer_block.1} parent=59 // pred_check
          %p356 = pneg %p41
        $region62: #{transformer_block.1} parent=59 // pred_check_branch
          %358 = sbr.rel (%p356) target = $region64
        $region63: #{transformer_block.1} parent=59 // pred_region
          %p359 = scmp.lt.s32.totalorder %s21, 1
          %s360 = scalar_select %p359, %s21, 1
          %s361 = smul.addr %s360, 6
          %s362 = smul.addr %s361, 8
          %s363 = scalar_lea.vmem %s0, %s362
        $region64: #{transformer_block.1} parent=59 // pred_fallthru
          _
      $region60: #{transformer_block.1} parent=5 // pred_fallthru
        _
      %p364 = scmp.le.s32.totalorder 1, %s21
      %p365 = scmp.lt.s32.totalorder %s21, 3
      %p366 = pnand %p364, %p365
      %p367 = pneg %p366
      // Predicated region
      $region65: #{transformer_block.1} parent=5 // pred_check
        _
      $region66: #{transformer_block.1} parent=5 // pred_check_branch
        %369 = sbr.rel (%p366) target = $region68
      $region67: #{transformer_block.1} parent=5 // pred_region
        %s370 = ssub.s32 %s21, 1
        %p371 = scmp.lt.s32.totalorder %s26, 1
        %s372 = scalar_select %p371, %s26, 1
        %s373 = smul.addr %s372, 6
        %s374 = smul.addr %s373, 8
        %s375 = scalar_lea.vmem %s0, %s374
        %p376 = pneg %p47
        %p377 = pneg %p44
        %p378 = pneg %p68
        %p379 = pneg %p65
        %p380 = pneg %p89
        %p381 = pneg %p86
        %p382 = pneg %p110
        %p383 = pneg %p107
        %p384 = pneg %p131
        %p385 = pneg %p128
        %p386 = pneg %p152
        %p387 = pneg %p149
        %p388 = pneg %p173
        %p389 = pneg %p170
        %p390 = pneg %p194
        %p391 = pneg %p191
        %p392 = pneg %p215
        %p393 = pneg %p212
        %p394 = pneg %p236
        %p395 = pneg %p233
        %p396 = pneg %p257
        %p397 = pneg %p254
        %p398 = pneg %p278
        %p399 = pneg %p275
        %p400 = pneg %p304
        %p401 = pneg %p301
        %s402 = sand.u32 %s291, 1
        %s403 = scalar_lea.sflag [#allocation3], %s402
        %s404 = sand.u32 %s291, 1
        %s405 = smul.addr %s404, 48
        %s406 = scalar_lea.vmem [#allocation2], %s405
        %p407 = scmp.lt.s32.totalorder %s26, 1
        %s408 = scalar_select %p407, %s26, 1
        %s409 = smul.addr %s408, 6
        %s410 = smul.addr %s409, 8
        %s411 = scalar_lea.vmem %s0, %s410
        %v413 = vld [vmem:[%s411] sm:$0xff]
        %v414 = vld [vmem:[%s411 + $0x8] sm:$0xff]
        %v415 = vld [vmem:[%s411 + $0x10] sm:$0xff]
        %v416 = vld [vmem:[%s411 + $0x18] sm:$0xff]
        %v417 = vld [vmem:[%s411 + $0x20] sm:$0xff]
        %v418 = vld [vmem:[%s411 + $0x28] sm:$0xff]
        %v419 = vld [vmem:[%s1] sm:$0x7]
        %v420 = vld [vmem:[%s2] sm:$0x7]
        %v421 = vadd.f32 %v413, %v414
        %vm422 = vcmask 261120
        %v423 = vsel %vm422, %v415, 0.0
        %v424 = vadd.f32 %v421, %v423
        %425 = vadd.xlane.f32.xlu0 %v424
        %v426 = vpop.xlane.xlu0 %425
        %v427 = vadd.f32 %v416, %v417
        %v428 = vsel %vm422, %v418, 0.0
        %v429 = vadd.f32 %v427, %v428
        %430 = vadd.xlane.f32.xlu0 %v429
        %v431 = vpop.xlane.xlu0 %430
        %v432 = vrcp.pop 288.0
        %v433 = vmul.f32 %v426, %v432
        %v434 = vmul.f32 %v431, %v432
        %v435 = vsub.f32 %v413, %v433
        %v436 = vsub.f32 %v414, %v433
        %v437 = vsub.f32 %v415, %v433
        %v438 = vsub.f32 %v416, %v434
        %v439 = vsub.f32 %v417, %v434
        %v440 = vsub.f32 %v418, %v434
        %v441 = vmul.f32 %v435, %v435
        %v442 = vmul.f32 %v436, %v436
        %v443 = vmul.f32 %v437, %v437
        %v444 = vmul.f32 %v438, %v438
        %v445 = vmul.f32 %v439, %v439
        %v446 = vmul.f32 %v440, %v440
        %v447 = vadd.f32 %v441, %v442
        %v448 = vsel %vm422, %v443, 0.0
        %v449 = vadd.f32 %v447, %v448
        %450 = vadd.xlane.f32.xlu0 %v449
        %v451 = vpop.xlane.xlu0 %450
        %v452 = vadd.f32 %v444, %v445
        %v453 = vsel %vm422, %v446, 0.0
        %v454 = vadd.f32 %v452, %v453
        %455 = vadd.xlane.f32.xlu0 %v454
        %v456 = vpop.xlane.xlu0 %455
        %v457 = vmul.f32 %v451, %v432
        %v458 = vmul.f32 %v456, %v432
        %v459 = vadd.f32 %v457, 1e-05
        %v460 = vadd.f32 %v458, 1e-05
        %v461 = vrsqrt.pop %v459
        %v462 = vrsqrt.pop %v460
        %v463 = vmul.f32 %v435, %v461
        %v464 = vmul.f32 %v436, %v461
        %v465 = vmul.f32 %v437, %v461
        %v466 = vmul.f32 %v438, %v462
        %v467 = vmul.f32 %v439, %v462
        %v468 = vmul.f32 %v440, %v462
        %v470 = vlaneseq
        %v471 = vshrl.u32 %v470, 7
        %v472 = vsub.s32 0, %v471
        %v473 = vrot.slane %v419, %v472
        %v474 = vlaneseq
        %v475 = vshrl.u32 %v474, 7
        %v476 = vsub.s32 1, %v475
        %v477 = vrot.slane %v419, %v476
        %v478 = vlaneseq
        %v479 = vshrl.u32 %v478, 7
        %v480 = vsub.s32 2, %v479
        %v481 = vrot.slane %v419, %v480
        %v485 = vmul.f32 %v463, %v473
        %v486 = vmul.f32 %v464, %v477
        %v487 = vmul.f32 %v465, %v481
        %v488 = vmul.f32 %v466, %v473
        %v489 = vmul.f32 %v467, %v477
        %v490 = vmul.f32 %v468, %v481
        %v492 = vlaneseq
        %v493 = vshrl.u32 %v492, 7
        %v494 = vsub.s32 0, %v493
        %v495 = vrot.slane %v420, %v494
        %v496 = vlaneseq
        %v497 = vshrl.u32 %v496, 7
        %v498 = vsub.s32 1, %v497
        %v499 = vrot.slane %v420, %v498
        %v500 = vlaneseq
        %v501 = vshrl.u32 %v500, 7
        %v502 = vsub.s32 2, %v501
        %v503 = vrot.slane %v420, %v502
        %v507 = vadd.f32 %v485, %v495
        %v508 = vadd.f32 %v486, %v499
        %v509 = vadd.f32 %v487, %v503
        %v510 = vadd.f32 %v488, %v495
        %v511 = vadd.f32 %v489, %v499
        %v512 = vadd.f32 %v490, %v503
        %v513 = vpack.c.bf16 %v510, %v507
        %v514 = vpack.c.bf16 %v511, %v508
        %v515 = vpack.c.bf16 %v512, %v509
        %v516 = vld [vmem:[%s3] sm:$0xff]
        %v517 = vld [vmem:[%s3 + $0x8] sm:$0xff]
        %v518 = vld [vmem:[%s3 + $0x10] sm:$0xff]
        %v519 = vld [vmem:[%s3 + $0x18] sm:$0xf]
        %v520 = vld [vmem:[%s3 + $0x1c] sm:$0xff]
        %v521 = vld [vmem:[%s3 + $0x24] sm:$0xff]
        %v522 = vld [vmem:[%s3 + $0x2c] sm:$0xff]
        %v523 = vld [vmem:[%s3 + $0x34] sm:$0xf]
        %v524 = vld [vmem:[%s3 + $0x38] sm:$0xff]
        %v525 = vld [vmem:[%s3 + $0x40] sm:$0xff]
        %v526 = vld [vmem:[%s3 + $0x48] sm:$0xff]
        %v527 = vld [vmem:[%s3 + $0x50] sm:$0xf]
        %v528 = vld [vmem:[%s3 + $0x54] sm:$0xff]
        %v529 = vld [vmem:[%s3 + $0x5c] sm:$0xff]
        %v530 = vld [vmem:[%s3 + $0x64] sm:$0xff]
        %v531 = vld [vmem:[%s3 + $0x6c] sm:$0xf]
        %v532 = vld [vmem:[%s3 + $0x70] sm:$0xff]
        %v533 = vld [vmem:[%s3 + $0x78] sm:$0xff]
        %v534 = vld [vmem:[%s3 + $0x80] sm:$0xff]
        %v535 = vld [vmem:[%s3 + $0x88] sm:$0xf]
        %v536 = vld [vmem:[%s3 + $0x8c] sm:$0xff]
        %v537 = vld [vmem:[%s3 + $0x94] sm:$0xff]
        %v538 = vld [vmem:[%s3 + $0x9c] sm:$0xff]
        %v539 = vld [vmem:[%s3 + $0xa4] sm:$0xf]
        %v540 = vld [vmem:[%s3 + $0xa8] sm:$0xff]
        %v541 = vld [vmem:[%s3 + $0xb0] sm:$0xff]
        %v542 = vld [vmem:[%s3 + $0xb8] sm:$0xff]
        %v543 = vld [vmem:[%s3 + $0xc0] sm:$0xf]
        %v544 = vld [vmem:[%s3 + $0xc4] sm:$0xff]
        %v545 = vld [vmem:[%s3 + $0xcc] sm:$0xff]
        %v546 = vld [vmem:[%s3 + $0xd4] sm:$0xff]
        %v547 = vld [vmem:[%s3 + $0xdc] sm:$0xf]
        %v548 = vld [vmem:[%s3 + $0xe0] sm:$0xff]
        %v549 = vld [vmem:[%s3 + $0xe8] sm:$0xff]
        %v550 = vld [vmem:[%s3 + $0xf0] sm:$0xff]
        %v551 = vld [vmem:[%s3 + $0xf8] sm:$0xf]
        %v552 = vld [vmem:[%s3 + $0xfc] sm:$0xff]
        %v553 = vld [vmem:[%s3 + $0x104] sm:$0xff]
        %v554 = vld [vmem:[%s3 + $0x10c] sm:$0xff]
        %v555 = vld [vmem:[%s3 + $0x114] sm:$0xf]
        %v556 = vld [vmem:[%s3 + $0x118] sm:$0xff]
        %v557 = vld [vmem:[%s3 + $0x120] sm:$0xff]
        %v558 = vld [vmem:[%s3 + $0x128] sm:$0xff]
        %v559 = vld [vmem:[%s3 + $0x130] sm:$0xf]
        %v560 = vld [vmem:[%s3 + $0x134] sm:$0xff]
        %v561 = vld [vmem:[%s3 + $0x13c] sm:$0xff]
        %v562 = vld [vmem:[%s3 + $0x144] sm:$0xff]
        %v563 = vld [vmem:[%s3 + $0x14c] sm:$0xf]
        %v564 = vld [vmem:[%s3 + $0x150] sm:$0xff]
        %v565 = vld [vmem:[%s3 + $0x158] sm:$0xff]
        %v566 = vld [vmem:[%s3 + $0x160] sm:$0xff]
        %v567 = vld [vmem:[%s3 + $0x168] sm:$0xf]
        %v568 = vld [vmem:[%s3 + $0x16c] sm:$0xff]
        %v569 = vld [vmem:[%s3 + $0x174] sm:$0xff]
        %v570 = vld [vmem:[%s3 + $0x17c] sm:$0xff]
        %v571 = vld [vmem:[%s3 + $0x184] sm:$0xf]
        %v572 = vld [vmem:[%s3 + $0x188] sm:$0xff]
        %v573 = vld [vmem:[%s3 + $0x190] sm:$0xff]
        %v574 = vld [vmem:[%s3 + $0x198] sm:$0xff]
        %v575 = vld [vmem:[%s3 + $0x1a0] sm:$0xf]
        %v576 = vld [vmem:[%s3 + $0x1a4] sm:$0xff]
        %v577 = vld [vmem:[%s3 + $0x1ac] sm:$0xff]
        %v578 = vld [vmem:[%s3 + $0x1b4] sm:$0xff]
        %v579 = vld [vmem:[%s3 + $0x1bc] sm:$0xf]
        %v580 = vld [vmem:[%s3 + $0x1c0] sm:$0xff]
        %v581 = vld [vmem:[%s3 + $0x1c8] sm:$0xff]
        %v582 = vld [vmem:[%s3 + $0x1d0] sm:$0xff]
        %v583 = vld [vmem:[%s3 + $0x1d8] sm:$0xf]
        %v584 = vld [vmem:[%s3 + $0x1dc] sm:$0xff]
        %v585 = vld [vmem:[%s3 + $0x1e4] sm:$0xff]
        %v586 = vld [vmem:[%s3 + $0x1ec] sm:$0xff]
        %v587 = vld [vmem:[%s3 + $0x1f4] sm:$0xf]
        %v588 = vld [vmem:[%s3 + $0x1f8] sm:$0xff]
        %v589 = vld [vmem:[%s3 + $0x200] sm:$0xff]
        %v590 = vld [vmem:[%s3 + $0x208] sm:$0xff]
        %v591 = vld [vmem:[%s3 + $0x210] sm:$0xf]
        %v592 = vld [vmem:[%s3 + $0x214] sm:$0xff]
        %v593 = vld [vmem:[%s3 + $0x21c] sm:$0xff]
        %v594 = vld [vmem:[%s3 + $0x224] sm:$0xff]
        %v595 = vld [vmem:[%s3 + $0x22c] sm:$0xf]
        %v596 = vld [vmem:[%s3 + $0x230] sm:$0xff]
        %v597 = vld [vmem:[%s3 + $0x238] sm:$0xff]
        %v598 = vld [vmem:[%s3 + $0x240] sm:$0xff]
        %v599 = vld [vmem:[%s3 + $0x248] sm:$0xf]
        %v600 = vld [vmem:[%s3 + $0x24c] sm:$0xff]
        %v601 = vld [vmem:[%s3 + $0x254] sm:$0xff]
        %v602 = vld [vmem:[%s3 + $0x25c] sm:$0xff]
        %v603 = vld [vmem:[%s3 + $0x264] sm:$0xf]
        %v604 = vld [vmem:[%s3 + $0x268] sm:$0xff]
        %v605 = vld [vmem:[%s3 + $0x270] sm:$0xff]
        %v606 = vld [vmem:[%s3 + $0x278] sm:$0xff]
        %v607 = vld [vmem:[%s3 + $0x280] sm:$0xf]
        %v608 = vld [vmem:[%s3 + $0x284] sm:$0xff]
        %v609 = vld [vmem:[%s3 + $0x28c] sm:$0xff]
        %v610 = vld [vmem:[%s3 + $0x294] sm:$0xff]
        %v611 = vld [vmem:[%s3 + $0x29c] sm:$0xf]
        %v612 = vld [vmem:[%s3 + $0x2a0] sm:$0xff]
        %v613 = vld [vmem:[%s3 + $0x2a8] sm:$0xff]
        %v614 = vld [vmem:[%s3 + $0x2b0] sm:$0xff]
        %v615 = vld [vmem:[%s3 + $0x2b8] sm:$0xf]
        %v616 = vld [vmem:[%s3 + $0x2bc] sm:$0xff]
        %v617 = vld [vmem:[%s3 + $0x2c4] sm:$0xff]
        %v618 = vld [vmem:[%s3 + $0x2cc] sm:$0xff]
        %v619 = vld [vmem:[%s3 + $0x2d4] sm:$0xf]
        %v620 = vld [vmem:[%s3 + $0x2d8] sm:$0xff]
        %v621 = vld [vmem:[%s3 + $0x2e0] sm:$0xff]
        %v622 = vld [vmem:[%s3 + $0x2e8] sm:$0xff]
        %v623 = vld [vmem:[%s3 + $0x2f0] sm:$0xf]
        %v624 = vld [vmem:[%s3 + $0x2f4] sm:$0xff]
        %v625 = vld [vmem:[%s3 + $0x2fc] sm:$0xff]
        %v626 = vld [vmem:[%s3 + $0x304] sm:$0xff]
        %v627 = vld [vmem:[%s3 + $0x30c] sm:$0xf]
        %v628 = vld [vmem:[%s3 + $0x310] sm:$0xff]
        %v629 = vld [vmem:[%s3 + $0x318] sm:$0xff]
        %v630 = vld [vmem:[%s3 + $0x320] sm:$0xff]
        %v631 = vld [vmem:[%s3 + $0x328] sm:$0xf]
        %v632 = vld [vmem:[%s3 + $0x32c] sm:$0xff]
        %v633 = vld [vmem:[%s3 + $0x334] sm:$0xff]
        %v634 = vld [vmem:[%s3 + $0x33c] sm:$0xff]
        %v635 = vld [vmem:[%s3 + $0x344] sm:$0xf]
        %v636 = vld [vmem:[%s3 + $0x348] sm:$0xff]
        %v637 = vld [vmem:[%s3 + $0x350] sm:$0xff]
        %v638 = vld [vmem:[%s3 + $0x358] sm:$0xff]
        %v639 = vld [vmem:[%s3 + $0x360] sm:$0xf]
        %v640 = vld [vmem:[%s3 + $0x364] sm:$0xff]
        %v641 = vld [vmem:[%s3 + $0x36c] sm:$0xff]
        %v642 = vld [vmem:[%s3 + $0x374] sm:$0xff]
        %v643 = vld [vmem:[%s3 + $0x37c] sm:$0xf]
        %v644 = vld [vmem:[%s3 + $0x380] sm:$0xff]
        %v645 = vld [vmem:[%s3 + $0x388] sm:$0xff]
        %v646 = vld [vmem:[%s3 + $0x390] sm:$0xff]
        %v647 = vld [vmem:[%s3 + $0x398] sm:$0xf]
        %v648 = vld [vmem:[%s3 + $0x39c] sm:$0xff]
        %v649 = vld [vmem:[%s3 + $0x3a4] sm:$0xff]
        %v650 = vld [vmem:[%s3 + $0x3ac] sm:$0xff]
        %v651 = vld [vmem:[%s3 + $0x3b4] sm:$0xf]
        %v652 = vld [vmem:[%s3 + $0x3b8] sm:$0xff]
        %v653 = vld [vmem:[%s3 + $0x3c0] sm:$0xff]
        %v654 = vld [vmem:[%s3 + $0x3c8] sm:$0xff]
        %v655 = vld [vmem:[%s3 + $0x3d0] sm:$0xf]
        %v656 = vld [vmem:[%s3 + $0x3d4] sm:$0xff]
        %v657 = vld [vmem:[%s3 + $0x3dc] sm:$0xff]
        %v658 = vld [vmem:[%s3 + $0x3e4] sm:$0xff]
        %v659 = vld [vmem:[%s3 + $0x3ec] sm:$0xf]
        %v804 = vunpack.c.l.b16 %v516
        %v805 = vunpack.c.h.b16 %v516
        %v806 = vunpack.c.l.b16 %v517
        %v807 = vunpack.c.h.b16 %v517
        %v808 = vunpack.c.l.b16 %v518
        %v809 = vunpack.c.h.b16 %v518
        %v810 = vunpack.c.l.b16 %v519
        %v811 = vunpack.c.l.b16 %v520
        %v812 = vunpack.c.h.b16 %v520
        %v813 = vunpack.c.l.b16 %v521
        %v814 = vunpack.c.h.b16 %v521
        %v815 = vunpack.c.l.b16 %v522
        %v816 = vunpack.c.h.b16 %v522
        %v817 = vunpack.c.l.b16 %v523
        %v818 = vunpack.c.l.b16 %v524
        %v819 = vunpack.c.h.b16 %v524
        %v820 = vunpack.c.l.b16 %v525
        %v821 = vunpack.c.h.b16 %v525
        %v822 = vunpack.c.l.b16 %v526
        %v823 = vunpack.c.h.b16 %v526
        %v824 = vunpack.c.l.b16 %v527
        %v825 = vunpack.c.l.b16 %v528
        %v826 = vunpack.c.h.b16 %v528
        %v827 = vunpack.c.l.b16 %v529
        %v828 = vunpack.c.h.b16 %v529
        %v829 = vunpack.c.l.b16 %v530
        %v830 = vunpack.c.h.b16 %v530
        %v831 = vunpack.c.l.b16 %v531
        %v832 = vunpack.c.l.b16 %v532
        %v833 = vunpack.c.h.b16 %v532
        %v834 = vunpack.c.l.b16 %v533
        %v835 = vunpack.c.h.b16 %v533
        %v836 = vunpack.c.l.b16 %v534
        %v837 = vunpack.c.h.b16 %v534
        %v838 = vunpack.c.l.b16 %v535
        %v839 = vunpack.c.l.b16 %v536
        %v840 = vunpack.c.h.b16 %v536
        %v841 = vunpack.c.l.b16 %v537
        %v842 = vunpack.c.h.b16 %v537
        %v843 = vunpack.c.l.b16 %v538
        %v844 = vunpack.c.h.b16 %v538
        %v845 = vunpack.c.l.b16 %v539
        %v846 = vunpack.c.l.b16 %v540
        %v847 = vunpack.c.h.b16 %v540
        %v848 = vunpack.c.l.b16 %v541
        %v849 = vunpack.c.h.b16 %v541
        %v850 = vunpack.c.l.b16 %v542
        %v851 = vunpack.c.h.b16 %v542
        %v852 = vunpack.c.l.b16 %v543
        %v853 = vunpack.c.l.b16 %v544
        %v854 = vunpack.c.h.b16 %v544
        %v855 = vunpack.c.l.b16 %v545
        %v856 = vunpack.c.h.b16 %v545
        %v857 = vunpack.c.l.b16 %v546
        %v858 = vunpack.c.h.b16 %v546
        %v859 = vunpack.c.l.b16 %v547
        %v860 = vunpack.c.l.b16 %v548
        %v861 = vunpack.c.h.b16 %v548
        %v862 = vunpack.c.l.b16 %v549
        %v863 = vunpack.c.h.b16 %v549
        %v864 = vunpack.c.l.b16 %v550
        %v865 = vunpack.c.h.b16 %v550
        %v866 = vunpack.c.l.b16 %v551
        %v867 = vunpack.c.l.b16 %v552
        %v868 = vunpack.c.h.b16 %v552
        %v869 = vunpack.c.l.b16 %v553
        %v870 = vunpack.c.h.b16 %v553
        %v871 = vunpack.c.l.b16 %v554
        %v872 = vunpack.c.h.b16 %v554
        %v873 = vunpack.c.l.b16 %v555
        %v874 = vunpack.c.l.b16 %v556
        %v875 = vunpack.c.h.b16 %v556
        %v876 = vunpack.c.l.b16 %v557
        %v877 = vunpack.c.h.b16 %v557
        %v878 = vunpack.c.l.b16 %v558
        %v879 = vunpack.c.h.b16 %v558
        %v880 = vunpack.c.l.b16 %v559
        %v881 = vunpack.c.l.b16 %v560
        %v882 = vunpack.c.h.b16 %v560
        %v883 = vunpack.c.l.b16 %v561
        %v884 = vunpack.c.h.b16 %v561
        %v885 = vunpack.c.l.b16 %v562
        %v886 = vunpack.c.h.b16 %v562
        %v887 = vunpack.c.l.b16 %v563
        %v888 = vunpack.c.l.b16 %v564
        %v889 = vunpack.c.h.b16 %v564
        %v890 = vunpack.c.l.b16 %v565
        %v891 = vunpack.c.h.b16 %v565
        %v892 = vunpack.c.l.b16 %v566
        %v893 = vunpack.c.h.b16 %v566
        %v894 = vunpack.c.l.b16 %v567
        %v895 = vunpack.c.l.b16 %v568
        %v896 = vunpack.c.h.b16 %v568
        %v897 = vunpack.c.l.b16 %v569
        %v898 = vunpack.c.h.b16 %v569
        %v899 = vunpack.c.l.b16 %v570
        %v900 = vunpack.c.h.b16 %v570
        %v901 = vunpack.c.l.b16 %v571
        %v902 = vunpack.c.l.b16 %v572
        %v903 = vunpack.c.h.b16 %v572
        %v904 = vunpack.c.l.b16 %v573
        %v905 = vunpack.c.h.b16 %v573
        %v906 = vunpack.c.l.b16 %v574
        %v907 = vunpack.c.h.b16 %v574
        %v908 = vunpack.c.l.b16 %v575
        %v909 = vunpack.c.l.b16 %v576
        %v910 = vunpack.c.h.b16 %v576
        %v911 = vunpack.c.l.b16 %v577
        %v912 = vunpack.c.h.b16 %v577
        %v913 = vunpack.c.l.b16 %v578
        %v914 = vunpack.c.h.b16 %v578
        %v915 = vunpack.c.l.b16 %v579
        %v916 = vunpack.c.l.b16 %v580
        %v917 = vunpack.c.h.b16 %v580
        %v918 = vunpack.c.l.b16 %v581
        %v919 = vunpack.c.h.b16 %v581
        %v920 = vunpack.c.l.b16 %v582
        %v921 = vunpack.c.h.b16 %v582
        %v922 = vunpack.c.l.b16 %v583
        %v923 = vunpack.c.l.b16 %v584
        %v924 = vunpack.c.h.b16 %v584
        %v925 = vunpack.c.l.b16 %v585
        %v926 = vunpack.c.h.b16 %v585
        %v927 = vunpack.c.l.b16 %v586
        %v928 = vunpack.c.h.b16 %v586
        %v929 = vunpack.c.l.b16 %v587
        %v930 = vunpack.c.l.b16 %v588
        %v931 = vunpack.c.h.b16 %v588
        %v932 = vunpack.c.l.b16 %v589
        %v933 = vunpack.c.h.b16 %v589
        %v934 = vunpack.c.l.b16 %v590
        %v935 = vunpack.c.h.b16 %v590
        %v936 = vunpack.c.l.b16 %v591
        %v937 = vunpack.c.l.b16 %v592
        %v938 = vunpack.c.h.b16 %v592
        %v939 = vunpack.c.l.b16 %v593
        %v940 = vunpack.c.h.b16 %v593
        %v941 = vunpack.c.l.b16 %v594
        %v942 = vunpack.c.h.b16 %v594
        %v943 = vunpack.c.l.b16 %v595
        %v944 = vunpack.c.l.b16 %v596
        %v945 = vunpack.c.h.b16 %v596
        %v946 = vunpack.c.l.b16 %v597
        %v947 = vunpack.c.h.b16 %v597
        %v948 = vunpack.c.l.b16 %v598
        %v949 = vunpack.c.h.b16 %v598
        %v950 = vunpack.c.l.b16 %v599
        %v951 = vunpack.c.l.b16 %v600
        %v952 = vunpack.c.h.b16 %v600
        %v953 = vunpack.c.l.b16 %v601
        %v954 = vunpack.c.h.b16 %v601
        %v955 = vunpack.c.l.b16 %v602
        %v956 = vunpack.c.h.b16 %v602
        %v957 = vunpack.c.l.b16 %v603
        %v958 = vunpack.c.l.b16 %v604
        %v959 = vunpack.c.h.b16 %v604
        %v960 = vunpack.c.l.b16 %v605
        %v961 = vunpack.c.h.b16 %v605
        %v962 = vunpack.c.l.b16 %v606
        %v963 = vunpack.c.h.b16 %v606
        %v964 = vunpack.c.l.b16 %v607
        %v965 = vunpack.c.l.b16 %v608
        %v966 = vunpack.c.h.b16 %v608
        %v967 = vunpack.c.l.b16 %v609
        %v968 = vunpack.c.h.b16 %v609
        %v969 = vunpack.c.l.b16 %v610
        %v970 = vunpack.c.h.b16 %v610
        %v971 = vunpack.c.l.b16 %v611
        %v972 = vunpack.c.l.b16 %v612
        %v973 = vunpack.c.h.b16 %v612
        %v974 = vunpack.c.l.b16 %v613
        %v975 = vunpack.c.h.b16 %v613
        %v976 = vunpack.c.l.b16 %v614
        %v977 = vunpack.c.h.b16 %v614
        %v978 = vunpack.c.l.b16 %v615
        %v979 = vunpack.c.l.b16 %v616
        %v980 = vunpack.c.h.b16 %v616
        %v981 = vunpack.c.l.b16 %v617
        %v982 = vunpack.c.h.b16 %v617
        %v983 = vunpack.c.l.b16 %v618
        %v984 = vunpack.c.h.b16 %v618
        %v985 = vunpack.c.l.b16 %v619
        %v986 = vunpack.c.l.b16 %v620
        %v987 = vunpack.c.h.b16 %v620
        %v988 = vunpack.c.l.b16 %v621
        %v989 = vunpack.c.h.b16 %v621
        %v990 = vunpack.c.l.b16 %v622
        %v991 = vunpack.c.h.b16 %v622
        %v992 = vunpack.c.l.b16 %v623
        %v993 = vunpack.c.l.b16 %v624
        %v994 = vunpack.c.h.b16 %v624
        %v995 = vunpack.c.l.b16 %v625
        %v996 = vunpack.c.h.b16 %v625
        %v997 = vunpack.c.l.b16 %v626
        %v998 = vunpack.c.h.b16 %v626
        %v999 = vunpack.c.l.b16 %v627
        %v1000 = vunpack.c.l.b16 %v628
        %v1001 = vunpack.c.h.b16 %v628
        %v1002 = vunpack.c.l.b16 %v629
        %v1003 = vunpack.c.h.b16 %v629
        %v1004 = vunpack.c.l.b16 %v630
        %v1005 = vunpack.c.h.b16 %v630
        %v1006 = vunpack.c.l.b16 %v631
        %v1007 = vunpack.c.l.b16 %v632
        %v1008 = vunpack.c.h.b16 %v632
        %v1009 = vunpack.c.l.b16 %v633
        %v1010 = vunpack.c.h.b16 %v633
        %v1011 = vunpack.c.l.b16 %v634
        %v1012 = vunpack.c.h.b16 %v634
        %v1013 = vunpack.c.l.b16 %v635
        %v1014 = vunpack.c.l.b16 %v636
        %v1015 = vunpack.c.h.b16 %v636
        %v1016 = vunpack.c.l.b16 %v637
        %v1017 = vunpack.c.h.b16 %v637
        %v1018 = vunpack.c.l.b16 %v638
        %v1019 = vunpack.c.h.b16 %v638
        %v1020 = vunpack.c.l.b16 %v639
        %v1021 = vunpack.c.l.b16 %v640
        %v1022 = vunpack.c.h.b16 %v640
        %v1023 = vunpack.c.l.b16 %v641
        %v1024 = vunpack.c.h.b16 %v641
        %v1025 = vunpack.c.l.b16 %v642
        %v1026 = vunpack.c.h.b16 %v642
        %v1027 = vunpack.c.l.b16 %v643
        %v1028 = vunpack.c.l.b16 %v644
        %v1029 = vunpack.c.h.b16 %v644
        %v1030 = vunpack.c.l.b16 %v645
        %v1031 = vunpack.c.h.b16 %v645
        %v1032 = vunpack.c.l.b16 %v646
        %v1033 = vunpack.c.h.b16 %v646
        %v1034 = vunpack.c.l.b16 %v647
        %v1035 = vunpack.c.l.b16 %v648
        %v1036 = vunpack.c.h.b16 %v648
        %v1037 = vunpack.c.l.b16 %v649
        %v1038 = vunpack.c.h.b16 %v649
        %v1039 = vunpack.c.l.b16 %v650
        %v1040 = vunpack.c.h.b16 %v650
        %v1041 = vunpack.c.l.b16 %v651
        %v1042 = vunpack.c.l.b16 %v652
        %v1043 = vunpack.c.h.b16 %v652
        %v1044 = vunpack.c.l.b16 %v653
        %v1045 = vunpack.c.h.b16 %v653
        %v1046 = vunpack.c.l.b16 %v654
        %v1047 = vunpack.c.h.b16 %v654
        %v1048 = vunpack.c.l.b16 %v655
        %v1049 = vunpack.c.l.b16 %v656
        %v1050 = vunpack.c.h.b16 %v656
        %v1051 = vunpack.c.l.b16 %v657
        %v1052 = vunpack.c.h.b16 %v657
        %v1053 = vunpack.c.l.b16 %v658
        %v1054 = vunpack.c.h.b16 %v658
        %v1055 = vunpack.c.l.b16 %v659
        %v1056 = vpack.c.b16 %v811, %v804
        %v1057 = vpack.c.b16 %v812, %v805
        %v1058 = vpack.c.b16 %v813, %v806
        %v1059 = vpack.c.b16 %v814, %v807
        %v1060 = vpack.c.b16 %v815, %v808
        %v1061 = vpack.c.b16 %v816, %v809
        %v1062 = vpack.c.b16 %v817, %v810
        %v1063 = vpack.c.b16 %v825, %v818
        %v1064 = vpack.c.b16 %v826, %v819
        %v1065 = vpack.c.b16 %v827, %v820
        %v1066 = vpack.c.b16 %v828, %v821
        %v1067 = vpack.c.b16 %v829, %v822
        %v1068 = vpack.c.b16 %v830, %v823
        %v1069 = vpack.c.b16 %v831, %v824
        %v1070 = vpack.c.b16 %v839, %v832
        %v1071 = vpack.c.b16 %v840, %v833
        %v1072 = vpack.c.b16 %v841, %v834
        %v1073 = vpack.c.b16 %v842, %v835
        %v1074 = vpack.c.b16 %v843, %v836
        %v1075 = vpack.c.b16 %v844, %v837
        %v1076 = vpack.c.b16 %v845, %v838
        %v1077 = vpack.c.b16 %v853, %v846
        %v1078 = vpack.c.b16 %v854, %v847
        %v1079 = vpack.c.b16 %v855, %v848
        %v1080 = vpack.c.b16 %v856, %v849
        %v1081 = vpack.c.b16 %v857, %v850
        %v1082 = vpack.c.b16 %v858, %v851
        %v1083 = vpack.c.b16 %v859, %v852
        %v1084 = vpack.c.b16 %v867, %v860
        %v1085 = vpack.c.b16 %v868, %v861
        %v1086 = vpack.c.b16 %v869, %v862
        %v1087 = vpack.c.b16 %v870, %v863
        %v1088 = vpack.c.b16 %v871, %v864
        %v1089 = vpack.c.b16 %v872, %v865
        %v1090 = vpack.c.b16 %v873, %v866
        %v1091 = vpack.c.b16 %v881, %v874
        %v1092 = vpack.c.b16 %v882, %v875
        %v1093 = vpack.c.b16 %v883, %v876
        %v1094 = vpack.c.b16 %v884, %v877
        %v1095 = vpack.c.b16 %v885, %v878
        %v1096 = vpack.c.b16 %v886, %v879
        %v1097 = vpack.c.b16 %v887, %v880
        %v1098 = vpack.c.b16 %v895, %v888
        %v1099 = vpack.c.b16 %v896, %v889
        %v1100 = vpack.c.b16 %v897, %v890
        %v1101 = vpack.c.b16 %v898, %v891
        %v1102 = vpack.c.b16 %v899, %v892
        %v1103 = vpack.c.b16 %v900, %v893
        %v1104 = vpack.c.b16 %v901, %v894
        %v1105 = vpack.c.b16 %v909, %v902
        %v1106 = vpack.c.b16 %v910, %v903
        %v1107 = vpack.c.b16 %v911, %v904
        %v1108 = vpack.c.b16 %v912, %v905
        %v1109 = vpack.c.b16 %v913, %v906
        %v1110 = vpack.c.b16 %v914, %v907
        %v1111 = vpack.c.b16 %v915, %v908
        %v1112 = vpack.c.b16 %v923, %v916
        %v1113 = vpack.c.b16 %v924, %v917
        %v1114 = vpack.c.b16 %v925, %v918
        %v1115 = vpack.c.b16 %v926, %v919
        %v1116 = vpack.c.b16 %v927, %v920
        %v1117 = vpack.c.b16 %v928, %v921
        %v1118 = vpack.c.b16 %v929, %v922
        %v1119 = vpack.c.b16 %v937, %v930
        %v1120 = vpack.c.b16 %v938, %v931
        %v1121 = vpack.c.b16 %v939, %v932
        %v1122 = vpack.c.b16 %v940, %v933
        %v1123 = vpack.c.b16 %v941, %v934
        %v1124 = vpack.c.b16 %v942, %v935
        %v1125 = vpack.c.b16 %v943, %v936
        %v1126 = vpack.c.b16 %v951, %v944
        %v1127 = vpack.c.b16 %v952, %v945
        %v1128 = vpack.c.b16 %v953, %v946
        %v1129 = vpack.c.b16 %v954, %v947
        %v1130 = vpack.c.b16 %v955, %v948
        %v1131 = vpack.c.b16 %v956, %v949
        %v1132 = vpack.c.b16 %v957, %v950
        %v1133 = vpack.c.b16 %v965, %v958
        %v1134 = vpack.c.b16 %v966, %v959
        %v1135 = vpack.c.b16 %v967, %v960
        %v1136 = vpack.c.b16 %v968, %v961
        %v1137 = vpack.c.b16 %v969, %v962
        %v1138 = vpack.c.b16 %v970, %v963
        %v1139 = vpack.c.b16 %v971, %v964
        %v1140 = vpack.c.b16 %v979, %v972
        %v1141 = vpack.c.b16 %v980, %v973
        %v1142 = vpack.c.b16 %v981, %v974
        %v1143 = vpack.c.b16 %v982, %v975
        %v1144 = vpack.c.b16 %v983, %v976
        %v1145 = vpack.c.b16 %v984, %v977
        %v1146 = vpack.c.b16 %v985, %v978
        %v1147 = vpack.c.b16 %v993, %v986
        %v1148 = vpack.c.b16 %v994, %v987
        %v1149 = vpack.c.b16 %v995, %v988
        %v1150 = vpack.c.b16 %v996, %v989
        %v1151 = vpack.c.b16 %v997, %v990
        %v1152 = vpack.c.b16 %v998, %v991
        %v1153 = vpack.c.b16 %v999, %v992
        %v1154 = vpack.c.b16 %v1007, %v1000
        %v1155 = vpack.c.b16 %v1008, %v1001
        %v1156 = vpack.c.b16 %v1009, %v1002
        %v1157 = vpack.c.b16 %v1010, %v1003
        %v1158 = vpack.c.b16 %v1011, %v1004
        %v1159 = vpack.c.b16 %v1012, %v1005
        %v1160 = vpack.c.b16 %v1013, %v1006
        %v1161 = vpack.c.b16 %v1021, %v1014
        %v1162 = vpack.c.b16 %v1022, %v1015
        %v1163 = vpack.c.b16 %v1023, %v1016
        %v1164 = vpack.c.b16 %v1024, %v1017
        %v1165 = vpack.c.b16 %v1025, %v1018
        %v1166 = vpack.c.b16 %v1026, %v1019
        %v1167 = vpack.c.b16 %v1027, %v1020
        %v1168 = vpack.c.b16 %v1035, %v1028
        %v1169 = vpack.c.b16 %v1036, %v1029
        %v1170 = vpack.c.b16 %v1037, %v1030
        %v1171 = vpack.c.b16 %v1038, %v1031
        %v1172 = vpack.c.b16 %v1039, %v1032
        %v1173 = vpack.c.b16 %v1040, %v1033
        %v1174 = vpack.c.b16 %v1041, %v1034
        %v1175 = vpack.c.b16 %v1049, %v1042
        %v1176 = vpack.c.b16 %v1050, %v1043
        %v1177 = vpack.c.b16 %v1051, %v1044
        %v1178 = vpack.c.b16 %v1052, %v1045
        %v1179 = vpack.c.b16 %v1053, %v1046
        %v1180 = vpack.c.b16 %v1054, %v1047
        %v1181 = vpack.c.b16 %v1055, %v1048
        %v1309 = vsel %vm422, %v515, 0
        %1311 = vmatprep.subr.bf16.mxu0 %v1057
        %1312 = vmatpush1.bf16.msra.mxu0 %v1056
        %1313 = vmatprep.subr.bf16.mxu0 %v1064
        %1314 = vmatpush1.bf16.msra.mxu0 %v1063
        %1315 = vmatprep.subr.bf16.mxu0 %v1071
        %1316 = vmatpush1.bf16.msra.mxu0 %v1070
        %1317 = vmatprep.subr.bf16.mxu0 %v1078
        %1318 = vmatpush1.bf16.msra.mxu0 %v1077
        %1319 = vmatprep.subr.bf16.mxu0 %v1085
        %1320 = vmatpush1.bf16.msra.mxu0 %v1084
        %1321 = vmatprep.subr.bf16.mxu0 %v1092
        %1322 = vmatpush1.bf16.msra.mxu0 %v1091
        %1323 = vmatprep.subr.bf16.mxu0 %v1099
        %1324 = vmatpush1.bf16.msra.mxu0 %v1098
        %1325 = vmatprep.subr.bf16.mxu0 %v1106
        %1326 = vmatpush1.bf16.msra.mxu0 %v1105
        %1327 = vmatprep.subr.bf16.mxu0 %v1113
        %1328 = vmatpush1.bf16.msra.mxu0 %v1112
        %1329 = vmatprep.subr.bf16.mxu0 %v1120
        %1330 = vmatpush1.bf16.msra.mxu0 %v1119
        %1331 = vmatprep.subr.bf16.mxu0 %v1127
        %1332 = vmatpush1.bf16.msra.mxu0 %v1126
        %1333 = vmatprep.subr.bf16.mxu0 %v1134
        %1334 = vmatpush1.bf16.msra.mxu0 %v1133
        %1335 = vmatprep.subr.bf16.mxu0 %v1141
        %1336 = vmatpush1.bf16.msra.mxu0 %v1140
        %1337 = vmatprep.subr.bf16.mxu0 %v1148
        %1338 = vmatpush1.bf16.msra.mxu0 %v1147
        %1339 = vmatprep.subr.bf16.mxu0 %v1155
        %1340 = vmatpush1.bf16.msra.mxu0 %v1154
        %1341 = vmatprep.subr.bf16.mxu0 %v1162
        %1342 = vmatpush1.bf16.msra.mxu0 %v1161
        %1343 = vmatprep.mubr.bf16.mxu0 %v514
        %1344 = vmatmul.mubr.bf16.gmra.mrb[0].mxu0 %v513
        %v1345 = vpop.f32.mrb[0].mxu0
        %v1346 = vadd.f32 0.0, %v1345
        %v1347 = vpop.f32.mrb[0].mxu0
        %v1348 = vadd.f32 0.0, %v1347
        %v1349 = vpop.f32.mrb[0].mxu0
        %v1350 = vadd.f32 0.0, %v1349
        %v1351 = vpop.f32.mrb[0].mxu0
        %v1352 = vadd.f32 0.0, %v1351
        %1353 = vdwg.mxu0
        %1354 = vmatprep.subr.bf16.mxu0 %v1169
        %1355 = vmatpush1.bf16.msra.mxu0 %v1168
        %1356 = vmatprep.subr.bf16.mxu0 %v1176
        %1357 = vmatpush1.bf16.msra.mxu0 %v1175
        %1358 = vmatprep.subr.bf16.mxu0 0
        %1359 = vmatpush1.bf16.msra.mxu0 0
        %1360 = vmatprep.subr.bf16.mxu0 0
        %1361 = vmatpush1.bf16.msra.mxu0 0
        %1362 = vmatprep.subr.bf16.mxu0 0
        %1363 = vmatpush1.bf16.msra.mxu0 0
        %1364 = vmatprep.subr.bf16.mxu0 0
        %1365 = vmatpush1.bf16.msra.mxu0 0
        %1366 = vmatprep.subr.bf16.mxu0 0
        %1367 = vmatpush1.bf16.msra.mxu0 0
        %1368 = vmatprep.subr.bf16.mxu0 0
        %1369 = vmatpush1.bf16.msra.mxu0 0
        %1370 = vmatprep.subr.bf16.mxu0 0
        %1371 = vmatpush1.bf16.msra.mxu0 0
        %1372 = vmatprep.subr.bf16.mxu0 0
        %1373 = vmatpush1.bf16.msra.mxu0 0
        %1374 = vmatprep.subr.bf16.mxu0 0
        %1375 = vmatpush1.bf16.msra.mxu0 0
        %1376 = vmatprep.subr.bf16.mxu0 0
        %1377 = vmatpush1.bf16.msra.mxu0 0
        %1378 = vmatprep.subr.bf16.mxu0 0
        %1379 = vmatpush1.bf16.msra.mxu0 0
        %1380 = vmatprep.subr.bf16.mxu0 0
        %1381 = vmatpush1.bf16.msra.mxu0 0
        %1382 = vmatprep.subr.bf16.mxu0 0
        %1383 = vmatpush1.bf16.msra.mxu0 0
        %1384 = vmatprep.subr.bf16.mxu0 0
        %1385 = vmatpush1.bf16.msra.mxu0 0
        %1386 = vmatprep.mubr.bf16.mxu0 0
        %1387 = vmatmul.mubr.bf16.gmra.mrb[0].mxu0 %v1309
        %v1388 = vpop.f32.mrb[0].mxu0
        %v1389 = vadd.f32 %v1346, %v1388
        %v1390 = vpop.f32.mrb[0].mxu0
        %v1391 = vadd.f32 %v1348, %v1390
        %v1392 = vpop.f32.mrb[0].mxu0
        %v1393 = vadd.f32 %v1350, %v1392
        %v1394 = vpop.f32.mrb[0].mxu0
        %v1395 = vadd.f32 %v1352, %v1394
        %1396 = vdwg.mxu0
        %1397 = vmatprep.subr.bf16.mxu0 %v1059
        %1398 = vmatpush1.bf16.msra.mxu0 %v1058
        %1399 = vmatprep.subr.bf16.mxu0 %v1066
        %1400 = vmatpush1.bf16.msra.mxu0 %v1065
        %1401 = vmatprep.subr.bf16.mxu0 %v1073
        %1402 = vmatpush1.bf16.msra.mxu0 %v1072
        %1403 = vmatprep.subr.bf16.mxu0 %v1080
        %1404 = vmatpush1.bf16.msra.mxu0 %v1079
        %1405 = vmatprep.subr.bf16.mxu0 %v1087
        %1406 = vmatpush1.bf16.msra.mxu0 %v1086
        %1407 = vmatprep.subr.bf16.mxu0 %v1094
        %1408 = vmatpush1.bf16.msra.mxu0 %v1093
        %1409 = vmatprep.subr.bf16.mxu0 %v1101
        %1410 = vmatpush1.bf16.msra.mxu0 %v1100
        %1411 = vmatprep.subr.bf16.mxu0 %v1108
        %1412 = vmatpush1.bf16.msra.mxu0 %v1107
        %1413 = vmatprep.subr.bf16.mxu0 %v1115
        %1414 = vmatpush1.bf16.msra.mxu0 %v1114
        %1415 = vmatprep.subr.bf16.mxu0 %v1122
        %1416 = vmatpush1.bf16.msra.mxu0 %v1121
        %1417 = vmatprep.subr.bf16.mxu0 %v1129
        %1418 = vmatpush1.bf16.msra.mxu0 %v1128
        %1419 = vmatprep.subr.bf16.mxu0 %v1136
        %1420 = vmatpush1.bf16.msra.mxu0 %v1135
        %1421 = vmatprep.subr.bf16.mxu0 %v1143
        %1422 = vmatpush1.bf16.msra.mxu0 %v1142
        %1423 = vmatprep.subr.bf16.mxu0 %v1150
        %1424 = vmatpush1.bf16.msra.mxu0 %v1149
        %1425 = vmatprep.subr.bf16.mxu0 %v1157
        %1426 = vmatpush1.bf16.msra.mxu0 %v1156
        %1427 = vmatprep.subr.bf16.mxu0 %v1164
        %1428 = vmatpush1.bf16.msra.mxu0 %v1163
        %1429 = vmatprep.mubr.bf16.mxu0 %v514
        %1430 = vmatmul.mubr.bf16.gmra.mrb[0].mxu0 %v513
        %v1431 = vpop.f32.mrb[0].mxu0
        %v1432 = vadd.f32 0.0, %v1431
        %v1433 = vpop.f32.mrb[0].mxu0
        %v1434 = vadd.f32 0.0, %v1433
        %v1435 = vpop.f32.mrb[0].mxu0
        %v1436 = vadd.f32 0.0, %v1435
        %v1437 = vpop.f32.mrb[0].mxu0
        %v1438 = vadd.f32 0.0, %v1437
        %1439 = vdwg.mxu0
        %1440 = vmatprep.subr.bf16.mxu0 %v1171
        %1441 = vmatpush1.bf16.msra.mxu0 %v1170
        %1442 = vmatprep.subr.bf16.mxu0 %v1178
        %1443 = vmatpush1.bf16.msra.mxu0 %v1177
        %1444 = vmatprep.subr.bf16.mxu0 0
        %1445 = vmatpush1.bf16.msra.mxu0 0
        %1446 = vmatprep.subr.bf16.mxu0 0
        %1447 = vmatpush1.bf16.msra.mxu0 0
        %1448 = vmatprep.subr.bf16.mxu0 0
        %1449 = vmatpush1.bf16.msra.mxu0 0
        %1450 = vmatprep.subr.bf16.mxu0 0
        %1451 = vmatpush1.bf16.msra.mxu0 0
        %1452 = vmatprep.subr.bf16.mxu0 0
        %1453 = vmatpush1.bf16.msra.mxu0 0
        %1454 = vmatprep.subr.bf16.mxu0 0
        %1455 = vmatpush1.bf16.msra.mxu0 0
        %1456 = vmatprep.subr.bf16.mxu0 0
        %1457 = vmatpush1.bf16.msra.mxu0 0
        %1458 = vmatprep.subr.bf16.mxu0 0
        %1459 = vmatpush1.bf16.msra.mxu0 0
        %1460 = vmatprep.subr.bf16.mxu0 0
        %1461 = vmatpush1.bf16.msra.mxu0 0
        %1462 = vmatprep.subr.bf16.mxu0 0
        %1463 = vmatpush1.bf16.msra.mxu0 0
        %1464 = vmatprep.subr.bf16.mxu0 0
        %1465 = vmatpush1.bf16.msra.mxu0 0
        %1466 = vmatprep.subr.bf16.mxu0 0
        %1467 = vmatpush1.bf16.msra.mxu0 0
        %1468 = vmatprep.subr.bf16.mxu0 0
        %1469 = vmatpush1.bf16.msra.mxu0 0
        %1470 = vmatprep.subr.bf16.mxu0 0
        %1471 = vmatpush1.bf16.msra.mxu0 0
        %1472 = vmatprep.mubr.bf16.mxu0 0
        %1473 = vmatmul.mubr.bf16.gmra.mrb[0].mxu0 %v1309
        %v1474 = vpop.f32.mrb[0].mxu0
        %v1475 = vadd.f32 %v1432, %v1474
        %v1476 = vpop.f32.mrb[0].mxu0
        %v1477 = vadd.f32 %v1434, %v1476
        %v1478 = vpop.f32.mrb[0].mxu0
        %v1479 = vadd.f32 %v1436, %v1478
        %v1480 = vpop.f32.mrb[0].mxu0
        %v1481 = vadd.f32 %v1438, %v1480
        %1482 = vdwg.mxu0
        %1483 = vmatprep.subr.bf16.mxu0 %v1061
        %1484 = vmatpush1.bf16.msra.mxu0 %v1060
        %1485 = vmatprep.subr.bf16.mxu0 %v1068
        %1486 = vmatpush1.bf16.msra.mxu0 %v1067
        %1487 = vmatprep.subr.bf16.mxu0 %v1075
        %1488 = vmatpush1.bf16.msra.mxu0 %v1074
        %1489 = vmatprep.subr.bf16.mxu0 %v1082
        %1490 = vmatpush1.bf16.msra.mxu0 %v1081
        %1491 = vmatprep.subr.bf16.mxu0 %v1089
        %1492 = vmatpush1.bf16.msra.mxu0 %v1088
        %1493 = vmatprep.subr.bf16.mxu0 %v1096
        %1494 = vmatpush1.bf16.msra.mxu0 %v1095
        %1495 = vmatprep.subr.bf16.mxu0 %v1103
        %1496 = vmatpush1.bf16.msra.mxu0 %v1102
        %1497 = vmatprep.subr.bf16.mxu0 %v1110
        %1498 = vmatpush1.bf16.msra.mxu0 %v1109
        %1499 = vmatprep.subr.bf16.mxu0 %v1117
        %1500 = vmatpush1.bf16.msra.mxu0 %v1116
        %1501 = vmatprep.subr.bf16.mxu0 %v1124
        %1502 = vmatpush1.bf16.msra.mxu0 %v1123
        %1503 = vmatprep.subr.bf16.mxu0 %v1131
        %1504 = vmatpush1.bf16.msra.mxu0 %v1130
        %1505 = vmatprep.subr.bf16.mxu0 %v1138
        %1506 = vmatpush1.bf16.msra.mxu0 %v1137
        %1507 = vmatprep.subr.bf16.mxu0 %v1145
        %1508 = vmatpush1.bf16.msra.mxu0 %v1144
        %1509 = vmatprep.subr.bf16.mxu0 %v1152
        %1510 = vmatpush1.bf16.msra.mxu0 %v1151
        %1511 = vmatprep.subr.bf16.mxu0 %v1159
        %1512 = vmatpush1.bf16.msra.mxu0 %v1158
        %1513 = vmatprep.subr.bf16.mxu0 %v1166
        %1514 = vmatpush1.bf16.msra.mxu0 %v1165
        %1515 = vmatprep.mubr.bf16.mxu0 %v514
        %1516 = vmatmul.mubr.bf16.gmra.mrb[0].mxu0 %v513
        %v1517 = vpop.f32.mrb[0].mxu0
        %v1518 = vadd.f32 0.0, %v1517
        %v1519 = vpop.f32.mrb[0].mxu0
        %v1520 = vadd.f32 0.0, %v1519
        %v1521 = vpop.f32.mrb[0].mxu0
        %v1522 = vadd.f32 0.0, %v1521
        %v1523 = vpop.f32.mrb[0].mxu0
        %v1524 = vadd.f32 0.0, %v1523
        %1525 = vdwg.mxu0
        %1526 = vmatprep.subr.bf16.mxu0 %v1173
        %1527 = vmatpush1.bf16.msra.mxu0 %v1172
        %1528 = vmatprep.subr.bf16.mxu0 %v1180
        %1529 = vmatpush1.bf16.msra.mxu0 %v1179
        %1530 = vmatprep.subr.bf16.mxu0 0
        %1531 = vmatpush1.bf16.msra.mxu0 0
        %1532 = vmatprep.subr.bf16.mxu0 0
        %1533 = vmatpush1.bf16.msra.mxu0 0
        %1534 = vmatprep.subr.bf16.mxu0 0
        %1535 = vmatpush1.bf16.msra.mxu0 0
        %1536 = vmatprep.subr.bf16.mxu0 0
        %1537 = vmatpush1.bf16.msra.mxu0 0
        %1538 = vmatprep.subr.bf16.mxu0 0
        %1539 = vmatpush1.bf16.msra.mxu0 0
        %1540 = vmatprep.subr.bf16.mxu0 0
        %1541 = vmatpush1.bf16.msra.mxu0 0
        %1542 = vmatprep.subr.bf16.mxu0 0
        %1543 = vmatpush1.bf16.msra.mxu0 0
        %1544 = vmatprep.subr.bf16.mxu0 0
        %1545 = vmatpush1.bf16.msra.mxu0 0
        %1546 = vmatprep.subr.bf16.mxu0 0
        %1547 = vmatpush1.bf16.msra.mxu0 0
        %1548 = vmatprep.subr.bf16.mxu0 0
        %1549 = vmatpush1.bf16.msra.mxu0 0
        %1550 = vmatprep.subr.bf16.mxu0 0
        %1551 = vmatpush1.bf16.msra.mxu0 0
        %1552 = vmatprep.subr.bf16.mxu0 0
        %1553 = vmatpush1.bf16.msra.mxu0 0
        %1554 = vmatprep.subr.bf16.mxu0 0
        %1555 = vmatpush1.bf16.msra.mxu0 0
        %1556 = vmatprep.subr.bf16.mxu0 0
        %1557 = vmatpush1.bf16.msra.mxu0 0
        %1558 = vmatprep.mubr.bf16.mxu0 0
        %1559 = vmatmul.mubr.bf16.gmra.mrb[0].mxu0 %v1309
        %v1560 = vpop.f32.mrb[0].mxu0
        %v1561 = vadd.f32 %v1518, %v1560
        %v1562 = vpop.f32.mrb[0].mxu0
        %v1563 = vadd.f32 %v1520, %v1562
        %v1564 = vpop.f32.mrb[0].mxu0
        %v1565 = vadd.f32 %v1522, %v1564
        %v1566 = vpop.f32.mrb[0].mxu0
        %v1567 = vadd.f32 %v1524, %v1566
        %1568 = vdwg.mxu0
        %1569 = vmatprep.subr.bf16.mxu0 0
        %1570 = vmatpush1.bf16.msra.mxu0 %v1062
        %1571 = vmatprep.subr.bf16.mxu0 0
        %1572 = vmatpush1.bf16.msra.mxu0 %v1069
        %1573 = vmatprep.subr.bf16.mxu0 0
        %1574 = vmatpush1.bf16.msra.mxu0 %v1076
        %1575 = vmatprep.subr.bf16.mxu0 0
        %1576 = vmatpush1.bf16.msra.mxu0 %v1083
        %1577 = vmatprep.subr.bf16.mxu0 0
        %1578 = vmatpush1.bf16.msra.mxu0 %v1090
        %1579 = vmatprep.subr.bf16.mxu0 0
        %1580 = vmatpush1.bf16.msra.mxu0 %v1097
        %1581 = vmatprep.subr.bf16.mxu0 0
        %1582 = vmatpush1.bf16.msra.mxu0 %v1104
        %1583 = vmatprep.subr.bf16.mxu0 0
        %1584 = vmatpush1.bf16.msra.mxu0 %v1111
        %1585 = vmatprep.subr.bf16.mxu0 0
        %1586 = vmatpush1.bf16.msra.mxu0 %v1118
        %1587 = vmatprep.subr.bf16.mxu0 0
        %1588 = vmatpush1.bf16.msra.mxu0 %v1125
        %1589 = vmatprep.subr.bf16.mxu0 0
        %1590 = vmatpush1.bf16.msra.mxu0 %v1132
        %1591 = vmatprep.subr.bf16.mxu0 0
        %1592 = vmatpush1.bf16.msra.mxu0 %v1139
        %1593 = vmatprep.subr.bf16.mxu0 0
        %1594 = vmatpush1.bf16.msra.mxu0 %v1146
        %1595 = vmatprep.subr.bf16.mxu0 0
        %1596 = vmatpush1.bf16.msra.mxu0 %v1153
        %1597 = vmatprep.subr.bf16.mxu0 0
        %1598 = vmatpush1.bf16.msra.mxu0 %v1160
        %1599 = vmatprep.subr.bf16.mxu0 0
        %1600 = vmatpush1.bf16.msra.mxu0 %v1167
        %1601 = vmatprep.mubr.bf16.mxu0 %v514
        %1602 = vmatmul.mubr.bf16.gmra.mrb[0].mxu0 %v513
        %v1603 = vpop.f32.mrb[0].mxu0
        %v1604 = vadd.f32 0.0, %v1603
        %v1605 = vpop.f32.mrb[0].mxu0
        %v1606 = vpop.f32.mrb[0].mxu0
        %v1607 = vadd.f32 0.0, %v1606
        %v1608 = vpop.f32.mrb[0].mxu0
        %1609 = vdwg.mxu0
        %1610 = vmatprep.subr.bf16.mxu0 0
        %1611 = vmatpush1.bf16.msra.mxu0 %v1174
        %1612 = vmatprep.subr.bf16.mxu0 0
        %1613 = vmatpush1.bf16.msra.mxu0 %v1181
        %1614 = vmatprep.subr.bf16.mxu0 0
        %1615 = vmatpush1.bf16.msra.mxu0 0
        %1616 = vmatprep.subr.bf16.mxu0 0
        %1617 = vmatpush1.bf16.msra.mxu0 0
        %1618 = vmatprep.subr.bf16.mxu0 0
        %1619 = vmatpush1.bf16.msra.mxu0 0
        %1620 = vmatprep.subr.bf16.mxu0 0
        %1621 = vmatpush1.bf16.msra.mxu0 0
        %1622 = vmatprep.subr.bf16.mxu0 0
        %1623 = vmatpush1.bf16.msra.mxu0 0
        %1624 = vmatprep.subr.bf16.mxu0 0
        %1625 = vmatpush1.bf16.msra.mxu0 0
        %1626 = vmatprep.subr.bf16.mxu0 0
        %1627 = vmatpush1.bf16.msra.mxu0 0
        %1628 = vmatprep.subr.bf16.mxu0 0
        %1629 = vmatpush1.bf16.msra.mxu0 0
        %1630 = vmatprep.subr.bf16.mxu0 0
        %1631 = vmatpush1.bf16.msra.mxu0 0
        %1632 = vmatprep.subr.bf16.mxu0 0
        %1633 = vmatpush1.bf16.msra.mxu0 0
        %1634 = vmatprep.subr.bf16.mxu0 0
        %1635 = vmatpush1.bf16.msra.mxu0 0
        %1636 = vmatprep.subr.bf16.mxu0 0
        %1637 = vmatpush1.bf16.msra.mxu0 0
        %1638 = vmatprep.subr.bf16.mxu0 0
        %1639 = vmatpush1.bf16.msra.mxu0 0
        %1640 = vmatprep.subr.bf16.mxu0 0
        %1641 = vmatpush1.bf16.msra.mxu0 0
        %1642 = vmatprep.mubr.bf16.mxu0 0
        %1643 = vmatmul.mubr.bf16.gmra.mrb[0].mxu0 %v1309
        %v1644 = vpop.f32.mrb[0].mxu0
        %v1645 = vadd.f32 %v1604, %v1644
        %v1646 = vpop.f32.mrb[0].mxu0
        %v1647 = vpop.f32.mrb[0].mxu0
        %v1648 = vadd.f32 %v1607, %v1647
        %v1649 = vpop.f32.mrb[0].mxu0
        %1650 = vdwg.mxu0
        %v1651 = vlaneseq
        %v1652 = vshrl.u32 %v1651, 7
        %v1653 = vadd.s32 %v1652, 8
        %v1654 = vlaneseq
        %v1655 = vand.u32 %v1654, 127
        %vm1656 = vcmp.le.s32.totalorder %v1655, %v1652
        %vm1657 = vcmp.le.s32.totalorder %v1655, %v1653
        %v1658 = vpack.c.bf16 %v1393, %v1389
        %v1659 = vpack.c.bf16 %v1479, %v1475
        %v1660 = vpack.c.bf16 %v1565, %v1561
        %1662 = vrot.lane.b32.xlu0 %v1659, 96
        %v1663 = vpop.permute.xlu0 %1662
        %vm1664 = vcmask 195584
        %v1666 = vsel %vm1664, %v1658, 0
        %v1669 = vsel %vm1664, %v1663, 0
        %1671 = vmatprep.subr.bf16.mxu0 0
        %1672 = vmatpush1.bf16.xpose.msra.mxu0 %v1669
        %1673 = vmatprep.subr.bf16.mxu0 0
        %1674 = vmatpush1.bf16.xpose.msra.mxu0 0
        %1675 = vmatprep.subr.bf16.mxu0 0
        %1676 = vmatpush1.bf16.xpose.msra.mxu0 0
        %1677 = vmatprep.subr.bf16.mxu0 0
        %1678 = vmatpush1.bf16.xpose.msra.mxu0 0
        %1679 = vmatprep.subr.bf16.mxu0 0
        %1680 = vmatpush1.bf16.xpose.msra.mxu0 0
        %1681 = vmatprep.subr.bf16.mxu0 0
        %1682 = vmatpush1.bf16.xpose.msra.mxu0 0
        %1683 = vmatprep.subr.bf16.mxu0 0
        %1684 = vmatpush1.bf16.xpose.msra.mxu0 0
        %1685 = vmatprep.subr.bf16.mxu0 0
        %1686 = vmatpush1.bf16.xpose.msra.mxu0 0
        %1687 = vmatprep.subr.bf16.mxu0 0
        %1688 = vmatpush1.bf16.xpose.msra.mxu0 0
        %1689 = vmatprep.subr.bf16.mxu0 0
        %1690 = vmatpush1.bf16.xpose.msra.mxu0 0
        %1691 = vmatprep.subr.bf16.mxu0 0
        %1692 = vmatpush1.bf16.xpose.msra.mxu0 0
        %1693 = vmatprep.subr.bf16.mxu0 0
        %1694 = vmatpush1.bf16.xpose.msra.mxu0 0
        %1695 = vmatprep.subr.bf16.mxu0 0
        %1696 = vmatpush1.bf16.xpose.msra.mxu0 0
        %1697 = vmatprep.subr.bf16.mxu0 0
        %1698 = vmatpush1.bf16.xpose.msra.mxu0 0
        %1699 = vmatprep.subr.bf16.mxu0 0
        %1700 = vmatpush1.bf16.xpose.msra.mxu0 0
        %1701 = vmatprep.subr.bf16.mxu0 0
        %1702 = vmatpush1.bf16.xpose.msra.mxu0 0
        %1703 = vmatprep.mubr.bf16.mxu0 0
        %1704 = vmatmul.mubr.bf16.gmra.mrb[0].mxu0 %v1666
        %v1705 = vpop.f32.mrb[0].mxu0
        %v1706 = vadd.f32 0.0, %v1705
        %v1707 = vpop.f32.mrb[0].mxu0
        %v1708 = vpop.f32.mrb[0].mxu0
        %v1709 = vadd.f32 0.0, %v1708
        %v1710 = vpop.f32.mrb[0].mxu0
        %1711 = vdwg.mxu0
        %v1712 = vsel %vm1656, %v1706, -inf
        %v1713 = vsel %vm1657, %v1709, -inf
        %vm1714 = vcmask 130048
        %v1715 = vsel %vm1714, %v1712, -inf
        %1716 = vmax.xlane.f32.xlu0 %v1715
        %v1717 = vpop.xlane.xlu0 %1716
        %v1718 = vsel %vm1714, %v1713, -inf
        %1719 = vmax.xlane.f32.xlu0 %v1718
        %v1720 = vpop.xlane.xlu0 %1719
        %v1721 = vsub.f32 %v1712, %v1717
        %v1722 = vsub.f32 %v1713, %v1720
        %v1723 = vmul.f32 %v1721, 1.442695
        %v1724 = vpow.pop %v1723
        %v1725 = vmul.f32 %v1722, 1.442695
        %v1726 = vpow.pop %v1725
        %v1727 = vsel %vm1714, %v1724, 0.0
        %1728 = vadd.xlane.f32.xlu0 %v1727
        %v1729 = vpop.xlane.xlu0 %1728
        %v1730 = vsel %vm1714, %v1726, 0.0
        %1731 = vadd.xlane.f32.xlu0 %v1730
        %v1732 = vpop.xlane.xlu0 %1731
        %v1733 = vrcp.pop %v1729
        %v1734 = vrcp.pop %v1732
        %v1735 = vmul.f32 %v1724, %v1733
        %v1736 = vmul.f32 %v1726, %v1734
        %v1737 = vpack.c.bf16 %v1736, %v1735
        %1739 = vrot.lane.b32.xlu0 %v1660, 64
        %v1740 = vpop.permute.xlu0 %1739
        %v1743 = vsel %vm1714, %v1737, 0
        %1745 = vmatprep.subr.bf16.mxu0 0
        %1746 = vmatpush1.bf16.msra.mxu0 %v1740
        %1747 = vmatprep.subr.bf16.mxu0 0
        %1748 = vmatpush1.bf16.msra.mxu0 0
        %1749 = vmatprep.subr.bf16.mxu0 0
        %1750 = vmatpush1.bf16.msra.mxu0 0
        %1751 = vmatprep.subr.bf16.mxu0 0
        %1752 = vmatpush1.bf16.msra.mxu0 0
        %1753 = vmatprep.subr.bf16.mxu0 0
        %1754 = vmatpush1.bf16.msra.mxu0 0
        %1755 = vmatprep.subr.bf16.mxu0 0
        %1756 = vmatpush1.bf16.msra.mxu0 0
        %1757 = vmatprep.subr.bf16.mxu0 0
        %1758 = vmatpush1.bf16.msra.mxu0 0
        %1759 = vmatprep.subr.bf16.mxu0 0
        %1760 = vmatpush1.bf16.msra.mxu0 0
        %1761 = vmatprep.subr.bf16.mxu0 0
        %1762 = vmatpush1.bf16.msra.mxu0 0
        %1763 = vmatprep.subr.bf16.mxu0 0
        %1764 = vmatpush1.bf16.msra.mxu0 0
        %1765 = vmatprep.subr.bf16.mxu0 0
        %1766 = vmatpush1.bf16.msra.mxu0 0
        %1767 = vmatprep.subr.bf16.mxu0 0
        %1768 = vmatpush1.bf16.msra.mxu0 0
        %1769 = vmatprep.subr.bf16.mxu0 0
        %1770 = vmatpush1.bf16.msra.mxu0 0
        %1771 = vmatprep.subr.bf16.mxu0 0
        %1772 = vmatpush1.bf16.msra.mxu0 0
        %1773 = vmatprep.subr.bf16.mxu0 0
        %1774 = vmatpush1.bf16.msra.mxu0 0
        %1775 = vmatprep.subr.bf16.mxu0 0
        %1776 = vmatpush1.bf16.msra.mxu0 0
        %1777 = vmatprep.mubr.bf16.mxu0 0
        %1778 = vmatmul.mubr.bf16.gmra.mrb[0].mxu0 %v1743
        %v1779 = vpop.f32.mrb[0].mxu0
        %v1780 = vadd.f32 0.0, %v1779
        %v1781 = vpop.f32.mrb[0].mxu0
        %v1782 = vpop.f32.mrb[0].mxu0
        %v1783 = vadd.f32 0.0, %v1782
        %v1784 = vpop.f32.mrb[0].mxu0
        %1785 = vdwg.mxu0
        %1787 = vrot.lane.b32.xlu0 %v1658, 104
        %v1788 = vpop.permute.xlu0 %1787
        %1789 = vrot.lane.b32.xlu0 %v1659, 72
        %v1790 = vpop.permute.xlu0 %1789
        %v1792 = vsel %vm1664, %v1788, 0
        %v1795 = vsel %vm1664, %v1790, 0
        %1797 = vmatprep.subr.bf16.mxu0 0
        %1798 = vmatpush1.bf16.xpose.msra.mxu0 %v1795
        %1799 = vmatprep.subr.bf16.mxu0 0
        %1800 = vmatpush1.bf16.xpose.msra.mxu0 0
        %1801 = vmatprep.subr.bf16.mxu0 0
        %1802 = vmatpush1.bf16.xpose.msra.mxu0 0
        %1803 = vmatprep.subr.bf16.mxu0 0
        %1804 = vmatpush1.bf16.xpose.msra.mxu0 0
        %1805 = vmatprep.subr.bf16.mxu0 0
        %1806 = vmatpush1.bf16.xpose.msra.mxu0 0
        %1807 = vmatprep.subr.bf16.mxu0 0
        %1808 = vmatpush1.bf16.xpose.msra.mxu0 0
        %1809 = vmatprep.subr.bf16.mxu0 0
        %1810 = vmatpush1.bf16.xpose.msra.mxu0 0
        %1811 = vmatprep.subr.bf16.mxu0 0
        %1812 = vmatpush1.bf16.xpose.msra.mxu0 0
        %1813 = vmatprep.subr.bf16.mxu0 0
        %1814 = vmatpush1.bf16.xpose.msra.mxu0 0
        %1815 = vmatprep.subr.bf16.mxu0 0
        %1816 = vmatpush1.bf16.xpose.msra.mxu0 0
        %1817 = vmatprep.subr.bf16.mxu0 0
        %1818 = vmatpush1.bf16.xpose.msra.mxu0 0
        %1819 = vmatprep.subr.bf16.mxu0 0
        %1820 = vmatpush1.bf16.xpose.msra.mxu0 0
        %1821 = vmatprep.subr.bf16.mxu0 0
        %1822 = vmatpush1.bf16.xpose.msra.mxu0 0
        %1823 = vmatprep.subr.bf16.mxu0 0
        %1824 = vmatpush1.bf16.xpose.msra.mxu0 0
        %1825 = vmatprep.subr.bf16.mxu0 0
        %1826 = vmatpush1.bf16.xpose.msra.mxu0 0
        %1827 = vmatprep.subr.bf16.mxu0 0
        %1828 = vmatpush1.bf16.xpose.msra.mxu0 0
        %1829 = vmatprep.mubr.bf16.mxu0 0
        %1830 = vmatmul.mubr.bf16.gmra.mrb[0].mxu0 %v1792
        %v1831 = vpop.f32.mrb[0].mxu0
        %v1832 = vadd.f32 0.0, %v1831
        %v1833 = vpop.f32.mrb[0].mxu0
        %v1834 = vpop.f32.mrb[0].mxu0
        %v1835 = vadd.f32 0.0, %v1834
        %v1836 = vpop.f32.mrb[0].mxu0
        %1837 = vdwg.mxu0
        %v1838 = vsel %vm1656, %v1832, -inf
        %v1839 = vsel %vm1657, %v1835, -inf
        %v1840 = vsel %vm1714, %v1838, -inf
        %1841 = vmax.xlane.f32.xlu0 %v1840
        %v1842 = vpop.xlane.xlu0 %1841
        %v1843 = vsel %vm1714, %v1839, -inf
        %1844 = vmax.xlane.f32.xlu0 %v1843
        %v1845 = vpop.xlane.xlu0 %1844
        %v1846 = vsub.f32 %v1838, %v1842
        %v1847 = vsub.f32 %v1839, %v1845
        %v1848 = vmul.f32 %v1846, 1.442695
        %v1849 = vpow.pop %v1848
        %v1850 = vmul.f32 %v1847, 1.442695
        %v1851 = vpow.pop %v1850
        %v1852 = vsel %vm1714, %v1849, 0.0
        %1853 = vadd.xlane.f32.xlu0 %v1852
        %v1854 = vpop.xlane.xlu0 %1853
        %v1855 = vsel %vm1714, %v1851, 0.0
        %1856 = vadd.xlane.f32.xlu0 %v1855
        %v1857 = vpop.xlane.xlu0 %1856
        %v1858 = vrcp.pop %v1854
        %v1859 = vrcp.pop %v1857
        %v1860 = vmul.f32 %v1849, %v1858
        %v1861 = vmul.f32 %v1851, %v1859
        %v1862 = vpack.c.bf16 %v1861, %v1860
        %1863 = vrot.lane.b32.xlu0 %v1660, 40
        %v1864 = vpop.permute.xlu0 %1863
        %v1867 = vsel %vm1714, %v1862, 0
        %1869 = vmatprep.subr.bf16.mxu0 0
        %1870 = vmatpush1.bf16.msra.mxu0 %v1864
        %1871 = vmatprep.subr.bf16.mxu0 0
        %1872 = vmatpush1.bf16.msra.mxu0 0
        %1873 = vmatprep.subr.bf16.mxu0 0
        %1874 = vmatpush1.bf16.msra.mxu0 0
        %1875 = vmatprep.subr.bf16.mxu0 0
        %1876 = vmatpush1.bf16.msra.mxu0 0
        %1877 = vmatprep.subr.bf16.mxu0 0
        %1878 = vmatpush1.bf16.msra.mxu0 0
        %1879 = vmatprep.subr.bf16.mxu0 0
        %1880 = vmatpush1.bf16.msra.mxu0 0
        %1881 = vmatprep.subr.bf16.mxu0 0
        %1882 = vmatpush1.bf16.msra.mxu0 0
        %1883 = vmatprep.subr.bf16.mxu0 0
        %1884 = vmatpush1.bf16.msra.mxu0 0
        %1885 = vmatprep.subr.bf16.mxu0 0
        %1886 = vmatpush1.bf16.msra.mxu0 0
        %1887 = vmatprep.subr.bf16.mxu0 0
        %1888 = vmatpush1.bf16.msra.mxu0 0
        %1889 = vmatprep.subr.bf16.mxu0 0
        %1890 = vmatpush1.bf16.msra.mxu0 0
        %1891 = vmatprep.subr.bf16.mxu0 0
        %1892 = vmatpush1.bf16.msra.mxu0 0
        %1893 = vmatprep.subr.bf16.mxu0 0
        %1894 = vmatpush1.bf16.msra.mxu0 0
        %1895 = vmatprep.subr.bf16.mxu0 0
        %1896 = vmatpush1.bf16.msra.mxu0 0
        %1897 = vmatprep.subr.bf16.mxu0 0
        %1898 = vmatpush1.bf16.msra.mxu0 0
        %1899 = vmatprep.subr.bf16.mxu0 0
        %1900 = vmatpush1.bf16.msra.mxu0 0
        %1901 = vmatprep.mubr.bf16.mxu0 0
        %1902 = vmatmul.mubr.bf16.gmra.mrb[0].mxu0 %v1867
        %v1903 = vpop.f32.mrb[0].mxu0
        %v1904 = vadd.f32 0.0, %v1903
        %v1905 = vpop.f32.mrb[0].mxu0
        %v1906 = vpop.f32.mrb[0].mxu0
        %v1907 = vadd.f32 0.0, %v1906
        %v1908 = vpop.f32.mrb[0].mxu0
        %1909 = vdwg.mxu0
        %v1910 = vpack.c.bf16 %v1567, %v1563
        %1911 = vrot.lane.b32.xlu0 %v1658, 80
        %v1912 = vpop.permute.xlu0 %1911
        %1913 = vrot.lane.b32.xlu0 %v1659, 48
        %v1914 = vpop.permute.xlu0 %1913
        %v1916 = vsel %vm1664, %v1912, 0
        %v1919 = vsel %vm1664, %v1914, 0
        %1921 = vmatprep.subr.bf16.mxu0 0
        %1922 = vmatpush1.bf16.xpose.msra.mxu0 %v1919
        %1923 = vmatprep.subr.bf16.mxu0 0
        %1924 = vmatpush1.bf16.xpose.msra.mxu0 0
        %1925 = vmatprep.subr.bf16.mxu0 0
        %1926 = vmatpush1.bf16.xpose.msra.mxu0 0
        %1927 = vmatprep.subr.bf16.mxu0 0
        %1928 = vmatpush1.bf16.xpose.msra.mxu0 0
        %1929 = vmatprep.subr.bf16.mxu0 0
        %1930 = vmatpush1.bf16.xpose.msra.mxu0 0
        %1931 = vmatprep.subr.bf16.mxu0 0
        %1932 = vmatpush1.bf16.xpose.msra.mxu0 0
        %1933 = vmatprep.subr.bf16.mxu0 0
        %1934 = vmatpush1.bf16.xpose.msra.mxu0 0
        %1935 = vmatprep.subr.bf16.mxu0 0
        %1936 = vmatpush1.bf16.xpose.msra.mxu0 0
        %1937 = vmatprep.subr.bf16.mxu0 0
        %1938 = vmatpush1.bf16.xpose.msra.mxu0 0
        %1939 = vmatprep.subr.bf16.mxu0 0
        %1940 = vmatpush1.bf16.xpose.msra.mxu0 0
        %1941 = vmatprep.subr.bf16.mxu0 0
        %1942 = vmatpush1.bf16.xpose.msra.mxu0 0
        %1943 = vmatprep.subr.bf16.mxu0 0
        %1944 = vmatpush1.bf16.xpose.msra.mxu0 0
        %1945 = vmatprep.subr.bf16.mxu0 0
        %1946 = vmatpush1.bf16.xpose.msra.mxu0 0
        %1947 = vmatprep.subr.bf16.mxu0 0
        %1948 = vmatpush1.bf16.xpose.msra.mxu0 0
        %1949 = vmatprep.subr.bf16.mxu0 0
        %1950 = vmatpush1.bf16.xpose.msra.mxu0 0
        %1951 = vmatprep.subr.bf16.mxu0 0
        %1952 = vmatpush1.bf16.xpose.msra.mxu0 0
        %1953 = vmatprep.mubr.bf16.mxu0 0
        %1954 = vmatmul.mubr.bf16.gmra.mrb[0].mxu0 %v1916
        %v1955 = vpop.f32.mrb[0].mxu0
        %v1956 = vadd.f32 0.0, %v1955
        %v1957 = vpop.f32.mrb[0].mxu0
        %v1958 = vpop.f32.mrb[0].mxu0
        %v1959 = vadd.f32 0.0, %v1958
        %v1960 = vpop.f32.mrb[0].mxu0
        %1961 = vdwg.mxu0
        %v1962 = vsel %vm1656, %v1956, -inf
        %v1963 = vsel %vm1657, %v1959, -inf
        %v1964 = vsel %vm1714, %v1962, -inf
        %1965 = vmax.xlane.f32.xlu0 %v1964
        %v1966 = vpop.xlane.xlu0 %1965
        %v1967 = vsel %vm1714, %v1963, -inf
        %1968 = vmax.xlane.f32.xlu0 %v1967
        %v1969 = vpop.xlane.xlu0 %1968
        %v1970 = vsub.f32 %v1962, %v1966
        %v1971 = vsub.f32 %v1963, %v1969
        %v1972 = vmul.f32 %v1970, 1.442695
        %v1973 = vpow.pop %v1972
        %v1974 = vmul.f32 %v1971, 1.442695
        %v1975 = vpow.pop %v1974
        %v1976 = vsel %vm1714, %v1973, 0.0
        %1977 = vadd.xlane.f32.xlu0 %v1976
        %v1978 = vpop.xlane.xlu0 %1977
        %v1979 = vsel %vm1714, %v1975, 0.0
        %1980 = vadd.xlane.f32.xlu0 %v1979
        %v1981 = vpop.xlane.xlu0 %1980
        %v1982 = vrcp.pop %v1978
        %v1983 = vrcp.pop %v1981
        %v1984 = vmul.f32 %v1973, %v1982
        %v1985 = vmul.f32 %v1975, %v1983
        %v1986 = vpack.c.bf16 %v1985, %v1984
        %1988 = vrot.lane.b32.xlu0 %v1660, 16
        %v1989 = vpop.permute.xlu0 %1988
        %1990 = vrot.lane.b32.xlu0 %v1910, 16
        %v1991 = vpop.permute.xlu0 %1990
        %vm1992 = vcmask 130048
        %v1993 = vsel %vm1992, %v1989, %v1991
        %v1996 = vsel %vm1714, %v1986, 0
        %1998 = vmatprep.subr.bf16.mxu0 0
        %1999 = vmatpush1.bf16.msra.mxu0 %v1993
        %2000 = vmatprep.subr.bf16.mxu0 0
        %2001 = vmatpush1.bf16.msra.mxu0 0
        %2002 = vmatprep.subr.bf16.mxu0 0
        %2003 = vmatpush1.bf16.msra.mxu0 0
        %2004 = vmatprep.subr.bf16.mxu0 0
        %2005 = vmatpush1.bf16.msra.mxu0 0
        %2006 = vmatprep.subr.bf16.mxu0 0
        %2007 = vmatpush1.bf16.msra.mxu0 0
        %2008 = vmatprep.subr.bf16.mxu0 0
        %2009 = vmatpush1.bf16.msra.mxu0 0
        %2010 = vmatprep.subr.bf16.mxu0 0
        %2011 = vmatpush1.bf16.msra.mxu0 0
        %2012 = vmatprep.subr.bf16.mxu0 0
        %2013 = vmatpush1.bf16.msra.mxu0 0
        %2014 = vmatprep.subr.bf16.mxu0 0
        %2015 = vmatpush1.bf16.msra.mxu0 0
        %2016 = vmatprep.subr.bf16.mxu0 0
        %2017 = vmatpush1.bf16.msra.mxu0 0
        %2018 = vmatprep.subr.bf16.mxu0 0
        %2019 = vmatpush1.bf16.msra.mxu0 0
        %2020 = vmatprep.subr.bf16.mxu0 0
        %2021 = vmatpush1.bf16.msra.mxu0 0
        %2022 = vmatprep.subr.bf16.mxu0 0
        %2023 = vmatpush1.bf16.msra.mxu0 0
        %2024 = vmatprep.subr.bf16.mxu0 0
        %2025 = vmatpush1.bf16.msra.mxu0 0
        %2026 = vmatprep.subr.bf16.mxu0 0
        %2027 = vmatpush1.bf16.msra.mxu0 0
        %2028 = vmatprep.subr.bf16.mxu0 0
        %2029 = vmatpush1.bf16.msra.mxu0 0
        %2030 = vmatprep.mubr.bf16.mxu0 0
        %2031 = vmatmul.mubr.bf16.gmra.mrb[0].mxu0 %v1996
        %v2032 = vpop.f32.mrb[0].mxu0
        %v2033 = vadd.f32 0.0, %v2032
        %v2034 = vpop.f32.mrb[0].mxu0
        %v2035 = vpop.f32.mrb[0].mxu0
        %v2036 = vadd.f32 0.0, %v2035
        %v2037 = vpop.f32.mrb[0].mxu0
        %2038 = vdwg.mxu0
        %2039 = vrot.lane.b32.xlu0 %v1658, 56
        %v2040 = vpop.permute.xlu0 %2039
        %2041 = vrot.lane.b32.xlu0 %v1659, 24
        %v2042 = vpop.permute.xlu0 %2041
        %v2044 = vsel %vm1664, %v2040, 0
        %v2047 = vsel %vm1664, %v2042, 0
        %2049 = vmatprep.subr.bf16.mxu0 0
        %2050 = vmatpush1.bf16.xpose.msra.mxu0 %v2047
        %2051 = vmatprep.subr.bf16.mxu0 0
        %2052 = vmatpush1.bf16.xpose.msra.mxu0 0
        %2053 = vmatprep.subr.bf16.mxu0 0
        %2054 = vmatpush1.bf16.xpose.msra.mxu0 0
        %2055 = vmatprep.subr.bf16.mxu0 0
        %2056 = vmatpush1.bf16.xpose.msra.mxu0 0
        %2057 = vmatprep.subr.bf16.mxu0 0
        %2058 = vmatpush1.bf16.xpose.msra.mxu0 0
        %2059 = vmatprep.subr.bf16.mxu0 0
        %2060 = vmatpush1.bf16.xpose.msra.mxu0 0
        %2061 = vmatprep.subr.bf16.mxu0 0
        %2062 = vmatpush1.bf16.xpose.msra.mxu0 0
        %2063 = vmatprep.subr.bf16.mxu0 0
        %2064 = vmatpush1.bf16.xpose.msra.mxu0 0
        %2065 = vmatprep.subr.bf16.mxu0 0
        %2066 = vmatpush1.bf16.xpose.msra.mxu0 0
        %2067 = vmatprep.subr.bf16.mxu0 0
        %2068 = vmatpush1.bf16.xpose.msra.mxu0 0
        %2069 = vmatprep.subr.bf16.mxu0 0
        %2070 = vmatpush1.bf16.xpose.msra.mxu0 0
        %2071 = vmatprep.subr.bf16.mxu0 0
        %2072 = vmatpush1.bf16.xpose.msra.mxu0 0
        %2073 = vmatprep.subr.bf16.mxu0 0
        %2074 = vmatpush1.bf16.xpose.msra.mxu0 0
        %2075 = vmatprep.subr.bf16.mxu0 0
        %2076 = vmatpush1.bf16.xpose.msra.mxu0 0
        %2077 = vmatprep.subr.bf16.mxu0 0
        %2078 = vmatpush1.bf16.xpose.msra.mxu0 0
        %2079 = vmatprep.subr.bf16.mxu0 0
        %2080 = vmatpush1.bf16.xpose.msra.mxu0 0
        %2081 = vmatprep.mubr.bf16.mxu0 0
        %2082 = vmatmul.mubr.bf16.gmra.mrb[0].mxu0 %v2044
        %v2083 = vpop.f32.mrb[0].mxu0
        %v2084 = vadd.f32 0.0, %v2083
        %v2085 = vpop.f32.mrb[0].mxu0
        %v2086 = vpop.f32.mrb[0].mxu0
        %v2087 = vadd.f32 0.0, %v2086
        %v2088 = vpop.f32.mrb[0].mxu0
        %2089 = vdwg.mxu0
        %v2090 = vsel %vm1656, %v2084, -inf
        %v2091 = vsel %vm1657, %v2087, -inf
        %v2092 = vsel %vm1714, %v2090, -inf
        %2093 = vmax.xlane.f32.xlu0 %v2092
        %v2094 = vpop.xlane.xlu0 %2093
        %v2095 = vsel %vm1714, %v2091, -inf
        %2096 = vmax.xlane.f32.xlu0 %v2095
        %v2097 = vpop.xlane.xlu0 %2096
        %v2098 = vsub.f32 %v2090, %v2094
        %v2099 = vsub.f32 %v2091, %v2097
        %v2100 = vmul.f32 %v2098, 1.442695
        %v2101 = vpow.pop %v2100
        %v2102 = vmul.f32 %v2099, 1.442695
        %v2103 = vpow.pop %v2102
        %v2104 = vsel %vm1714, %v2101, 0.0
        %2105 = vadd.xlane.f32.xlu0 %v2104
        %v2106 = vpop.xlane.xlu0 %2105
        %v2107 = vsel %vm1714, %v2103, 0.0
        %2108 = vadd.xlane.f32.xlu0 %v2107
        %v2109 = vpop.xlane.xlu0 %2108
        %v2110 = vrcp.pop %v2106
        %v2111 = vrcp.pop %v2109
        %v2112 = vmul.f32 %v2101, %v2110
        %v2113 = vmul.f32 %v2103, %v2111
        %v2114 = vpack.c.bf16 %v2113, %v2112
        %2115 = vrot.lane.b32.xlu0 %v1910, 120
        %v2116 = vpop.permute.xlu0 %2115
        %v2119 = vsel %vm1714, %v2114, 0
        %2121 = vmatprep.subr.bf16.mxu0 0
        %2122 = vmatpush1.bf16.msra.mxu0 %v2116
        %2123 = vmatprep.subr.bf16.mxu0 0
        %2124 = vmatpush1.bf16.msra.mxu0 0
        %2125 = vmatprep.subr.bf16.mxu0 0
        %2126 = vmatpush1.bf16.msra.mxu0 0
        %2127 = vmatprep.subr.bf16.mxu0 0
        %2128 = vmatpush1.bf16.msra.mxu0 0
        %2129 = vmatprep.subr.bf16.mxu0 0
        %2130 = vmatpush1.bf16.msra.mxu0 0
        %2131 = vmatprep.subr.bf16.mxu0 0
        %2132 = vmatpush1.bf16.msra.mxu0 0
        %2133 = vmatprep.subr.bf16.mxu0 0
        %2134 = vmatpush1.bf16.msra.mxu0 0
        %2135 = vmatprep.subr.bf16.mxu0 0
        %2136 = vmatpush1.bf16.msra.mxu0 0
        %2137 = vmatprep.subr.bf16.mxu0 0
        %2138 = vmatpush1.bf16.msra.mxu0 0
        %2139 = vmatprep.subr.bf16.mxu0 0
        %2140 = vmatpush1.bf16.msra.mxu0 0
        %2141 = vmatprep.subr.bf16.mxu0 0
        %2142 = vmatpush1.bf16.msra.mxu0 0
        %2143 = vmatprep.subr.bf16.mxu0 0
        %2144 = vmatpush1.bf16.msra.mxu0 0
        %2145 = vmatprep.subr.bf16.mxu0 0
        %2146 = vmatpush1.bf16.msra.mxu0 0
        %2147 = vmatprep.subr.bf16.mxu0 0
        %2148 = vmatpush1.bf16.msra.mxu0 0
        %2149 = vmatprep.subr.bf16.mxu0 0
        %2150 = vmatpush1.bf16.msra.mxu0 0
        %2151 = vmatprep.subr.bf16.mxu0 0
        %2152 = vmatpush1.bf16.msra.mxu0 0
        %2153 = vmatprep.mubr.bf16.mxu0 0
        %2154 = vmatmul.mubr.bf16.gmra.mrb[0].mxu0 %v2119
        %v2155 = vpop.f32.mrb[0].mxu0
        %v2156 = vadd.f32 0.0, %v2155
        %v2157 = vpop.f32.mrb[0].mxu0
        %v2158 = vpop.f32.mrb[0].mxu0
        %v2159 = vadd.f32 0.0, %v2158
        %v2160 = vpop.f32.mrb[0].mxu0
        %2161 = vdwg.mxu0
        %v2162 = vpack.c.bf16 %v1481, %v1477
        %2163 = vrot.lane.b32.xlu0 %v1658, 32
        %v2164 = vpop.permute.xlu0 %2163
        %v2166 = vsel %vm1664, %v2164, 0
        %v2169 = vsel %vm1664, %v2162, 0
        %2171 = vmatprep.subr.bf16.mxu0 0
        %2172 = vmatpush1.bf16.xpose.msra.mxu0 %v2169
        %2173 = vmatprep.subr.bf16.mxu0 0
        %2174 = vmatpush1.bf16.xpose.msra.mxu0 0
        %2175 = vmatprep.subr.bf16.mxu0 0
        %2176 = vmatpush1.bf16.xpose.msra.mxu0 0
        %2177 = vmatprep.subr.bf16.mxu0 0
        %2178 = vmatpush1.bf16.xpose.msra.mxu0 0
        %2179 = vmatprep.subr.bf16.mxu0 0
        %2180 = vmatpush1.bf16.xpose.msra.mxu0 0
        %2181 = vmatprep.subr.bf16.mxu0 0
        %2182 = vmatpush1.bf16.xpose.msra.mxu0 0
        %2183 = vmatprep.subr.bf16.mxu0 0
        %2184 = vmatpush1.bf16.xpose.msra.mxu0 0
        %2185 = vmatprep.subr.bf16.mxu0 0
        %2186 = vmatpush1.bf16.xpose.msra.mxu0 0
        %2187 = vmatprep.subr.bf16.mxu0 0
        %2188 = vmatpush1.bf16.xpose.msra.mxu0 0
        %2189 = vmatprep.subr.bf16.mxu0 0
        %2190 = vmatpush1.bf16.xpose.msra.mxu0 0
        %2191 = vmatprep.subr.bf16.mxu0 0
        %2192 = vmatpush1.bf16.xpose.msra.mxu0 0
        %2193 = vmatprep.subr.bf16.mxu0 0
        %2194 = vmatpush1.bf16.xpose.msra.mxu0 0
        %2195 = vmatprep.subr.bf16.mxu0 0
        %2196 = vmatpush1.bf16.xpose.msra.mxu0 0
        %2197 = vmatprep.subr.bf16.mxu0 0
        %2198 = vmatpush1.bf16.xpose.msra.mxu0 0
        %2199 = vmatprep.subr.bf16.mxu0 0
        %2200 = vmatpush1.bf16.xpose.msra.mxu0 0
        %2201 = vmatprep.subr.bf16.mxu0 0
        %2202 = vmatpush1.bf16.xpose.msra.mxu0 0
        %2203 = vmatprep.mubr.bf16.mxu0 0
        %2204 = vmatmul.mubr.bf16.gmra.mrb[0].mxu0 %v2166
        %v2205 = vpop.f32.mrb[0].mxu0
        %v2206 = vadd.f32 0.0, %v2205
        %v2207 = vpop.f32.mrb[0].mxu0
        %v2208 = vpop.f32.mrb[0].mxu0
        %v2209 = vadd.f32 0.0, %v2208
        %v2210 = vpop.f32.mrb[0].mxu0
        %2211 = vdwg.mxu0
        %v2212 = vsel %vm1656, %v2206, -inf
        %v2213 = vsel %vm1657, %v2209, -inf
        %v2214 = vsel %vm1714, %v2212, -inf
        %2215 = vmax.xlane.f32.xlu0 %v2214
        %v2216 = vpop.xlane.xlu0 %2215
        %v2217 = vsel %vm1714, %v2213, -inf
        %2218 = vmax.xlane.f32.xlu0 %v2217
        %v2219 = vpop.xlane.xlu0 %2218
        %v2220 = vsub.f32 %v2212, %v2216
        %v2221 = vsub.f32 %v2213, %v2219
        %v2222 = vmul.f32 %v2220, 1.442695
        %v2223 = vpow.pop %v2222
        %v2224 = vmul.f32 %v2221, 1.442695
        %v2225 = vpow.pop %v2224
        %v2226 = vsel %vm1714, %v2223, 0.0
        %2227 = vadd.xlane.f32.xlu0 %v2226
        %v2228 = vpop.xlane.xlu0 %2227
        %v2229 = vsel %vm1714, %v2225, 0.0
        %2230 = vadd.xlane.f32.xlu0 %v2229
        %v2231 = vpop.xlane.xlu0 %2230
        %v2232 = vrcp.pop %v2228
        %v2233 = vrcp.pop %v2231
        %v2234 = vmul.f32 %v2223, %v2232
        %v2235 = vmul.f32 %v2225, %v2233
        %v2236 = vpack.c.bf16 %v2235, %v2234
        %2237 = vrot.lane.b32.xlu0 %v1910, 96
        %v2238 = vpop.permute.xlu0 %2237
        %v2241 = vsel %vm1714, %v2236, 0
        %2243 = vmatprep.subr.bf16.mxu0 0
        %2244 = vmatpush1.bf16.msra.mxu0 %v2238
        %2245 = vmatprep.subr.bf16.mxu0 0
        %2246 = vmatpush1.bf16.msra.mxu0 0
        %2247 = vmatprep.subr.bf16.mxu0 0
        %2248 = vmatpush1.bf16.msra.mxu0 0
        %2249 = vmatprep.subr.bf16.mxu0 0
        %2250 = vmatpush1.bf16.msra.mxu0 0
        %2251 = vmatprep.subr.bf16.mxu0 0
        %2252 = vmatpush1.bf16.msra.mxu0 0
        %2253 = vmatprep.subr.bf16.mxu0 0
        %2254 = vmatpush1.bf16.msra.mxu0 0
        %2255 = vmatprep.subr.bf16.mxu0 0
        %2256 = vmatpush1.bf16.msra.mxu0 0
        %2257 = vmatprep.subr.bf16.mxu0 0
        %2258 = vmatpush1.bf16.msra.mxu0 0
        %2259 = vmatprep.subr.bf16.mxu0 0
        %2260 = vmatpush1.bf16.msra.mxu0 0
        %2261 = vmatprep.subr.bf16.mxu0 0
        %2262 = vmatpush1.bf16.msra.mxu0 0
        %2263 = vmatprep.subr.bf16.mxu0 0
        %2264 = vmatpush1.bf16.msra.mxu0 0
        %2265 = vmatprep.subr.bf16.mxu0 0
        %2266 = vmatpush1.bf16.msra.mxu0 0
        %2267 = vmatprep.subr.bf16.mxu0 0
        %2268 = vmatpush1.bf16.msra.mxu0 0
        %2269 = vmatprep.subr.bf16.mxu0 0
        %2270 = vmatpush1.bf16.msra.mxu0 0
        %2271 = vmatprep.subr.bf16.mxu0 0
        %2272 = vmatpush1.bf16.msra.mxu0 0
        %2273 = vmatprep.subr.bf16.mxu0 0
        %2274 = vmatpush1.bf16.msra.mxu0 0
        %2275 = vmatprep.mubr.bf16.mxu0 0
        %2276 = vmatmul.mubr.bf16.gmra.mrb[0].mxu0 %v2241
        %v2277 = vpop.f32.mrb[0].mxu0
        %v2278 = vadd.f32 0.0, %v2277
        %v2279 = vpop.f32.mrb[0].mxu0
        %v2280 = vpop.f32.mrb[0].mxu0
        %v2281 = vadd.f32 0.0, %v2280
        %v2282 = vpop.f32.mrb[0].mxu0
        %2283 = vdwg.mxu0
        %v2284 = vpack.c.bf16 %v1395, %v1391
        %2286 = vrot.lane.b32.xlu0 %v1658, 8
        %v2287 = vpop.permute.xlu0 %2286
        %2288 = vrot.lane.b32.xlu0 %v2284, 8
        %v2289 = vpop.permute.xlu0 %2288
        %vm2290 = vcmask 64512
        %v2291 = vsel %vm2290, %v2287, %v2289
        %2293 = vrot.lane.b32.xlu0 %v2162, 104
        %v2294 = vpop.permute.xlu0 %2293
        %v2296 = vsel %vm1664, %v2291, 0
        %v2299 = vsel %vm1664, %v2294, 0
        %2301 = vmatprep.subr.bf16.mxu0 0
        %2302 = vmatpush1.bf16.xpose.msra.mxu0 %v2299
        %2303 = vmatprep.subr.bf16.mxu0 0
        %2304 = vmatpush1.bf16.xpose.msra.mxu0 0
        %2305 = vmatprep.subr.bf16.mxu0 0
        %2306 = vmatpush1.bf16.xpose.msra.mxu0 0
        %2307 = vmatprep.subr.bf16.mxu0 0
        %2308 = vmatpush1.bf16.xpose.msra.mxu0 0
        %2309 = vmatprep.subr.bf16.mxu0 0
        %2310 = vmatpush1.bf16.xpose.msra.mxu0 0
        %2311 = vmatprep.subr.bf16.mxu0 0
        %2312 = vmatpush1.bf16.xpose.msra.mxu0 0
        %2313 = vmatprep.subr.bf16.mxu0 0
        %2314 = vmatpush1.bf16.xpose.msra.mxu0 0
        %2315 = vmatprep.subr.bf16.mxu0 0
        %2316 = vmatpush1.bf16.xpose.msra.mxu0 0
        %2317 = vmatprep.subr.bf16.mxu0 0
        %2318 = vmatpush1.bf16.xpose.msra.mxu0 0
        %2319 = vmatprep.subr.bf16.mxu0 0
        %2320 = vmatpush1.bf16.xpose.msra.mxu0 0
        %2321 = vmatprep.subr.bf16.mxu0 0
        %2322 = vmatpush1.bf16.xpose.msra.mxu0 0
        %2323 = vmatprep.subr.bf16.mxu0 0
        %2324 = vmatpush1.bf16.xpose.msra.mxu0 0
        %2325 = vmatprep.subr.bf16.mxu0 0
        %2326 = vmatpush1.bf16.xpose.msra.mxu0 0
        %2327 = vmatprep.subr.bf16.mxu0 0
        %2328 = vmatpush1.bf16.xpose.msra.mxu0 0
        %2329 = vmatprep.subr.bf16.mxu0 0
        %2330 = vmatpush1.bf16.xpose.msra.mxu0 0
        %2331 = vmatprep.subr.bf16.mxu0 0
        %2332 = vmatpush1.bf16.xpose.msra.mxu0 0
        %2333 = vmatprep.mubr.bf16.mxu0 0
        %2334 = vmatmul.mubr.bf16.gmra.mrb[0].mxu0 %v2296
        %v2335 = vpop.f32.mrb[0].mxu0
        %v2336 = vadd.f32 0.0, %v2335
        %v2337 = vpop.f32.mrb[0].mxu0
        %v2338 = vpop.f32.mrb[0].mxu0
        %v2339 = vadd.f32 0.0, %v2338
        %v2340 = vpop.f32.mrb[0].mxu0
        %2341 = vdwg.mxu0
        %v2342 = vsel %vm1656, %v2336, -inf
        %v2343 = vsel %vm1657, %v2339, -inf
        %v2344 = vsel %vm1714, %v2342, -inf
        %2345 = vmax.xlane.f32.xlu0 %v2344
        %v2346 = vpop.xlane.xlu0 %2345
        %v2347 = vsel %vm1714, %v2343, -inf
        %2348 = vmax.xlane.f32.xlu0 %v2347
        %v2349 = vpop.xlane.xlu0 %2348
        %v2350 = vsub.f32 %v2342, %v2346
        %v2351 = vsub.f32 %v2343, %v2349
        %v2352 = vmul.f32 %v2350, 1.442695
        %v2353 = vpow.pop %v2352
        %v2354 = vmul.f32 %v2351, 1.442695
        %v2355 = vpow.pop %v2354
        %v2356 = vsel %vm1714, %v2353, 0.0
        %2357 = vadd.xlane.f32.xlu0 %v2356
        %v2358 = vpop.xlane.xlu0 %2357
        %v2359 = vsel %vm1714, %v2355, 0.0
        %2360 = vadd.xlane.f32.xlu0 %v2359
        %v2361 = vpop.xlane.xlu0 %2360
        %v2362 = vrcp.pop %v2358
        %v2363 = vrcp.pop %v2361
        %v2364 = vmul.f32 %v2353, %v2362
        %v2365 = vmul.f32 %v2355, %v2363
        %v2366 = vpack.c.bf16 %v2365, %v2364
        %2367 = vrot.lane.b32.xlu0 %v1910, 72
        %v2368 = vpop.permute.xlu0 %2367
        %v2371 = vsel %vm1714, %v2366, 0
        %2373 = vmatprep.subr.bf16.mxu0 0
        %2374 = vmatpush1.bf16.msra.mxu0 %v2368
        %2375 = vmatprep.subr.bf16.mxu0 0
        %2376 = vmatpush1.bf16.msra.mxu0 0
        %2377 = vmatprep.subr.bf16.mxu0 0
        %2378 = vmatpush1.bf16.msra.mxu0 0
        %2379 = vmatprep.subr.bf16.mxu0 0
        %2380 = vmatpush1.bf16.msra.mxu0 0
        %2381 = vmatprep.subr.bf16.mxu0 0
        %2382 = vmatpush1.bf16.msra.mxu0 0
        %2383 = vmatprep.subr.bf16.mxu0 0
        %2384 = vmatpush1.bf16.msra.mxu0 0
        %2385 = vmatprep.subr.bf16.mxu0 0
        %2386 = vmatpush1.bf16.msra.mxu0 0
        %2387 = vmatprep.subr.bf16.mxu0 0
        %2388 = vmatpush1.bf16.msra.mxu0 0
        %2389 = vmatprep.subr.bf16.mxu0 0
        %2390 = vmatpush1.bf16.msra.mxu0 0
        %2391 = vmatprep.subr.bf16.mxu0 0
        %2392 = vmatpush1.bf16.msra.mxu0 0
        %2393 = vmatprep.subr.bf16.mxu0 0
        %2394 = vmatpush1.bf16.msra.mxu0 0
        %2395 = vmatprep.subr.bf16.mxu0 0
        %2396 = vmatpush1.bf16.msra.mxu0 0
        %2397 = vmatprep.subr.bf16.mxu0 0
        %2398 = vmatpush1.bf16.msra.mxu0 0
        %2399 = vmatprep.subr.bf16.mxu0 0
        %2400 = vmatpush1.bf16.msra.mxu0 0
        %2401 = vmatprep.subr.bf16.mxu0 0
        %2402 = vmatpush1.bf16.msra.mxu0 0
        %2403 = vmatprep.subr.bf16.mxu0 0
        %2404 = vmatpush1.bf16.msra.mxu0 0
        %2405 = vmatprep.mubr.bf16.mxu0 0
        %2406 = vmatmul.mubr.bf16.gmra.mrb[0].mxu0 %v2371
        %v2407 = vpop.f32.mrb[0].mxu0
        %v2408 = vadd.f32 0.0, %v2407
        %v2409 = vpop.f32.mrb[0].mxu0
        %v2410 = vpop.f32.mrb[0].mxu0
        %v2411 = vadd.f32 0.0, %v2410
        %v2412 = vpop.f32.mrb[0].mxu0
        %2413 = vdwg.mxu0
        %2414 = vrot.lane.b32.xlu0 %v2284, 112
        %v2415 = vpop.permute.xlu0 %2414
        %2416 = vrot.lane.b32.xlu0 %v2162, 80
        %v2417 = vpop.permute.xlu0 %2416
        %v2419 = vsel %vm1664, %v2415, 0
        %v2422 = vsel %vm1664, %v2417, 0
        %2424 = vmatprep.subr.bf16.mxu0 0
        %2425 = vmatpush1.bf16.xpose.msra.mxu0 %v2422
        %2426 = vmatprep.subr.bf16.mxu0 0
        %2427 = vmatpush1.bf16.xpose.msra.mxu0 0
        %2428 = vmatprep.subr.bf16.mxu0 0
        %2429 = vmatpush1.bf16.xpose.msra.mxu0 0
        %2430 = vmatprep.subr.bf16.mxu0 0
        %2431 = vmatpush1.bf16.xpose.msra.mxu0 0
        %2432 = vmatprep.subr.bf16.mxu0 0
        %2433 = vmatpush1.bf16.xpose.msra.mxu0 0
        %2434 = vmatprep.subr.bf16.mxu0 0
        %2435 = vmatpush1.bf16.xpose.msra.mxu0 0
        %2436 = vmatprep.subr.bf16.mxu0 0
        %2437 = vmatpush1.bf16.xpose.msra.mxu0 0
        %2438 = vmatprep.subr.bf16.mxu0 0
        %2439 = vmatpush1.bf16.xpose.msra.mxu0 0
        %2440 = vmatprep.subr.bf16.mxu0 0
        %2441 = vmatpush1.bf16.xpose.msra.mxu0 0
        %2442 = vmatprep.subr.bf16.mxu0 0
        %2443 = vmatpush1.bf16.xpose.msra.mxu0 0
        %2444 = vmatprep.subr.bf16.mxu0 0
        %2445 = vmatpush1.bf16.xpose.msra.mxu0 0
        %2446 = vmatprep.subr.bf16.mxu0 0
        %2447 = vmatpush1.bf16.xpose.msra.mxu0 0
        %2448 = vmatprep.subr.bf16.mxu0 0
        %2449 = vmatpush1.bf16.xpose.msra.mxu0 0
        %2450 = vmatprep.subr.bf16.mxu0 0
        %2451 = vmatpush1.bf16.xpose.msra.mxu0 0
        %2452 = vmatprep.subr.bf16.mxu0 0
        %2453 = vmatpush1.bf16.xpose.msra.mxu0 0
        %2454 = vmatprep.subr.bf16.mxu0 0
        %2455 = vmatpush1.bf16.xpose.msra.mxu0 0
        %2456 = vmatprep.mubr.bf16.mxu0 0
        %2457 = vmatmul.mubr.bf16.gmra.mrb[0].mxu0 %v2419
        %v2458 = vpop.f32.mrb[0].mxu0
        %v2459 = vadd.f32 0.0, %v2458
        %v2460 = vpop.f32.mrb[0].mxu0
        %v2461 = vpop.f32.mrb[0].mxu0
        %v2462 = vadd.f32 0.0, %v2461
        %v2463 = vpop.f32.mrb[0].mxu0
        %2464 = vdwg.mxu0
        %v2465 = vsel %vm1656, %v2459, -inf
        %v2466 = vsel %vm1657, %v2462, -inf
        %v2467 = vsel %vm1714, %v2465, -inf
        %2468 = vmax.xlane.f32.xlu0 %v2467
        %v2469 = vpop.xlane.xlu0 %2468
        %v2470 = vsel %vm1714, %v2466, -inf
        %2471 = vmax.xlane.f32.xlu0 %v2470
        %v2472 = vpop.xlane.xlu0 %2471
        %v2473 = vsub.f32 %v2465, %v2469
        %v2474 = vsub.f32 %v2466, %v2472
        %v2475 = vmul.f32 %v2473, 1.442695
        %v2476 = vpow.pop %v2475
        %v2477 = vmul.f32 %v2474, 1.442695
        %v2478 = vpow.pop %v2477
        %v2479 = vsel %vm1714, %v2476, 0.0
        %2480 = vadd.xlane.f32.xlu0 %v2479
        %v2481 = vpop.xlane.xlu0 %2480
        %v2482 = vsel %vm1714, %v2478, 0.0
        %2483 = vadd.xlane.f32.xlu0 %v2482
        %v2484 = vpop.xlane.xlu0 %2483
        %v2485 = vrcp.pop %v2481
        %v2486 = vrcp.pop %v2484
        %v2487 = vmul.f32 %v2476, %v2485
        %v2488 = vmul.f32 %v2478, %v2486
        %v2489 = vpack.c.bf16 %v2488, %v2487
        %2490 = vrot.lane.b32.xlu0 %v1910, 48
        %v2491 = vpop.permute.xlu0 %2490
        %v2494 = vsel %vm1714, %v2489, 0
        %2496 = vmatprep.subr.bf16.mxu0 0
        %2497 = vmatpush1.bf16.msra.mxu0 %v2491
        %2498 = vmatprep.subr.bf16.mxu0 0
        %2499 = vmatpush1.bf16.msra.mxu0 0
        %2500 = vmatprep.subr.bf16.mxu0 0
        %2501 = vmatpush1.bf16.msra.mxu0 0
        %2502 = vmatprep.subr.bf16.mxu0 0
        %2503 = vmatpush1.bf16.msra.mxu0 0
        %2504 = vmatprep.subr.bf16.mxu0 0
        %2505 = vmatpush1.bf16.msra.mxu0 0
        %2506 = vmatprep.subr.bf16.mxu0 0
        %2507 = vmatpush1.bf16.msra.mxu0 0
        %2508 = vmatprep.subr.bf16.mxu0 0
        %2509 = vmatpush1.bf16.msra.mxu0 0
        %2510 = vmatprep.subr.bf16.mxu0 0
        %2511 = vmatpush1.bf16.msra.mxu0 0
        %2512 = vmatprep.subr.bf16.mxu0 0
        %2513 = vmatpush1.bf16.msra.mxu0 0
        %2514 = vmatprep.subr.bf16.mxu0 0
        %2515 = vmatpush1.bf16.msra.mxu0 0
        %2516 = vmatprep.subr.bf16.mxu0 0
        %2517 = vmatpush1.bf16.msra.mxu0 0
        %2518 = vmatprep.subr.bf16.mxu0 0
        %2519 = vmatpush1.bf16.msra.mxu0 0
        %2520 = vmatprep.subr.bf16.mxu0 0
        %2521 = vmatpush1.bf16.msra.mxu0 0
        %2522 = vmatprep.subr.bf16.mxu0 0
        %2523 = vmatpush1.bf16.msra.mxu0 0
        %2524 = vmatprep.subr.bf16.mxu0 0
        %2525 = vmatpush1.bf16.msra.mxu0 0
        %2526 = vmatprep.subr.bf16.mxu0 0
        %2527 = vmatpush1.bf16.msra.mxu0 0
        %2528 = vmatprep.mubr.bf16.mxu0 0
        %2529 = vmatmul.mubr.bf16.gmra.mrb[0].mxu0 %v2494
        %v2530 = vpop.f32.mrb[0].mxu0
        %v2531 = vadd.f32 0.0, %v2530
        %v2532 = vpop.f32.mrb[0].mxu0
        %v2533 = vpop.f32.mrb[0].mxu0
        %v2534 = vadd.f32 0.0, %v2533
        %v2535 = vpop.f32.mrb[0].mxu0
        %2536 = vdwg.mxu0
        %2537 = vrot.lane.b32.xlu0 %v2284, 88
        %v2538 = vpop.permute.xlu0 %2537
        %2539 = vrot.lane.b32.xlu0 %v2162, 56
        %v2540 = vpop.permute.xlu0 %2539
        %v2542 = vsel %vm1664, %v2538, 0
        %v2545 = vsel %vm1664, %v2540, 0
        %2547 = vmatprep.subr.bf16.mxu0 0
        %2548 = vmatpush1.bf16.xpose.msra.mxu0 %v2545
        %2549 = vmatprep.subr.bf16.mxu0 0
        %2550 = vmatpush1.bf16.xpose.msra.mxu0 0
        %2551 = vmatprep.subr.bf16.mxu0 0
        %2552 = vmatpush1.bf16.xpose.msra.mxu0 0
        %2553 = vmatprep.subr.bf16.mxu0 0
        %2554 = vmatpush1.bf16.xpose.msra.mxu0 0
        %2555 = vmatprep.subr.bf16.mxu0 0
        %2556 = vmatpush1.bf16.xpose.msra.mxu0 0
        %2557 = vmatprep.subr.bf16.mxu0 0
        %2558 = vmatpush1.bf16.xpose.msra.mxu0 0
        %2559 = vmatprep.subr.bf16.mxu0 0
        %2560 = vmatpush1.bf16.xpose.msra.mxu0 0
        %2561 = vmatprep.subr.bf16.mxu0 0
        %2562 = vmatpush1.bf16.xpose.msra.mxu0 0
        %2563 = vmatprep.subr.bf16.mxu0 0
        %2564 = vmatpush1.bf16.xpose.msra.mxu0 0
        %2565 = vmatprep.subr.bf16.mxu0 0
        %2566 = vmatpush1.bf16.xpose.msra.mxu0 0
        %2567 = vmatprep.subr.bf16.mxu0 0
        %2568 = vmatpush1.bf16.xpose.msra.mxu0 0
        %2569 = vmatprep.subr.bf16.mxu0 0
        %2570 = vmatpush1.bf16.xpose.msra.mxu0 0
        %2571 = vmatprep.subr.bf16.mxu0 0
        %2572 = vmatpush1.bf16.xpose.msra.mxu0 0
        %2573 = vmatprep.subr.bf16.mxu0 0
        %2574 = vmatpush1.bf16.xpose.msra.mxu0 0
        %2575 = vmatprep.subr.bf16.mxu0 0
        %2576 = vmatpush1.bf16.xpose.msra.mxu0 0
        %2577 = vmatprep.subr.bf16.mxu0 0
        %2578 = vmatpush1.bf16.xpose.msra.mxu0 0
        %2579 = vmatprep.mubr.bf16.mxu0 0
        %2580 = vmatmul.mubr.bf16.gmra.mrb[0].mxu0 %v2542
        %v2581 = vpop.f32.mrb[0].mxu0
        %v2582 = vadd.f32 0.0, %v2581
        %v2583 = vpop.f32.mrb[0].mxu0
        %v2584 = vpop.f32.mrb[0].mxu0
        %v2585 = vadd.f32 0.0, %v2584
        %v2586 = vpop.f32.mrb[0].mxu0
        %2587 = vdwg.mxu0
        %v2588 = vsel %vm1656, %v2582, -inf
        %v2589 = vsel %vm1657, %v2585, -inf
        %v2590 = vsel %vm1714, %v2588, -inf
        %2591 = vmax.xlane.f32.xlu0 %v2590
        %v2592 = vpop.xlane.xlu0 %2591
        %v2593 = vsel %vm1714, %v2589, -inf
        %2594 = vmax.xlane.f32.xlu0 %v2593
        %v2595 = vpop.xlane.xlu0 %2594
        %v2596 = vsub.f32 %v2588, %v2592
        %v2597 = vsub.f32 %v2589, %v2595
        %v2598 = vmul.f32 %v2596, 1.442695
        %v2599 = vpow.pop %v2598
        %v2600 = vmul.f32 %v2597, 1.442695
        %v2601 = vpow.pop %v2600
        %v2602 = vsel %vm1714, %v2599, 0.0
        %2603 = vadd.xlane.f32.xlu0 %v2602
        %v2604 = vpop.xlane.xlu0 %2603
        %v2605 = vsel %vm1714, %v2601, 0.0
        %2606 = vadd.xlane.f32.xlu0 %v2605
        %v2607 = vpop.xlane.xlu0 %2606
        %v2608 = vrcp.pop %v2604
        %v2609 = vrcp.pop %v2607
        %v2610 = vmul.f32 %v2599, %v2608
        %v2611 = vmul.f32 %v2601, %v2609
        %v2612 = vpack.c.bf16 %v2611, %v2610
        %2613 = vrot.lane.b32.xlu0 %v1910, 24
        %v2614 = vpop.permute.xlu0 %2613
        %v2617 = vsel %vm1714, %v2612, 0
        %2619 = vmatprep.subr.bf16.mxu0 0
        %2620 = vmatpush1.bf16.msra.mxu0 %v2614
        %2621 = vmatprep.subr.bf16.mxu0 0
        %2622 = vmatpush1.bf16.msra.mxu0 0
        %2623 = vmatprep.subr.bf16.mxu0 0
        %2624 = vmatpush1.bf16.msra.mxu0 0
        %2625 = vmatprep.subr.bf16.mxu0 0
        %2626 = vmatpush1.bf16.msra.mxu0 0
        %2627 = vmatprep.subr.bf16.mxu0 0
        %2628 = vmatpush1.bf16.msra.mxu0 0
        %2629 = vmatprep.subr.bf16.mxu0 0
        %2630 = vmatpush1.bf16.msra.mxu0 0
        %2631 = vmatprep.subr.bf16.mxu0 0
        %2632 = vmatpush1.bf16.msra.mxu0 0
        %2633 = vmatprep.subr.bf16.mxu0 0
        %2634 = vmatpush1.bf16.msra.mxu0 0
        %2635 = vmatprep.subr.bf16.mxu0 0
        %2636 = vmatpush1.bf16.msra.mxu0 0
        %2637 = vmatprep.subr.bf16.mxu0 0
        %2638 = vmatpush1.bf16.msra.mxu0 0
        %2639 = vmatprep.subr.bf16.mxu0 0
        %2640 = vmatpush1.bf16.msra.mxu0 0
        %2641 = vmatprep.subr.bf16.mxu0 0
        %2642 = vmatpush1.bf16.msra.mxu0 0
        %2643 = vmatprep.subr.bf16.mxu0 0
        %2644 = vmatpush1.bf16.msra.mxu0 0
        %2645 = vmatprep.subr.bf16.mxu0 0
        %2646 = vmatpush1.bf16.msra.mxu0 0
        %2647 = vmatprep.subr.bf16.mxu0 0
        %2648 = vmatpush1.bf16.msra.mxu0 0
        %2649 = vmatprep.subr.bf16.mxu0 0
        %2650 = vmatpush1.bf16.msra.mxu0 0
        %2651 = vmatprep.mubr.bf16.mxu0 0
        %2652 = vmatmul.mubr.bf16.gmra.mrb[0].mxu0 %v2617
        %v2653 = vpop.f32.mrb[0].mxu0
        %v2654 = vadd.f32 0.0, %v2653
        %v2655 = vpop.f32.mrb[0].mxu0
        %v2656 = vpop.f32.mrb[0].mxu0
        %v2657 = vadd.f32 0.0, %v2656
        %v2658 = vpop.f32.mrb[0].mxu0
        %2659 = vdwg.mxu0
        %v2660 = vpack.c.bf16 %v1648, %v1645
        %2661 = vrot.lane.b32.xlu0 %v2284, 64
        %v2662 = vpop.permute.xlu0 %2661
        %2663 = vrot.lane.b32.xlu0 %v2162, 32
        %v2664 = vpop.permute.xlu0 %2663
        %v2666 = vsel %vm1664, %v2662, 0
        %v2669 = vsel %vm1664, %v2664, 0
        %2671 = vmatprep.subr.bf16.mxu0 0
        %2672 = vmatpush1.bf16.xpose.msra.mxu0 %v2669
        %2673 = vmatprep.subr.bf16.mxu0 0
        %2674 = vmatpush1.bf16.xpose.msra.mxu0 0
        %2675 = vmatprep.subr.bf16.mxu0 0
        %2676 = vmatpush1.bf16.xpose.msra.mxu0 0
        %2677 = vmatprep.subr.bf16.mxu0 0
        %2678 = vmatpush1.bf16.xpose.msra.mxu0 0
        %2679 = vmatprep.subr.bf16.mxu0 0
        %2680 = vmatpush1.bf16.xpose.msra.mxu0 0
        %2681 = vmatprep.subr.bf16.mxu0 0
        %2682 = vmatpush1.bf16.xpose.msra.mxu0 0
        %2683 = vmatprep.subr.bf16.mxu0 0
        %2684 = vmatpush1.bf16.xpose.msra.mxu0 0
        %2685 = vmatprep.subr.bf16.mxu0 0
        %2686 = vmatpush1.bf16.xpose.msra.mxu0 0
        %2687 = vmatprep.subr.bf16.mxu0 0
        %2688 = vmatpush1.bf16.xpose.msra.mxu0 0
        %2689 = vmatprep.subr.bf16.mxu0 0
        %2690 = vmatpush1.bf16.xpose.msra.mxu0 0
        %2691 = vmatprep.subr.bf16.mxu0 0
        %2692 = vmatpush1.bf16.xpose.msra.mxu0 0
        %2693 = vmatprep.subr.bf16.mxu0 0
        %2694 = vmatpush1.bf16.xpose.msra.mxu0 0
        %2695 = vmatprep.subr.bf16.mxu0 0
        %2696 = vmatpush1.bf16.xpose.msra.mxu0 0
        %2697 = vmatprep.subr.bf16.mxu0 0
        %2698 = vmatpush1.bf16.xpose.msra.mxu0 0
        %2699 = vmatprep.subr.bf16.mxu0 0
        %2700 = vmatpush1.bf16.xpose.msra.mxu0 0
        %2701 = vmatprep.subr.bf16.mxu0 0
        %2702 = vmatpush1.bf16.xpose.msra.mxu0 0
        %2703 = vmatprep.mubr.bf16.mxu0 0
        %2704 = vmatmul.mubr.bf16.gmra.mrb[0].mxu0 %v2666
        %v2705 = vpop.f32.mrb[0].mxu0
        %v2706 = vadd.f32 0.0, %v2705
        %v2707 = vpop.f32.mrb[0].mxu0
        %v2708 = vpop.f32.mrb[0].mxu0
        %v2709 = vadd.f32 0.0, %v2708
        %v2710 = vpop.f32.mrb[0].mxu0
        %2711 = vdwg.mxu0
        %v2712 = vsel %vm1656, %v2706, -inf
        %v2713 = vsel %vm1657, %v2709, -inf
        %v2714 = vsel %vm1714, %v2712, -inf
        %2715 = vmax.xlane.f32.xlu0 %v2714
        %v2716 = vpop.xlane.xlu0 %2715
        %v2717 = vsel %vm1714, %v2713, -inf
        %2718 = vmax.xlane.f32.xlu0 %v2717
        %v2719 = vpop.xlane.xlu0 %2718
        %v2720 = vsub.f32 %v2712, %v2716
        %v2721 = vsub.f32 %v2713, %v2719
        %v2722 = vmul.f32 %v2720, 1.442695
        %v2723 = vpow.pop %v2722
        %v2724 = vmul.f32 %v2721, 1.442695
        %v2725 = vpow.pop %v2724
        %v2726 = vsel %vm1714, %v2723, 0.0
        %2727 = vadd.xlane.f32.xlu0 %v2726
        %v2728 = vpop.xlane.xlu0 %2727
        %v2729 = vsel %vm1714, %v2725, 0.0
        %2730 = vadd.xlane.f32.xlu0 %v2729
        %v2731 = vpop.xlane.xlu0 %2730
        %v2732 = vrcp.pop %v2728
        %v2733 = vrcp.pop %v2731
        %v2734 = vmul.f32 %v2723, %v2732
        %v2735 = vmul.f32 %v2725, %v2733
        %v2736 = vpack.c.bf16 %v2735, %v2734
        %v2738 = vsel %vm1714, %v2736, 0
        %2740 = vmatprep.subr.bf16.mxu0 0
        %2741 = vmatpush1.bf16.msra.mxu0 %v2660
        %2742 = vmatprep.subr.bf16.mxu0 0
        %2743 = vmatpush1.bf16.msra.mxu0 0
        %2744 = vmatprep.subr.bf16.mxu0 0
        %2745 = vmatpush1.bf16.msra.mxu0 0
        %2746 = vmatprep.subr.bf16.mxu0 0
        %2747 = vmatpush1.bf16.msra.mxu0 0
        %2748 = vmatprep.subr.bf16.mxu0 0
        %2749 = vmatpush1.bf16.msra.mxu0 0
        %2750 = vmatprep.subr.bf16.mxu0 0
        %2751 = vmatpush1.bf16.msra.mxu0 0
        %2752 = vmatprep.subr.bf16.mxu0 0
        %2753 = vmatpush1.bf16.msra.mxu0 0
        %2754 = vmatprep.subr.bf16.mxu0 0
        %2755 = vmatpush1.bf16.msra.mxu0 0
        %2756 = vmatprep.subr.bf16.mxu0 0
        %2757 = vmatpush1.bf16.msra.mxu0 0
        %2758 = vmatprep.subr.bf16.mxu0 0
        %2759 = vmatpush1.bf16.msra.mxu0 0
        %2760 = vmatprep.subr.bf16.mxu0 0
        %2761 = vmatpush1.bf16.msra.mxu0 0
        %2762 = vmatprep.subr.bf16.mxu0 0
        %2763 = vmatpush1.bf16.msra.mxu0 0
        %2764 = vmatprep.subr.bf16.mxu0 0
        %2765 = vmatpush1.bf16.msra.mxu0 0
        %2766 = vmatprep.subr.bf16.mxu0 0
        %2767 = vmatpush1.bf16.msra.mxu0 0
        %2768 = vmatprep.subr.bf16.mxu0 0
        %2769 = vmatpush1.bf16.msra.mxu0 0
        %2770 = vmatprep.subr.bf16.mxu0 0
        %2771 = vmatpush1.bf16.msra.mxu0 0
        %2772 = vmatprep.mubr.bf16.mxu0 0
        %2773 = vmatmul.mubr.bf16.gmra.mrb[0].mxu0 %v2738
        %v2774 = vpop.f32.mrb[0].mxu0
        %v2775 = vadd.f32 0.0, %v2774
        %v2776 = vpop.f32.mrb[0].mxu0
        %v2777 = vpop.f32.mrb[0].mxu0
        %v2778 = vadd.f32 0.0, %v2777
        %v2779 = vpop.f32.mrb[0].mxu0
        %2780 = vdwg.mxu0
        %2781 = vrot.lane.b32.xlu0 %v2284, 40
        %v2782 = vpop.permute.xlu0 %2781
        %2783 = vrot.lane.b32.xlu0 %v2162, 8
        %v2784 = vpop.permute.xlu0 %2783
        %2785 = vrot.lane.b32.xlu0 %v1660, 8
        %v2786 = vpop.permute.xlu0 %2785
        %v2787 = vsel %vm2290, %v2784, %v2786
        %v2789 = vsel %vm1664, %v2782, 0
        %v2792 = vsel %vm1664, %v2787, 0
        %2794 = vmatprep.subr.bf16.mxu0 0
        %2795 = vmatpush1.bf16.xpose.msra.mxu0 %v2792
        %2796 = vmatprep.subr.bf16.mxu0 0
        %2797 = vmatpush1.bf16.xpose.msra.mxu0 0
        %2798 = vmatprep.subr.bf16.mxu0 0
        %2799 = vmatpush1.bf16.xpose.msra.mxu0 0
        %2800 = vmatprep.subr.bf16.mxu0 0
        %2801 = vmatpush1.bf16.xpose.msra.mxu0 0
        %2802 = vmatprep.subr.bf16.mxu0 0
        %2803 = vmatpush1.bf16.xpose.msra.mxu0 0
        %2804 = vmatprep.subr.bf16.mxu0 0
        %2805 = vmatpush1.bf16.xpose.msra.mxu0 0
        %2806 = vmatprep.subr.bf16.mxu0 0
        %2807 = vmatpush1.bf16.xpose.msra.mxu0 0
        %2808 = vmatprep.subr.bf16.mxu0 0
        %2809 = vmatpush1.bf16.xpose.msra.mxu0 0
        %2810 = vmatprep.subr.bf16.mxu0 0
        %2811 = vmatpush1.bf16.xpose.msra.mxu0 0
        %2812 = vmatprep.subr.bf16.mxu0 0
        %2813 = vmatpush1.bf16.xpose.msra.mxu0 0
        %2814 = vmatprep.subr.bf16.mxu0 0
        %2815 = vmatpush1.bf16.xpose.msra.mxu0 0
        %2816 = vmatprep.subr.bf16.mxu0 0
        %2817 = vmatpush1.bf16.xpose.msra.mxu0 0
        %2818 = vmatprep.subr.bf16.mxu0 0
        %2819 = vmatpush1.bf16.xpose.msra.mxu0 0
        %2820 = vmatprep.subr.bf16.mxu0 0
        %2821 = vmatpush1.bf16.xpose.msra.mxu0 0
        %2822 = vmatprep.subr.bf16.mxu0 0
        %2823 = vmatpush1.bf16.xpose.msra.mxu0 0
        %2824 = vmatprep.subr.bf16.mxu0 0
        %2825 = vmatpush1.bf16.xpose.msra.mxu0 0
        %2826 = vmatprep.mubr.bf16.mxu0 0
        %2827 = vmatmul.mubr.bf16.gmra.mrb[0].mxu0 %v2789
        %v2828 = vpop.f32.mrb[0].mxu0
        %v2829 = vadd.f32 0.0, %v2828
        %v2830 = vpop.f32.mrb[0].mxu0
        %v2831 = vpop.f32.mrb[0].mxu0
        %v2832 = vadd.f32 0.0, %v2831
        %v2833 = vpop.f32.mrb[0].mxu0
        %2834 = vdwg.mxu0
        %v2835 = vsel %vm1656, %v2829, -inf
        %v2836 = vsel %vm1657, %v2832, -inf
        %v2837 = vsel %vm1714, %v2835, -inf
        %2838 = vmax.xlane.f32.xlu0 %v2837
        %v2839 = vpop.xlane.xlu0 %2838
        %v2840 = vsel %vm1714, %v2836, -inf
        %2841 = vmax.xlane.f32.xlu0 %v2840
        %v2842 = vpop.xlane.xlu0 %2841
        %v2843 = vsub.f32 %v2835, %v2839
        %v2844 = vsub.f32 %v2836, %v2842
        %v2845 = vmul.f32 %v2843, 1.442695
        %v2846 = vpow.pop %v2845
        %v2847 = vmul.f32 %v2844, 1.442695
        %v2848 = vpow.pop %v2847
        %v2849 = vsel %vm1714, %v2846, 0.0
        %2850 = vadd.xlane.f32.xlu0 %v2849
        %v2851 = vpop.xlane.xlu0 %2850
        %v2852 = vsel %vm1714, %v2848, 0.0
        %2853 = vadd.xlane.f32.xlu0 %v2852
        %v2854 = vpop.xlane.xlu0 %2853
        %v2855 = vrcp.pop %v2851
        %v2856 = vrcp.pop %v2854
        %v2857 = vmul.f32 %v2846, %v2855
        %v2858 = vmul.f32 %v2848, %v2856
        %v2859 = vpack.c.bf16 %v2858, %v2857
        %2861 = vrot.lane.b32.xlu0 %v2660, 104
        %v2862 = vpop.permute.xlu0 %2861
        %v2865 = vsel %vm1714, %v2859, 0
        %2867 = vmatprep.subr.bf16.mxu0 0
        %2868 = vmatpush1.bf16.msra.mxu0 %v2862
        %2869 = vmatprep.subr.bf16.mxu0 0
        %2870 = vmatpush1.bf16.msra.mxu0 0
        %2871 = vmatprep.subr.bf16.mxu0 0
        %2872 = vmatpush1.bf16.msra.mxu0 0
        %2873 = vmatprep.subr.bf16.mxu0 0
        %2874 = vmatpush1.bf16.msra.mxu0 0
        %2875 = vmatprep.subr.bf16.mxu0 0
        %2876 = vmatpush1.bf16.msra.mxu0 0
        %2877 = vmatprep.subr.bf16.mxu0 0
        %2878 = vmatpush1.bf16.msra.mxu0 0
        %2879 = vmatprep.subr.bf16.mxu0 0
        %2880 = vmatpush1.bf16.msra.mxu0 0
        %2881 = vmatprep.subr.bf16.mxu0 0
        %2882 = vmatpush1.bf16.msra.mxu0 0
        %2883 = vmatprep.subr.bf16.mxu0 0
        %2884 = vmatpush1.bf16.msra.mxu0 0
        %2885 = vmatprep.subr.bf16.mxu0 0
        %2886 = vmatpush1.bf16.msra.mxu0 0
        %2887 = vmatprep.subr.bf16.mxu0 0
        %2888 = vmatpush1.bf16.msra.mxu0 0
        %2889 = vmatprep.subr.bf16.mxu0 0
        %2890 = vmatpush1.bf16.msra.mxu0 0
        %2891 = vmatprep.subr.bf16.mxu0 0
        %2892 = vmatpush1.bf16.msra.mxu0 0
        %2893 = vmatprep.subr.bf16.mxu0 0
        %2894 = vmatpush1.bf16.msra.mxu0 0
        %2895 = vmatprep.subr.bf16.mxu0 0
        %2896 = vmatpush1.bf16.msra.mxu0 0
        %2897 = vmatprep.subr.bf16.mxu0 0
        %2898 = vmatpush1.bf16.msra.mxu0 0
        %2899 = vmatprep.mubr.bf16.mxu0 0
        %2900 = vmatmul.mubr.bf16.gmra.mrb[0].mxu0 %v2865
        %v2901 = vpop.f32.mrb[0].mxu0
        %v2902 = vadd.f32 0.0, %v2901
        %v2903 = vpop.f32.mrb[0].mxu0
        %v2904 = vpop.f32.mrb[0].mxu0
        %v2905 = vadd.f32 0.0, %v2904
        %v2906 = vpop.f32.mrb[0].mxu0
        %2907 = vdwg.mxu0
        %2908 = vrot.lane.b32.xlu0 %v2284, 16
        %v2909 = vpop.permute.xlu0 %2908
        %2910 = vrot.lane.b32.xlu0 %v1659, 16
        %v2911 = vpop.permute.xlu0 %2910
        %v2912 = vsel %vm1992, %v2909, %v2911
        %2913 = vrot.lane.b32.xlu0 %v1660, 112
        %v2914 = vpop.permute.xlu0 %2913
        %v2916 = vsel %vm1664, %v2912, 0
        %v2919 = vsel %vm1664, %v2914, 0
        %2921 = vmatprep.subr.bf16.mxu0 0
        %2922 = vmatpush1.bf16.xpose.msra.mxu0 %v2919
        %2923 = vmatprep.subr.bf16.mxu0 0
        %2924 = vmatpush1.bf16.xpose.msra.mxu0 0
        %2925 = vmatprep.subr.bf16.mxu0 0
        %2926 = vmatpush1.bf16.xpose.msra.mxu0 0
        %2927 = vmatprep.subr.bf16.mxu0 0
        %2928 = vmatpush1.bf16.xpose.msra.mxu0 0
        %2929 = vmatprep.subr.bf16.mxu0 0
        %2930 = vmatpush1.bf16.xpose.msra.mxu0 0
        %2931 = vmatprep.subr.bf16.mxu0 0
        %2932 = vmatpush1.bf16.xpose.msra.mxu0 0
        %2933 = vmatprep.subr.bf16.mxu0 0
        %2934 = vmatpush1.bf16.xpose.msra.mxu0 0
        %2935 = vmatprep.subr.bf16.mxu0 0
        %2936 = vmatpush1.bf16.xpose.msra.mxu0 0
        %2937 = vmatprep.subr.bf16.mxu0 0
        %2938 = vmatpush1.bf16.xpose.msra.mxu0 0
        %2939 = vmatprep.subr.bf16.mxu0 0
        %2940 = vmatpush1.bf16.xpose.msra.mxu0 0
        %2941 = vmatprep.subr.bf16.mxu0 0
        %2942 = vmatpush1.bf16.xpose.msra.mxu0 0
        %2943 = vmatprep.subr.bf16.mxu0 0
        %2944 = vmatpush1.bf16.xpose.msra.mxu0 0
        %2945 = vmatprep.subr.bf16.mxu0 0
        %2946 = vmatpush1.bf16.xpose.msra.mxu0 0
        %2947 = vmatprep.subr.bf16.mxu0 0
        %2948 = vmatpush1.bf16.xpose.msra.mxu0 0
        %2949 = vmatprep.subr.bf16.mxu0 0
        %2950 = vmatpush1.bf16.xpose.msra.mxu0 0
        %2951 = vmatprep.subr.bf16.mxu0 0
        %2952 = vmatpush1.bf16.xpose.msra.mxu0 0
        %2953 = vmatprep.mubr.bf16.mxu0 0
        %2954 = vmatmul.mubr.bf16.gmra.mrb[0].mxu0 %v2916
        %v2955 = vpop.f32.mrb[0].mxu0
        %v2956 = vadd.f32 0.0, %v2955
        %v2957 = vpop.f32.mrb[0].mxu0
        %v2958 = vpop.f32.mrb[0].mxu0
        %v2959 = vadd.f32 0.0, %v2958
        %v2960 = vpop.f32.mrb[0].mxu0
        %2961 = vdwg.mxu0
        %v2962 = vsel %vm1656, %v2956, -inf
        %v2963 = vsel %vm1657, %v2959, -inf
        %v2964 = vsel %vm1714, %v2962, -inf
        %2965 = vmax.xlane.f32.xlu0 %v2964
        %v2966 = vpop.xlane.xlu0 %2965
        %v2967 = vsel %vm1714, %v2963, -inf
        %2968 = vmax.xlane.f32.xlu0 %v2967
        %v2969 = vpop.xlane.xlu0 %2968
        %v2970 = vsub.f32 %v2962, %v2966
        %v2971 = vsub.f32 %v2963, %v2969
        %v2972 = vmul.f32 %v2970, 1.442695
        %v2973 = vpow.pop %v2972
        %v2974 = vmul.f32 %v2971, 1.442695
        %v2975 = vpow.pop %v2974
        %v2976 = vsel %vm1714, %v2973, 0.0
        %2977 = vadd.xlane.f32.xlu0 %v2976
        %v2978 = vpop.xlane.xlu0 %2977
        %v2979 = vsel %vm1714, %v2975, 0.0
        %2980 = vadd.xlane.f32.xlu0 %v2979
        %v2981 = vpop.xlane.xlu0 %2980
        %v2982 = vrcp.pop %v2978
        %v2983 = vrcp.pop %v2981
        %v2984 = vmul.f32 %v2973, %v2982
        %v2985 = vmul.f32 %v2975, %v2983
        %v2986 = vpack.c.bf16 %v2985, %v2984
        %2987 = vrot.lane.b32.xlu0 %v2660, 80
        %v2988 = vpop.permute.xlu0 %2987
        %v2991 = vsel %vm1714, %v2986, 0
        %2993 = vmatprep.subr.bf16.mxu0 0
        %2994 = vmatpush1.bf16.msra.mxu0 %v2988
        %2995 = vmatprep.subr.bf16.mxu0 0
        %2996 = vmatpush1.bf16.msra.mxu0 0
        %2997 = vmatprep.subr.bf16.mxu0 0
        %2998 = vmatpush1.bf16.msra.mxu0 0
        %2999 = vmatprep.subr.bf16.mxu0 0
        %3000 = vmatpush1.bf16.msra.mxu0 0
        %3001 = vmatprep.subr.bf16.mxu0 0
        %3002 = vmatpush1.bf16.msra.mxu0 0
        %3003 = vmatprep.subr.bf16.mxu0 0
        %3004 = vmatpush1.bf16.msra.mxu0 0
        %3005 = vmatprep.subr.bf16.mxu0 0
        %3006 = vmatpush1.bf16.msra.mxu0 0
        %3007 = vmatprep.subr.bf16.mxu0 0
        %3008 = vmatpush1.bf16.msra.mxu0 0
        %3009 = vmatprep.subr.bf16.mxu0 0
        %3010 = vmatpush1.bf16.msra.mxu0 0
        %3011 = vmatprep.subr.bf16.mxu0 0
        %3012 = vmatpush1.bf16.msra.mxu0 0
        %3013 = vmatprep.subr.bf16.mxu0 0
        %3014 = vmatpush1.bf16.msra.mxu0 0
        %3015 = vmatprep.subr.bf16.mxu0 0
        %3016 = vmatpush1.bf16.msra.mxu0 0
        %3017 = vmatprep.subr.bf16.mxu0 0
        %3018 = vmatpush1.bf16.msra.mxu0 0
        %3019 = vmatprep.subr.bf16.mxu0 0
        %3020 = vmatpush1.bf16.msra.mxu0 0
        %3021 = vmatprep.subr.bf16.mxu0 0
        %3022 = vmatpush1.bf16.msra.mxu0 0
        %3023 = vmatprep.subr.bf16.mxu0 0
        %3024 = vmatpush1.bf16.msra.mxu0 0
        %3025 = vmatprep.mubr.bf16.mxu0 0
        %3026 = vmatmul.mubr.bf16.gmra.mrb[0].mxu0 %v2991
        %v3027 = vpop.f32.mrb[0].mxu0
        %v3028 = vadd.f32 0.0, %v3027
        %v3029 = vpop.f32.mrb[0].mxu0
        %v3030 = vpop.f32.mrb[0].mxu0
        %v3031 = vadd.f32 0.0, %v3030
        %v3032 = vpop.f32.mrb[0].mxu0
        %3033 = vdwg.mxu0
        %3034 = vrot.lane.b32.xlu0 %v1659, 120
        %v3035 = vpop.permute.xlu0 %3034
        %3036 = vrot.lane.b32.xlu0 %v1660, 88
        %v3037 = vpop.permute.xlu0 %3036
        %v3039 = vsel %vm1664, %v3035, 0
        %v3042 = vsel %vm1664, %v3037, 0
        %3044 = vmatprep.subr.bf16.mxu0 0
        %3045 = vmatpush1.bf16.xpose.msra.mxu0 %v3042
        %3046 = vmatprep.subr.bf16.mxu0 0
        %3047 = vmatpush1.bf16.xpose.msra.mxu0 0
        %3048 = vmatprep.subr.bf16.mxu0 0
        %3049 = vmatpush1.bf16.xpose.msra.mxu0 0
        %3050 = vmatprep.subr.bf16.mxu0 0
        %3051 = vmatpush1.bf16.xpose.msra.mxu0 0
        %3052 = vmatprep.subr.bf16.mxu0 0
        %3053 = vmatpush1.bf16.xpose.msra.mxu0 0
        %3054 = vmatprep.subr.bf16.mxu0 0
        %3055 = vmatpush1.bf16.xpose.msra.mxu0 0
        %3056 = vmatprep.subr.bf16.mxu0 0
        %3057 = vmatpush1.bf16.xpose.msra.mxu0 0
        %3058 = vmatprep.subr.bf16.mxu0 0
        %3059 = vmatpush1.bf16.xpose.msra.mxu0 0
        %3060 = vmatprep.subr.bf16.mxu0 0
        %3061 = vmatpush1.bf16.xpose.msra.mxu0 0
        %3062 = vmatprep.subr.bf16.mxu0 0
        %3063 = vmatpush1.bf16.xpose.msra.mxu0 0
        %3064 = vmatprep.subr.bf16.mxu0 0
        %3065 = vmatpush1.bf16.xpose.msra.mxu0 0
        %3066 = vmatprep.subr.bf16.mxu0 0
        %3067 = vmatpush1.bf16.xpose.msra.mxu0 0
        %3068 = vmatprep.subr.bf16.mxu0 0
        %3069 = vmatpush1.bf16.xpose.msra.mxu0 0
        %3070 = vmatprep.subr.bf16.mxu0 0
        %3071 = vmatpush1.bf16.xpose.msra.mxu0 0
        %3072 = vmatprep.subr.bf16.mxu0 0
        %3073 = vmatpush1.bf16.xpose.msra.mxu0 0
        %3074 = vmatprep.subr.bf16.mxu0 0
        %3075 = vmatpush1.bf16.xpose.msra.mxu0 0
        %3076 = vmatprep.mubr.bf16.mxu0 0
        %3077 = vmatmul.mubr.bf16.gmra.mrb[0].mxu0 %v3039
        %v3078 = vpop.f32.mrb[0].mxu0
        %v3079 = vadd.f32 0.0, %v3078
        %v3080 = vpop.f32.mrb[0].mxu0
        %v3081 = vpop.f32.mrb[0].mxu0
        %v3082 = vadd.f32 0.0, %v3081
        %v3083 = vpop.f32.mrb[0].mxu0
        %3084 = vdwg.mxu0
        %v3085 = vsel %vm1656, %v3079, -inf
        %v3086 = vsel %vm1657, %v3082, -inf
        %v3087 = vsel %vm1714, %v3085, -inf
        %3088 = vmax.xlane.f32.xlu0 %v3087
        %v3089 = vpop.xlane.xlu0 %3088
        %v3090 = vsel %vm1714, %v3086, -inf
        %3091 = vmax.xlane.f32.xlu0 %v3090
        %v3092 = vpop.xlane.xlu0 %3091
        %v3093 = vsub.f32 %v3085, %v3089
        %v3094 = vsub.f32 %v3086, %v3092
        %v3095 = vmul.f32 %v3093, 1.442695
        %v3096 = vpow.pop %v3095
        %v3097 = vmul.f32 %v3094, 1.442695
        %v3098 = vpow.pop %v3097
        %v3099 = vsel %vm1714, %v3096, 0.0
        %3100 = vadd.xlane.f32.xlu0 %v3099
        %v3101 = vpop.xlane.xlu0 %3100
        %v3102 = vsel %vm1714, %v3098, 0.0
        %3103 = vadd.xlane.f32.xlu0 %v3102
        %v3104 = vpop.xlane.xlu0 %3103
        %v3105 = vrcp.pop %v3101
        %v3106 = vrcp.pop %v3104
        %v3107 = vmul.f32 %v3096, %v3105
        %v3108 = vmul.f32 %v3098, %v3106
        %v3109 = vpack.c.bf16 %v3108, %v3107
        %3110 = vrot.lane.b32.xlu0 %v2660, 56
        %v3111 = vpop.permute.xlu0 %3110
        %v3114 = vsel %vm1714, %v3109, 0
        %3116 = vmatprep.subr.bf16.mxu0 0
        %3117 = vmatpush1.bf16.msra.mxu0 %v3111
        %3118 = vmatprep.subr.bf16.mxu0 0
        %3119 = vmatpush1.bf16.msra.mxu0 0
        %3120 = vmatprep.subr.bf16.mxu0 0
        %3121 = vmatpush1.bf16.msra.mxu0 0
        %3122 = vmatprep.subr.bf16.mxu0 0
        %3123 = vmatpush1.bf16.msra.mxu0 0
        %3124 = vmatprep.subr.bf16.mxu0 0
        %3125 = vmatpush1.bf16.msra.mxu0 0
        %3126 = vmatprep.subr.bf16.mxu0 0
        %3127 = vmatpush1.bf16.msra.mxu0 0
        %3128 = vmatprep.subr.bf16.mxu0 0
        %3129 = vmatpush1.bf16.msra.mxu0 0
        %3130 = vmatprep.subr.bf16.mxu0 0
        %3131 = vmatpush1.bf16.msra.mxu0 0
        %3132 = vmatprep.subr.bf16.mxu0 0
        %3133 = vmatpush1.bf16.msra.mxu0 0
        %3134 = vmatprep.subr.bf16.mxu0 0
        %3135 = vmatpush1.bf16.msra.mxu0 0
        %3136 = vmatprep.subr.bf16.mxu0 0
        %3137 = vmatpush1.bf16.msra.mxu0 0
        %3138 = vmatprep.subr.bf16.mxu0 0
        %3139 = vmatpush1.bf16.msra.mxu0 0
        %3140 = vmatprep.subr.bf16.mxu0 0
        %3141 = vmatpush1.bf16.msra.mxu0 0
        %3142 = vmatprep.subr.bf16.mxu0 0
        %3143 = vmatpush1.bf16.msra.mxu0 0
        %3144 = vmatprep.subr.bf16.mxu0 0
        %3145 = vmatpush1.bf16.msra.mxu0 0
        %3146 = vmatprep.subr.bf16.mxu0 0
        %3147 = vmatpush1.bf16.msra.mxu0 0
        %3148 = vmatprep.mubr.bf16.mxu0 0
        %3149 = vmatmul.mubr.bf16.gmra.mrb[0].mxu0 %v3114
        %v3150 = vpop.f32.mrb[0].mxu0
        %v3151 = vadd.f32 0.0, %v3150
        %v3152 = vpop.f32.mrb[0].mxu0
        %v3153 = vpop.f32.mrb[0].mxu0
        %v3154 = vadd.f32 0.0, %v3153
        %v3155 = vpop.f32.mrb[0].mxu0
        %3156 = vdwg.mxu0
        %3159 = vrot.lane.b32.xlu0 %v1904, 24
        %v3160 = vpop.permute.xlu0 %3159
        %3161 = vrot.lane.b32.xlu0 %v1907, 24
        %v3162 = vpop.permute.xlu0 %3161
        %3167 = vrot.lane.b32.xlu0 %v2033, 48
        %v3168 = vpop.permute.xlu0 %3167
        %3169 = vrot.lane.b32.xlu0 %v2036, 48
        %v3170 = vpop.permute.xlu0 %3169
        %3175 = vrot.lane.b32.xlu0 %v2156, 72
        %v3176 = vpop.permute.xlu0 %3175
        %3177 = vrot.lane.b32.xlu0 %v2159, 72
        %v3178 = vpop.permute.xlu0 %3177
        %3183 = vrot.lane.b32.xlu0 %v2278, 96
        %v3184 = vpop.permute.xlu0 %3183
        %3185 = vrot.lane.b32.xlu0 %v2281, 96
        %v3186 = vpop.permute.xlu0 %3185
        %3191 = vrot.lane.b32.xlu0 %v2408, 120
        %v3192 = vpop.permute.xlu0 %3191
        %3193 = vrot.lane.b32.xlu0 %v2411, 120
        %v3194 = vpop.permute.xlu0 %3193
        %3199 = vrot.lane.b32.xlu0 %v2531, 16
        %v3200 = vpop.permute.xlu0 %3199
        %3201 = vrot.lane.b32.xlu0 %v2534, 16
        %v3202 = vpop.permute.xlu0 %3201
        %3207 = vrot.lane.b32.xlu0 %v2654, 40
        %v3208 = vpop.permute.xlu0 %3207
        %3209 = vrot.lane.b32.xlu0 %v2657, 40
        %v3210 = vpop.permute.xlu0 %3209
        %3215 = vrot.lane.b32.xlu0 %v2775, 64
        %v3216 = vpop.permute.xlu0 %3215
        %3217 = vrot.lane.b32.xlu0 %v2778, 64
        %v3218 = vpop.permute.xlu0 %3217
        %3223 = vrot.lane.b32.xlu0 %v2902, 88
        %v3224 = vpop.permute.xlu0 %3223
        %3225 = vrot.lane.b32.xlu0 %v2905, 88
        %v3226 = vpop.permute.xlu0 %3225
        %3231 = vrot.lane.b32.xlu0 %v3028, 112
        %v3232 = vpop.permute.xlu0 %3231
        %3233 = vrot.lane.b32.xlu0 %v3031, 112
        %v3234 = vpop.permute.xlu0 %3233
        %3239 = vrot.lane.b32.xlu0 %v3151, 8
        %v3240 = vpop.permute.xlu0 %3239
        %3241 = vrot.lane.b32.xlu0 %v3154, 8
        %v3242 = vpop.permute.xlu0 %3241
        %v3245 = vsel %vm1664, %v1780, %v3160
        %v3246 = vsel %vm1664, %v1783, %v3162
        %vm3247 = vcmask 392192
        %v3248 = vsel %vm3247, %v3245, %v3168
        %v3249 = vsel %vm3247, %v3246, %v3170
        %vm3250 = vcmask 588800
        %v3251 = vsel %vm3250, %v3248, %v3176
        %v3252 = vsel %vm3250, %v3249, %v3178
        %vm3253 = vcmask 785408
        %v3254 = vsel %vm3253, %v3251, %v3184
        %v3255 = vsel %vm3253, %v3252, %v3186
        %vm3256 = vcmask 982016
        %v3257 = vsel %vm3256, %v3254, %v3192
        %v3258 = vsel %vm3256, %v3255, %v3194
        %v3259 = vsel %vm1714, %v3192, %v3200
        %v3260 = vsel %vm1714, %v3194, %v3202
        %vm3261 = vcmask 326656
        %v3262 = vsel %vm3261, %v3259, %v3208
        %v3263 = vsel %vm3261, %v3260, %v3210
        %vm3264 = vcmask 523264
        %v3265 = vsel %vm3264, %v3262, %v3216
        %v3266 = vsel %vm3264, %v3263, %v3218
        %vm3267 = vcmask 719872
        %v3268 = vsel %vm3267, %v3265, %v3224
        %v3269 = vsel %vm3267, %v3266, %v3226
        %vm3270 = vcmask 916480
        %v3271 = vsel %vm3270, %v3268, %v3232
        %v3272 = vsel %vm3270, %v3269, %v3234
        %vm3273 = vcmask 64512
        %v3274 = vsel %vm3273, %v3232, %v3240
        %v3275 = vsel %vm3273, %v3234, %v3242
        %v3276 = vpack.c.bf16 %v3258, %v3257
        %v3277 = vpack.c.bf16 %v3272, %v3271
        %v3278 = vpack.c.bf16 %v3275, %v3274
        %v3279 = vld [vmem:[%s4] sm:$0xff]
        %v3280 = vld [vmem:[%s4 + $0x8] sm:$0xf]
        %v3281 = vld [vmem:[%s4 + $0xc] sm:$0xff]
        %v3282 = vld [vmem:[%s4 + $0x14] sm:$0xf]
        %v3283 = vld [vmem:[%s4 + $0x18] sm:$0xff]
        %v3284 = vld [vmem:[%s4 + $0x20] sm:$0xf]
        %v3285 = vld [vmem:[%s4 + $0x24] sm:$0xff]
        %v3286 = vld [vmem:[%s4 + $0x2c] sm:$0xf]
        %v3287 = vld [vmem:[%s4 + $0x30] sm:$0xff]
        %v3288 = vld [vmem:[%s4 + $0x38] sm:$0xf]
        %v3289 = vld [vmem:[%s4 + $0x3c] sm:$0xff]
        %v3290 = vld [vmem:[%s4 + $0x44] sm:$0xf]
        %v3291 = vld [vmem:[%s4 + $0x48] sm:$0xff]
        %v3292 = vld [vmem:[%s4 + $0x50] sm:$0xf]
        %v3293 = vld [vmem:[%s4 + $0x54] sm:$0xff]
        %v3294 = vld [vmem:[%s4 + $0x5c] sm:$0xf]
        %v3295 = vld [vmem:[%s4 + $0x60] sm:$0xff]
        %v3296 = vld [vmem:[%s4 + $0x68] sm:$0xf]
        %v3297 = vld [vmem:[%s4 + $0x6c] sm:$0xff]
        %v3298 = vld [vmem:[%s4 + $0x74] sm:$0xf]
        %v3299 = vld [vmem:[%s4 + $0x78] sm:$0xff]
        %v3300 = vld [vmem:[%s4 + $0x80] sm:$0xf]
        %v3301 = vld [vmem:[%s4 + $0x84] sm:$0xff]
        %v3302 = vld [vmem:[%s4 + $0x8c] sm:$0xf]
        %v3303 = vld [vmem:[%s4 + $0x90] sm:$0xff]
        %v3304 = vld [vmem:[%s4 + $0x98] sm:$0xf]
        %v3305 = vld [vmem:[%s4 + $0x9c] sm:$0xff]
        %v3306 = vld [vmem:[%s4 + $0xa4] sm:$0xf]
        %v3307 = vld [vmem:[%s4 + $0xa8] sm:$0xff]
        %v3308 = vld [vmem:[%s4 + $0xb0] sm:$0xf]
        %v3309 = vld [vmem:[%s4 + $0xb4] sm:$0xff]
        %v3310 = vld [vmem:[%s4 + $0xbc] sm:$0xf]
        %v3311 = vld [vmem:[%s4 + $0xc0] sm:$0xff]
        %v3312 = vld [vmem:[%s4 + $0xc8] sm:$0xf]
        %v3313 = vld [vmem:[%s4 + $0xcc] sm:$0xff]
        %v3314 = vld [vmem:[%s4 + $0xd4] sm:$0xf]
        %v3315 = vld [vmem:[%s4 + $0xd8] sm:$0xff]
        %v3316 = vld [vmem:[%s4 + $0xe0] sm:$0xf]
        %v3317 = vld [vmem:[%s4 + $0xe4] sm:$0xff]
        %v3318 = vld [vmem:[%s4 + $0xec] sm:$0xf]
        %v3319 = vld [vmem:[%s4 + $0xf0] sm:$0xff]
        %v3320 = vld [vmem:[%s4 + $0xf8] sm:$0xf]
        %v3321 = vld [vmem:[%s4 + $0xfc] sm:$0xff]
        %v3322 = vld [vmem:[%s4 + $0x104] sm:$0xf]
        %v3323 = vld [vmem:[%s4 + $0x108] sm:$0xff]
        %v3324 = vld [vmem:[%s4 + $0x110] sm:$0xf]
        %v3325 = vld [vmem:[%s4 + $0x114] sm:$0xff]
        %v3326 = vld [vmem:[%s4 + $0x11c] sm:$0xf]
        %v3327 = vld [vmem:[%s4 + $0x120] sm:$0xff]
        %v3328 = vld [vmem:[%s4 + $0x128] sm:$0xf]
        %v3329 = vld [vmem:[%s4 + $0x12c] sm:$0xff]
        %v3330 = vld [vmem:[%s4 + $0x134] sm:$0xf]
        %v3331 = vld [vmem:[%s4 + $0x138] sm:$0xff]
        %v3332 = vld [vmem:[%s4 + $0x140] sm:$0xf]
        %v3333 = vld [vmem:[%s4 + $0x144] sm:$0xff]
        %v3334 = vld [vmem:[%s4 + $0x14c] sm:$0xf]
        %v3335 = vld [vmem:[%s4 + $0x150] sm:$0xff]
        %v3336 = vld [vmem:[%s4 + $0x158] sm:$0xf]
        %v3337 = vld [vmem:[%s4 + $0x15c] sm:$0xff]
        %v3338 = vld [vmem:[%s4 + $0x164] sm:$0xf]
        %v3339 = vld [vmem:[%s4 + $0x168] sm:$0xff]
        %v3340 = vld [vmem:[%s4 + $0x170] sm:$0xf]
        %v3341 = vld [vmem:[%s4 + $0x174] sm:$0xff]
        %v3342 = vld [vmem:[%s4 + $0x17c] sm:$0xf]
        %v3343 = vld [vmem:[%s4 + $0x180] sm:$0xff]
        %v3344 = vld [vmem:[%s4 + $0x188] sm:$0xf]
        %v3345 = vld [vmem:[%s4 + $0x18c] sm:$0xff]
        %v3346 = vld [vmem:[%s4 + $0x194] sm:$0xf]
        %v3347 = vld [vmem:[%s4 + $0x198] sm:$0xff]
        %v3348 = vld [vmem:[%s4 + $0x1a0] sm:$0xf]
        %v3349 = vld [vmem:[%s4 + $0x1a4] sm:$0xff]
        %v3350 = vld [vmem:[%s4 + $0x1ac] sm:$0xf]
        %v3351 = vld [vmem:[%s5] sm:$0x7]
        %v3353 = vlaneseq
        %v3354 = vshrl.u32 %v3353, 7
        %v3355 = vsub.s32 0, %v3354
        %v3356 = vrot.slane %v3351, %v3355
        %v3357 = vlaneseq
        %v3358 = vshrl.u32 %v3357, 7
        %v3359 = vsub.s32 1, %v3358
        %v3360 = vrot.slane %v3351, %v3359
        %v3361 = vlaneseq
        %v3362 = vshrl.u32 %v3361, 7
        %v3363 = vsub.s32 2, %v3362
        %v3364 = vrot.slane %v3351, %v3363
        %v3440 = vunpack.c.l.b16 %v3279
        %v3441 = vunpack.c.h.b16 %v3279
        %v3442 = vunpack.c.l.b16 %v3280
        %v3443 = vunpack.c.l.b16 %v3281
        %v3444 = vunpack.c.h.b16 %v3281
        %v3445 = vunpack.c.l.b16 %v3282
        %v3446 = vunpack.c.l.b16 %v3283
        %v3447 = vunpack.c.h.b16 %v3283
        %v3448 = vunpack.c.l.b16 %v3284
        %v3449 = vunpack.c.l.b16 %v3285
        %v3450 = vunpack.c.h.b16 %v3285
        %v3451 = vunpack.c.l.b16 %v3286
        %v3452 = vunpack.c.l.b16 %v3287
        %v3453 = vunpack.c.h.b16 %v3287
        %v3454 = vunpack.c.l.b16 %v3288
        %v3455 = vunpack.c.l.b16 %v3289
        %v3456 = vunpack.c.h.b16 %v3289
        %v3457 = vunpack.c.l.b16 %v3290
        %v3458 = vunpack.c.l.b16 %v3291
        %v3459 = vunpack.c.h.b16 %v3291
        %v3460 = vunpack.c.l.b16 %v3292
        %v3461 = vunpack.c.l.b16 %v3293
        %v3462 = vunpack.c.h.b16 %v3293
        %v3463 = vunpack.c.l.b16 %v3294
        %v3464 = vunpack.c.l.b16 %v3295
        %v3465 = vunpack.c.h.b16 %v3295
        %v3466 = vunpack.c.l.b16 %v3296
        %v3467 = vunpack.c.l.b16 %v3297
        %v3468 = vunpack.c.h.b16 %v3297
        %v3469 = vunpack.c.l.b16 %v3298
        %v3470 = vunpack.c.l.b16 %v3299
        %v3471 = vunpack.c.h.b16 %v3299
        %v3472 = vunpack.c.l.b16 %v3300
        %v3473 = vunpack.c.l.b16 %v3301
        %v3474 = vunpack.c.h.b16 %v3301
        %v3475 = vunpack.c.l.b16 %v3302
        %v3476 = vunpack.c.l.b16 %v3303
        %v3477 = vunpack.c.h.b16 %v3303
        %v3478 = vunpack.c.l.b16 %v3304
        %v3479 = vunpack.c.l.b16 %v3305
        %v3480 = vunpack.c.h.b16 %v3305
        %v3481 = vunpack.c.l.b16 %v3306
        %v3482 = vunpack.c.l.b16 %v3307
        %v3483 = vunpack.c.h.b16 %v3307
        %v3484 = vunpack.c.l.b16 %v3308
        %v3485 = vunpack.c.l.b16 %v3309
        %v3486 = vunpack.c.h.b16 %v3309
        %v3487 = vunpack.c.l.b16 %v3310
        %v3488 = vunpack.c.l.b16 %v3311
        %v3489 = vunpack.c.h.b16 %v3311
        %v3490 = vunpack.c.l.b16 %v3312
        %v3491 = vunpack.c.l.b16 %v3313
        %v3492 = vunpack.c.h.b16 %v3313
        %v3493 = vunpack.c.l.b16 %v3314
        %v3494 = vunpack.c.l.b16 %v3315
        %v3495 = vunpack.c.h.b16 %v3315
        %v3496 = vunpack.c.l.b16 %v3316
        %v3497 = vunpack.c.l.b16 %v3317
        %v3498 = vunpack.c.h.b16 %v3317
        %v3499 = vunpack.c.l.b16 %v3318
        %v3500 = vunpack.c.l.b16 %v3319
        %v3501 = vunpack.c.h.b16 %v3319
        %v3502 = vunpack.c.l.b16 %v3320
        %v3503 = vunpack.c.l.b16 %v3321
        %v3504 = vunpack.c.h.b16 %v3321
        %v3505 = vunpack.c.l.b16 %v3322
        %v3506 = vunpack.c.l.b16 %v3323
        %v3507 = vunpack.c.h.b16 %v3323
        %v3508 = vunpack.c.l.b16 %v3324
        %v3509 = vunpack.c.l.b16 %v3325
        %v3510 = vunpack.c.h.b16 %v3325
        %v3511 = vunpack.c.l.b16 %v3326
        %v3512 = vunpack.c.l.b16 %v3327
        %v3513 = vunpack.c.h.b16 %v3327
        %v3514 = vunpack.c.l.b16 %v3328
        %v3515 = vunpack.c.l.b16 %v3329
        %v3516 = vunpack.c.h.b16 %v3329
        %v3517 = vunpack.c.l.b16 %v3330
        %v3518 = vunpack.c.l.b16 %v3331
        %v3519 = vunpack.c.h.b16 %v3331
        %v3520 = vunpack.c.l.b16 %v3332
        %v3521 = vunpack.c.l.b16 %v3333
        %v3522 = vunpack.c.h.b16 %v3333
        %v3523 = vunpack.c.l.b16 %v3334
        %v3524 = vunpack.c.l.b16 %v3335
        %v3525 = vunpack.c.h.b16 %v3335
        %v3526 = vunpack.c.l.b16 %v3336
        %v3527 = vunpack.c.l.b16 %v3337
        %v3528 = vunpack.c.h.b16 %v3337
        %v3529 = vunpack.c.l.b16 %v3338
        %v3530 = vunpack.c.l.b16 %v3339
        %v3531 = vunpack.c.h.b16 %v3339
        %v3532 = vunpack.c.l.b16 %v3340
        %v3533 = vunpack.c.l.b16 %v3341
        %v3534 = vunpack.c.h.b16 %v3341
        %v3535 = vunpack.c.l.b16 %v3342
        %v3536 = vunpack.c.l.b16 %v3343
        %v3537 = vunpack.c.h.b16 %v3343
        %v3538 = vunpack.c.l.b16 %v3344
        %v3539 = vunpack.c.l.b16 %v3345
        %v3540 = vunpack.c.h.b16 %v3345
        %v3541 = vunpack.c.l.b16 %v3346
        %v3542 = vunpack.c.l.b16 %v3347
        %v3543 = vunpack.c.h.b16 %v3347
        %v3544 = vunpack.c.l.b16 %v3348
        %v3545 = vunpack.c.l.b16 %v3349
        %v3546 = vunpack.c.h.b16 %v3349
        %v3547 = vunpack.c.l.b16 %v3350
        %v3548 = vpack.c.b16 %v3443, %v3440
        %v3549 = vpack.c.b16 %v3444, %v3441
        %v3550 = vpack.c.b16 %v3445, %v3442
        %v3551 = vpack.c.b16 %v3449, %v3446
        %v3552 = vpack.c.b16 %v3450, %v3447
        %v3553 = vpack.c.b16 %v3451, %v3448
        %v3554 = vpack.c.b16 %v3455, %v3452
        %v3555 = vpack.c.b16 %v3456, %v3453
        %v3556 = vpack.c.b16 %v3457, %v3454
        %v3557 = vpack.c.b16 %v3461, %v3458
        %v3558 = vpack.c.b16 %v3462, %v3459
        %v3559 = vpack.c.b16 %v3463, %v3460
        %v3560 = vpack.c.b16 %v3467, %v3464
        %v3561 = vpack.c.b16 %v3468, %v3465
        %v3562 = vpack.c.b16 %v3469, %v3466
        %v3563 = vpack.c.b16 %v3473, %v3470
        %v3564 = vpack.c.b16 %v3474, %v3471
        %v3565 = vpack.c.b16 %v3475, %v3472
        %v3566 = vpack.c.b16 %v3479, %v3476
        %v3567 = vpack.c.b16 %v3480, %v3477
        %v3568 = vpack.c.b16 %v3481, %v3478
        %v3569 = vpack.c.b16 %v3485, %v3482
        %v3570 = vpack.c.b16 %v3486, %v3483
        %v3571 = vpack.c.b16 %v3487, %v3484
        %v3572 = vpack.c.b16 %v3491, %v3488
        %v3573 = vpack.c.b16 %v3492, %v3489
        %v3574 = vpack.c.b16 %v3493, %v3490
        %v3575 = vpack.c.b16 %v3497, %v3494
        %v3576 = vpack.c.b16 %v3498, %v3495
        %v3577 = vpack.c.b16 %v3499, %v3496
        %v3578 = vpack.c.b16 %v3503, %v3500
        %v3579 = vpack.c.b16 %v3504, %v3501
        %v3580 = vpack.c.b16 %v3505, %v3502
        %v3581 = vpack.c.b16 %v3509, %v3506
        %v3582 = vpack.c.b16 %v3510, %v3507
        %v3583 = vpack.c.b16 %v3511, %v3508
        %v3584 = vpack.c.b16 %v3515, %v3512
        %v3585 = vpack.c.b16 %v3516, %v3513
        %v3586 = vpack.c.b16 %v3517, %v3514
        %v3587 = vpack.c.b16 %v3521, %v3518
        %v3588 = vpack.c.b16 %v3522, %v3519
        %v3589 = vpack.c.b16 %v3523, %v3520
        %v3590 = vpack.c.b16 %v3527, %v3524
        %v3591 = vpack.c.b16 %v3528, %v3525
        %v3592 = vpack.c.b16 %v3529, %v3526
        %v3593 = vpack.c.b16 %v3533, %v3530
        %v3594 = vpack.c.b16 %v3534, %v3531
        %v3595 = vpack.c.b16 %v3535, %v3532
        %v3596 = vpack.c.b16 %v3539, %v3536
        %v3597 = vpack.c.b16 %v3540, %v3537
        %v3598 = vpack.c.b16 %v3541, %v3538
        %v3599 = vpack.c.b16 %v3545, %v3542
        %v3600 = vpack.c.b16 %v3546, %v3543
        %v3601 = vpack.c.b16 %v3547, %v3544
        %v3657 = vsel %vm422, %v3278, 0
        %3659 = vmatprep.subr.bf16.mxu0 %v3549
        %3660 = vmatpush1.bf16.msra.mxu0 %v3548
        %3661 = vmatprep.subr.bf16.mxu0 %v3552
        %3662 = vmatpush1.bf16.msra.mxu0 %v3551
        %3663 = vmatprep.subr.bf16.mxu0 %v3555
        %3664 = vmatpush1.bf16.msra.mxu0 %v3554
        %3665 = vmatprep.subr.bf16.mxu0 %v3558
        %3666 = vmatpush1.bf16.msra.mxu0 %v3557
        %3667 = vmatprep.subr.bf16.mxu0 %v3561
        %3668 = vmatpush1.bf16.msra.mxu0 %v3560
        %3669 = vmatprep.subr.bf16.mxu0 %v3564
        %3670 = vmatpush1.bf16.msra.mxu0 %v3563
        %3671 = vmatprep.subr.bf16.mxu0 %v3567
        %3672 = vmatpush1.bf16.msra.mxu0 %v3566
        %3673 = vmatprep.subr.bf16.mxu0 %v3570
        %3674 = vmatpush1.bf16.msra.mxu0 %v3569
        %3675 = vmatprep.subr.bf16.mxu0 %v3573
        %3676 = vmatpush1.bf16.msra.mxu0 %v3572
        %3677 = vmatprep.subr.bf16.mxu0 %v3576
        %3678 = vmatpush1.bf16.msra.mxu0 %v3575
        %3679 = vmatprep.subr.bf16.mxu0 %v3579
        %3680 = vmatpush1.bf16.msra.mxu0 %v3578
        %3681 = vmatprep.subr.bf16.mxu0 %v3582
        %3682 = vmatpush1.bf16.msra.mxu0 %v3581
        %3683 = vmatprep.subr.bf16.mxu0 %v3585
        %3684 = vmatpush1.bf16.msra.mxu0 %v3584
        %3685 = vmatprep.subr.bf16.mxu0 %v3588
        %3686 = vmatpush1.bf16.msra.mxu0 %v3587
        %3687 = vmatprep.subr.bf16.mxu0 %v3591
        %3688 = vmatpush1.bf16.msra.mxu0 %v3590
        %3689 = vmatprep.subr.bf16.mxu0 %v3594
        %3690 = vmatpush1.bf16.msra.mxu0 %v3593
        %3691 = vmatprep.mubr.bf16.mxu0 %v3277
        %3692 = vmatmul.mubr.bf16.gmra.mrb[0].mxu0 %v3276
        %v3693 = vpop.f32.mrb[0].mxu0
        %v3694 = vadd.f32 %v3356, %v3693
        %v3695 = vpop.f32.mrb[0].mxu0
        %v3696 = vadd.f32 %v3360, %v3695
        %v3697 = vpop.f32.mrb[0].mxu0
        %v3698 = vadd.f32 %v3356, %v3697
        %v3699 = vpop.f32.mrb[0].mxu0
        %v3700 = vadd.f32 %v3360, %v3699
        %3701 = vdwg.mxu0
        %3702 = vmatprep.subr.bf16.mxu0 %v3597
        %3703 = vmatpush1.bf16.msra.mxu0 %v3596
        %3704 = vmatprep.subr.bf16.mxu0 %v3600
        %3705 = vmatpush1.bf16.msra.mxu0 %v3599
        %3706 = vmatprep.subr.bf16.mxu0 0
        %3707 = vmatpush1.bf16.msra.mxu0 0
        %3708 = vmatprep.subr.bf16.mxu0 0
        %3709 = vmatpush1.bf16.msra.mxu0 0
        %3710 = vmatprep.subr.bf16.mxu0 0
        %3711 = vmatpush1.bf16.msra.mxu0 0
        %3712 = vmatprep.subr.bf16.mxu0 0
        %3713 = vmatpush1.bf16.msra.mxu0 0
        %3714 = vmatprep.subr.bf16.mxu0 0
        %3715 = vmatpush1.bf16.msra.mxu0 0
        %3716 = vmatprep.subr.bf16.mxu0 0
        %3717 = vmatpush1.bf16.msra.mxu0 0
        %3718 = vmatprep.subr.bf16.mxu0 0
        %3719 = vmatpush1.bf16.msra.mxu0 0
        %3720 = vmatprep.subr.bf16.mxu0 0
        %3721 = vmatpush1.bf16.msra.mxu0 0
        %3722 = vmatprep.subr.bf16.mxu0 0
        %3723 = vmatpush1.bf16.msra.mxu0 0
        %3724 = vmatprep.subr.bf16.mxu0 0
        %3725 = vmatpush1.bf16.msra.mxu0 0
        %3726 = vmatprep.subr.bf16.mxu0 0
        %3727 = vmatpush1.bf16.msra.mxu0 0
        %3728 = vmatprep.subr.bf16.mxu0 0
        %3729 = vmatpush1.bf16.msra.mxu0 0
        %3730 = vmatprep.subr.bf16.mxu0 0
        %3731 = vmatpush1.bf16.msra.mxu0 0
        %3732 = vmatprep.subr.bf16.mxu0 0
        %3733 = vmatpush1.bf16.msra.mxu0 0
        %3734 = vmatprep.mubr.bf16.mxu0 0
        %3735 = vmatmul.mubr.bf16.gmra.mrb[0].mxu0 %v3657
        %v3736 = vpop.f32.mrb[0].mxu0
        %v3737 = vadd.f32 %v3694, %v3736
        %v3738 = vpop.f32.mrb[0].mxu0
        %v3739 = vadd.f32 %v3696, %v3738
        %v3740 = vpop.f32.mrb[0].mxu0
        %v3741 = vadd.f32 %v3698, %v3740
        %v3742 = vpop.f32.mrb[0].mxu0
        %v3743 = vadd.f32 %v3700, %v3742
        %3744 = vdwg.mxu0
        %3745 = vmatprep.subr.bf16.mxu0 0
        %3746 = vmatpush1.bf16.msra.mxu0 %v3550
        %3747 = vmatprep.subr.bf16.mxu0 0
        %3748 = vmatpush1.bf16.msra.mxu0 %v3553
        %3749 = vmatprep.subr.bf16.mxu0 0
        %3750 = vmatpush1.bf16.msra.mxu0 %v3556
        %3751 = vmatprep.subr.bf16.mxu0 0
        %3752 = vmatpush1.bf16.msra.mxu0 %v3559
        %3753 = vmatprep.subr.bf16.mxu0 0
        %3754 = vmatpush1.bf16.msra.mxu0 %v3562
        %3755 = vmatprep.subr.bf16.mxu0 0
        %3756 = vmatpush1.bf16.msra.mxu0 %v3565
        %3757 = vmatprep.subr.bf16.mxu0 0
        %3758 = vmatpush1.bf16.msra.mxu0 %v3568
        %3759 = vmatprep.subr.bf16.mxu0 0
        %3760 = vmatpush1.bf16.msra.mxu0 %v3571
        %3761 = vmatprep.subr.bf16.mxu0 0
        %3762 = vmatpush1.bf16.msra.mxu0 %v3574
        %3763 = vmatprep.subr.bf16.mxu0 0
        %3764 = vmatpush1.bf16.msra.mxu0 %v3577
        %3765 = vmatprep.subr.bf16.mxu0 0
        %3766 = vmatpush1.bf16.msra.mxu0 %v3580
        %3767 = vmatprep.subr.bf16.mxu0 0
        %3768 = vmatpush1.bf16.msra.mxu0 %v3583
        %3769 = vmatprep.subr.bf16.mxu0 0
        %3770 = vmatpush1.bf16.msra.mxu0 %v3586
        %3771 = vmatprep.subr.bf16.mxu0 0
        %3772 = vmatpush1.bf16.msra.mxu0 %v3589
        %3773 = vmatprep.subr.bf16.mxu0 0
        %3774 = vmatpush1.bf16.msra.mxu0 %v3592
        %3775 = vmatprep.subr.bf16.mxu0 0
        %3776 = vmatpush1.bf16.msra.mxu0 %v3595
        %3777 = vmatprep.mubr.bf16.mxu0 %v3277
        %3778 = vmatmul.mubr.bf16.gmra.mrb[0].mxu0 %v3276
        %v3779 = vpop.f32.mrb[0].mxu0
        %v3780 = vadd.f32 %v3364, %v3779
        %v3781 = vpop.f32.mrb[0].mxu0
        %v3782 = vpop.f32.mrb[0].mxu0
        %v3783 = vadd.f32 %v3364, %v3782
        %v3784 = vpop.f32.mrb[0].mxu0
        %3785 = vdwg.mxu0
        %3786 = vmatprep.subr.bf16.mxu0 0
        %3787 = vmatpush1.bf16.msra.mxu0 %v3598
        %3788 = vmatprep.subr.bf16.mxu0 0
        %3789 = vmatpush1.bf16.msra.mxu0 %v3601
        %3790 = vmatprep.subr.bf16.mxu0 0
        %3791 = vmatpush1.bf16.msra.mxu0 0
        %3792 = vmatprep.subr.bf16.mxu0 0
        %3793 = vmatpush1.bf16.msra.mxu0 0
        %3794 = vmatprep.subr.bf16.mxu0 0
        %3795 = vmatpush1.bf16.msra.mxu0 0
        %3796 = vmatprep.subr.bf16.mxu0 0
        %3797 = vmatpush1.bf16.msra.mxu0 0
        %3798 = vmatprep.subr.bf16.mxu0 0
        %3799 = vmatpush1.bf16.msra.mxu0 0
        %3800 = vmatprep.subr.bf16.mxu0 0
        %3801 = vmatpush1.bf16.msra.mxu0 0
        %3802 = vmatprep.subr.bf16.mxu0 0
        %3803 = vmatpush1.bf16.msra.mxu0 0
        %3804 = vmatprep.subr.bf16.mxu0 0
        %3805 = vmatpush1.bf16.msra.mxu0 0
        %3806 = vmatprep.subr.bf16.mxu0 0
        %3807 = vmatpush1.bf16.msra.mxu0 0
        %3808 = vmatprep.subr.bf16.mxu0 0
        %3809 = vmatpush1.bf16.msra.mxu0 0
        %3810 = vmatprep.subr.bf16.mxu0 0
        %3811 = vmatpush1.bf16.msra.mxu0 0
        %3812 = vmatprep.subr.bf16.mxu0 0
        %3813 = vmatpush1.bf16.msra.mxu0 0
        %3814 = vmatprep.subr.bf16.mxu0 0
        %3815 = vmatpush1.bf16.msra.mxu0 0
        %3816 = vmatprep.subr.bf16.mxu0 0
        %3817 = vmatpush1.bf16.msra.mxu0 0
        %3818 = vmatprep.mubr.bf16.mxu0 0
        %3819 = vmatmul.mubr.bf16.gmra.mrb[0].mxu0 %v3657
        %v3820 = vpop.f32.mrb[0].mxu0
        %v3821 = vadd.f32 %v3780, %v3820
        %v3822 = vpop.f32.mrb[0].mxu0
        %v3823 = vpop.f32.mrb[0].mxu0
        %v3824 = vadd.f32 %v3783, %v3823
        %v3825 = vpop.f32.mrb[0].mxu0
        %3826 = vdwg.mxu0
        %v3827 = vadd.f32 %v413, %v3737
        %v3828 = vadd.f32 %v414, %v3739
        %v3829 = vadd.f32 %v415, %v3821
        %v3830 = vadd.f32 %v416, %v3741
        %v3831 = vadd.f32 %v417, %v3743
        %v3832 = vadd.f32 %v418, %v3824
        %v3833 = vld [vmem:[%s6] sm:$0x7]
        %v3834 = vld [vmem:[%s7] sm:$0x7]
        %v3835 = vadd.f32 %v3827, %v3828
        %v3836 = vsel %vm422, %v3829, 0.0
        %v3837 = vadd.f32 %v3835, %v3836
        %3838 = vadd.xlane.f32.xlu0 %v3837
        %v3839 = vpop.xlane.xlu0 %3838
        %v3840 = vadd.f32 %v3830, %v3831
        %v3841 = vsel %vm422, %v3832, 0.0
        %v3842 = vadd.f32 %v3840, %v3841
        %3843 = vadd.xlane.f32.xlu0 %v3842
        %v3844 = vpop.xlane.xlu0 %3843
        %v3845 = vmul.f32 %v3839, %v432
        %v3846 = vmul.f32 %v3844, %v432
        %v3847 = vsub.f32 %v3827, %v3845
        %v3848 = vsub.f32 %v3828, %v3845
        %v3849 = vsub.f32 %v3829, %v3845
        %v3850 = vsub.f32 %v3830, %v3846
        %v3851 = vsub.f32 %v3831, %v3846
        %v3852 = vsub.f32 %v3832, %v3846
        %v3853 = vmul.f32 %v3847, %v3847
        %v3854 = vmul.f32 %v3848, %v3848
        %v3855 = vmul.f32 %v3849, %v3849
        %v3856 = vmul.f32 %v3850, %v3850
        %v3857 = vmul.f32 %v3851, %v3851
        %v3858 = vmul.f32 %v3852, %v3852
        %v3859 = vadd.f32 %v3853, %v3854
        %v3860 = vsel %vm422, %v3855, 0.0
        %v3861 = vadd.f32 %v3859, %v3860
        %3862 = vadd.xlane.f32.xlu0 %v3861
        %v3863 = vpop.xlane.xlu0 %3862
        %v3864 = vadd.f32 %v3856, %v3857
        %v3865 = vsel %vm422, %v3858, 0.0
        %v3866 = vadd.f32 %v3864, %v3865
        %3867 = vadd.xlane.f32.xlu0 %v3866
        %v3868 = vpop.xlane.xlu0 %3867
        %v3869 = vmul.f32 %v3863, %v432
        %v3870 = vmul.f32 %v3868, %v432
        %v3871 = vadd.f32 %v3869, 1e-05
        %v3872 = vadd.f32 %v3870, 1e-05
        %v3873 = vrsqrt.pop %v3871
        %v3874 = vrsqrt.pop %v3872
        %v3875 = vmul.f32 %v3847, %v3873
        %v3876 = vmul.f32 %v3848, %v3873
        %v3877 = vmul.f32 %v3849, %v3873
        %v3878 = vmul.f32 %v3850, %v3874
        %v3879 = vmul.f32 %v3851, %v3874
        %v3880 = vmul.f32 %v3852, %v3874
        %v3882 = vlaneseq
        %v3883 = vshrl.u32 %v3882, 7
        %v3884 = vsub.s32 0, %v3883
        %v3885 = vrot.slane %v3833, %v3884
        %v3886 = vlaneseq
        %v3887 = vshrl.u32 %v3886, 7
        %v3888 = vsub.s32 1, %v3887
        %v3889 = vrot.slane %v3833, %v3888
        %v3890 = vlaneseq
        %v3891 = vshrl.u32 %v3890, 7
        %v3892 = vsub.s32 2, %v3891
        %v3893 = vrot.slane %v3833, %v3892
        %v3897 = vmul.f32 %v3875, %v3885
        %v3898 = vmul.f32 %v3876, %v3889
        %v3899 = vmul.f32 %v3877, %v3893
        %v3900 = vmul.f32 %v3878, %v3885
        %v3901 = vmul.f32 %v3879, %v3889
        %v3902 = vmul.f32 %v3880, %v3893
        %v3904 = vlaneseq
        %v3905 = vshrl.u32 %v3904, 7
        %v3906 = vsub.s32 0, %v3905
        %v3907 = vrot.slane %v3834, %v3906
        %v3908 = vlaneseq
        %v3909 = vshrl.u32 %v3908, 7
        %v3910 = vsub.s32 1, %v3909
        %v3911 = vrot.slane %v3834, %v3910
        %v3912 = vlaneseq
        %v3913 = vshrl.u32 %v3912, 7
        %v3914 = vsub.s32 2, %v3913
        %v3915 = vrot.slane %v3834, %v3914
        %v3919 = vadd.f32 %v3897, %v3907
        %v3920 = vadd.f32 %v3898, %v3911
        %v3921 = vadd.f32 %v3899, %v3915
        %v3922 = vadd.f32 %v3900, %v3907
        %v3923 = vadd.f32 %v3901, %v3911
        %v3924 = vadd.f32 %v3902, %v3915
        %v3925 = vpack.c.bf16 %v3922, %v3919
        %v3926 = vpack.c.bf16 %v3923, %v3920
        %v3927 = vpack.c.bf16 %v3924, %v3921
        %v3928 = vld [vmem:[%s8] sm:$0xff]
        %v3929 = vld [vmem:[%s8 + $0x8] sm:$0xff]
        %v3930 = vld [vmem:[%s8 + $0x10] sm:$0xff]
        %v3931 = vld [vmem:[%s8 + $0x18] sm:$0xff]
        %v3932 = vld [vmem:[%s8 + $0x20] sm:$0xf]
        %v3933 = vld [vmem:[%s8 + $0x24] sm:$0xff]
        %v3934 = vld [vmem:[%s8 + $0x2c] sm:$0xff]
        %v3935 = vld [vmem:[%s8 + $0x34] sm:$0xff]
        %v3936 = vld [vmem:[%s8 + $0x3c] sm:$0xff]
        %v3937 = vld [vmem:[%s8 + $0x44] sm:$0xf]
        %v3938 = vld [vmem:[%s8 + $0x48] sm:$0xff]
        %v3939 = vld [vmem:[%s8 + $0x50] sm:$0xff]
        %v3940 = vld [vmem:[%s8 + $0x58] sm:$0xff]
        %v3941 = vld [vmem:[%s8 + $0x60] sm:$0xff]
        %v3942 = vld [vmem:[%s8 + $0x68] sm:$0xf]
        %v3943 = vld [vmem:[%s8 + $0x6c] sm:$0xff]
        %v3944 = vld [vmem:[%s8 + $0x74] sm:$0xff]
        %v3945 = vld [vmem:[%s8 + $0x7c] sm:$0xff]
        %v3946 = vld [vmem:[%s8 + $0x84] sm:$0xff]
        %v3947 = vld [vmem:[%s8 + $0x8c] sm:$0xf]
        %v3948 = vld [vmem:[%s8 + $0x90] sm:$0xff]
        %v3949 = vld [vmem:[%s8 + $0x98] sm:$0xff]
        %v3950 = vld [vmem:[%s8 + $0xa0] sm:$0xff]
        %v3951 = vld [vmem:[%s8 + $0xa8] sm:$0xff]
        %v3952 = vld [vmem:[%s8 + $0xb0] sm:$0xf]
        %v3953 = vld [vmem:[%s8 + $0xb4] sm:$0xff]
        %v3954 = vld [vmem:[%s8 + $0xbc] sm:$0xff]
        %v3955 = vld [vmem:[%s8 + $0xc4] sm:$0xff]
        %v3956 = vld [vmem:[%s8 + $0xcc] sm:$0xff]
        %v3957 = vld [vmem:[%s8 + $0xd4] sm:$0xf]
        %v3958 = vld [vmem:[%s8 + $0xd8] sm:$0xff]
        %v3959 = vld [vmem:[%s8 + $0xe0] sm:$0xff]
        %v3960 = vld [vmem:[%s8 + $0xe8] sm:$0xff]
        %v3961 = vld [vmem:[%s8 + $0xf0] sm:$0xff]
        %v3962 = vld [vmem:[%s8 + $0xf8] sm:$0xf]
        %v3963 = vld [vmem:[%s8 + $0xfc] sm:$0xff]
        %v3964 = vld [vmem:[%s8 + $0x104] sm:$0xff]
        %v3965 = vld [vmem:[%s8 + $0x10c] sm:$0xff]
        %v3966 = vld [vmem:[%s8 + $0x114] sm:$0xff]
        %v3967 = vld [vmem:[%s8 + $0x11c] sm:$0xf]
        %v3968 = vld [vmem:[%s8 + $0x120] sm:$0xff]
        %v3969 = vld [vmem:[%s8 + $0x128] sm:$0xff]
        %v3970 = vld [vmem:[%s8 + $0x130] sm:$0xff]
        %v3971 = vld [vmem:[%s8 + $0x138] sm:$0xff]
        %v3972 = vld [vmem:[%s8 + $0x140] sm:$0xf]
        %v3973 = vld [vmem:[%s8 + $0x144] sm:$0xff]
        %v3974 = vld [vmem:[%s8 + $0x14c] sm:$0xff]
        %v3975 = vld [vmem:[%s8 + $0x154] sm:$0xff]
        %v3976 = vld [vmem:[%s8 + $0x15c] sm:$0xff]
        %v3977 = vld [vmem:[%s8 + $0x164] sm:$0xf]
        %v3978 = vld [vmem:[%s8 + $0x168] sm:$0xff]
        %v3979 = vld [vmem:[%s8 + $0x170] sm:$0xff]
        %v3980 = vld [vmem:[%s8 + $0x178] sm:$0xff]
        %v3981 = vld [vmem:[%s8 + $0x180] sm:$0xff]
        %v3982 = vld [vmem:[%s8 + $0x188] sm:$0xf]
        %v3983 = vld [vmem:[%s8 + $0x18c] sm:$0xff]
        %v3984 = vld [vmem:[%s8 + $0x194] sm:$0xff]
        %v3985 = vld [vmem:[%s8 + $0x19c] sm:$0xff]
        %v3986 = vld [vmem:[%s8 + $0x1a4] sm:$0xff]
        %v3987 = vld [vmem:[%s8 + $0x1ac] sm:$0xf]
        %v3988 = vld [vmem:[%s8 + $0x1b0] sm:$0xff]
        %v3989 = vld [vmem:[%s8 + $0x1b8] sm:$0xff]
        %v3990 = vld [vmem:[%s8 + $0x1c0] sm:$0xff]
        %v3991 = vld [vmem:[%s8 + $0x1c8] sm:$0xff]
        %v3992 = vld [vmem:[%s8 + $0x1d0] sm:$0xf]
        %v3993 = vld [vmem:[%s8 + $0x1d4] sm:$0xff]
        %v3994 = vld [vmem:[%s8 + $0x1dc] sm:$0xff]
        %v3995 = vld [vmem:[%s8 + $0x1e4] sm:$0xff]
        %v3996 = vld [vmem:[%s8 + $0x1ec] sm:$0xff]
        %v3997 = vld [vmem:[%s8 + $0x1f4] sm:$0xf]
        %v3998 = vld [vmem:[%s8 + $0x1f8] sm:$0xff]
        %v3999 = vld [vmem:[%s8 + $0x200] sm:$0xff]
        %v4000 = vld [vmem:[%s8 + $0x208] sm:$0xff]
        %v4001 = vld [vmem:[%s8 + $0x210] sm:$0xff]
        %v4002 = vld [vmem:[%s8 + $0x218] sm:$0xf]
        %v4003 = vld [vmem:[%s8 + $0x21c] sm:$0xff]
        %v4004 = vld [vmem:[%s8 + $0x224] sm:$0xff]
        %v4005 = vld [vmem:[%s8 + $0x22c] sm:$0xff]
        %v4006 = vld [vmem:[%s8 + $0x234] sm:$0xff]
        %v4007 = vld [vmem:[%s8 + $0x23c] sm:$0xf]
        %v4008 = vld [vmem:[%s8 + $0x240] sm:$0xff]
        %v4009 = vld [vmem:[%s8 + $0x248] sm:$0xff]
        %v4010 = vld [vmem:[%s8 + $0x250] sm:$0xff]
        %v4011 = vld [vmem:[%s8 + $0x258] sm:$0xff]
        %v4012 = vld [vmem:[%s8 + $0x260] sm:$0xf]
        %v4013 = vld [vmem:[%s8 + $0x264] sm:$0xff]
        %v4014 = vld [vmem:[%s8 + $0x26c] sm:$0xff]
        %v4015 = vld [vmem:[%s8 + $0x274] sm:$0xff]
        %v4016 = vld [vmem:[%s8 + $0x27c] sm:$0xff]
        %v4017 = vld [vmem:[%s8 + $0x284] sm:$0xf]
        %v4018 = vld [vmem:[%s8 + $0x288] sm:$0xff]
        %v4019 = vld [vmem:[%s8 + $0x290] sm:$0xff]
        %v4020 = vld [vmem:[%s8 + $0x298] sm:$0xff]
        %v4021 = vld [vmem:[%s8 + $0x2a0] sm:$0xff]
        %v4022 = vld [vmem:[%s8 + $0x2a8] sm:$0xf]
        %v4023 = vld [vmem:[%s8 + $0x2ac] sm:$0xff]
        %v4024 = vld [vmem:[%s8 + $0x2b4] sm:$0xff]
        %v4025 = vld [vmem:[%s8 + $0x2bc] sm:$0xff]
        %v4026 = vld [vmem:[%s8 + $0x2c4] sm:$0xff]
        %v4027 = vld [vmem:[%s8 + $0x2cc] sm:$0xf]
        %v4028 = vld [vmem:[%s8 + $0x2d0] sm:$0xff]
        %v4029 = vld [vmem:[%s8 + $0x2d8] sm:$0xff]
        %v4030 = vld [vmem:[%s8 + $0x2e0] sm:$0xff]
        %v4031 = vld [vmem:[%s8 + $0x2e8] sm:$0xff]
        %v4032 = vld [vmem:[%s8 + $0x2f0] sm:$0xf]
        %v4033 = vld [vmem:[%s8 + $0x2f4] sm:$0xff]
        %v4034 = vld [vmem:[%s8 + $0x2fc] sm:$0xff]
        %v4035 = vld [vmem:[%s8 + $0x304] sm:$0xff]
        %v4036 = vld [vmem:[%s8 + $0x30c] sm:$0xff]
        %v4037 = vld [vmem:[%s8 + $0x314] sm:$0xf]
        %v4038 = vld [vmem:[%s8 + $0x318] sm:$0xff]
        %v4039 = vld [vmem:[%s8 + $0x320] sm:$0xff]
        %v4040 = vld [vmem:[%s8 + $0x328] sm:$0xff]
        %v4041 = vld [vmem:[%s8 + $0x330] sm:$0xff]
        %v4042 = vld [vmem:[%s8 + $0x338] sm:$0xf]
        %v4043 = vld [vmem:[%s8 + $0x33c] sm:$0xff]
        %v4044 = vld [vmem:[%s8 + $0x344] sm:$0xff]
        %v4045 = vld [vmem:[%s8 + $0x34c] sm:$0xff]
        %v4046 = vld [vmem:[%s8 + $0x354] sm:$0xff]
        %v4047 = vld [vmem:[%s8 + $0x35c] sm:$0xf]
        %v4048 = vld [vmem:[%s8 + $0x360] sm:$0xff]
        %v4049 = vld [vmem:[%s8 + $0x368] sm:$0xff]
        %v4050 = vld [vmem:[%s8 + $0x370] sm:$0xff]
        %v4051 = vld [vmem:[%s8 + $0x378] sm:$0xff]
        %v4052 = vld [vmem:[%s8 + $0x380] sm:$0xf]
        %v4053 = vld [vmem:[%s8 + $0x384] sm:$0xff]
        %v4054 = vld [vmem:[%s8 + $0x38c] sm:$0xff]
        %v4055 = vld [vmem:[%s8 + $0x394] sm:$0xff]
        %v4056 = vld [vmem:[%s8 + $0x39c] sm:$0xff]
        %v4057 = vld [vmem:[%s8 + $0x3a4] sm:$0xf]
        %v4058 = vld [vmem:[%s8 + $0x3a8] sm:$0xff]
        %v4059 = vld [vmem:[%s8 + $0x3b0] sm:$0xff]
        %v4060 = vld [vmem:[%s8 + $0x3b8] sm:$0xff]
        %v4061 = vld [vmem:[%s8 + $0x3c0] sm:$0xff]
        %v4062 = vld [vmem:[%s8 + $0x3c8] sm:$0xf]
        %v4063 = vld [vmem:[%s8 + $0x3cc] sm:$0xff]
        %v4064 = vld [vmem:[%s8 + $0x3d4] sm:$0xff]
        %v4065 = vld [vmem:[%s8 + $0x3dc] sm:$0xff]
        %v4066 = vld [vmem:[%s8 + $0x3e4] sm:$0xff]
        %v4067 = vld [vmem:[%s8 + $0x3ec] sm:$0xf]
        %v4068 = vld [vmem:[%s8 + $0x3f0] sm:$0xff]
        %v4069 = vld [vmem:[%s8 + $0x3f8] sm:$0xff]
        %v4070 = vld [vmem:[%s8 + $0x400] sm:$0xff]
        %v4071 = vld [vmem:[%s8 + $0x408] sm:$0xff]
        %v4072 = vld [vmem:[%s8 + $0x410] sm:$0xf]
        %v4073 = vld [vmem:[%s8 + $0x414] sm:$0xff]
        %v4074 = vld [vmem:[%s8 + $0x41c] sm:$0xff]
        %v4075 = vld [vmem:[%s8 + $0x424] sm:$0xff]
        %v4076 = vld [vmem:[%s8 + $0x42c] sm:$0xff]
        %v4077 = vld [vmem:[%s8 + $0x434] sm:$0xf]
        %v4078 = vld [vmem:[%s8 + $0x438] sm:$0xff]
        %v4079 = vld [vmem:[%s8 + $0x440] sm:$0xff]
        %v4080 = vld [vmem:[%s8 + $0x448] sm:$0xff]
        %v4081 = vld [vmem:[%s8 + $0x450] sm:$0xff]
        %v4082 = vld [vmem:[%s8 + $0x458] sm:$0xf]
        %v4083 = vld [vmem:[%s8 + $0x45c] sm:$0xff]
        %v4084 = vld [vmem:[%s8 + $0x464] sm:$0xff]
        %v4085 = vld [vmem:[%s8 + $0x46c] sm:$0xff]
        %v4086 = vld [vmem:[%s8 + $0x474] sm:$0xff]
        %v4087 = vld [vmem:[%s8 + $0x47c] sm:$0xf]
        %v4088 = vld [vmem:[%s8 + $0x480] sm:$0xff]
        %v4089 = vld [vmem:[%s8 + $0x488] sm:$0xff]
        %v4090 = vld [vmem:[%s8 + $0x490] sm:$0xff]
        %v4091 = vld [vmem:[%s8 + $0x498] sm:$0xff]
        %v4092 = vld [vmem:[%s8 + $0x4a0] sm:$0xf]
        %v4093 = vld [vmem:[%s8 + $0x4a4] sm:$0xff]
        %v4094 = vld [vmem:[%s8 + $0x4ac] sm:$0xff]
        %v4095 = vld [vmem:[%s8 + $0x4b4] sm:$0xff]
        %v4096 = vld [vmem:[%s8 + $0x4bc] sm:$0xff]
        %v4097 = vld [vmem:[%s8 + $0x4c4] sm:$0xf]
        %v4098 = vld [vmem:[%s8 + $0x4c8] sm:$0xff]
        %v4099 = vld [vmem:[%s8 + $0x4d0] sm:$0xff]
        %v4100 = vld [vmem:[%s8 + $0x4d8] sm:$0xff]
        %v4101 = vld [vmem:[%s8 + $0x4e0] sm:$0xff]
        %v4102 = vld [vmem:[%s8 + $0x4e8] sm:$0xf]
        %v4103 = vld [vmem:[%s8 + $0x4ec] sm:$0xff]
        %v4104 = vld [vmem:[%s8 + $0x4f4] sm:$0xff]
        %v4105 = vld [vmem:[%s8 + $0x4fc] sm:$0xff]
        %v4106 = vld [vmem:[%s8 + $0x504] sm:$0xff]
        %v4107 = vld [vmem:[%s8 + $0x50c] sm:$0xf]
        %v4108 = vld [vmem:[%s9] sm:$0xff]
        %v4109 = vld [vmem:[%s9 + $0x8] sm:$0x1]
        %v4112 = vlaneseq
        %v4113 = vshrl.u32 %v4112, 7
        %v4114 = vsub.s32 0, %v4113
        %v4115 = vrot.slane %v4108, %v4114
        %v4116 = vlaneseq
        %v4117 = vshrl.u32 %v4116, 7
        %v4118 = vsub.s32 1, %v4117
        %v4119 = vrot.slane %v4108, %v4118
        %v4120 = vlaneseq
        %v4121 = vshrl.u32 %v4120, 7
        %v4122 = vsub.s32 2, %v4121
        %v4123 = vrot.slane %v4108, %v4122
        %v4124 = vlaneseq
        %v4125 = vshrl.u32 %v4124, 7
        %v4126 = vsub.s32 3, %v4125
        %v4127 = vrot.slane %v4108, %v4126
        %v4128 = vlaneseq
        %v4129 = vshrl.u32 %v4128, 7
        %v4130 = vsub.s32 4, %v4129
        %v4131 = vrot.slane %v4108, %v4130
        %v4132 = vlaneseq
        %v4133 = vshrl.u32 %v4132, 7
        %v4134 = vsub.s32 5, %v4133
        %v4135 = vrot.slane %v4108, %v4134
        %v4136 = vlaneseq
        %v4137 = vshrl.u32 %v4136, 7
        %v4138 = vsub.s32 6, %v4137
        %v4139 = vrot.slane %v4108, %v4138
        %v4140 = vlaneseq
        %v4141 = vshrl.u32 %v4140, 7
        %v4142 = vsub.s32 7, %v4141
        %v4143 = vrot.slane %v4108, %v4142
        %v4144 = vlaneseq
        %v4145 = vshrl.u32 %v4144, 7
        %v4146 = vsub.s32 0, %v4145
        %v4147 = vrot.slane %v4109, %v4146
        %v4337 = vunpack.c.l.b16 %v3928
        %v4338 = vunpack.c.h.b16 %v3928
        %v4339 = vunpack.c.l.b16 %v3929
        %v4340 = vunpack.c.h.b16 %v3929
        %v4341 = vunpack.c.l.b16 %v3930
        %v4342 = vunpack.c.h.b16 %v3930
        %v4343 = vunpack.c.l.b16 %v3931
        %v4344 = vunpack.c.h.b16 %v3931
        %v4345 = vunpack.c.l.b16 %v3932
        %v4346 = vunpack.c.l.b16 %v3933
        %v4347 = vunpack.c.h.b16 %v3933
        %v4348 = vunpack.c.l.b16 %v3934
        %v4349 = vunpack.c.h.b16 %v3934
        %v4350 = vunpack.c.l.b16 %v3935
        %v4351 = vunpack.c.h.b16 %v3935
        %v4352 = vunpack.c.l.b16 %v3936
        %v4353 = vunpack.c.h.b16 %v3936
        %v4354 = vunpack.c.l.b16 %v3937
        %v4355 = vunpack.c.l.b16 %v3938
        %v4356 = vunpack.c.h.b16 %v3938
        %v4357 = vunpack.c.l.b16 %v3939
        %v4358 = vunpack.c.h.b16 %v3939
        %v4359 = vunpack.c.l.b16 %v3940
        %v4360 = vunpack.c.h.b16 %v3940
        %v4361 = vunpack.c.l.b16 %v3941
        %v4362 = vunpack.c.h.b16 %v3941
        %v4363 = vunpack.c.l.b16 %v3942
        %v4364 = vunpack.c.l.b16 %v3943
        %v4365 = vunpack.c.h.b16 %v3943
        %v4366 = vunpack.c.l.b16 %v3944
        %v4367 = vunpack.c.h.b16 %v3944
        %v4368 = vunpack.c.l.b16 %v3945
        %v4369 = vunpack.c.h.b16 %v3945
        %v4370 = vunpack.c.l.b16 %v3946
        %v4371 = vunpack.c.h.b16 %v3946
        %v4372 = vunpack.c.l.b16 %v3947
        %v4373 = vunpack.c.l.b16 %v3948
        %v4374 = vunpack.c.h.b16 %v3948
        %v4375 = vunpack.c.l.b16 %v3949
        %v4376 = vunpack.c.h.b16 %v3949
        %v4377 = vunpack.c.l.b16 %v3950
        %v4378 = vunpack.c.h.b16 %v3950
        %v4379 = vunpack.c.l.b16 %v3951
        %v4380 = vunpack.c.h.b16 %v3951
        %v4381 = vunpack.c.l.b16 %v3952
        %v4382 = vunpack.c.l.b16 %v3953
        %v4383 = vunpack.c.h.b16 %v3953
        %v4384 = vunpack.c.l.b16 %v3954
        %v4385 = vunpack.c.h.b16 %v3954
        %v4386 = vunpack.c.l.b16 %v3955
        %v4387 = vunpack.c.h.b16 %v3955
        %v4388 = vunpack.c.l.b16 %v3956
        %v4389 = vunpack.c.h.b16 %v3956
        %v4390 = vunpack.c.l.b16 %v3957
        %v4391 = vunpack.c.l.b16 %v3958
        %v4392 = vunpack.c.h.b16 %v3958
        %v4393 = vunpack.c.l.b16 %v3959
        %v4394 = vunpack.c.h.b16 %v3959
        %v4395 = vunpack.c.l.b16 %v3960
        %v4396 = vunpack.c.h.b16 %v3960
        %v4397 = vunpack.c.l.b16 %v3961
        %v4398 = vunpack.c.h.b16 %v3961
        %v4399 = vunpack.c.l.b16 %v3962
        %v4400 = vunpack.c.l.b16 %v3963
        %v4401 = vunpack.c.h.b16 %v3963
        %v4402 = vunpack.c.l.b16 %v3964
        %v4403 = vunpack.c.h.b16 %v3964
        %v4404 = vunpack.c.l.b16 %v3965
        %v4405 = vunpack.c.h.b16 %v3965
        %v4406 = vunpack.c.l.b16 %v3966
        %v4407 = vunpack.c.h.b16 %v3966
        %v4408 = vunpack.c.l.b16 %v3967
        %v4409 = vunpack.c.l.b16 %v3968
        %v4410 = vunpack.c.h.b16 %v3968
        %v4411 = vunpack.c.l.b16 %v3969
        %v4412 = vunpack.c.h.b16 %v3969
        %v4413 = vunpack.c.l.b16 %v3970
        %v4414 = vunpack.c.h.b16 %v3970
        %v4415 = vunpack.c.l.b16 %v3971
        %v4416 = vunpack.c.h.b16 %v3971
        %v4417 = vunpack.c.l.b16 %v3972
        %v4418 = vunpack.c.l.b16 %v3973
        %v4419 = vunpack.c.h.b16 %v3973
        %v4420 = vunpack.c.l.b16 %v3974
        %v4421 = vunpack.c.h.b16 %v3974
        %v4422 = vunpack.c.l.b16 %v3975
        %v4423 = vunpack.c.h.b16 %v3975
        %v4424 = vunpack.c.l.b16 %v3976
        %v4425 = vunpack.c.h.b16 %v3976
        %v4426 = vunpack.c.l.b16 %v3977
        %v4427 = vunpack.c.l.b16 %v3978
        %v4428 = vunpack.c.h.b16 %v3978
        %v4429 = vunpack.c.l.b16 %v3979
        %v4430 = vunpack.c.h.b16 %v3979
        %v4431 = vunpack.c.l.b16 %v3980
        %v4432 = vunpack.c.h.b16 %v3980
        %v4433 = vunpack.c.l.b16 %v3981
        %v4434 = vunpack.c.h.b16 %v3981
        %v4435 = vunpack.c.l.b16 %v3982
        %v4436 = vunpack.c.l.b16 %v3983
        %v4437 = vunpack.c.h.b16 %v3983
        %v4438 = vunpack.c.l.b16 %v3984
        %v4439 = vunpack.c.h.b16 %v3984
        %v4440 = vunpack.c.l.b16 %v3985
        %v4441 = vunpack.c.h.b16 %v3985
        %v4442 = vunpack.c.l.b16 %v3986
        %v4443 = vunpack.c.h.b16 %v3986
        %v4444 = vunpack.c.l.b16 %v3987
        %v4445 = vunpack.c.l.b16 %v3988
        %v4446 = vunpack.c.h.b16 %v3988
        %v4447 = vunpack.c.l.b16 %v3989
        %v4448 = vunpack.c.h.b16 %v3989
        %v4449 = vunpack.c.l.b16 %v3990
        %v4450 = vunpack.c.h.b16 %v3990
        %v4451 = vunpack.c.l.b16 %v3991
        %v4452 = vunpack.c.h.b16 %v3991
        %v4453 = vunpack.c.l.b16 %v3992
        %v4454 = vunpack.c.l.b16 %v3993
        %v4455 = vunpack.c.h.b16 %v3993
        %v4456 = vunpack.c.l.b16 %v3994
        %v4457 = vunpack.c.h.b16 %v3994
        %v4458 = vunpack.c.l.b16 %v3995
        %v4459 = vunpack.c.h.b16 %v3995
        %v4460 = vunpack.c.l.b16 %v3996
        %v4461 = vunpack.c.h.b16 %v3996
        %v4462 = vunpack.c.l.b16 %v3997
        %v4463 = vunpack.c.l.b16 %v3998
        %v4464 = vunpack.c.h.b16 %v3998
        %v4465 = vunpack.c.l.b16 %v3999
        %v4466 = vunpack.c.h.b16 %v3999
        %v4467 = vunpack.c.l.b16 %v4000
        %v4468 = vunpack.c.h.b16 %v4000
        %v4469 = vunpack.c.l.b16 %v4001
        %v4470 = vunpack.c.h.b16 %v4001
        %v4471 = vunpack.c.l.b16 %v4002
        %v4472 = vunpack.c.l.b16 %v4003
        %v4473 = vunpack.c.h.b16 %v4003
        %v4474 = vunpack.c.l.b16 %v4004
        %v4475 = vunpack.c.h.b16 %v4004
        %v4476 = vunpack.c.l.b16 %v4005
        %v4477 = vunpack.c.h.b16 %v4005
        %v4478 = vunpack.c.l.b16 %v4006
        %v4479 = vunpack.c.h.b16 %v4006
        %v4480 = vunpack.c.l.b16 %v4007
        %v4481 = vunpack.c.l.b16 %v4008
        %v4482 = vunpack.c.h.b16 %v4008
        %v4483 = vunpack.c.l.b16 %v4009
        %v4484 = vunpack.c.h.b16 %v4009
        %v4485 = vunpack.c.l.b16 %v4010
        %v4486 = vunpack.c.h.b16 %v4010
        %v4487 = vunpack.c.l.b16 %v4011
        %v4488 = vunpack.c.h.b16 %v4011
        %v4489 = vunpack.c.l.b16 %v4012
        %v4490 = vunpack.c.l.b16 %v4013
        %v4491 = vunpack.c.h.b16 %v4013
        %v4492 = vunpack.c.l.b16 %v4014
        %v4493 = vunpack.c.h.b16 %v4014
        %v4494 = vunpack.c.l.b16 %v4015
        %v4495 = vunpack.c.h.b16 %v4015
        %v4496 = vunpack.c.l.b16 %v4016
        %v4497 = vunpack.c.h.b16 %v4016
        %v4498 = vunpack.c.l.b16 %v4017
        %v4499 = vunpack.c.l.b16 %v4018
        %v4500 = vunpack.c.h.b16 %v4018
        %v4501 = vunpack.c.l.b16 %v4019
        %v4502 = vunpack.c.h.b16 %v4019
        %v4503 = vunpack.c.l.b16 %v4020
        %v4504 = vunpack.c.h.b16 %v4020
        %v4505 = vunpack.c.l.b16 %v4021
        %v4506 = vunpack.c.h.b16 %v4021
        %v4507 = vunpack.c.l.b16 %v4022
        %v4508 = vunpack.c.l.b16 %v4023
        %v4509 = vunpack.c.h.b16 %v4023
        %v4510 = vunpack.c.l.b16 %v4024
        %v4511 = vunpack.c.h.b16 %v4024
        %v4512 = vunpack.c.l.b16 %v4025
        %v4513 = vunpack.c.h.b16 %v4025
        %v4514 = vunpack.c.l.b16 %v4026
        %v4515 = vunpack.c.h.b16 %v4026
        %v4516 = vunpack.c.l.b16 %v4027
        %v4517 = vunpack.c.l.b16 %v4028
        %v4518 = vunpack.c.h.b16 %v4028
        %v4519 = vunpack.c.l.b16 %v4029
        %v4520 = vunpack.c.h.b16 %v4029
        %v4521 = vunpack.c.l.b16 %v4030
        %v4522 = vunpack.c.h.b16 %v4030
        %v4523 = vunpack.c.l.b16 %v4031
        %v4524 = vunpack.c.h.b16 %v4031
        %v4525 = vunpack.c.l.b16 %v4032
        %v4526 = vunpack.c.l.b16 %v4033
        %v4527 = vunpack.c.h.b16 %v4033
        %v4528 = vunpack.c.l.b16 %v4034
        %v4529 = vunpack.c.h.b16 %v4034
        %v4530 = vunpack.c.l.b16 %v4035
        %v4531 = vunpack.c.h.b16 %v4035
        %v4532 = vunpack.c.l.b16 %v4036
        %v4533 = vunpack.c.h.b16 %v4036
        %v4534 = vunpack.c.l.b16 %v4037
        %v4535 = vunpack.c.l.b16 %v4038
        %v4536 = vunpack.c.h.b16 %v4038
        %v4537 = vunpack.c.l.b16 %v4039
        %v4538 = vunpack.c.h.b16 %v4039
        %v4539 = vunpack.c.l.b16 %v4040
        %v4540 = vunpack.c.h.b16 %v4040
        %v4541 = vunpack.c.l.b16 %v4041
        %v4542 = vunpack.c.h.b16 %v4041
        %v4543 = vunpack.c.l.b16 %v4042
        %v4544 = vunpack.c.l.b16 %v4043
        %v4545 = vunpack.c.h.b16 %v4043
        %v4546 = vunpack.c.l.b16 %v4044
        %v4547 = vunpack.c.h.b16 %v4044
        %v4548 = vunpack.c.l.b16 %v4045
        %v4549 = vunpack.c.h.b16 %v4045
        %v4550 = vunpack.c.l.b16 %v4046
        %v4551 = vunpack.c.h.b16 %v4046
        %v4552 = vunpack.c.l.b16 %v4047
        %v4553 = vunpack.c.l.b16 %v4048
        %v4554 = vunpack.c.h.b16 %v4048
        %v4555 = vunpack.c.l.b16 %v4049
        %v4556 = vunpack.c.h.b16 %v4049
        %v4557 = vunpack.c.l.b16 %v4050
        %v4558 = vunpack.c.h.b16 %v4050
        %v4559 = vunpack.c.l.b16 %v4051
        %v4560 = vunpack.c.h.b16 %v4051
        %v4561 = vunpack.c.l.b16 %v4052
        %v4562 = vunpack.c.l.b16 %v4053
        %v4563 = vunpack.c.h.b16 %v4053
        %v4564 = vunpack.c.l.b16 %v4054
        %v4565 = vunpack.c.h.b16 %v4054
        %v4566 = vunpack.c.l.b16 %v4055
        %v4567 = vunpack.c.h.b16 %v4055
        %v4568 = vunpack.c.l.b16 %v4056
        %v4569 = vunpack.c.h.b16 %v4056
        %v4570 = vunpack.c.l.b16 %v4057
        %v4571 = vunpack.c.l.b16 %v4058
        %v4572 = vunpack.c.h.b16 %v4058
        %v4573 = vunpack.c.l.b16 %v4059
        %v4574 = vunpack.c.h.b16 %v4059
        %v4575 = vunpack.c.l.b16 %v4060
        %v4576 = vunpack.c.h.b16 %v4060
        %v4577 = vunpack.c.l.b16 %v4061
        %v4578 = vunpack.c.h.b16 %v4061
        %v4579 = vunpack.c.l.b16 %v4062
        %v4580 = vunpack.c.l.b16 %v4063
        %v4581 = vunpack.c.h.b16 %v4063
        %v4582 = vunpack.c.l.b16 %v4064
        %v4583 = vunpack.c.h.b16 %v4064
        %v4584 = vunpack.c.l.b16 %v4065
        %v4585 = vunpack.c.h.b16 %v4065
        %v4586 = vunpack.c.l.b16 %v4066
        %v4587 = vunpack.c.h.b16 %v4066
        %v4588 = vunpack.c.l.b16 %v4067
        %v4589 = vunpack.c.l.b16 %v4068
        %v4590 = vunpack.c.h.b16 %v4068
        %v4591 = vunpack.c.l.b16 %v4069
        %v4592 = vunpack.c.h.b16 %v4069
        %v4593 = vunpack.c.l.b16 %v4070
        %v4594 = vunpack.c.h.b16 %v4070
        %v4595 = vunpack.c.l.b16 %v4071
        %v4596 = vunpack.c.h.b16 %v4071
        %v4597 = vunpack.c.l.b16 %v4072
        %v4598 = vunpack.c.l.b16 %v4073
        %v4599 = vunpack.c.h.b16 %v4073
        %v4600 = vunpack.c.l.b16 %v4074
        %v4601 = vunpack.c.h.b16 %v4074
        %v4602 = vunpack.c.l.b16 %v4075
        %v4603 = vunpack.c.h.b16 %v4075
        %v4604 = vunpack.c.l.b16 %v4076
        %v4605 = vunpack.c.h.b16 %v4076
        %v4606 = vunpack.c.l.b16 %v4077
        %v4607 = vunpack.c.l.b16 %v4078
        %v4608 = vunpack.c.h.b16 %v4078
        %v4609 = vunpack.c.l.b16 %v4079
        %v4610 = vunpack.c.h.b16 %v4079
        %v4611 = vunpack.c.l.b16 %v4080
        %v4612 = vunpack.c.h.b16 %v4080
        %v4613 = vunpack.c.l.b16 %v4081
        %v4614 = vunpack.c.h.b16 %v4081
        %v4615 = vunpack.c.l.b16 %v4082
        %v4616 = vunpack.c.l.b16 %v4083
        %v4617 = vunpack.c.h.b16 %v4083
        %v4618 = vunpack.c.l.b16 %v4084
        %v4619 = vunpack.c.h.b16 %v4084
        %v4620 = vunpack.c.l.b16 %v4085
        %v4621 = vunpack.c.h.b16 %v4085
        %v4622 = vunpack.c.l.b16 %v4086
        %v4623 = vunpack.c.h.b16 %v4086
        %v4624 = vunpack.c.l.b16 %v4087
        %v4625 = vunpack.c.l.b16 %v4088
        %v4626 = vunpack.c.h.b16 %v4088
        %v4627 = vunpack.c.l.b16 %v4089
        %v4628 = vunpack.c.h.b16 %v4089
        %v4629 = vunpack.c.l.b16 %v4090
        %v4630 = vunpack.c.h.b16 %v4090
        %v4631 = vunpack.c.l.b16 %v4091
        %v4632 = vunpack.c.h.b16 %v4091
        %v4633 = vunpack.c.l.b16 %v4092
        %v4634 = vunpack.c.l.b16 %v4093
        %v4635 = vunpack.c.h.b16 %v4093
        %v4636 = vunpack.c.l.b16 %v4094
        %v4637 = vunpack.c.h.b16 %v4094
        %v4638 = vunpack.c.l.b16 %v4095
        %v4639 = vunpack.c.h.b16 %v4095
        %v4640 = vunpack.c.l.b16 %v4096
        %v4641 = vunpack.c.h.b16 %v4096
        %v4642 = vunpack.c.l.b16 %v4097
        %v4643 = vunpack.c.l.b16 %v4098
        %v4644 = vunpack.c.h.b16 %v4098
        %v4645 = vunpack.c.l.b16 %v4099
        %v4646 = vunpack.c.h.b16 %v4099
        %v4647 = vunpack.c.l.b16 %v4100
        %v4648 = vunpack.c.h.b16 %v4100
        %v4649 = vunpack.c.l.b16 %v4101
        %v4650 = vunpack.c.h.b16 %v4101
        %v4651 = vunpack.c.l.b16 %v4102
        %v4652 = vunpack.c.l.b16 %v4103
        %v4653 = vunpack.c.h.b16 %v4103
        %v4654 = vunpack.c.l.b16 %v4104
        %v4655 = vunpack.c.h.b16 %v4104
        %v4656 = vunpack.c.l.b16 %v4105
        %v4657 = vunpack.c.h.b16 %v4105
        %v4658 = vunpack.c.l.b16 %v4106
        %v4659 = vunpack.c.h.b16 %v4106
        %v4660 = vunpack.c.l.b16 %v4107
        %v4661 = vpack.c.b16 %v4346, %v4337
        %v4662 = vpack.c.b16 %v4347, %v4338
        %v4663 = vpack.c.b16 %v4348, %v4339
        %v4664 = vpack.c.b16 %v4349, %v4340
        %v4665 = vpack.c.b16 %v4350, %v4341
        %v4666 = vpack.c.b16 %v4351, %v4342
        %v4667 = vpack.c.b16 %v4352, %v4343
        %v4668 = vpack.c.b16 %v4353, %v4344
        %v4669 = vpack.c.b16 %v4354, %v4345
        %v4670 = vpack.c.b16 %v4364, %v4355
        %v4671 = vpack.c.b16 %v4365, %v4356
        %v4672 = vpack.c.b16 %v4366, %v4357
        %v4673 = vpack.c.b16 %v4367, %v4358
        %v4674 = vpack.c.b16 %v4368, %v4359
        %v4675 = vpack.c.b16 %v4369, %v4360
        %v4676 = vpack.c.b16 %v4370, %v4361
        %v4677 = vpack.c.b16 %v4371, %v4362
        %v4678 = vpack.c.b16 %v4372, %v4363
        %v4679 = vpack.c.b16 %v4382, %v4373
        %v4680 = vpack.c.b16 %v4383, %v4374
        %v4681 = vpack.c.b16 %v4384, %v4375
        %v4682 = vpack.c.b16 %v4385, %v4376
        %v4683 = vpack.c.b16 %v4386, %v4377
        %v4684 = vpack.c.b16 %v4387, %v4378
        %v4685 = vpack.c.b16 %v4388, %v4379
        %v4686 = vpack.c.b16 %v4389, %v4380
        %v4687 = vpack.c.b16 %v4390, %v4381
        %v4688 = vpack.c.b16 %v4400, %v4391
        %v4689 = vpack.c.b16 %v4401, %v4392
        %v4690 = vpack.c.b16 %v4402, %v4393
        %v4691 = vpack.c.b16 %v4403, %v4394
        %v4692 = vpack.c.b16 %v4404, %v4395
        %v4693 = vpack.c.b16 %v4405, %v4396
        %v4694 = vpack.c.b16 %v4406, %v4397
        %v4695 = vpack.c.b16 %v4407, %v4398
        %v4696 = vpack.c.b16 %v4408, %v4399
        %v4697 = vpack.c.b16 %v4418, %v4409
        %v4698 = vpack.c.b16 %v4419, %v4410
        %v4699 = vpack.c.b16 %v4420, %v4411
        %v4700 = vpack.c.b16 %v4421, %v4412
        %v4701 = vpack.c.b16 %v4422, %v4413
        %v4702 = vpack.c.b16 %v4423, %v4414
        %v4703 = vpack.c.b16 %v4424, %v4415
        %v4704 = vpack.c.b16 %v4425, %v4416
        %v4705 = vpack.c.b16 %v4426, %v4417
        %v4706 = vpack.c.b16 %v4436, %v4427
        %v4707 = vpack.c.b16 %v4437, %v4428
        %v4708 = vpack.c.b16 %v4438, %v4429
        %v4709 = vpack.c.b16 %v4439, %v4430
        %v4710 = vpack.c.b16 %v4440, %v4431
        %v4711 = vpack.c.b16 %v4441, %v4432
        %v4712 = vpack.c.b16 %v4442, %v4433
        %v4713 = vpack.c.b16 %v4443, %v4434
        %v4714 = vpack.c.b16 %v4444, %v4435
        %v4715 = vpack.c.b16 %v4454, %v4445
        %v4716 = vpack.c.b16 %v4455, %v4446
        %v4717 = vpack.c.b16 %v4456, %v4447
        %v4718 = vpack.c.b16 %v4457, %v4448
        %v4719 = vpack.c.b16 %v4458, %v4449
        %v4720 = vpack.c.b16 %v4459, %v4450
        %v4721 = vpack.c.b16 %v4460, %v4451
        %v4722 = vpack.c.b16 %v4461, %v4452
        %v4723 = vpack.c.b16 %v4462, %v4453
        %v4724 = vpack.c.b16 %v4472, %v4463
        %v4725 = vpack.c.b16 %v4473, %v4464
        %v4726 = vpack.c.b16 %v4474, %v4465
        %v4727 = vpack.c.b16 %v4475, %v4466
        %v4728 = vpack.c.b16 %v4476, %v4467
        %v4729 = vpack.c.b16 %v4477, %v4468
        %v4730 = vpack.c.b16 %v4478, %v4469
        %v4731 = vpack.c.b16 %v4479, %v4470
        %v4732 = vpack.c.b16 %v4480, %v4471
        %v4733 = vpack.c.b16 %v4490, %v4481
        %v4734 = vpack.c.b16 %v4491, %v4482
        %v4735 = vpack.c.b16 %v4492, %v4483
        %v4736 = vpack.c.b16 %v4493, %v4484
        %v4737 = vpack.c.b16 %v4494, %v4485
        %v4738 = vpack.c.b16 %v4495, %v4486
        %v4739 = vpack.c.b16 %v4496, %v4487
        %v4740 = vpack.c.b16 %v4497, %v4488
        %v4741 = vpack.c.b16 %v4498, %v4489
        %v4742 = vpack.c.b16 %v4508, %v4499
        %v4743 = vpack.c.b16 %v4509, %v4500
        %v4744 = vpack.c.b16 %v4510, %v4501
        %v4745 = vpack.c.b16 %v4511, %v4502
        %v4746 = vpack.c.b16 %v4512, %v4503
        %v4747 = vpack.c.b16 %v4513, %v4504
        %v4748 = vpack.c.b16 %v4514, %v4505
        %v4749 = vpack.c.b16 %v4515, %v4506
        %v4750 = vpack.c.b16 %v4516, %v4507
        %v4751 = vpack.c.b16 %v4526, %v4517
        %v4752 = vpack.c.b16 %v4527, %v4518
        %v4753 = vpack.c.b16 %v4528, %v4519
        %v4754 = vpack.c.b16 %v4529, %v4520
        %v4755 = vpack.c.b16 %v4530, %v4521
        %v4756 = vpack.c.b16 %v4531, %v4522
        %v4757 = vpack.c.b16 %v4532, %v4523
        %v4758 = vpack.c.b16 %v4533, %v4524
        %v4759 = vpack.c.b16 %v4534, %v4525
        %v4760 = vpack.c.b16 %v4544, %v4535
        %v4761 = vpack.c.b16 %v4545, %v4536
        %v4762 = vpack.c.b16 %v4546, %v4537
        %v4763 = vpack.c.b16 %v4547, %v4538
        %v4764 = vpack.c.b16 %v4548, %v4539
        %v4765 = vpack.c.b16 %v4549, %v4540
        %v4766 = vpack.c.b16 %v4550, %v4541
        %v4767 = vpack.c.b16 %v4551, %v4542
        %v4768 = vpack.c.b16 %v4552, %v4543
        %v4769 = vpack.c.b16 %v4562, %v4553
        %v4770 = vpack.c.b16 %v4563, %v4554
        %v4771 = vpack.c.b16 %v4564, %v4555
        %v4772 = vpack.c.b16 %v4565, %v4556
        %v4773 = vpack.c.b16 %v4566, %v4557
        %v4774 = vpack.c.b16 %v4567, %v4558
        %v4775 = vpack.c.b16 %v4568, %v4559
        %v4776 = vpack.c.b16 %v4569, %v4560
        %v4777 = vpack.c.b16 %v4570, %v4561
        %v4778 = vpack.c.b16 %v4580, %v4571
        %v4779 = vpack.c.b16 %v4581, %v4572
        %v4780 = vpack.c.b16 %v4582, %v4573
        %v4781 = vpack.c.b16 %v4583, %v4574
        %v4782 = vpack.c.b16 %v4584, %v4575
        %v4783 = vpack.c.b16 %v4585, %v4576
        %v4784 = vpack.c.b16 %v4586, %v4577
        %v4785 = vpack.c.b16 %v4587, %v4578
        %v4786 = vpack.c.b16 %v4588, %v4579
        %v4787 = vpack.c.b16 %v4598, %v4589
        %v4788 = vpack.c.b16 %v4599, %v4590
        %v4789 = vpack.c.b16 %v4600, %v4591
        %v4790 = vpack.c.b16 %v4601, %v4592
        %v4791 = vpack.c.b16 %v4602, %v4593
        %v4792 = vpack.c.b16 %v4603, %v4594
        %v4793 = vpack.c.b16 %v4604, %v4595
        %v4794 = vpack.c.b16 %v4605, %v4596
        %v4795 = vpack.c.b16 %v4606, %v4597
        %v4796 = vpack.c.b16 %v4616, %v4607
        %v4797 = vpack.c.b16 %v4617, %v4608
        %v4798 = vpack.c.b16 %v4618, %v4609
        %v4799 = vpack.c.b16 %v4619, %v4610
        %v4800 = vpack.c.b16 %v4620, %v4611
        %v4801 = vpack.c.b16 %v4621, %v4612
        %v4802 = vpack.c.b16 %v4622, %v4613
        %v4803 = vpack.c.b16 %v4623, %v4614
        %v4804 = vpack.c.b16 %v4624, %v4615
        %v4805 = vpack.c.b16 %v4634, %v4625
        %v4806 = vpack.c.b16 %v4635, %v4626
        %v4807 = vpack.c.b16 %v4636, %v4627
        %v4808 = vpack.c.b16 %v4637, %v4628
        %v4809 = vpack.c.b16 %v4638, %v4629
        %v4810 = vpack.c.b16 %v4639, %v4630
        %v4811 = vpack.c.b16 %v4640, %v4631
        %v4812 = vpack.c.b16 %v4641, %v4632
        %v4813 = vpack.c.b16 %v4642, %v4633
        %v4814 = vpack.c.b16 %v4652, %v4643
        %v4815 = vpack.c.b16 %v4653, %v4644
        %v4816 = vpack.c.b16 %v4654, %v4645
        %v4817 = vpack.c.b16 %v4655, %v4646
        %v4818 = vpack.c.b16 %v4656, %v4647
        %v4819 = vpack.c.b16 %v4657, %v4648
        %v4820 = vpack.c.b16 %v4658, %v4649
        %v4821 = vpack.c.b16 %v4659, %v4650
        %v4822 = vpack.c.b16 %v4660, %v4651
        %v4986 = vsel %vm422, %v3927, 0
        %4988 = vmatprep.subr.bf16.mxu0 %v4662
        %4989 = vmatpush1.bf16.msra.mxu0 %v4661
        %4990 = vmatprep.subr.bf16.mxu0 %v4671
        %4991 = vmatpush1.bf16.msra.mxu0 %v4670
        %4992 = vmatprep.subr.bf16.mxu0 %v4680
        %4993 = vmatpush1.bf16.msra.mxu0 %v4679
        %4994 = vmatprep.subr.bf16.mxu0 %v4689
        %4995 = vmatpush1.bf16.msra.mxu0 %v4688
        %4996 = vmatprep.subr.bf16.mxu0 %v4698
        %4997 = vmatpush1.bf16.msra.mxu0 %v4697
        %4998 = vmatprep.subr.bf16.mxu0 %v4707
        %4999 = vmatpush1.bf16.msra.mxu0 %v4706
        %5000 = vmatprep.subr.bf16.mxu0 %v4716
        %5001 = vmatpush1.bf16.msra.mxu0 %v4715
        %5002 = vmatprep.subr.bf16.mxu0 %v4725
        %5003 = vmatpush1.bf16.msra.mxu0 %v4724
        %5004 = vmatprep.subr.bf16.mxu0 %v4734
        %5005 = vmatpush1.bf16.msra.mxu0 %v4733
        %5006 = vmatprep.subr.bf16.mxu0 %v4743
        %5007 = vmatpush1.bf16.msra.mxu0 %v4742
        %5008 = vmatprep.subr.bf16.mxu0 %v4752
        %5009 = vmatpush1.bf16.msra.mxu0 %v4751
        %5010 = vmatprep.subr.bf16.mxu0 %v4761
        %5011 = vmatpush1.bf16.msra.mxu0 %v4760
        %5012 = vmatprep.subr.bf16.mxu0 %v4770
        %5013 = vmatpush1.bf16.msra.mxu0 %v4769
        %5014 = vmatprep.subr.bf16.mxu0 %v4779
        %5015 = vmatpush1.bf16.msra.mxu0 %v4778
        %5016 = vmatprep.subr.bf16.mxu0 %v4788
        %5017 = vmatpush1.bf16.msra.mxu0 %v4787
        %5018 = vmatprep.subr.bf16.mxu0 %v4797
        %5019 = vmatpush1.bf16.msra.mxu0 %v4796
        %5020 = vmatprep.mubr.bf16.mxu0 %v3926
        %5021 = vmatmul.mubr.bf16.gmra.mrb[0].mxu0 %v3925
        %v5022 = vpop.f32.mrb[0].mxu0
        %v5023 = vadd.f32 %v4115, %v5022
        %v5024 = vpop.f32.mrb[0].mxu0
        %v5025 = vadd.f32 %v4119, %v5024
        %v5026 = vpop.f32.mrb[0].mxu0
        %v5027 = vadd.f32 %v4115, %v5026
        %v5028 = vpop.f32.mrb[0].mxu0
        %v5029 = vadd.f32 %v4119, %v5028
        %5030 = vdwg.mxu0
        %5031 = vmatprep.subr.bf16.mxu0 %v4806
        %5032 = vmatpush1.bf16.msra.mxu0 %v4805
        %5033 = vmatprep.subr.bf16.mxu0 %v4815
        %5034 = vmatpush1.bf16.msra.mxu0 %v4814
        %5035 = vmatprep.subr.bf16.mxu0 0
        %5036 = vmatpush1.bf16.msra.mxu0 0
        %5037 = vmatprep.subr.bf16.mxu0 0
        %5038 = vmatpush1.bf16.msra.mxu0 0
        %5039 = vmatprep.subr.bf16.mxu0 0
        %5040 = vmatpush1.bf16.msra.mxu0 0
        %5041 = vmatprep.subr.bf16.mxu0 0
        %5042 = vmatpush1.bf16.msra.mxu0 0
        %5043 = vmatprep.subr.bf16.mxu0 0
        %5044 = vmatpush1.bf16.msra.mxu0 0
        %5045 = vmatprep.subr.bf16.mxu0 0
        %5046 = vmatpush1.bf16.msra.mxu0 0
        %5047 = vmatprep.subr.bf16.mxu0 0
        %5048 = vmatpush1.bf16.msra.mxu0 0
        %5049 = vmatprep.subr.bf16.mxu0 0
        %5050 = vmatpush1.bf16.msra.mxu0 0
        %5051 = vmatprep.subr.bf16.mxu0 0
        %5052 = vmatpush1.bf16.msra.mxu0 0
        %5053 = vmatprep.subr.bf16.mxu0 0
        %5054 = vmatpush1.bf16.msra.mxu0 0
        %5055 = vmatprep.subr.bf16.mxu0 0
        %5056 = vmatpush1.bf16.msra.mxu0 0
        %5057 = vmatprep.subr.bf16.mxu0 0
        %5058 = vmatpush1.bf16.msra.mxu0 0
        %5059 = vmatprep.subr.bf16.mxu0 0
        %5060 = vmatpush1.bf16.msra.mxu0 0
        %5061 = vmatprep.subr.bf16.mxu0 0
        %5062 = vmatpush1.bf16.msra.mxu0 0
        %5063 = vmatprep.mubr.bf16.mxu0 0
        %5064 = vmatmul.mubr.bf16.gmra.mrb[0].mxu0 %v4986
        %v5065 = vpop.f32.mrb[0].mxu0
        %v5066 = vadd.f32 %v5023, %v5065
        %v5067 = vpop.f32.mrb[0].mxu0
        %v5068 = vadd.f32 %v5025, %v5067
        %v5069 = vpop.f32.mrb[0].mxu0
        %v5070 = vadd.f32 %v5027, %v5069
        %v5071 = vpop.f32.mrb[0].mxu0
        %v5072 = vadd.f32 %v5029, %v5071
        %5073 = vdwg.mxu0
        %5074 = vmatprep.subr.bf16.mxu0 %v4664
        %5075 = vmatpush1.bf16.msra.mxu0 %v4663
        %5076 = vmatprep.subr.bf16.mxu0 %v4673
        %5077 = vmatpush1.bf16.msra.mxu0 %v4672
        %5078 = vmatprep.subr.bf16.mxu0 %v4682
        %5079 = vmatpush1.bf16.msra.mxu0 %v4681
        %5080 = vmatprep.subr.bf16.mxu0 %v4691
        %5081 = vmatpush1.bf16.msra.mxu0 %v4690
        %5082 = vmatprep.subr.bf16.mxu0 %v4700
        %5083 = vmatpush1.bf16.msra.mxu0 %v4699
        %5084 = vmatprep.subr.bf16.mxu0 %v4709
        %5085 = vmatpush1.bf16.msra.mxu0 %v4708
        %5086 = vmatprep.subr.bf16.mxu0 %v4718
        %5087 = vmatpush1.bf16.msra.mxu0 %v4717
        %5088 = vmatprep.subr.bf16.mxu0 %v4727
        %5089 = vmatpush1.bf16.msra.mxu0 %v4726
        %5090 = vmatprep.subr.bf16.mxu0 %v4736
        %5091 = vmatpush1.bf16.msra.mxu0 %v4735
        %5092 = vmatprep.subr.bf16.mxu0 %v4745
        %5093 = vmatpush1.bf16.msra.mxu0 %v4744
        %5094 = vmatprep.subr.bf16.mxu0 %v4754
        %5095 = vmatpush1.bf16.msra.mxu0 %v4753
        %5096 = vmatprep.subr.bf16.mxu0 %v4763
        %5097 = vmatpush1.bf16.msra.mxu0 %v4762
        %5098 = vmatprep.subr.bf16.mxu0 %v4772
        %5099 = vmatpush1.bf16.msra.mxu0 %v4771
        %5100 = vmatprep.subr.bf16.mxu0 %v4781
        %5101 = vmatpush1.bf16.msra.mxu0 %v4780
        %5102 = vmatprep.subr.bf16.mxu0 %v4790
        %5103 = vmatpush1.bf16.msra.mxu0 %v4789
        %5104 = vmatprep.subr.bf16.mxu0 %v4799
        %5105 = vmatpush1.bf16.msra.mxu0 %v4798
        %5106 = vmatprep.mubr.bf16.mxu0 %v3926
        %5107 = vmatmul.mubr.bf16.gmra.mrb[0].mxu0 %v3925
        %v5108 = vpop.f32.mrb[0].mxu0
        %v5109 = vadd.f32 %v4123, %v5108
        %v5110 = vpop.f32.mrb[0].mxu0
        %v5111 = vadd.f32 %v4127, %v5110
        %v5112 = vpop.f32.mrb[0].mxu0
        %v5113 = vadd.f32 %v4123, %v5112
        %v5114 = vpop.f32.mrb[0].mxu0
        %v5115 = vadd.f32 %v4127, %v5114
        %5116 = vdwg.mxu0
        %5117 = vmatprep.subr.bf16.mxu0 %v4808
        %5118 = vmatpush1.bf16.msra.mxu0 %v4807
        %5119 = vmatprep.subr.bf16.mxu0 %v4817
        %5120 = vmatpush1.bf16.msra.mxu0 %v4816
        %5121 = vmatprep.subr.bf16.mxu0 0
        %5122 = vmatpush1.bf16.msra.mxu0 0
        %5123 = vmatprep.subr.bf16.mxu0 0
        %5124 = vmatpush1.bf16.msra.mxu0 0
        %5125 = vmatprep.subr.bf16.mxu0 0
        %5126 = vmatpush1.bf16.msra.mxu0 0
        %5127 = vmatprep.subr.bf16.mxu0 0
        %5128 = vmatpush1.bf16.msra.mxu0 0
        %5129 = vmatprep.subr.bf16.mxu0 0
        %5130 = vmatpush1.bf16.msra.mxu0 0
        %5131 = vmatprep.subr.bf16.mxu0 0
        %5132 = vmatpush1.bf16.msra.mxu0 0
        %5133 = vmatprep.subr.bf16.mxu0 0
        %5134 = vmatpush1.bf16.msra.mxu0 0
        %5135 = vmatprep.subr.bf16.mxu0 0
        %5136 = vmatpush1.bf16.msra.mxu0 0
        %5137 = vmatprep.subr.bf16.mxu0 0
        %5138 = vmatpush1.bf16.msra.mxu0 0
        %5139 = vmatprep.subr.bf16.mxu0 0
        %5140 = vmatpush1.bf16.msra.mxu0 0
        %5141 = vmatprep.subr.bf16.mxu0 0
        %5142 = vmatpush1.bf16.msra.mxu0 0
        %5143 = vmatprep.subr.bf16.mxu0 0
        %5144 = vmatpush1.bf16.msra.mxu0 0
        %5145 = vmatprep.subr.bf16.mxu0 0
        %5146 = vmatpush1.bf16.msra.mxu0 0
        %5147 = vmatprep.subr.bf16.mxu0 0
        %5148 = vmatpush1.bf16.msra.mxu0 0
        %5149 = vmatprep.mubr.bf16.mxu0 0
        %5150 = vmatmul.mubr.bf16.gmra.mrb[0].mxu0 %v4986
        %v5151 = vpop.f32.mrb[0].mxu0
        %v5152 = vadd.f32 %v5109, %v5151
        %v5153 = vpop.f32.mrb[0].mxu0
        %v5154 = vadd.f32 %v5111, %v5153
        %v5155 = vpop.f32.mrb[0].mxu0
        %v5156 = vadd.f32 %v5113, %v5155
        %v5157 = vpop.f32.mrb[0].mxu0
        %v5158 = vadd.f32 %v5115, %v5157
        %5159 = vdwg.mxu0
        %5160 = vmatprep.subr.bf16.mxu0 %v4666
        %5161 = vmatpush1.bf16.msra.mxu0 %v4665
        %5162 = vmatprep.subr.bf16.mxu0 %v4675
        %5163 = vmatpush1.bf16.msra.mxu0 %v4674
        %5164 = vmatprep.subr.bf16.mxu0 %v4684
        %5165 = vmatpush1.bf16.msra.mxu0 %v4683
        %5166 = vmatprep.subr.bf16.mxu0 %v4693
        %5167 = vmatpush1.bf16.msra.mxu0 %v4692
        %5168 = vmatprep.subr.bf16.mxu0 %v4702
        %5169 = vmatpush1.bf16.msra.mxu0 %v4701
        %5170 = vmatprep.subr.bf16.mxu0 %v4711
        %5171 = vmatpush1.bf16.msra.mxu0 %v4710
        %5172 = vmatprep.subr.bf16.mxu0 %v4720
        %5173 = vmatpush1.bf16.msra.mxu0 %v4719
        %5174 = vmatprep.subr.bf16.mxu0 %v4729
        %5175 = vmatpush1.bf16.msra.mxu0 %v4728
        %5176 = vmatprep.subr.bf16.mxu0 %v4738
        %5177 = vmatpush1.bf16.msra.mxu0 %v4737
        %5178 = vmatprep.subr.bf16.mxu0 %v4747
        %5179 = vmatpush1.bf16.msra.mxu0 %v4746
        %5180 = vmatprep.subr.bf16.mxu0 %v4756
        %5181 = vmatpush1.bf16.msra.mxu0 %v4755
        %5182 = vmatprep.subr.bf16.mxu0 %v4765
        %5183 = vmatpush1.bf16.msra.mxu0 %v4764
        %5184 = vmatprep.subr.bf16.mxu0 %v4774
        %5185 = vmatpush1.bf16.msra.mxu0 %v4773
        %5186 = vmatprep.subr.bf16.mxu0 %v4783
        %5187 = vmatpush1.bf16.msra.mxu0 %v4782
        %5188 = vmatprep.subr.bf16.mxu0 %v4792
        %5189 = vmatpush1.bf16.msra.mxu0 %v4791
        %5190 = vmatprep.subr.bf16.mxu0 %v4801
        %5191 = vmatpush1.bf16.msra.mxu0 %v4800
        %5192 = vmatprep.mubr.bf16.mxu0 %v3926
        %5193 = vmatmul.mubr.bf16.gmra.mrb[0].mxu0 %v3925
        %v5194 = vpop.f32.mrb[0].mxu0
        %v5195 = vadd.f32 %v4131, %v5194
        %v5196 = vpop.f32.mrb[0].mxu0
        %v5197 = vadd.f32 %v4135, %v5196
        %v5198 = vpop.f32.mrb[0].mxu0
        %v5199 = vadd.f32 %v4131, %v5198
        %v5200 = vpop.f32.mrb[0].mxu0
        %v5201 = vadd.f32 %v4135, %v5200
        %5202 = vdwg.mxu0
        %5203 = vmatprep.subr.bf16.mxu0 %v4810
        %5204 = vmatpush1.bf16.msra.mxu0 %v4809
        %5205 = vmatprep.subr.bf16.mxu0 %v4819
        %5206 = vmatpush1.bf16.msra.mxu0 %v4818
        %5207 = vmatprep.subr.bf16.mxu0 0
        %5208 = vmatpush1.bf16.msra.mxu0 0
        %5209 = vmatprep.subr.bf16.mxu0 0
        %5210 = vmatpush1.bf16.msra.mxu0 0
        %5211 = vmatprep.subr.bf16.mxu0 0
        %5212 = vmatpush1.bf16.msra.mxu0 0
        %5213 = vmatprep.subr.bf16.mxu0 0
        %5214 = vmatpush1.bf16.msra.mxu0 0
        %5215 = vmatprep.subr.bf16.mxu0 0
        %5216 = vmatpush1.bf16.msra.mxu0 0
        %5217 = vmatprep.subr.bf16.mxu0 0
        %5218 = vmatpush1.bf16.msra.mxu0 0
        %5219 = vmatprep.subr.bf16.mxu0 0
        %5220 = vmatpush1.bf16.msra.mxu0 0
        %5221 = vmatprep.subr.bf16.mxu0 0
        %5222 = vmatpush1.bf16.msra.mxu0 0
        %5223 = vmatprep.subr.bf16.mxu0 0
        %5224 = vmatpush1.bf16.msra.mxu0 0
        %5225 = vmatprep.subr.bf16.mxu0 0
        %5226 = vmatpush1.bf16.msra.mxu0 0
        %5227 = vmatprep.subr.bf16.mxu0 0
        %5228 = vmatpush1.bf16.msra.mxu0 0
        %5229 = vmatprep.subr.bf16.mxu0 0
        %5230 = vmatpush1.bf16.msra.mxu0 0
        %5231 = vmatprep.subr.bf16.mxu0 0
        %5232 = vmatpush1.bf16.msra.mxu0 0
        %5233 = vmatprep.subr.bf16.mxu0 0
        %5234 = vmatpush1.bf16.msra.mxu0 0
        %5235 = vmatprep.mubr.bf16.mxu0 0
        %5236 = vmatmul.mubr.bf16.gmra.mrb[0].mxu0 %v4986
        %v5237 = vpop.f32.mrb[0].mxu0
        %v5238 = vadd.f32 %v5195, %v5237
        %v5239 = vpop.f32.mrb[0].mxu0
        %v5240 = vadd.f32 %v5197, %v5239
        %v5241 = vpop.f32.mrb[0].mxu0
        %v5242 = vadd.f32 %v5199, %v5241
        %v5243 = vpop.f32.mrb[0].mxu0
        %v5244 = vadd.f32 %v5201, %v5243
        %5245 = vdwg.mxu0
        %5246 = vmatprep.subr.bf16.mxu0 %v4668
        %5247 = vmatpush1.bf16.msra.mxu0 %v4667
        %5248 = vmatprep.subr.bf16.mxu0 %v4677
        %5249 = vmatpush1.bf16.msra.mxu0 %v4676
        %5250 = vmatprep.subr.bf16.mxu0 %v4686
        %5251 = vmatpush1.bf16.msra.mxu0 %v4685
        %5252 = vmatprep.subr.bf16.mxu0 %v4695
        %5253 = vmatpush1.bf16.msra.mxu0 %v4694
        %5254 = vmatprep.subr.bf16.mxu0 %v4704
        %5255 = vmatpush1.bf16.msra.mxu0 %v4703
        %5256 = vmatprep.subr.bf16.mxu0 %v4713
        %5257 = vmatpush1.bf16.msra.mxu0 %v4712
        %5258 = vmatprep.subr.bf16.mxu0 %v4722
        %5259 = vmatpush1.bf16.msra.mxu0 %v4721
        %5260 = vmatprep.subr.bf16.mxu0 %v4731
        %5261 = vmatpush1.bf16.msra.mxu0 %v4730
        %5262 = vmatprep.subr.bf16.mxu0 %v4740
        %5263 = vmatpush1.bf16.msra.mxu0 %v4739
        %5264 = vmatprep.subr.bf16.mxu0 %v4749
        %5265 = vmatpush1.bf16.msra.mxu0 %v4748
        %5266 = vmatprep.subr.bf16.mxu0 %v4758
        %5267 = vmatpush1.bf16.msra.mxu0 %v4757
        %5268 = vmatprep.subr.bf16.mxu0 %v4767
        %5269 = vmatpush1.bf16.msra.mxu0 %v4766
        %5270 = vmatprep.subr.bf16.mxu0 %v4776
        %5271 = vmatpush1.bf16.msra.mxu0 %v4775
        %5272 = vmatprep.subr.bf16.mxu0 %v4785
        %5273 = vmatpush1.bf16.msra.mxu0 %v4784
        %5274 = vmatprep.subr.bf16.mxu0 %v4794
        %5275 = vmatpush1.bf16.msra.mxu0 %v4793
        %5276 = vmatprep.subr.bf16.mxu0 %v4803
        %5277 = vmatpush1.bf16.msra.mxu0 %v4802
        %5278 = vmatprep.mubr.bf16.mxu0 %v3926
        %5279 = vmatmul.mubr.bf16.gmra.mrb[0].mxu0 %v3925
        %v5280 = vpop.f32.mrb[0].mxu0
        %v5281 = vadd.f32 %v4139, %v5280
        %v5282 = vpop.f32.mrb[0].mxu0
        %v5283 = vadd.f32 %v4143, %v5282
        %v5284 = vpop.f32.mrb[0].mxu0
        %v5285 = vadd.f32 %v4139, %v5284
        %v5286 = vpop.f32.mrb[0].mxu0
        %v5287 = vadd.f32 %v4143, %v5286
        %5288 = vdwg.mxu0
        %5289 = vmatprep.subr.bf16.mxu0 %v4812
        %5290 = vmatpush1.bf16.msra.mxu0 %v4811
        %5291 = vmatprep.subr.bf16.mxu0 %v4821
        %5292 = vmatpush1.bf16.msra.mxu0 %v4820
        %5293 = vmatprep.subr.bf16.mxu0 0
        %5294 = vmatpush1.bf16.msra.mxu0 0
        %5295 = vmatprep.subr.bf16.mxu0 0
        %5296 = vmatpush1.bf16.msra.mxu0 0
        %5297 = vmatprep.subr.bf16.mxu0 0
        %5298 = vmatpush1.bf16.msra.mxu0 0
        %5299 = vmatprep.subr.bf16.mxu0 0
        %5300 = vmatpush1.bf16.msra.mxu0 0
        %5301 = vmatprep.subr.bf16.mxu0 0
        %5302 = vmatpush1.bf16.msra.mxu0 0
        %5303 = vmatprep.subr.bf16.mxu0 0
        %5304 = vmatpush1.bf16.msra.mxu0 0
        %5305 = vmatprep.subr.bf16.mxu0 0
        %5306 = vmatpush1.bf16.msra.mxu0 0
        %5307 = vmatprep.subr.bf16.mxu0 0
        %5308 = vmatpush1.bf16.msra.mxu0 0
        %5309 = vmatprep.subr.bf16.mxu0 0
        %5310 = vmatpush1.bf16.msra.mxu0 0
        %5311 = vmatprep.subr.bf16.mxu0 0
        %5312 = vmatpush1.bf16.msra.mxu0 0
        %5313 = vmatprep.subr.bf16.mxu0 0
        %5314 = vmatpush1.bf16.msra.mxu0 0
        %5315 = vmatprep.subr.bf16.mxu0 0
        %5316 = vmatpush1.bf16.msra.mxu0 0
        %5317 = vmatprep.subr.bf16.mxu0 0
        %5318 = vmatpush1.bf16.msra.mxu0 0
        %5319 = vmatprep.subr.bf16.mxu0 0
        %5320 = vmatpush1.bf16.msra.mxu0 0
        %5321 = vmatprep.mubr.bf16.mxu0 0
        %5322 = vmatmul.mubr.bf16.gmra.mrb[0].mxu0 %v4986
        %v5323 = vpop.f32.mrb[0].mxu0
        %v5324 = vadd.f32 %v5281, %v5323
        %v5325 = vpop.f32.mrb[0].mxu0
        %v5326 = vadd.f32 %v5283, %v5325
        %v5327 = vpop.f32.mrb[0].mxu0
        %v5328 = vadd.f32 %v5285, %v5327
        %v5329 = vpop.f32.mrb[0].mxu0
        %v5330 = vadd.f32 %v5287, %v5329
        %5331 = vdwg.mxu0
        %5332 = vmatprep.subr.bf16.mxu0 0
        %5333 = vmatpush1.bf16.msra.mxu0 %v4669
        %5334 = vmatprep.subr.bf16.mxu0 0
        %5335 = vmatpush1.bf16.msra.mxu0 %v4678
        %5336 = vmatprep.subr.bf16.mxu0 0
        %5337 = vmatpush1.bf16.msra.mxu0 %v4687
        %5338 = vmatprep.subr.bf16.mxu0 0
        %5339 = vmatpush1.bf16.msra.mxu0 %v4696
        %5340 = vmatprep.subr.bf16.mxu0 0
        %5341 = vmatpush1.bf16.msra.mxu0 %v4705
        %5342 = vmatprep.subr.bf16.mxu0 0
        %5343 = vmatpush1.bf16.msra.mxu0 %v4714
        %5344 = vmatprep.subr.bf16.mxu0 0
        %5345 = vmatpush1.bf16.msra.mxu0 %v4723
        %5346 = vmatprep.subr.bf16.mxu0 0
        %5347 = vmatpush1.bf16.msra.mxu0 %v4732
        %5348 = vmatprep.subr.bf16.mxu0 0
        %5349 = vmatpush1.bf16.msra.mxu0 %v4741
        %5350 = vmatprep.subr.bf16.mxu0 0
        %5351 = vmatpush1.bf16.msra.mxu0 %v4750
        %5352 = vmatprep.subr.bf16.mxu0 0
        %5353 = vmatpush1.bf16.msra.mxu0 %v4759
        %5354 = vmatprep.subr.bf16.mxu0 0
        %5355 = vmatpush1.bf16.msra.mxu0 %v4768
        %5356 = vmatprep.subr.bf16.mxu0 0
        %5357 = vmatpush1.bf16.msra.mxu0 %v4777
        %5358 = vmatprep.subr.bf16.mxu0 0
        %5359 = vmatpush1.bf16.msra.mxu0 %v4786
        %5360 = vmatprep.subr.bf16.mxu0 0
        %5361 = vmatpush1.bf16.msra.mxu0 %v4795
        %5362 = vmatprep.subr.bf16.mxu0 0
        %5363 = vmatpush1.bf16.msra.mxu0 %v4804
        %5364 = vmatprep.mubr.bf16.mxu0 %v3926
        %5365 = vmatmul.mubr.bf16.gmra.mrb[0].mxu0 %v3925
        %v5366 = vpop.f32.mrb[0].mxu0
        %v5367 = vadd.f32 %v4147, %v5366
        %v5368 = vpop.f32.mrb[0].mxu0
        %v5369 = vpop.f32.mrb[0].mxu0
        %v5370 = vadd.f32 %v4147, %v5369
        %v5371 = vpop.f32.mrb[0].mxu0
        %5372 = vdwg.mxu0
        %5373 = vmatprep.subr.bf16.mxu0 0
        %5374 = vmatpush1.bf16.msra.mxu0 %v4813
        %5375 = vmatprep.subr.bf16.mxu0 0
        %5376 = vmatpush1.bf16.msra.mxu0 %v4822
        %5377 = vmatprep.subr.bf16.mxu0 0
        %5378 = vmatpush1.bf16.msra.mxu0 0
        %5379 = vmatprep.subr.bf16.mxu0 0
        %5380 = vmatpush1.bf16.msra.mxu0 0
        %5381 = vmatprep.subr.bf16.mxu0 0
        %5382 = vmatpush1.bf16.msra.mxu0 0
        %5383 = vmatprep.subr.bf16.mxu0 0
        %5384 = vmatpush1.bf16.msra.mxu0 0
        %5385 = vmatprep.subr.bf16.mxu0 0
        %5386 = vmatpush1.bf16.msra.mxu0 0
        %5387 = vmatprep.subr.bf16.mxu0 0
        %5388 = vmatpush1.bf16.msra.mxu0 0
        %5389 = vmatprep.subr.bf16.mxu0 0
        %5390 = vmatpush1.bf16.msra.mxu0 0
        %5391 = vmatprep.subr.bf16.mxu0 0
        %5392 = vmatpush1.bf16.msra.mxu0 0
        %5393 = vmatprep.subr.bf16.mxu0 0
        %5394 = vmatpush1.bf16.msra.mxu0 0
        %5395 = vmatprep.subr.bf16.mxu0 0
        %5396 = vmatpush1.bf16.msra.mxu0 0
        %5397 = vmatprep.subr.bf16.mxu0 0
        %5398 = vmatpush1.bf16.msra.mxu0 0
        %5399 = vmatprep.subr.bf16.mxu0 0
        %5400 = vmatpush1.bf16.msra.mxu0 0
        %5401 = vmatprep.subr.bf16.mxu0 0
        %5402 = vmatpush1.bf16.msra.mxu0 0
        %5403 = vmatprep.subr.bf16.mxu0 0
        %5404 = vmatpush1.bf16.msra.mxu0 0
        %5405 = vmatprep.mubr.bf16.mxu0 0
        %5406 = vmatmul.mubr.bf16.gmra.mrb[0].mxu0 %v4986
        %v5407 = vpop.f32.mrb[0].mxu0
        %v5408 = vadd.f32 %v5367, %v5407
        %v5409 = vpop.f32.mrb[0].mxu0
        %v5410 = vpop.f32.mrb[0].mxu0
        %v5411 = vadd.f32 %v5370, %v5410
        %v5412 = vpop.f32.mrb[0].mxu0
        %5413 = vdwg.mxu0
        %v5414 = vmax.f32 %v5066, 0.0
        %v5415 = vmax.f32 %v5068, 0.0
        %v5416 = vmax.f32 %v5152, 0.0
        %v5417 = vmax.f32 %v5154, 0.0
        %v5418 = vmax.f32 %v5238, 0.0
        %v5419 = vmax.f32 %v5240, 0.0
        %v5420 = vmax.f32 %v5324, 0.0
        %v5421 = vmax.f32 %v5326, 0.0
        %v5422 = vmax.f32 %v5408, 0.0
        %v5423 = vmax.f32 %v5070, 0.0
        %v5424 = vmax.f32 %v5072, 0.0
        %v5425 = vmax.f32 %v5156, 0.0
        %v5426 = vmax.f32 %v5158, 0.0
        %v5427 = vmax.f32 %v5242, 0.0
        %v5428 = vmax.f32 %v5244, 0.0
        %v5429 = vmax.f32 %v5328, 0.0
        %v5430 = vmax.f32 %v5330, 0.0
        %v5431 = vmax.f32 %v5411, 0.0
        %v5432 = vpack.c.bf16 %v5423, %v5414
        %v5433 = vpack.c.bf16 %v5424, %v5415
        %v5434 = vpack.c.bf16 %v5425, %v5416
        %v5435 = vpack.c.bf16 %v5426, %v5417
        %v5436 = vpack.c.bf16 %v5427, %v5418
        %v5437 = vpack.c.bf16 %v5428, %v5419
        %v5438 = vpack.c.bf16 %v5429, %v5420
        %v5439 = vpack.c.bf16 %v5430, %v5421
        %v5440 = vpack.c.bf16 %v5431, %v5422
        %v5441 = vld [vmem:[%s10] sm:$0xff]
        %v5442 = vld [vmem:[%s10 + $0x8] sm:$0xf]
        %v5443 = vld [vmem:[%s10 + $0xc] sm:$0xff]
        %v5444 = vld [vmem:[%s10 + $0x14] sm:$0xf]
        %v5445 = vld [vmem:[%s10 + $0x18] sm:$0xff]
        %v5446 = vld [vmem:[%s10 + $0x20] sm:$0xf]
        %v5447 = vld [vmem:[%s10 + $0x24] sm:$0xff]
        %v5448 = vld [vmem:[%s10 + $0x2c] sm:$0xf]
        %v5449 = vld [vmem:[%s10 + $0x30] sm:$0xff]
        %v5450 = vld [vmem:[%s10 + $0x38] sm:$0xf]
        %v5451 = vld [vmem:[%s10 + $0x3c] sm:$0xff]
        %v5452 = vld [vmem:[%s10 + $0x44] sm:$0xf]
        %v5453 = vld [vmem:[%s10 + $0x48] sm:$0xff]
        %v5454 = vld [vmem:[%s10 + $0x50] sm:$0xf]
        %v5455 = vld [vmem:[%s10 + $0x54] sm:$0xff]
        %v5456 = vld [vmem:[%s10 + $0x5c] sm:$0xf]
        %v5457 = vld [vmem:[%s10 + $0x60] sm:$0xff]
        %v5458 = vld [vmem:[%s10 + $0x68] sm:$0xf]
        %v5459 = vld [vmem:[%s10 + $0x6c] sm:$0xff]
        %v5460 = vld [vmem:[%s10 + $0x74] sm:$0xf]
        %v5461 = vld [vmem:[%s10 + $0x78] sm:$0xff]
        %v5462 = vld [vmem:[%s10 + $0x80] sm:$0xf]
        %v5463 = vld [vmem:[%s10 + $0x84] sm:$0xff]
        %v5464 = vld [vmem:[%s10 + $0x8c] sm:$0xf]
        %v5465 = vld [vmem:[%s10 + $0x90] sm:$0xff]
        %v5466 = vld [vmem:[%s10 + $0x98] sm:$0xf]
        %v5467 = vld [vmem:[%s10 + $0x9c] sm:$0xff]
        %v5468 = vld [vmem:[%s10 + $0xa4] sm:$0xf]
        %v5469 = vld [vmem:[%s10 + $0xa8] sm:$0xff]
        %v5470 = vld [vmem:[%s10 + $0xb0] sm:$0xf]
        %v5471 = vld [vmem:[%s10 + $0xb4] sm:$0xff]
        %v5472 = vld [vmem:[%s10 + $0xbc] sm:$0xf]
        %v5473 = vld [vmem:[%s10 + $0xc0] sm:$0xff]
        %v5474 = vld [vmem:[%s10 + $0xc8] sm:$0xf]
        %v5475 = vld [vmem:[%s10 + $0xcc] sm:$0xff]
        %v5476 = vld [vmem:[%s10 + $0xd4] sm:$0xf]
        %v5477 = vld [vmem:[%s10 + $0xd8] sm:$0xff]
        %v5478 = vld [vmem:[%s10 + $0xe0] sm:$0xf]
        %v5479 = vld [vmem:[%s10 + $0xe4] sm:$0xff]
        %v5480 = vld [vmem:[%s10 + $0xec] sm:$0xf]
        %v5481 = vld [vmem:[%s10 + $0xf0] sm:$0xff]
        %v5482 = vld [vmem:[%s10 + $0xf8] sm:$0xf]
        %v5483 = vld [vmem:[%s10 + $0xfc] sm:$0xff]
        %v5484 = vld [vmem:[%s10 + $0x104] sm:$0xf]
        %v5485 = vld [vmem:[%s10 + $0x108] sm:$0xff]
        %v5486 = vld [vmem:[%s10 + $0x110] sm:$0xf]
        %v5487 = vld [vmem:[%s10 + $0x114] sm:$0xff]
        %v5488 = vld [vmem:[%s10 + $0x11c] sm:$0xf]
        %v5489 = vld [vmem:[%s10 + $0x120] sm:$0xff]
        %v5490 = vld [vmem:[%s10 + $0x128] sm:$0xf]
        %v5491 = vld [vmem:[%s10 + $0x12c] sm:$0xff]
        %v5492 = vld [vmem:[%s10 + $0x134] sm:$0xf]
        %v5493 = vld [vmem:[%s10 + $0x138] sm:$0xff]
        %v5494 = vld [vmem:[%s10 + $0x140] sm:$0xf]
        %v5495 = vld [vmem:[%s10 + $0x144] sm:$0xff]
        %v5496 = vld [vmem:[%s10 + $0x14c] sm:$0xf]
        %v5497 = vld [vmem:[%s10 + $0x150] sm:$0xff]
        %v5498 = vld [vmem:[%s10 + $0x158] sm:$0xf]
        %v5499 = vld [vmem:[%s10 + $0x15c] sm:$0xff]
        %v5500 = vld [vmem:[%s10 + $0x164] sm:$0xf]
        %v5501 = vld [vmem:[%s10 + $0x168] sm:$0xff]
        %v5502 = vld [vmem:[%s10 + $0x170] sm:$0xf]
        %v5503 = vld [vmem:[%s10 + $0x174] sm:$0xff]
        %v5504 = vld [vmem:[%s10 + $0x17c] sm:$0xf]
        %v5505 = vld [vmem:[%s10 + $0x180] sm:$0xff]
        %v5506 = vld [vmem:[%s10 + $0x188] sm:$0xf]
        %v5507 = vld [vmem:[%s10 + $0x18c] sm:$0xff]
        %v5508 = vld [vmem:[%s10 + $0x194] sm:$0xf]
        %v5509 = vld [vmem:[%s10 + $0x198] sm:$0xff]
        %v5510 = vld [vmem:[%s10 + $0x1a0] sm:$0xf]
        %v5511 = vld [vmem:[%s10 + $0x1a4] sm:$0xff]
        %v5512 = vld [vmem:[%s10 + $0x1ac] sm:$0xf]
        %v5513 = vld [vmem:[%s10 + $0x1b0] sm:$0xff]
        %v5514 = vld [vmem:[%s10 + $0x1b8] sm:$0xf]
        %v5515 = vld [vmem:[%s10 + $0x1bc] sm:$0xff]
        %v5516 = vld [vmem:[%s10 + $0x1c4] sm:$0xf]
        %v5517 = vld [vmem:[%s10 + $0x1c8] sm:$0xff]
        %v5518 = vld [vmem:[%s10 + $0x1d0] sm:$0xf]
        %v5519 = vld [vmem:[%s10 + $0x1d4] sm:$0xff]
        %v5520 = vld [vmem:[%s10 + $0x1dc] sm:$0xf]
        %v5521 = vld [vmem:[%s10 + $0x1e0] sm:$0xff]
        %v5522 = vld [vmem:[%s10 + $0x1e8] sm:$0xf]
        %v5523 = vld [vmem:[%s10 + $0x1ec] sm:$0xff]
        %v5524 = vld [vmem:[%s10 + $0x1f4] sm:$0xf]
        %v5525 = vld [vmem:[%s10 + $0x1f8] sm:$0xff]
        %v5526 = vld [vmem:[%s10 + $0x200] sm:$0xf]
        %v5527 = vld [vmem:[%s10 + $0x204] sm:$0xff]
        %v5528 = vld [vmem:[%s10 + $0x20c] sm:$0xf]
        %v5529 = vld [vmem:[%s10 + $0x210] sm:$0xff]
        %v5530 = vld [vmem:[%s10 + $0x218] sm:$0xf]
        %v5531 = vld [vmem:[%s10 + $0x21c] sm:$0xff]
        %v5532 = vld [vmem:[%s10 + $0x224] sm:$0xf]
        %v5533 = vld [vmem:[%s10 + $0x228] sm:$0xff]
        %v5534 = vld [vmem:[%s10 + $0x230] sm:$0xf]
        %v5535 = vld [vmem:[%s10 + $0x234] sm:$0xff]
        %v5536 = vld [vmem:[%s10 + $0x23c] sm:$0xf]
        %v5537 = vld [vmem:[%s10 + $0x240] sm:$0xff]
        %v5538 = vld [vmem:[%s10 + $0x248] sm:$0xf]
        %v5539 = vld [vmem:[%s10 + $0x24c] sm:$0xff]
        %v5540 = vld [vmem:[%s10 + $0x254] sm:$0xf]
        %v5541 = vld [vmem:[%s10 + $0x258] sm:$0xff]
        %v5542 = vld [vmem:[%s10 + $0x260] sm:$0xf]
        %v5543 = vld [vmem:[%s10 + $0x264] sm:$0xff]
        %v5544 = vld [vmem:[%s10 + $0x26c] sm:$0xf]
        %v5545 = vld [vmem:[%s10 + $0x270] sm:$0xff]
        %v5546 = vld [vmem:[%s10 + $0x278] sm:$0xf]
        %v5547 = vld [vmem:[%s10 + $0x27c] sm:$0xff]
        %v5548 = vld [vmem:[%s10 + $0x284] sm:$0xf]
        %v5549 = vld [vmem:[%s10 + $0x288] sm:$0xff]
        %v5550 = vld [vmem:[%s10 + $0x290] sm:$0xf]
        %v5551 = vld [vmem:[%s10 + $0x294] sm:$0xff]
        %v5552 = vld [vmem:[%s10 + $0x29c] sm:$0xf]
        %v5553 = vld [vmem:[%s10 + $0x2a0] sm:$0xff]
        %v5554 = vld [vmem:[%s10 + $0x2a8] sm:$0xf]
        %v5555 = vld [vmem:[%s10 + $0x2ac] sm:$0xff]
        %v5556 = vld [vmem:[%s10 + $0x2b4] sm:$0xf]
        %v5557 = vld [vmem:[%s10 + $0x2b8] sm:$0xff]
        %v5558 = vld [vmem:[%s10 + $0x2c0] sm:$0xf]
        %v5559 = vld [vmem:[%s10 + $0x2c4] sm:$0xff]
        %v5560 = vld [vmem:[%s10 + $0x2cc] sm:$0xf]
        %v5561 = vld [vmem:[%s10 + $0x2d0] sm:$0xff]
        %v5562 = vld [vmem:[%s10 + $0x2d8] sm:$0xf]
        %v5563 = vld [vmem:[%s10 + $0x2dc] sm:$0xff]
        %v5564 = vld [vmem:[%s10 + $0x2e4] sm:$0xf]
        %v5565 = vld [vmem:[%s10 + $0x2e8] sm:$0xff]
        %v5566 = vld [vmem:[%s10 + $0x2f0] sm:$0xf]
        %v5567 = vld [vmem:[%s10 + $0x2f4] sm:$0xff]
        %v5568 = vld [vmem:[%s10 + $0x2fc] sm:$0xf]
        %v5569 = vld [vmem:[%s10 + $0x300] sm:$0xff]
        %v5570 = vld [vmem:[%s10 + $0x308] sm:$0xf]
        %v5571 = vld [vmem:[%s10 + $0x30c] sm:$0xff]
        %v5572 = vld [vmem:[%s10 + $0x314] sm:$0xf]
        %v5573 = vld [vmem:[%s10 + $0x318] sm:$0xff]
        %v5574 = vld [vmem:[%s10 + $0x320] sm:$0xf]
        %v5575 = vld [vmem:[%s10 + $0x324] sm:$0xff]
        %v5576 = vld [vmem:[%s10 + $0x32c] sm:$0xf]
        %v5577 = vld [vmem:[%s10 + $0x330] sm:$0xff]
        %v5578 = vld [vmem:[%s10 + $0x338] sm:$0xf]
        %v5579 = vld [vmem:[%s10 + $0x33c] sm:$0xff]
        %v5580 = vld [vmem:[%s10 + $0x344] sm:$0xf]
        %v5581 = vld [vmem:[%s10 + $0x348] sm:$0xff]
        %v5582 = vld [vmem:[%s10 + $0x350] sm:$0xf]
        %v5583 = vld [vmem:[%s10 + $0x354] sm:$0xff]
        %v5584 = vld [vmem:[%s10 + $0x35c] sm:$0xf]
        %v5585 = vld [vmem:[%s10 + $0x360] sm:$0xff]
        %v5586 = vld [vmem:[%s10 + $0x368] sm:$0xf]
        %v5587 = vld [vmem:[%s10 + $0x36c] sm:$0xff]
        %v5588 = vld [vmem:[%s10 + $0x374] sm:$0xf]
        %v5589 = vld [vmem:[%s10 + $0x378] sm:$0xff]
        %v5590 = vld [vmem:[%s10 + $0x380] sm:$0xf]
        %v5591 = vld [vmem:[%s10 + $0x384] sm:$0xff]
        %v5592 = vld [vmem:[%s10 + $0x38c] sm:$0xf]
        %v5593 = vld [vmem:[%s10 + $0x390] sm:$0xff]
        %v5594 = vld [vmem:[%s10 + $0x398] sm:$0xf]
        %v5595 = vld [vmem:[%s10 + $0x39c] sm:$0xff]
        %v5596 = vld [vmem:[%s10 + $0x3a4] sm:$0xf]
        %v5597 = vld [vmem:[%s10 + $0x3a8] sm:$0xff]
        %v5598 = vld [vmem:[%s10 + $0x3b0] sm:$0xf]
        %v5599 = vld [vmem:[%s10 + $0x3b4] sm:$0xff]
        %v5600 = vld [vmem:[%s10 + $0x3bc] sm:$0xf]
        %v5601 = vld [vmem:[%s10 + $0x3c0] sm:$0xff]
        %v5602 = vld [vmem:[%s10 + $0x3c8] sm:$0xf]
        %v5603 = vld [vmem:[%s10 + $0x3cc] sm:$0xff]
        %v5604 = vld [vmem:[%s10 + $0x3d4] sm:$0xf]
        %v5605 = vld [vmem:[%s10 + $0x3d8] sm:$0xff]
        %v5606 = vld [vmem:[%s10 + $0x3e0] sm:$0xf]
        %v5607 = vld [vmem:[%s10 + $0x3e4] sm:$0xff]
        %v5608 = vld [vmem:[%s10 + $0x3ec] sm:$0xf]
        %v5609 = vld [vmem:[%s10 + $0x3f0] sm:$0xff]
        %v5610 = vld [vmem:[%s10 + $0x3f8] sm:$0xf]
        %v5611 = vld [vmem:[%s10 + $0x3fc] sm:$0xff]
        %v5612 = vld [vmem:[%s10 + $0x404] sm:$0xf]
        %v5613 = vld [vmem:[%s10 + $0x408] sm:$0xff]
        %v5614 = vld [vmem:[%s10 + $0x410] sm:$0xf]
        %v5615 = vld [vmem:[%s10 + $0x414] sm:$0xff]
        %v5616 = vld [vmem:[%s10 + $0x41c] sm:$0xf]
        %v5617 = vld [vmem:[%s10 + $0x420] sm:$0xff]
        %v5618 = vld [vmem:[%s10 + $0x428] sm:$0xf]
        %v5619 = vld [vmem:[%s10 + $0x42c] sm:$0xff]
        %v5620 = vld [vmem:[%s10 + $0x434] sm:$0xf]
        %v5621 = vld [vmem:[%s10 + $0x438] sm:$0xff]
        %v5622 = vld [vmem:[%s10 + $0x440] sm:$0xf]
        %v5623 = vld [vmem:[%s10 + $0x444] sm:$0xff]
        %v5624 = vld [vmem:[%s10 + $0x44c] sm:$0xf]
        %v5625 = vld [vmem:[%s10 + $0x450] sm:$0xff]
        %v5626 = vld [vmem:[%s10 + $0x458] sm:$0xf]
        %v5627 = vld [vmem:[%s10 + $0x45c] sm:$0xff]
        %v5628 = vld [vmem:[%s10 + $0x464] sm:$0xf]
        %v5629 = vld [vmem:[%s10 + $0x468] sm:$0xff]
        %v5630 = vld [vmem:[%s10 + $0x470] sm:$0xf]
        %v5631 = vld [vmem:[%s10 + $0x474] sm:$0xff]
        %v5632 = vld [vmem:[%s10 + $0x47c] sm:$0xf]
        %v5633 = vld [vmem:[%s10 + $0x480] sm:$0xff]
        %v5634 = vld [vmem:[%s10 + $0x488] sm:$0xf]
        %v5635 = vld [vmem:[%s10 + $0x48c] sm:$0xff]
        %v5636 = vld [vmem:[%s10 + $0x494] sm:$0xf]
        %v5637 = vld [vmem:[%s10 + $0x498] sm:$0xff]
        %v5638 = vld [vmem:[%s10 + $0x4a0] sm:$0xf]
        %v5639 = vld [vmem:[%s10 + $0x4a4] sm:$0xff]
        %v5640 = vld [vmem:[%s10 + $0x4ac] sm:$0xf]
        %v5641 = vld [vmem:[%s10 + $0x4b0] sm:$0xff]
        %v5642 = vld [vmem:[%s10 + $0x4b8] sm:$0xf]
        %v5643 = vld [vmem:[%s10 + $0x4bc] sm:$0xff]
        %v5644 = vld [vmem:[%s10 + $0x4c4] sm:$0xf]
        %v5645 = vld [vmem:[%s10 + $0x4c8] sm:$0xff]
        %v5646 = vld [vmem:[%s10 + $0x4d0] sm:$0xf]
        %v5647 = vld [vmem:[%s10 + $0x4d4] sm:$0xff]
        %v5648 = vld [vmem:[%s10 + $0x4dc] sm:$0xf]
        %v5649 = vld [vmem:[%s10 + $0x4e0] sm:$0xff]
        %v5650 = vld [vmem:[%s10 + $0x4e8] sm:$0xf]
        %v5651 = vld [vmem:[%s10 + $0x4ec] sm:$0xff]
        %v5652 = vld [vmem:[%s10 + $0x4f4] sm:$0xf]
        %v5653 = vld [vmem:[%s10 + $0x4f8] sm:$0xff]
        %v5654 = vld [vmem:[%s10 + $0x500] sm:$0xf]
        %v5655 = vld [vmem:[%s10 + $0x504] sm:$0xff]
        %v5656 = vld [vmem:[%s10 + $0x50c] sm:$0xf]
        %v5657 = vld [vmem:[%s10 + $0x510] sm:$0xff]
        %v5658 = vld [vmem:[%s10 + $0x518] sm:$0xf]
        %v5659 = vld [vmem:[%s10 + $0x51c] sm:$0xff]
        %v5660 = vld [vmem:[%s10 + $0x524] sm:$0xf]
        %v5661 = vld [vmem:[%s10 + $0x528] sm:$0xff]
        %v5662 = vld [vmem:[%s10 + $0x530] sm:$0xf]
        %v5663 = vld [vmem:[%s10 + $0x534] sm:$0xff]
        %v5664 = vld [vmem:[%s10 + $0x53c] sm:$0xf]
        %v5665 = vld [vmem:[%s10 + $0x540] sm:$0xff]
        %v5666 = vld [vmem:[%s10 + $0x548] sm:$0xf]
        %v5667 = vld [vmem:[%s10 + $0x54c] sm:$0xff]
        %v5668 = vld [vmem:[%s10 + $0x554] sm:$0xf]
        %v5669 = vld [vmem:[%s10 + $0x558] sm:$0xff]
        %v5670 = vld [vmem:[%s10 + $0x560] sm:$0xf]
        %v5671 = vld [vmem:[%s10 + $0x564] sm:$0xff]
        %v5672 = vld [vmem:[%s10 + $0x56c] sm:$0xf]
        %v5673 = vld [vmem:[%s10 + $0x570] sm:$0xff]
        %v5674 = vld [vmem:[%s10 + $0x578] sm:$0xf]
        %v5675 = vld [vmem:[%s10 + $0x57c] sm:$0xff]
        %v5676 = vld [vmem:[%s10 + $0x584] sm:$0xf]
        %v5677 = vld [vmem:[%s10 + $0x588] sm:$0xff]
        %v5678 = vld [vmem:[%s10 + $0x590] sm:$0xf]
        %v5679 = vld [vmem:[%s10 + $0x594] sm:$0xff]
        %v5680 = vld [vmem:[%s10 + $0x59c] sm:$0xf]
        %v5681 = vld [vmem:[%s10 + $0x5a0] sm:$0xff]
        %v5682 = vld [vmem:[%s10 + $0x5a8] sm:$0xf]
        %v5683 = vld [vmem:[%s10 + $0x5ac] sm:$0xff]
        %v5684 = vld [vmem:[%s10 + $0x5b4] sm:$0xf]
        %v5685 = vld [vmem:[%s10 + $0x5b8] sm:$0xff]
        %v5686 = vld [vmem:[%s10 + $0x5c0] sm:$0xf]
        %v5687 = vld [vmem:[%s10 + $0x5c4] sm:$0xff]
        %v5688 = vld [vmem:[%s10 + $0x5cc] sm:$0xf]
        %v5689 = vld [vmem:[%s10 + $0x5d0] sm:$0xff]
        %v5690 = vld [vmem:[%s10 + $0x5d8] sm:$0xf]
        %v5691 = vld [vmem:[%s10 + $0x5dc] sm:$0xff]
        %v5692 = vld [vmem:[%s10 + $0x5e4] sm:$0xf]
        %v5693 = vld [vmem:[%s10 + $0x5e8] sm:$0xff]
        %v5694 = vld [vmem:[%s10 + $0x5f0] sm:$0xf]
        %v5695 = vld [vmem:[%s10 + $0x5f4] sm:$0xff]
        %v5696 = vld [vmem:[%s10 + $0x5fc] sm:$0xf]
        %v5697 = vld [vmem:[%s10 + $0x600] sm:$0xff]
        %v5698 = vld [vmem:[%s10 + $0x608] sm:$0xf]
        %v5699 = vld [vmem:[%s10 + $0x60c] sm:$0xff]
        %v5700 = vld [vmem:[%s10 + $0x614] sm:$0xf]
        %v5701 = vld [vmem:[%s10 + $0x618] sm:$0xff]
        %v5702 = vld [vmem:[%s10 + $0x620] sm:$0xf]
        %v5703 = vld [vmem:[%s10 + $0x624] sm:$0xff]
        %v5704 = vld [vmem:[%s10 + $0x62c] sm:$0xf]
        %v5705 = vld [vmem:[%s10 + $0x630] sm:$0xff]
        %v5706 = vld [vmem:[%s10 + $0x638] sm:$0xf]
        %v5707 = vld [vmem:[%s10 + $0x63c] sm:$0xff]
        %v5708 = vld [vmem:[%s10 + $0x644] sm:$0xf]
        %v5709 = vld [vmem:[%s10 + $0x648] sm:$0xff]
        %v5710 = vld [vmem:[%s10 + $0x650] sm:$0xf]
        %v5711 = vld [vmem:[%s10 + $0x654] sm:$0xff]
        %v5712 = vld [vmem:[%s10 + $0x65c] sm:$0xf]
        %v5713 = vld [vmem:[%s10 + $0x660] sm:$0xff]
        %v5714 = vld [vmem:[%s10 + $0x668] sm:$0xf]
        %v5715 = vld [vmem:[%s10 + $0x66c] sm:$0xff]
        %v5716 = vld [vmem:[%s10 + $0x674] sm:$0xf]
        %v5717 = vld [vmem:[%s10 + $0x678] sm:$0xff]
        %v5718 = vld [vmem:[%s10 + $0x680] sm:$0xf]
        %v5719 = vld [vmem:[%s10 + $0x684] sm:$0xff]
        %v5720 = vld [vmem:[%s10 + $0x68c] sm:$0xf]
        %v5721 = vld [vmem:[%s10 + $0x690] sm:$0xff]
        %v5722 = vld [vmem:[%s10 + $0x698] sm:$0xf]
        %v5723 = vld [vmem:[%s10 + $0x69c] sm:$0xff]
        %v5724 = vld [vmem:[%s10 + $0x6a4] sm:$0xf]
        %v5725 = vld [vmem:[%s10 + $0x6a8] sm:$0xff]
        %v5726 = vld [vmem:[%s10 + $0x6b0] sm:$0xf]
        %v5727 = vld [vmem:[%s10 + $0x6b4] sm:$0xff]
        %v5728 = vld [vmem:[%s10 + $0x6bc] sm:$0xf]
        %v5729 = vld [vmem:[%s11] sm:$0x7]
        %v5731 = vlaneseq
        %v5732 = vshrl.u32 %v5731, 7
        %v5733 = vsub.s32 0, %v5732
        %v5734 = vrot.slane %v5729, %v5733
        %v5735 = vlaneseq
        %v5736 = vshrl.u32 %v5735, 7
        %v5737 = vsub.s32 1, %v5736
        %v5738 = vrot.slane %v5729, %v5737
        %v5739 = vlaneseq
        %v5740 = vshrl.u32 %v5739, 7
        %v5741 = vsub.s32 2, %v5740
        %v5742 = vrot.slane %v5729, %v5741
        %v6034 = vunpack.c.l.b16 %v5441
        %v6035 = vunpack.c.h.b16 %v5441
        %v6036 = vunpack.c.l.b16 %v5442
        %v6037 = vunpack.c.l.b16 %v5443
        %v6038 = vunpack.c.h.b16 %v5443
        %v6039 = vunpack.c.l.b16 %v5444
        %v6040 = vunpack.c.l.b16 %v5445
        %v6041 = vunpack.c.h.b16 %v5445
        %v6042 = vunpack.c.l.b16 %v5446
        %v6043 = vunpack.c.l.b16 %v5447
        %v6044 = vunpack.c.h.b16 %v5447
        %v6045 = vunpack.c.l.b16 %v5448
        %v6046 = vunpack.c.l.b16 %v5449
        %v6047 = vunpack.c.h.b16 %v5449
        %v6048 = vunpack.c.l.b16 %v5450
        %v6049 = vunpack.c.l.b16 %v5451
        %v6050 = vunpack.c.h.b16 %v5451
        %v6051 = vunpack.c.l.b16 %v5452
        %v6052 = vunpack.c.l.b16 %v5453
        %v6053 = vunpack.c.h.b16 %v5453
        %v6054 = vunpack.c.l.b16 %v5454
        %v6055 = vunpack.c.l.b16 %v5455
        %v6056 = vunpack.c.h.b16 %v5455
        %v6057 = vunpack.c.l.b16 %v5456
        %v6058 = vunpack.c.l.b16 %v5457
        %v6059 = vunpack.c.h.b16 %v5457
        %v6060 = vunpack.c.l.b16 %v5458
        %v6061 = vunpack.c.l.b16 %v5459
        %v6062 = vunpack.c.h.b16 %v5459
        %v6063 = vunpack.c.l.b16 %v5460
        %v6064 = vunpack.c.l.b16 %v5461
        %v6065 = vunpack.c.h.b16 %v5461
        %v6066 = vunpack.c.l.b16 %v5462
        %v6067 = vunpack.c.l.b16 %v5463
        %v6068 = vunpack.c.h.b16 %v5463
        %v6069 = vunpack.c.l.b16 %v5464
        %v6070 = vunpack.c.l.b16 %v5465
        %v6071 = vunpack.c.h.b16 %v5465
        %v6072 = vunpack.c.l.b16 %v5466
        %v6073 = vunpack.c.l.b16 %v5467
        %v6074 = vunpack.c.h.b16 %v5467
        %v6075 = vunpack.c.l.b16 %v5468
        %v6076 = vunpack.c.l.b16 %v5469
        %v6077 = vunpack.c.h.b16 %v5469
        %v6078 = vunpack.c.l.b16 %v5470
        %v6079 = vunpack.c.l.b16 %v5471
        %v6080 = vunpack.c.h.b16 %v5471
        %v6081 = vunpack.c.l.b16 %v5472
        %v6082 = vunpack.c.l.b16 %v5473
        %v6083 = vunpack.c.h.b16 %v5473
        %v6084 = vunpack.c.l.b16 %v5474
        %v6085 = vunpack.c.l.b16 %v5475
        %v6086 = vunpack.c.h.b16 %v5475
        %v6087 = vunpack.c.l.b16 %v5476
        %v6088 = vunpack.c.l.b16 %v5477
        %v6089 = vunpack.c.h.b16 %v5477
        %v6090 = vunpack.c.l.b16 %v5478
        %v6091 = vunpack.c.l.b16 %v5479
        %v6092 = vunpack.c.h.b16 %v5479
        %v6093 = vunpack.c.l.b16 %v5480
        %v6094 = vunpack.c.l.b16 %v5481
        %v6095 = vunpack.c.h.b16 %v5481
        %v6096 = vunpack.c.l.b16 %v5482
        %v6097 = vunpack.c.l.b16 %v5483
        %v6098 = vunpack.c.h.b16 %v5483
        %v6099 = vunpack.c.l.b16 %v5484
        %v6100 = vunpack.c.l.b16 %v5485
        %v6101 = vunpack.c.h.b16 %v5485
        %v6102 = vunpack.c.l.b16 %v5486
        %v6103 = vunpack.c.l.b16 %v5487
        %v6104 = vunpack.c.h.b16 %v5487
        %v6105 = vunpack.c.l.b16 %v5488
        %v6106 = vunpack.c.l.b16 %v5489
        %v6107 = vunpack.c.h.b16 %v5489
        %v6108 = vunpack.c.l.b16 %v5490
        %v6109 = vunpack.c.l.b16 %v5491
        %v6110 = vunpack.c.h.b16 %v5491
        %v6111 = vunpack.c.l.b16 %v5492
        %v6112 = vunpack.c.l.b16 %v5493
        %v6113 = vunpack.c.h.b16 %v5493
        %v6114 = vunpack.c.l.b16 %v5494
        %v6115 = vunpack.c.l.b16 %v5495
        %v6116 = vunpack.c.h.b16 %v5495
        %v6117 = vunpack.c.l.b16 %v5496
        %v6118 = vunpack.c.l.b16 %v5497
        %v6119 = vunpack.c.h.b16 %v5497
        %v6120 = vunpack.c.l.b16 %v5498
        %v6121 = vunpack.c.l.b16 %v5499
        %v6122 = vunpack.c.h.b16 %v5499
        %v6123 = vunpack.c.l.b16 %v5500
        %v6124 = vunpack.c.l.b16 %v5501
        %v6125 = vunpack.c.h.b16 %v5501
        %v6126 = vunpack.c.l.b16 %v5502
        %v6127 = vunpack.c.l.b16 %v5503
        %v6128 = vunpack.c.h.b16 %v5503
        %v6129 = vunpack.c.l.b16 %v5504
        %v6130 = vunpack.c.l.b16 %v5505
        %v6131 = vunpack.c.h.b16 %v5505
        %v6132 = vunpack.c.l.b16 %v5506
        %v6133 = vunpack.c.l.b16 %v5507
        %v6134 = vunpack.c.h.b16 %v5507
        %v6135 = vunpack.c.l.b16 %v5508
        %v6136 = vunpack.c.l.b16 %v5509
        %v6137 = vunpack.c.h.b16 %v5509
        %v6138 = vunpack.c.l.b16 %v5510
        %v6139 = vunpack.c.l.b16 %v5511
        %v6140 = vunpack.c.h.b16 %v5511
        %v6141 = vunpack.c.l.b16 %v5512
        %v6142 = vunpack.c.l.b16 %v5513
        %v6143 = vunpack.c.h.b16 %v5513
        %v6144 = vunpack.c.l.b16 %v5514
        %v6145 = vunpack.c.l.b16 %v5515
        %v6146 = vunpack.c.h.b16 %v5515
        %v6147 = vunpack.c.l.b16 %v5516
        %v6148 = vunpack.c.l.b16 %v5517
        %v6149 = vunpack.c.h.b16 %v5517
        %v6150 = vunpack.c.l.b16 %v5518
        %v6151 = vunpack.c.l.b16 %v5519
        %v6152 = vunpack.c.h.b16 %v5519
        %v6153 = vunpack.c.l.b16 %v5520
        %v6154 = vunpack.c.l.b16 %v5521
        %v6155 = vunpack.c.h.b16 %v5521
        %v6156 = vunpack.c.l.b16 %v5522
        %v6157 = vunpack.c.l.b16 %v5523
        %v6158 = vunpack.c.h.b16 %v5523
        %v6159 = vunpack.c.l.b16 %v5524
        %v6160 = vunpack.c.l.b16 %v5525
        %v6161 = vunpack.c.h.b16 %v5525
        %v6162 = vunpack.c.l.b16 %v5526
        %v6163 = vunpack.c.l.b16 %v5527
        %v6164 = vunpack.c.h.b16 %v5527
        %v6165 = vunpack.c.l.b16 %v5528
        %v6166 = vunpack.c.l.b16 %v5529
        %v6167 = vunpack.c.h.b16 %v5529
        %v6168 = vunpack.c.l.b16 %v5530
        %v6169 = vunpack.c.l.b16 %v5531
        %v6170 = vunpack.c.h.b16 %v5531
        %v6171 = vunpack.c.l.b16 %v5532
        %v6172 = vunpack.c.l.b16 %v5533
        %v6173 = vunpack.c.h.b16 %v5533
        %v6174 = vunpack.c.l.b16 %v5534
        %v6175 = vunpack.c.l.b16 %v5535
        %v6176 = vunpack.c.h.b16 %v5535
        %v6177 = vunpack.c.l.b16 %v5536
        %v6178 = vunpack.c.l.b16 %v5537
        %v6179 = vunpack.c.h.b16 %v5537
        %v6180 = vunpack.c.l.b16 %v5538
        %v6181 = vunpack.c.l.b16 %v5539
        %v6182 = vunpack.c.h.b16 %v5539
        %v6183 = vunpack.c.l.b16 %v5540
        %v6184 = vunpack.c.l.b16 %v5541
        %v6185 = vunpack.c.h.b16 %v5541
        %v6186 = vunpack.c.l.b16 %v5542
        %v6187 = vunpack.c.l.b16 %v5543
        %v6188 = vunpack.c.h.b16 %v5543
        %v6189 = vunpack.c.l.b16 %v5544
        %v6190 = vunpack.c.l.b16 %v5545
        %v6191 = vunpack.c.h.b16 %v5545
        %v6192 = vunpack.c.l.b16 %v5546
        %v6193 = vunpack.c.l.b16 %v5547
        %v6194 = vunpack.c.h.b16 %v5547
        %v6195 = vunpack.c.l.b16 %v5548
        %v6196 = vunpack.c.l.b16 %v5549
        %v6197 = vunpack.c.h.b16 %v5549
        %v6198 = vunpack.c.l.b16 %v5550
        %v6199 = vunpack.c.l.b16 %v5551
        %v6200 = vunpack.c.h.b16 %v5551
        %v6201 = vunpack.c.l.b16 %v5552
        %v6202 = vunpack.c.l.b16 %v5553
        %v6203 = vunpack.c.h.b16 %v5553
        %v6204 = vunpack.c.l.b16 %v5554
        %v6205 = vunpack.c.l.b16 %v5555
        %v6206 = vunpack.c.h.b16 %v5555
        %v6207 = vunpack.c.l.b16 %v5556
        %v6208 = vunpack.c.l.b16 %v5557
        %v6209 = vunpack.c.h.b16 %v5557
        %v6210 = vunpack.c.l.b16 %v5558
        %v6211 = vunpack.c.l.b16 %v5559
        %v6212 = vunpack.c.h.b16 %v5559
        %v6213 = vunpack.c.l.b16 %v5560
        %v6214 = vunpack.c.l.b16 %v5561
        %v6215 = vunpack.c.h.b16 %v5561
        %v6216 = vunpack.c.l.b16 %v5562
        %v6217 = vunpack.c.l.b16 %v5563
        %v6218 = vunpack.c.h.b16 %v5563
        %v6219 = vunpack.c.l.b16 %v5564
        %v6220 = vunpack.c.l.b16 %v5565
        %v6221 = vunpack.c.h.b16 %v5565
        %v6222 = vunpack.c.l.b16 %v5566
        %v6223 = vunpack.c.l.b16 %v5567
        %v6224 = vunpack.c.h.b16 %v5567
        %v6225 = vunpack.c.l.b16 %v5568
        %v6226 = vunpack.c.l.b16 %v5569
        %v6227 = vunpack.c.h.b16 %v5569
        %v6228 = vunpack.c.l.b16 %v5570
        %v6229 = vunpack.c.l.b16 %v5571
        %v6230 = vunpack.c.h.b16 %v5571
        %v6231 = vunpack.c.l.b16 %v5572
        %v6232 = vunpack.c.l.b16 %v5573
        %v6233 = vunpack.c.h.b16 %v5573
        %v6234 = vunpack.c.l.b16 %v5574
        %v6235 = vunpack.c.l.b16 %v5575
        %v6236 = vunpack.c.h.b16 %v5575
        %v6237 = vunpack.c.l.b16 %v5576
        %v6238 = vunpack.c.l.b16 %v5577
        %v6239 = vunpack.c.h.b16 %v5577
        %v6240 = vunpack.c.l.b16 %v5578
        %v6241 = vunpack.c.l.b16 %v5579
        %v6242 = vunpack.c.h.b16 %v5579
        %v6243 = vunpack.c.l.b16 %v5580
        %v6244 = vunpack.c.l.b16 %v5581
        %v6245 = vunpack.c.h.b16 %v5581
        %v6246 = vunpack.c.l.b16 %v5582
        %v6247 = vunpack.c.l.b16 %v5583
        %v6248 = vunpack.c.h.b16 %v5583
        %v6249 = vunpack.c.l.b16 %v5584
        %v6250 = vunpack.c.l.b16 %v5585
        %v6251 = vunpack.c.h.b16 %v5585
        %v6252 = vunpack.c.l.b16 %v5586
        %v6253 = vunpack.c.l.b16 %v5587
        %v6254 = vunpack.c.h.b16 %v5587
        %v6255 = vunpack.c.l.b16 %v5588
        %v6256 = vunpack.c.l.b16 %v5589
        %v6257 = vunpack.c.h.b16 %v5589
        %v6258 = vunpack.c.l.b16 %v5590
        %v6259 = vunpack.c.l.b16 %v5591
        %v6260 = vunpack.c.h.b16 %v5591
        %v6261 = vunpack.c.l.b16 %v5592
        %v6262 = vunpack.c.l.b16 %v5593
        %v6263 = vunpack.c.h.b16 %v5593
        %v6264 = vunpack.c.l.b16 %v5594
        %v6265 = vunpack.c.l.b16 %v5595
        %v6266 = vunpack.c.h.b16 %v5595
        %v6267 = vunpack.c.l.b16 %v5596
        %v6268 = vunpack.c.l.b16 %v5597
        %v6269 = vunpack.c.h.b16 %v5597
        %v6270 = vunpack.c.l.b16 %v5598
        %v6271 = vunpack.c.l.b16 %v5599
        %v6272 = vunpack.c.h.b16 %v5599
        %v6273 = vunpack.c.l.b16 %v5600
        %v6274 = vunpack.c.l.b16 %v5601
        %v6275 = vunpack.c.h.b16 %v5601
        %v6276 = vunpack.c.l.b16 %v5602
        %v6277 = vunpack.c.l.b16 %v5603
        %v6278 = vunpack.c.h.b16 %v5603
        %v6279 = vunpack.c.l.b16 %v5604
        %v6280 = vunpack.c.l.b16 %v5605
        %v6281 = vunpack.c.h.b16 %v5605
        %v6282 = vunpack.c.l.b16 %v5606
        %v6283 = vunpack.c.l.b16 %v5607
        %v6284 = vunpack.c.h.b16 %v5607
        %v6285 = vunpack.c.l.b16 %v5608
        %v6286 = vunpack.c.l.b16 %v5609
        %v6287 = vunpack.c.h.b16 %v5609
        %v6288 = vunpack.c.l.b16 %v5610
        %v6289 = vunpack.c.l.b16 %v5611
        %v6290 = vunpack.c.h.b16 %v5611
        %v6291 = vunpack.c.l.b16 %v5612
        %v6292 = vunpack.c.l.b16 %v5613
        %v6293 = vunpack.c.h.b16 %v5613
        %v6294 = vunpack.c.l.b16 %v5614
        %v6295 = vunpack.c.l.b16 %v5615
        %v6296 = vunpack.c.h.b16 %v5615
        %v6297 = vunpack.c.l.b16 %v5616
        %v6298 = vunpack.c.l.b16 %v5617
        %v6299 = vunpack.c.h.b16 %v5617
        %v6300 = vunpack.c.l.b16 %v5618
        %v6301 = vunpack.c.l.b16 %v5619
        %v6302 = vunpack.c.h.b16 %v5619
        %v6303 = vunpack.c.l.b16 %v5620
        %v6304 = vunpack.c.l.b16 %v5621
        %v6305 = vunpack.c.h.b16 %v5621
        %v6306 = vunpack.c.l.b16 %v5622
        %v6307 = vunpack.c.l.b16 %v5623
        %v6308 = vunpack.c.h.b16 %v5623
        %v6309 = vunpack.c.l.b16 %v5624
        %v6310 = vunpack.c.l.b16 %v5625
        %v6311 = vunpack.c.h.b16 %v5625
        %v6312 = vunpack.c.l.b16 %v5626
        %v6313 = vunpack.c.l.b16 %v5627
        %v6314 = vunpack.c.h.b16 %v5627
        %v6315 = vunpack.c.l.b16 %v5628
        %v6316 = vunpack.c.l.b16 %v5629
        %v6317 = vunpack.c.h.b16 %v5629
        %v6318 = vunpack.c.l.b16 %v5630
        %v6319 = vunpack.c.l.b16 %v5631
        %v6320 = vunpack.c.h.b16 %v5631
        %v6321 = vunpack.c.l.b16 %v5632
        %v6322 = vunpack.c.l.b16 %v5633
        %v6323 = vunpack.c.h.b16 %v5633
        %v6324 = vunpack.c.l.b16 %v5634
        %v6325 = vunpack.c.l.b16 %v5635
        %v6326 = vunpack.c.h.b16 %v5635
        %v6327 = vunpack.c.l.b16 %v5636
        %v6328 = vunpack.c.l.b16 %v5637
        %v6329 = vunpack.c.h.b16 %v5637
        %v6330 = vunpack.c.l.b16 %v5638
        %v6331 = vunpack.c.l.b16 %v5639
        %v6332 = vunpack.c.h.b16 %v5639
        %v6333 = vunpack.c.l.b16 %v5640
        %v6334 = vunpack.c.l.b16 %v5641
        %v6335 = vunpack.c.h.b16 %v5641
        %v6336 = vunpack.c.l.b16 %v5642
        %v6337 = vunpack.c.l.b16 %v5643
        %v6338 = vunpack.c.h.b16 %v5643
        %v6339 = vunpack.c.l.b16 %v5644
        %v6340 = vunpack.c.l.b16 %v5645
        %v6341 = vunpack.c.h.b16 %v5645
        %v6342 = vunpack.c.l.b16 %v5646
        %v6343 = vunpack.c.l.b16 %v5647
        %v6344 = vunpack.c.h.b16 %v5647
        %v6345 = vunpack.c.l.b16 %v5648
        %v6346 = vunpack.c.l.b16 %v5649
        %v6347 = vunpack.c.h.b16 %v5649
        %v6348 = vunpack.c.l.b16 %v5650
        %v6349 = vunpack.c.l.b16 %v5651
        %v6350 = vunpack.c.h.b16 %v5651
        %v6351 = vunpack.c.l.b16 %v5652
        %v6352 = vunpack.c.l.b16 %v5653
        %v6353 = vunpack.c.h.b16 %v5653
        %v6354 = vunpack.c.l.b16 %v5654
        %v6355 = vunpack.c.l.b16 %v5655
        %v6356 = vunpack.c.h.b16 %v5655
        %v6357 = vunpack.c.l.b16 %v5656
        %v6358 = vunpack.c.l.b16 %v5657
        %v6359 = vunpack.c.h.b16 %v5657
        %v6360 = vunpack.c.l.b16 %v5658
        %v6361 = vunpack.c.l.b16 %v5659
        %v6362 = vunpack.c.h.b16 %v5659
        %v6363 = vunpack.c.l.b16 %v5660
        %v6364 = vunpack.c.l.b16 %v5661
        %v6365 = vunpack.c.h.b16 %v5661
        %v6366 = vunpack.c.l.b16 %v5662
        %v6367 = vunpack.c.l.b16 %v5663
        %v6368 = vunpack.c.h.b16 %v5663
        %v6369 = vunpack.c.l.b16 %v5664
        %v6370 = vunpack.c.l.b16 %v5665
        %v6371 = vunpack.c.h.b16 %v5665
        %v6372 = vunpack.c.l.b16 %v5666
        %v6373 = vunpack.c.l.b16 %v5667
        %v6374 = vunpack.c.h.b16 %v5667
        %v6375 = vunpack.c.l.b16 %v5668
        %v6376 = vunpack.c.l.b16 %v5669
        %v6377 = vunpack.c.h.b16 %v5669
        %v6378 = vunpack.c.l.b16 %v5670
        %v6379 = vunpack.c.l.b16 %v5671
        %v6380 = vunpack.c.h.b16 %v5671
        %v6381 = vunpack.c.l.b16 %v5672
        %v6382 = vunpack.c.l.b16 %v5673
        %v6383 = vunpack.c.h.b16 %v5673
        %v6384 = vunpack.c.l.b16 %v5674
        %v6385 = vunpack.c.l.b16 %v5675
        %v6386 = vunpack.c.h.b16 %v5675
        %v6387 = vunpack.c.l.b16 %v5676
        %v6388 = vunpack.c.l.b16 %v5677
        %v6389 = vunpack.c.h.b16 %v5677
        %v6390 = vunpack.c.l.b16 %v5678
        %v6391 = vunpack.c.l.b16 %v5679
        %v6392 = vunpack.c.h.b16 %v5679
        %v6393 = vunpack.c.l.b16 %v5680
        %v6394 = vunpack.c.l.b16 %v5681
        %v6395 = vunpack.c.h.b16 %v5681
        %v6396 = vunpack.c.l.b16 %v5682
        %v6397 = vunpack.c.l.b16 %v5683
        %v6398 = vunpack.c.h.b16 %v5683
        %v6399 = vunpack.c.l.b16 %v5684
        %v6400 = vunpack.c.l.b16 %v5685
        %v6401 = vunpack.c.h.b16 %v5685
        %v6402 = vunpack.c.l.b16 %v5686
        %v6403 = vunpack.c.l.b16 %v5687
        %v6404 = vunpack.c.h.b16 %v5687
        %v6405 = vunpack.c.l.b16 %v5688
        %v6406 = vunpack.c.l.b16 %v5689
        %v6407 = vunpack.c.h.b16 %v5689
        %v6408 = vunpack.c.l.b16 %v5690
        %v6409 = vunpack.c.l.b16 %v5691
        %v6410 = vunpack.c.h.b16 %v5691
        %v6411 = vunpack.c.l.b16 %v5692
        %v6412 = vunpack.c.l.b16 %v5693
        %v6413 = vunpack.c.h.b16 %v5693
        %v6414 = vunpack.c.l.b16 %v5694
        %v6415 = vunpack.c.l.b16 %v5695
        %v6416 = vunpack.c.h.b16 %v5695
        %v6417 = vunpack.c.l.b16 %v5696
        %v6418 = vunpack.c.l.b16 %v5697
        %v6419 = vunpack.c.h.b16 %v5697
        %v6420 = vunpack.c.l.b16 %v5698
        %v6421 = vunpack.c.l.b16 %v5699
        %v6422 = vunpack.c.h.b16 %v5699
        %v6423 = vunpack.c.l.b16 %v5700
        %v6424 = vunpack.c.l.b16 %v5701
        %v6425 = vunpack.c.h.b16 %v5701
        %v6426 = vunpack.c.l.b16 %v5702
        %v6427 = vunpack.c.l.b16 %v5703
        %v6428 = vunpack.c.h.b16 %v5703
        %v6429 = vunpack.c.l.b16 %v5704
        %v6430 = vunpack.c.l.b16 %v5705
        %v6431 = vunpack.c.h.b16 %v5705
        %v6432 = vunpack.c.l.b16 %v5706
        %v6433 = vunpack.c.l.b16 %v5707
        %v6434 = vunpack.c.h.b16 %v5707
        %v6435 = vunpack.c.l.b16 %v5708
        %v6436 = vunpack.c.l.b16 %v5709
        %v6437 = vunpack.c.h.b16 %v5709
        %v6438 = vunpack.c.l.b16 %v5710
        %v6439 = vunpack.c.l.b16 %v5711
        %v6440 = vunpack.c.h.b16 %v5711
        %v6441 = vunpack.c.l.b16 %v5712
        %v6442 = vunpack.c.l.b16 %v5713
        %v6443 = vunpack.c.h.b16 %v5713
        %v6444 = vunpack.c.l.b16 %v5714
        %v6445 = vunpack.c.l.b16 %v5715
        %v6446 = vunpack.c.h.b16 %v5715
        %v6447 = vunpack.c.l.b16 %v5716
        %v6448 = vunpack.c.l.b16 %v5717
        %v6449 = vunpack.c.h.b16 %v5717
        %v6450 = vunpack.c.l.b16 %v5718
        %v6451 = vunpack.c.l.b16 %v5719
        %v6452 = vunpack.c.h.b16 %v5719
        %v6453 = vunpack.c.l.b16 %v5720
        %v6454 = vunpack.c.l.b16 %v5721
        %v6455 = vunpack.c.h.b16 %v5721
        %v6456 = vunpack.c.l.b16 %v5722
        %v6457 = vunpack.c.l.b16 %v5723
        %v6458 = vunpack.c.h.b16 %v5723
        %v6459 = vunpack.c.l.b16 %v5724
        %v6460 = vunpack.c.l.b16 %v5725
        %v6461 = vunpack.c.h.b16 %v5725
        %v6462 = vunpack.c.l.b16 %v5726
        %v6463 = vunpack.c.l.b16 %v5727
        %v6464 = vunpack.c.h.b16 %v5727
        %v6465 = vunpack.c.l.b16 %v5728
        %v6466 = vpack.c.b16 %v6037, %v6034
        %v6467 = vpack.c.b16 %v6038, %v6035
        %v6468 = vpack.c.b16 %v6039, %v6036
        %v6469 = vpack.c.b16 %v6043, %v6040
        %v6470 = vpack.c.b16 %v6044, %v6041
        %v6471 = vpack.c.b16 %v6045, %v6042
        %v6472 = vpack.c.b16 %v6049, %v6046
        %v6473 = vpack.c.b16 %v6050, %v6047
        %v6474 = vpack.c.b16 %v6051, %v6048
        %v6475 = vpack.c.b16 %v6055, %v6052
        %v6476 = vpack.c.b16 %v6056, %v6053
        %v6477 = vpack.c.b16 %v6057, %v6054
        %v6478 = vpack.c.b16 %v6061, %v6058
        %v6479 = vpack.c.b16 %v6062, %v6059
        %v6480 = vpack.c.b16 %v6063, %v6060
        %v6481 = vpack.c.b16 %v6067, %v6064
        %v6482 = vpack.c.b16 %v6068, %v6065
        %v6483 = vpack.c.b16 %v6069, %v6066
        %v6484 = vpack.c.b16 %v6073, %v6070
        %v6485 = vpack.c.b16 %v6074, %v6071
        %v6486 = vpack.c.b16 %v6075, %v6072
        %v6487 = vpack.c.b16 %v6079, %v6076
        %v6488 = vpack.c.b16 %v6080, %v6077
        %v6489 = vpack.c.b16 %v6081, %v6078
        %v6490 = vpack.c.b16 %v6085, %v6082
        %v6491 = vpack.c.b16 %v6086, %v6083
        %v6492 = vpack.c.b16 %v6087, %v6084
        %v6493 = vpack.c.b16 %v6091, %v6088
        %v6494 = vpack.c.b16 %v6092, %v6089
        %v6495 = vpack.c.b16 %v6093, %v6090
        %v6496 = vpack.c.b16 %v6097, %v6094
        %v6497 = vpack.c.b16 %v6098, %v6095
        %v6498 = vpack.c.b16 %v6099, %v6096
        %v6499 = vpack.c.b16 %v6103, %v6100
        %v6500 = vpack.c.b16 %v6104, %v6101
        %v6501 = vpack.c.b16 %v6105, %v6102
        %v6502 = vpack.c.b16 %v6109, %v6106
        %v6503 = vpack.c.b16 %v6110, %v6107
        %v6504 = vpack.c.b16 %v6111, %v6108
        %v6505 = vpack.c.b16 %v6115, %v6112
        %v6506 = vpack.c.b16 %v6116, %v6113
        %v6507 = vpack.c.b16 %v6117, %v6114
        %v6508 = vpack.c.b16 %v6121, %v6118
        %v6509 = vpack.c.b16 %v6122, %v6119
        %v6510 = vpack.c.b16 %v6123, %v6120
        %v6511 = vpack.c.b16 %v6127, %v6124
        %v6512 = vpack.c.b16 %v6128, %v6125
        %v6513 = vpack.c.b16 %v6129, %v6126
        %v6514 = vpack.c.b16 %v6133, %v6130
        %v6515 = vpack.c.b16 %v6134, %v6131
        %v6516 = vpack.c.b16 %v6135, %v6132
        %v6517 = vpack.c.b16 %v6139, %v6136
        %v6518 = vpack.c.b16 %v6140, %v6137
        %v6519 = vpack.c.b16 %v6141, %v6138
        %v6520 = vpack.c.b16 %v6145, %v6142
        %v6521 = vpack.c.b16 %v6146, %v6143
        %v6522 = vpack.c.b16 %v6147, %v6144
        %v6523 = vpack.c.b16 %v6151, %v6148
        %v6524 = vpack.c.b16 %v6152, %v6149
        %v6525 = vpack.c.b16 %v6153, %v6150
        %v6526 = vpack.c.b16 %v6157, %v6154
        %v6527 = vpack.c.b16 %v6158, %v6155
        %v6528 = vpack.c.b16 %v6159, %v6156
        %v6529 = vpack.c.b16 %v6163, %v6160
        %v6530 = vpack.c.b16 %v6164, %v6161
        %v6531 = vpack.c.b16 %v6165, %v6162
        %v6532 = vpack.c.b16 %v6169, %v6166
        %v6533 = vpack.c.b16 %v6170, %v6167
        %v6534 = vpack.c.b16 %v6171, %v6168
        %v6535 = vpack.c.b16 %v6175, %v6172
        %v6536 = vpack.c.b16 %v6176, %v6173
        %v6537 = vpack.c.b16 %v6177, %v6174
        %v6538 = vpack.c.b16 %v6181, %v6178
        %v6539 = vpack.c.b16 %v6182, %v6179
        %v6540 = vpack.c.b16 %v6183, %v6180
        %v6541 = vpack.c.b16 %v6187, %v6184
        %v6542 = vpack.c.b16 %v6188, %v6185
        %v6543 = vpack.c.b16 %v6189, %v6186
        %v6544 = vpack.c.b16 %v6193, %v6190
        %v6545 = vpack.c.b16 %v6194, %v6191
        %v6546 = vpack.c.b16 %v6195, %v6192
        %v6547 = vpack.c.b16 %v6199, %v6196
        %v6548 = vpack.c.b16 %v6200, %v6197
        %v6549 = vpack.c.b16 %v6201, %v6198
        %v6550 = vpack.c.b16 %v6205, %v6202
        %v6551 = vpack.c.b16 %v6206, %v6203
        %v6552 = vpack.c.b16 %v6207, %v6204
        %v6553 = vpack.c.b16 %v6211, %v6208
        %v6554 = vpack.c.b16 %v6212, %v6209
        %v6555 = vpack.c.b16 %v6213, %v6210
        %v6556 = vpack.c.b16 %v6217, %v6214
        %v6557 = vpack.c.b16 %v6218, %v6215
        %v6558 = vpack.c.b16 %v6219, %v6216
        %v6559 = vpack.c.b16 %v6223, %v6220
        %v6560 = vpack.c.b16 %v6224, %v6221
        %v6561 = vpack.c.b16 %v6225, %v6222
        %v6562 = vpack.c.b16 %v6229, %v6226
        %v6563 = vpack.c.b16 %v6230, %v6227
        %v6564 = vpack.c.b16 %v6231, %v6228
        %v6565 = vpack.c.b16 %v6235, %v6232
        %v6566 = vpack.c.b16 %v6236, %v6233
        %v6567 = vpack.c.b16 %v6237, %v6234
        %v6568 = vpack.c.b16 %v6241, %v6238
        %v6569 = vpack.c.b16 %v6242, %v6239
        %v6570 = vpack.c.b16 %v6243, %v6240
        %v6571 = vpack.c.b16 %v6247, %v6244
        %v6572 = vpack.c.b16 %v6248, %v6245
        %v6573 = vpack.c.b16 %v6249, %v6246
        %v6574 = vpack.c.b16 %v6253, %v6250
        %v6575 = vpack.c.b16 %v6254, %v6251
        %v6576 = vpack.c.b16 %v6255, %v6252
        %v6577 = vpack.c.b16 %v6259, %v6256
        %v6578 = vpack.c.b16 %v6260, %v6257
        %v6579 = vpack.c.b16 %v6261, %v6258
        %v6580 = vpack.c.b16 %v6265, %v6262
        %v6581 = vpack.c.b16 %v6266, %v6263
        %v6582 = vpack.c.b16 %v6267, %v6264
        %v6583 = vpack.c.b16 %v6271, %v6268
        %v6584 = vpack.c.b16 %v6272, %v6269
        %v6585 = vpack.c.b16 %v6273, %v6270
        %v6586 = vpack.c.b16 %v6277, %v6274
        %v6587 = vpack.c.b16 %v6278, %v6275
        %v6588 = vpack.c.b16 %v6279, %v6276
        %v6589 = vpack.c.b16 %v6283, %v6280
        %v6590 = vpack.c.b16 %v6284, %v6281
        %v6591 = vpack.c.b16 %v6285, %v6282
        %v6592 = vpack.c.b16 %v6289, %v6286
        %v6593 = vpack.c.b16 %v6290, %v6287
        %v6594 = vpack.c.b16 %v6291, %v6288
        %v6595 = vpack.c.b16 %v6295, %v6292
        %v6596 = vpack.c.b16 %v6296, %v6293
        %v6597 = vpack.c.b16 %v6297, %v6294
        %v6598 = vpack.c.b16 %v6301, %v6298
        %v6599 = vpack.c.b16 %v6302, %v6299
        %v6600 = vpack.c.b16 %v6303, %v6300
        %v6601 = vpack.c.b16 %v6307, %v6304
        %v6602 = vpack.c.b16 %v6308, %v6305
        %v6603 = vpack.c.b16 %v6309, %v6306
        %v6604 = vpack.c.b16 %v6313, %v6310
        %v6605 = vpack.c.b16 %v6314, %v6311
        %v6606 = vpack.c.b16 %v6315, %v6312
        %v6607 = vpack.c.b16 %v6319, %v6316
        %v6608 = vpack.c.b16 %v6320, %v6317
        %v6609 = vpack.c.b16 %v6321, %v6318
        %v6610 = vpack.c.b16 %v6325, %v6322
        %v6611 = vpack.c.b16 %v6326, %v6323
        %v6612 = vpack.c.b16 %v6327, %v6324
        %v6613 = vpack.c.b16 %v6331, %v6328
        %v6614 = vpack.c.b16 %v6332, %v6329
        %v6615 = vpack.c.b16 %v6333, %v6330
        %v6616 = vpack.c.b16 %v6337, %v6334
        %v6617 = vpack.c.b16 %v6338, %v6335
        %v6618 = vpack.c.b16 %v6339, %v6336
        %v6619 = vpack.c.b16 %v6343, %v6340
        %v6620 = vpack.c.b16 %v6344, %v6341
        %v6621 = vpack.c.b16 %v6345, %v6342
        %v6622 = vpack.c.b16 %v6349, %v6346
        %v6623 = vpack.c.b16 %v6350, %v6347
        %v6624 = vpack.c.b16 %v6351, %v6348
        %v6625 = vpack.c.b16 %v6355, %v6352
        %v6626 = vpack.c.b16 %v6356, %v6353
        %v6627 = vpack.c.b16 %v6357, %v6354
        %v6628 = vpack.c.b16 %v6361, %v6358
        %v6629 = vpack.c.b16 %v6362, %v6359
        %v6630 = vpack.c.b16 %v6363, %v6360
        %v6631 = vpack.c.b16 %v6367, %v6364
        %v6632 = vpack.c.b16 %v6368, %v6365
        %v6633 = vpack.c.b16 %v6369, %v6366
        %v6634 = vpack.c.b16 %v6373, %v6370
        %v6635 = vpack.c.b16 %v6374, %v6371
        %v6636 = vpack.c.b16 %v6375, %v6372
        %v6637 = vpack.c.b16 %v6379, %v6376
        %v6638 = vpack.c.b16 %v6380, %v6377
        %v6639 = vpack.c.b16 %v6381, %v6378
        %v6640 = vpack.c.b16 %v6385, %v6382
        %v6641 = vpack.c.b16 %v6386, %v6383
        %v6642 = vpack.c.b16 %v6387, %v6384
        %v6643 = vpack.c.b16 %v6391, %v6388
        %v6644 = vpack.c.b16 %v6392, %v6389
        %v6645 = vpack.c.b16 %v6393, %v6390
        %v6646 = vpack.c.b16 %v6397, %v6394
        %v6647 = vpack.c.b16 %v6398, %v6395
        %v6648 = vpack.c.b16 %v6399, %v6396
        %v6649 = vpack.c.b16 %v6403, %v6400
        %v6650 = vpack.c.b16 %v6404, %v6401
        %v6651 = vpack.c.b16 %v6405, %v6402
        %v6652 = vpack.c.b16 %v6409, %v6406
        %v6653 = vpack.c.b16 %v6410, %v6407
        %v6654 = vpack.c.b16 %v6411, %v6408
        %v6655 = vpack.c.b16 %v6415, %v6412
        %v6656 = vpack.c.b16 %v6416, %v6413
        %v6657 = vpack.c.b16 %v6417, %v6414
        %v6658 = vpack.c.b16 %v6421, %v6418
        %v6659 = vpack.c.b16 %v6422, %v6419
        %v6660 = vpack.c.b16 %v6423, %v6420
        %v6661 = vpack.c.b16 %v6427, %v6424
        %v6662 = vpack.c.b16 %v6428, %v6425
        %v6663 = vpack.c.b16 %v6429, %v6426
        %v6664 = vpack.c.b16 %v6433, %v6430
        %v6665 = vpack.c.b16 %v6434, %v6431
        %v6666 = vpack.c.b16 %v6435, %v6432
        %v6667 = vpack.c.b16 %v6439, %v6436
        %v6668 = vpack.c.b16 %v6440, %v6437
        %v6669 = vpack.c.b16 %v6441, %v6438
        %v6670 = vpack.c.b16 %v6445, %v6442
        %v6671 = vpack.c.b16 %v6446, %v6443
        %v6672 = vpack.c.b16 %v6447, %v6444
        %v6673 = vpack.c.b16 %v6451, %v6448
        %v6674 = vpack.c.b16 %v6452, %v6449
        %v6675 = vpack.c.b16 %v6453, %v6450
        %v6676 = vpack.c.b16 %v6457, %v6454
        %v6677 = vpack.c.b16 %v6458, %v6455
        %v6678 = vpack.c.b16 %v6459, %v6456
        %v6679 = vpack.c.b16 %v6463, %v6460
        %v6680 = vpack.c.b16 %v6464, %v6461
        %v6681 = vpack.c.b16 %v6465, %v6462
        %6898 = vmatprep.subr.bf16.mxu0 %v6467
        %6899 = vmatpush1.bf16.msra.mxu0 %v6466
        %6900 = vmatprep.subr.bf16.mxu0 %v6470
        %6901 = vmatpush1.bf16.msra.mxu0 %v6469
        %6902 = vmatprep.subr.bf16.mxu0 %v6473
        %6903 = vmatpush1.bf16.msra.mxu0 %v6472
        %6904 = vmatprep.subr.bf16.mxu0 %v6476
        %6905 = vmatpush1.bf16.msra.mxu0 %v6475
        %6906 = vmatprep.subr.bf16.mxu0 %v6479
        %6907 = vmatpush1.bf16.msra.mxu0 %v6478
        %6908 = vmatprep.subr.bf16.mxu0 %v6482
        %6909 = vmatpush1.bf16.msra.mxu0 %v6481
        %6910 = vmatprep.subr.bf16.mxu0 %v6485
        %6911 = vmatpush1.bf16.msra.mxu0 %v6484
        %6912 = vmatprep.subr.bf16.mxu0 %v6488
        %6913 = vmatpush1.bf16.msra.mxu0 %v6487
        %6914 = vmatprep.subr.bf16.mxu0 %v6491
        %6915 = vmatpush1.bf16.msra.mxu0 %v6490
        %6916 = vmatprep.subr.bf16.mxu0 %v6494
        %6917 = vmatpush1.bf16.msra.mxu0 %v6493
        %6918 = vmatprep.subr.bf16.mxu0 %v6497
        %6919 = vmatpush1.bf16.msra.mxu0 %v6496
        %6920 = vmatprep.subr.bf16.mxu0 %v6500
        %6921 = vmatpush1.bf16.msra.mxu0 %v6499
        %6922 = vmatprep.subr.bf16.mxu0 %v6503
        %6923 = vmatpush1.bf16.msra.mxu0 %v6502
        %6924 = vmatprep.subr.bf16.mxu0 %v6506
        %6925 = vmatpush1.bf16.msra.mxu0 %v6505
        %6926 = vmatprep.subr.bf16.mxu0 %v6509
        %6927 = vmatpush1.bf16.msra.mxu0 %v6508
        %6928 = vmatprep.subr.bf16.mxu0 %v6512
        %6929 = vmatpush1.bf16.msra.mxu0 %v6511
        %6930 = vmatprep.mubr.bf16.mxu0 %v5433
        %6931 = vmatmul.mubr.bf16.gmra.mrb[0].mxu0 %v5432
        %v6932 = vpop.f32.mrb[0].mxu0
        %v6933 = vadd.f32 %v5734, %v6932
        %v6934 = vpop.f32.mrb[0].mxu0
        %v6935 = vadd.f32 %v5738, %v6934
        %v6936 = vpop.f32.mrb[0].mxu0
        %v6937 = vadd.f32 %v5734, %v6936
        %v6938 = vpop.f32.mrb[0].mxu0
        %v6939 = vadd.f32 %v5738, %v6938
        %6940 = vdwg.mxu0
        %6941 = vmatprep.subr.bf16.mxu0 %v6515
        %6942 = vmatpush1.bf16.msra.mxu0 %v6514
        %6943 = vmatprep.subr.bf16.mxu0 %v6518
        %6944 = vmatpush1.bf16.msra.mxu0 %v6517
        %6945 = vmatprep.subr.bf16.mxu0 %v6521
        %6946 = vmatpush1.bf16.msra.mxu0 %v6520
        %6947 = vmatprep.subr.bf16.mxu0 %v6524
        %6948 = vmatpush1.bf16.msra.mxu0 %v6523
        %6949 = vmatprep.subr.bf16.mxu0 %v6527
        %6950 = vmatpush1.bf16.msra.mxu0 %v6526
        %6951 = vmatprep.subr.bf16.mxu0 %v6530
        %6952 = vmatpush1.bf16.msra.mxu0 %v6529
        %6953 = vmatprep.subr.bf16.mxu0 %v6533
        %6954 = vmatpush1.bf16.msra.mxu0 %v6532
        %6955 = vmatprep.subr.bf16.mxu0 %v6536
        %6956 = vmatpush1.bf16.msra.mxu0 %v6535
        %6957 = vmatprep.subr.bf16.mxu0 %v6539
        %6958 = vmatpush1.bf16.msra.mxu0 %v6538
        %6959 = vmatprep.subr.bf16.mxu0 %v6542
        %6960 = vmatpush1.bf16.msra.mxu0 %v6541
        %6961 = vmatprep.subr.bf16.mxu0 %v6545
        %6962 = vmatpush1.bf16.msra.mxu0 %v6544
        %6963 = vmatprep.subr.bf16.mxu0 %v6548
        %6964 = vmatpush1.bf16.msra.mxu0 %v6547
        %6965 = vmatprep.subr.bf16.mxu0 %v6551
        %6966 = vmatpush1.bf16.msra.mxu0 %v6550
        %6967 = vmatprep.subr.bf16.mxu0 %v6554
        %6968 = vmatpush1.bf16.msra.mxu0 %v6553
        %6969 = vmatprep.subr.bf16.mxu0 %v6557
        %6970 = vmatpush1.bf16.msra.mxu0 %v6556
        %6971 = vmatprep.subr.bf16.mxu0 %v6560
        %6972 = vmatpush1.bf16.msra.mxu0 %v6559
        %6973 = vmatprep.mubr.bf16.mxu0 %v5435
        %6974 = vmatmul.mubr.bf16.gmra.mrb[0].mxu0 %v5434
        %v6975 = vpop.f32.mrb[0].mxu0
        %v6976 = vadd.f32 %v6933, %v6975
        %v6977 = vpop.f32.mrb[0].mxu0
        %v6978 = vadd.f32 %v6935, %v6977
        %v6979 = vpop.f32.mrb[0].mxu0
        %v6980 = vadd.f32 %v6937, %v6979
        %v6981 = vpop.f32.mrb[0].mxu0
        %v6982 = vadd.f32 %v6939, %v6981
        %6983 = vdwg.mxu0
        %6984 = vmatprep.subr.bf16.mxu0 %v6563
        %6985 = vmatpush1.bf16.msra.mxu0 %v6562
        %6986 = vmatprep.subr.bf16.mxu0 %v6566
        %6987 = vmatpush1.bf16.msra.mxu0 %v6565
        %6988 = vmatprep.subr.bf16.mxu0 %v6569
        %6989 = vmatpush1.bf16.msra.mxu0 %v6568
        %6990 = vmatprep.subr.bf16.mxu0 %v6572
        %6991 = vmatpush1.bf16.msra.mxu0 %v6571
        %6992 = vmatprep.subr.bf16.mxu0 %v6575
        %6993 = vmatpush1.bf16.msra.mxu0 %v6574
        %6994 = vmatprep.subr.bf16.mxu0 %v6578
        %6995 = vmatpush1.bf16.msra.mxu0 %v6577
        %6996 = vmatprep.subr.bf16.mxu0 %v6581
        %6997 = vmatpush1.bf16.msra.mxu0 %v6580
        %6998 = vmatprep.subr.bf16.mxu0 %v6584
        %6999 = vmatpush1.bf16.msra.mxu0 %v6583
        %7000 = vmatprep.subr.bf16.mxu0 %v6587
        %7001 = vmatpush1.bf16.msra.mxu0 %v6586
        %7002 = vmatprep.subr.bf16.mxu0 %v6590
        %7003 = vmatpush1.bf16.msra.mxu0 %v6589
        %7004 = vmatprep.subr.bf16.mxu0 %v6593
        %7005 = vmatpush1.bf16.msra.mxu0 %v6592
        %7006 = vmatprep.subr.bf16.mxu0 %v6596
        %7007 = vmatpush1.bf16.msra.mxu0 %v6595
        %7008 = vmatprep.subr.bf16.mxu0 %v6599
        %7009 = vmatpush1.bf16.msra.mxu0 %v6598
        %7010 = vmatprep.subr.bf16.mxu0 %v6602
        %7011 = vmatpush1.bf16.msra.mxu0 %v6601
        %7012 = vmatprep.subr.bf16.mxu0 %v6605
        %7013 = vmatpush1.bf16.msra.mxu0 %v6604
        %7014 = vmatprep.subr.bf16.mxu0 %v6608
        %7015 = vmatpush1.bf16.msra.mxu0 %v6607
        %7016 = vmatprep.mubr.bf16.mxu0 %v5437
        %7017 = vmatmul.mubr.bf16.gmra.mrb[0].mxu0 %v5436
        %v7018 = vpop.f32.mrb[0].mxu0
        %v7019 = vadd.f32 %v6976, %v7018
        %v7020 = vpop.f32.mrb[0].mxu0
        %v7021 = vadd.f32 %v6978, %v7020
        %v7022 = vpop.f32.mrb[0].mxu0
        %v7023 = vadd.f32 %v6980, %v7022
        %v7024 = vpop.f32.mrb[0].mxu0
        %v7025 = vadd.f32 %v6982, %v7024
        %7026 = vdwg.mxu0
        %7027 = vmatprep.subr.bf16.mxu0 %v6611
        %7028 = vmatpush1.bf16.msra.mxu0 %v6610
        %7029 = vmatprep.subr.bf16.mxu0 %v6614
        %7030 = vmatpush1.bf16.msra.mxu0 %v6613
        %7031 = vmatprep.subr.bf16.mxu0 %v6617
        %7032 = vmatpush1.bf16.msra.mxu0 %v6616
        %7033 = vmatprep.subr.bf16.mxu0 %v6620
        %7034 = vmatpush1.bf16.msra.mxu0 %v6619
        %7035 = vmatprep.subr.bf16.mxu0 %v6623
        %7036 = vmatpush1.bf16.msra.mxu0 %v6622
        %7037 = vmatprep.subr.bf16.mxu0 %v6626
        %7038 = vmatpush1.bf16.msra.mxu0 %v6625
        %7039 = vmatprep.subr.bf16.mxu0 %v6629
        %7040 = vmatpush1.bf16.msra.mxu0 %v6628
        %7041 = vmatprep.subr.bf16.mxu0 %v6632
        %7042 = vmatpush1.bf16.msra.mxu0 %v6631
        %7043 = vmatprep.subr.bf16.mxu0 %v6635
        %7044 = vmatpush1.bf16.msra.mxu0 %v6634
        %7045 = vmatprep.subr.bf16.mxu0 %v6638
        %7046 = vmatpush1.bf16.msra.mxu0 %v6637
        %7047 = vmatprep.subr.bf16.mxu0 %v6641
        %7048 = vmatpush1.bf16.msra.mxu0 %v6640
        %7049 = vmatprep.subr.bf16.mxu0 %v6644
        %7050 = vmatpush1.bf16.msra.mxu0 %v6643
        %7051 = vmatprep.subr.bf16.mxu0 %v6647
        %7052 = vmatpush1.bf16.msra.mxu0 %v6646
        %7053 = vmatprep.subr.bf16.mxu0 %v6650
        %7054 = vmatpush1.bf16.msra.mxu0 %v6649
        %7055 = vmatprep.subr.bf16.mxu0 %v6653
        %7056 = vmatpush1.bf16.msra.mxu0 %v6652
        %7057 = vmatprep.subr.bf16.mxu0 %v6656
        %7058 = vmatpush1.bf16.msra.mxu0 %v6655
        %7059 = vmatprep.mubr.bf16.mxu0 %v5439
        %7060 = vmatmul.mubr.bf16.gmra.mrb[0].mxu0 %v5438
        %v7061 = vpop.f32.mrb[0].mxu0
        %v7062 = vadd.f32 %v7019, %v7061
        %v7063 = vpop.f32.mrb[0].mxu0
        %v7064 = vadd.f32 %v7021, %v7063
        %v7065 = vpop.f32.mrb[0].mxu0
        %v7066 = vadd.f32 %v7023, %v7065
        %v7067 = vpop.f32.mrb[0].mxu0
        %v7068 = vadd.f32 %v7025, %v7067
        %7069 = vdwg.mxu0
        %7070 = vmatprep.subr.bf16.mxu0 %v6659
        %7071 = vmatpush1.bf16.msra.mxu0 %v6658
        %7072 = vmatprep.subr.bf16.mxu0 %v6662
        %7073 = vmatpush1.bf16.msra.mxu0 %v6661
        %7074 = vmatprep.subr.bf16.mxu0 %v6665
        %7075 = vmatpush1.bf16.msra.mxu0 %v6664
        %7076 = vmatprep.subr.bf16.mxu0 %v6668
        %7077 = vmatpush1.bf16.msra.mxu0 %v6667
        %7078 = vmatprep.subr.bf16.mxu0 %v6671
        %7079 = vmatpush1.bf16.msra.mxu0 %v6670
        %7080 = vmatprep.subr.bf16.mxu0 %v6674
        %7081 = vmatpush1.bf16.msra.mxu0 %v6673
        %7082 = vmatprep.subr.bf16.mxu0 %v6677
        %7083 = vmatpush1.bf16.msra.mxu0 %v6676
        %7084 = vmatprep.subr.bf16.mxu0 %v6680
        %7085 = vmatpush1.bf16.msra.mxu0 %v6679
        %7086 = vmatprep.subr.bf16.mxu0 0
        %7087 = vmatpush1.bf16.msra.mxu0 0
        %7088 = vmatprep.subr.bf16.mxu0 0
        %7089 = vmatpush1.bf16.msra.mxu0 0
        %7090 = vmatprep.subr.bf16.mxu0 0
        %7091 = vmatpush1.bf16.msra.mxu0 0
        %7092 = vmatprep.subr.bf16.mxu0 0
        %7093 = vmatpush1.bf16.msra.mxu0 0
        %7094 = vmatprep.subr.bf16.mxu0 0
        %7095 = vmatpush1.bf16.msra.mxu0 0
        %7096 = vmatprep.subr.bf16.mxu0 0
        %7097 = vmatpush1.bf16.msra.mxu0 0
        %7098 = vmatprep.subr.bf16.mxu0 0
        %7099 = vmatpush1.bf16.msra.mxu0 0
        %7100 = vmatprep.subr.bf16.mxu0 0
        %7101 = vmatpush1.bf16.msra.mxu0 0
        %7102 = vmatprep.mubr.bf16.mxu0 0
        %7103 = vmatmul.mubr.bf16.gmra.mrb[0].mxu0 %v5440
        %v7104 = vpop.f32.mrb[0].mxu0
        %v7105 = vadd.f32 %v7062, %v7104
        %v7106 = vpop.f32.mrb[0].mxu0
        %v7107 = vadd.f32 %v7064, %v7106
        %v7108 = vpop.f32.mrb[0].mxu0
        %v7109 = vadd.f32 %v7066, %v7108
        %v7110 = vpop.f32.mrb[0].mxu0
        %v7111 = vadd.f32 %v7068, %v7110
        %7112 = vdwg.mxu0
        %7113 = vmatprep.subr.bf16.mxu0 0
        %7114 = vmatpush1.bf16.msra.mxu0 %v6468
        %7115 = vmatprep.subr.bf16.mxu0 0
        %7116 = vmatpush1.bf16.msra.mxu0 %v6471
        %7117 = vmatprep.subr.bf16.mxu0 0
        %7118 = vmatpush1.bf16.msra.mxu0 %v6474
        %7119 = vmatprep.subr.bf16.mxu0 0
        %7120 = vmatpush1.bf16.msra.mxu0 %v6477
        %7121 = vmatprep.subr.bf16.mxu0 0
        %7122 = vmatpush1.bf16.msra.mxu0 %v6480
        %7123 = vmatprep.subr.bf16.mxu0 0
        %7124 = vmatpush1.bf16.msra.mxu0 %v6483
        %7125 = vmatprep.subr.bf16.mxu0 0
        %7126 = vmatpush1.bf16.msra.mxu0 %v6486
        %7127 = vmatprep.subr.bf16.mxu0 0
        %7128 = vmatpush1.bf16.msra.mxu0 %v6489
        %7129 = vmatprep.subr.bf16.mxu0 0
        %7130 = vmatpush1.bf16.msra.mxu0 %v6492
        %7131 = vmatprep.subr.bf16.mxu0 0
        %7132 = vmatpush1.bf16.msra.mxu0 %v6495
        %7133 = vmatprep.subr.bf16.mxu0 0
        %7134 = vmatpush1.bf16.msra.mxu0 %v6498
        %7135 = vmatprep.subr.bf16.mxu0 0
        %7136 = vmatpush1.bf16.msra.mxu0 %v6501
        %7137 = vmatprep.subr.bf16.mxu0 0
        %7138 = vmatpush1.bf16.msra.mxu0 %v6504
        %7139 = vmatprep.subr.bf16.mxu0 0
        %7140 = vmatpush1.bf16.msra.mxu0 %v6507
        %7141 = vmatprep.subr.bf16.mxu0 0
        %7142 = vmatpush1.bf16.msra.mxu0 %v6510
        %7143 = vmatprep.subr.bf16.mxu0 0
        %7144 = vmatpush1.bf16.msra.mxu0 %v6513
        %7145 = vmatprep.mubr.bf16.mxu0 %v5433
        %7146 = vmatmul.mubr.bf16.gmra.mrb[0].mxu0 %v5432
        %v7147 = vpop.f32.mrb[0].mxu0
        %v7148 = vadd.f32 %v5742, %v7147
        %v7149 = vpop.f32.mrb[0].mxu0
        %v7150 = vpop.f32.mrb[0].mxu0
        %v7151 = vadd.f32 %v5742, %v7150
        %v7152 = vpop.f32.mrb[0].mxu0
        %7153 = vdwg.mxu0
        %7154 = vmatprep.subr.bf16.mxu0 0
        %7155 = vmatpush1.bf16.msra.mxu0 %v6516
        %7156 = vmatprep.subr.bf16.mxu0 0
        %7157 = vmatpush1.bf16.msra.mxu0 %v6519
        %7158 = vmatprep.subr.bf16.mxu0 0
        %7159 = vmatpush1.bf16.msra.mxu0 %v6522
        %7160 = vmatprep.subr.bf16.mxu0 0
        %7161 = vmatpush1.bf16.msra.mxu0 %v6525
        %7162 = vmatprep.subr.bf16.mxu0 0
        %7163 = vmatpush1.bf16.msra.mxu0 %v6528
        %7164 = vmatprep.subr.bf16.mxu0 0
        %7165 = vmatpush1.bf16.msra.mxu0 %v6531
        %7166 = vmatprep.subr.bf16.mxu0 0
        %7167 = vmatpush1.bf16.msra.mxu0 %v6534
        %7168 = vmatprep.subr.bf16.mxu0 0
        %7169 = vmatpush1.bf16.msra.mxu0 %v6537
        %7170 = vmatprep.subr.bf16.mxu0 0
        %7171 = vmatpush1.bf16.msra.mxu0 %v6540
        %7172 = vmatprep.subr.bf16.mxu0 0
        %7173 = vmatpush1.bf16.msra.mxu0 %v6543
        %7174 = vmatprep.subr.bf16.mxu0 0
        %7175 = vmatpush1.bf16.msra.mxu0 %v6546
        %7176 = vmatprep.subr.bf16.mxu0 0
        %7177 = vmatpush1.bf16.msra.mxu0 %v6549
        %7178 = vmatprep.subr.bf16.mxu0 0
        %7179 = vmatpush1.bf16.msra.mxu0 %v6552
        %7180 = vmatprep.subr.bf16.mxu0 0
        %7181 = vmatpush1.bf16.msra.mxu0 %v6555
        %7182 = vmatprep.subr.bf16.mxu0 0
        %7183 = vmatpush1.bf16.msra.mxu0 %v6558
        %7184 = vmatprep.subr.bf16.mxu0 0
        %7185 = vmatpush1.bf16.msra.mxu0 %v6561
        %7186 = vmatprep.mubr.bf16.mxu0 %v5435
        %7187 = vmatmul.mubr.bf16.gmra.mrb[0].mxu0 %v5434
        %v7188 = vpop.f32.mrb[0].mxu0
        %v7189 = vadd.f32 %v7148, %v7188
        %v7190 = vpop.f32.mrb[0].mxu0
        %v7191 = vpop.f32.mrb[0].mxu0
        %v7192 = vadd.f32 %v7151, %v7191
        %v7193 = vpop.f32.mrb[0].mxu0
        %7194 = vdwg.mxu0
        %7195 = vmatprep.subr.bf16.mxu0 0
        %7196 = vmatpush1.bf16.msra.mxu0 %v6564
        %7197 = vmatprep.subr.bf16.mxu0 0
        %7198 = vmatpush1.bf16.msra.mxu0 %v6567
        %7199 = vmatprep.subr.bf16.mxu0 0
        %7200 = vmatpush1.bf16.msra.mxu0 %v6570
        %7201 = vmatprep.subr.bf16.mxu0 0
        %7202 = vmatpush1.bf16.msra.mxu0 %v6573
        %7203 = vmatprep.subr.bf16.mxu0 0
        %7204 = vmatpush1.bf16.msra.mxu0 %v6576
        %7205 = vmatprep.subr.bf16.mxu0 0
        %7206 = vmatpush1.bf16.msra.mxu0 %v6579
        %7207 = vmatprep.subr.bf16.mxu0 0
        %7208 = vmatpush1.bf16.msra.mxu0 %v6582
        %7209 = vmatprep.subr.bf16.mxu0 0
        %7210 = vmatpush1.bf16.msra.mxu0 %v6585
        %7211 = vmatprep.subr.bf16.mxu0 0
        %7212 = vmatpush1.bf16.msra.mxu0 %v6588
        %7213 = vmatprep.subr.bf16.mxu0 0
        %7214 = vmatpush1.bf16.msra.mxu0 %v6591
        %7215 = vmatprep.subr.bf16.mxu0 0
        %7216 = vmatpush1.bf16.msra.mxu0 %v6594
        %7217 = vmatprep.subr.bf16.mxu0 0
        %7218 = vmatpush1.bf16.msra.mxu0 %v6597
        %7219 = vmatprep.subr.bf16.mxu0 0
        %7220 = vmatpush1.bf16.msra.mxu0 %v6600
        %7221 = vmatprep.subr.bf16.mxu0 0
        %7222 = vmatpush1.bf16.msra.mxu0 %v6603
        %7223 = vmatprep.subr.bf16.mxu0 0
        %7224 = vmatpush1.bf16.msra.mxu0 %v6606
        %7225 = vmatprep.subr.bf16.mxu0 0
        %7226 = vmatpush1.bf16.msra.mxu0 %v6609
        %7227 = vmatprep.mubr.bf16.mxu0 %v5437
        %7228 = vmatmul.mubr.bf16.gmra.mrb[0].mxu0 %v5436
        %v7229 = vpop.f32.mrb[0].mxu0
        %v7230 = vadd.f32 %v7189, %v7229
        %v7231 = vpop.f32.mrb[0].mxu0
        %v7232 = vpop.f32.mrb[0].mxu0
        %v7233 = vadd.f32 %v7192, %v7232
        %v7234 = vpop.f32.mrb[0].mxu0
        %7235 = vdwg.mxu0
        %7236 = vmatprep.subr.bf16.mxu0 0
        %7237 = vmatpush1.bf16.msra.mxu0 %v6612
        %7238 = vmatprep.subr.bf16.mxu0 0
        %7239 = vmatpush1.bf16.msra.mxu0 %v6615
        %7240 = vmatprep.subr.bf16.mxu0 0
        %7241 = vmatpush1.bf16.msra.mxu0 %v6618
        %7242 = vmatprep.subr.bf16.mxu0 0
        %7243 = vmatpush1.bf16.msra.mxu0 %v6621
        %7244 = vmatprep.subr.bf16.mxu0 0
        %7245 = vmatpush1.bf16.msra.mxu0 %v6624
        %7246 = vmatprep.subr.bf16.mxu0 0
        %7247 = vmatpush1.bf16.msra.mxu0 %v6627
        %7248 = vmatprep.subr.bf16.mxu0 0
        %7249 = vmatpush1.bf16.msra.mxu0 %v6630
        %7250 = vmatprep.subr.bf16.mxu0 0
        %7251 = vmatpush1.bf16.msra.mxu0 %v6633
        %7252 = vmatprep.subr.bf16.mxu0 0
        %7253 = vmatpush1.bf16.msra.mxu0 %v6636
        %7254 = vmatprep.subr.bf16.mxu0 0
        %7255 = vmatpush1.bf16.msra.mxu0 %v6639
        %7256 = vmatprep.subr.bf16.mxu0 0
        %7257 = vmatpush1.bf16.msra.mxu0 %v6642
        %7258 = vmatprep.subr.bf16.mxu0 0
        %7259 = vmatpush1.bf16.msra.mxu0 %v6645
        %7260 = vmatprep.subr.bf16.mxu0 0
        %7261 = vmatpush1.bf16.msra.mxu0 %v6648
        %7262 = vmatprep.subr.bf16.mxu0 0
        %7263 = vmatpush1.bf16.msra.mxu0 %v6651
        %7264 = vmatprep.subr.bf16.mxu0 0
        %7265 = vmatpush1.bf16.msra.mxu0 %v6654
        %7266 = vmatprep.subr.bf16.mxu0 0
        %7267 = vmatpush1.bf16.msra.mxu0 %v6657
        %7268 = vmatprep.mubr.bf16.mxu0 %v5439
        %7269 = vmatmul.mubr.bf16.gmra.mrb[0].mxu0 %v5438
        %v7270 = vpop.f32.mrb[0].mxu0
        %v7271 = vadd.f32 %v7230, %v7270
        %v7272 = vpop.f32.mrb[0].mxu0
        %v7273 = vpop.f32.mrb[0].mxu0
        %v7274 = vadd.f32 %v7233, %v7273
        %v7275 = vpop.f32.mrb[0].mxu0
        %7276 = vdwg.mxu0
        %7277 = vmatprep.subr.bf16.mxu0 0
        %7278 = vmatpush1.bf16.msra.mxu0 %v6660
        %7279 = vmatprep.subr.bf16.mxu0 0
        %7280 = vmatpush1.bf16.msra.mxu0 %v6663
        %7281 = vmatprep.subr.bf16.mxu0 0
        %7282 = vmatpush1.bf16.msra.mxu0 %v6666
        %7283 = vmatprep.subr.bf16.mxu0 0
        %7284 = vmatpush1.bf16.msra.mxu0 %v6669
        %7285 = vmatprep.subr.bf16.mxu0 0
        %7286 = vmatpush1.bf16.msra.mxu0 %v6672
        %7287 = vmatprep.subr.bf16.mxu0 0
        %7288 = vmatpush1.bf16.msra.mxu0 %v6675
        %7289 = vmatprep.subr.bf16.mxu0 0
        %7290 = vmatpush1.bf16.msra.mxu0 %v6678
        %7291 = vmatprep.subr.bf16.mxu0 0
        %7292 = vmatpush1.bf16.msra.mxu0 %v6681
        %7293 = vmatprep.subr.bf16.mxu0 0
        %7294 = vmatpush1.bf16.msra.mxu0 0
        %7295 = vmatprep.subr.bf16.mxu0 0
        %7296 = vmatpush1.bf16.msra.mxu0 0
        %7297 = vmatprep.subr.bf16.mxu0 0
        %7298 = vmatpush1.bf16.msra.mxu0 0
        %7299 = vmatprep.subr.bf16.mxu0 0
        %7300 = vmatpush1.bf16.msra.mxu0 0
        %7301 = vmatprep.subr.bf16.mxu0 0
        %7302 = vmatpush1.bf16.msra.mxu0 0
        %7303 = vmatprep.subr.bf16.mxu0 0
        %7304 = vmatpush1.bf16.msra.mxu0 0
        %7305 = vmatprep.subr.bf16.mxu0 0
        %7306 = vmatpush1.bf16.msra.mxu0 0
        %7307 = vmatprep.subr.bf16.mxu0 0
        %7308 = vmatpush1.bf16.msra.mxu0 0
        %7309 = vmatprep.mubr.bf16.mxu0 0
        %7310 = vmatmul.mubr.bf16.gmra.mrb[0].mxu0 %v5440
        %v7311 = vpop.f32.mrb[0].mxu0
        %v7312 = vadd.f32 %v7271, %v7311
        %v7313 = vpop.f32.mrb[0].mxu0
        %v7314 = vpop.f32.mrb[0].mxu0
        %v7315 = vadd.f32 %v7274, %v7314
        %v7316 = vpop.f32.mrb[0].mxu0
        %7317 = vdwg.mxu0
        %v7318 = vadd.f32 %v3827, %v7105
        %v7319 = vadd.f32 %v3828, %v7107
        %v7320 = vadd.f32 %v3829, %v7312
        %v7321 = vadd.f32 %v3830, %v7109
        %v7322 = vadd.f32 %v3831, %v7111
        %v7323 = vadd.f32 %v3832, %v7315
        %7324 = vst [vmem:[%s406] sm:$0xff] %v7318
        %7325 = vst [vmem:[%s406 + $0x8] sm:$0xff] %v7319
        %7326 = vst.msk [vmem:[%s406 + $0x10] sm:$0xff] %vm422, %v7320
        %7327 = vst [vmem:[%s406 + $0x18] sm:$0xff] %v7321
        %7328 = vst [vmem:[%s406 + $0x20] sm:$0xff] %v7322
        %7329 = vst.msk [vmem:[%s406 + $0x28] sm:$0xff] %vm422, %v7323
        %s7330 = sand.u32 %s291, 1
        %s7331 = scalar_lea.sflag [#allocation3], %s7330
        %s7332 = sand.u32 %s291, 1
        %s7333 = smul.addr %s7332, 48
        %s7334 = scalar_lea.vmem [#allocation2], %s7333
        // Predicated region
        $region69: #{transformer_block.1} parent=67 // pred_check
          %p7335 = pneg %p301
        $region70: #{transformer_block.1} parent=67 // pred_check_branch
          %7337 = sbr.rel (%p7335) target = $region72
        $region71: #{transformer_block.1} parent=67 // pred_region
          %s7339 = ssub.s32 768, 768
          %7340 = vsyncadd %s7331, %s7339
          %s7341 = smul.addr %s26, 6
          %s7342 = smul.addr %s7341, 128
          %s7343 = scalar_lea.hbm %s12, %s7342
          %s7344 = sshll.u32 %s7334, 4
          %s7345 = int_to_ptr.vmem [resolvable:$true] %s7344
          %7350 = dma.vmem_to_hbm [thread:$0]  %s7345, 768, %s7343, %s7331, 384, 384, 24
        $region72: #{transformer_block.1} parent=67 // pred_fallthru
          _
      $region68: #{transformer_block.1} parent=5 // pred_fallthru
        _
      %p7351 = scmp.le.s32.totalorder 2, %s21
      // Predicated region
      $region73: #{transformer_block.1} parent=5 // pred_check
        %p7352 = pneg %p7351
      $region74: #{transformer_block.1} parent=5 // pred_check_branch
        %7354 = sbr.rel (%p7352) target = $region76
      $region75: #{transformer_block.1} parent=5 // pred_region
        %s7355 = ssub.s32 %s21, 2
        // Predicated region
        $region77: #{transformer_block.1} parent=75 // pred_check
          %p7356 = pneg %p307
        $region78: #{transformer_block.1} parent=75 // pred_check_branch
          %7358 = sbr.rel (%p7356) target = $region80
        $region79: #{transformer_block.1} parent=75 // pred_region
          %s7359 = sand.u32 %s292, 1
          %s7360 = scalar_lea.sflag [#allocation3], %s7359
          %s7361 = sand.u32 %s292, 1
          %s7362 = smul.addr %s7361, 48
          %s7363 = scalar_lea.vmem [#allocation2], %s7362
          %7364 = dma.done %s7360, 768
        $region80: #{transformer_block.1} parent=75 // pred_fallthru
          _
      $region76: #{transformer_block.1} parent=5 // pred_fallthru
        _
    $region6: #{transformer_block.1} parent=1 // loop_footer
      %s25 = sadd.s32 1, %s21
    $region7: #{transformer_block.1} parent=1 // loop_footer_branch
      %20 = sbr.rel target = $region3
    $region8: #{transformer_block.1} parent=1 // loop_exit
      _
    %7365 = vsyncpa [#allocation3], 1
    %s7366 = scalar_lea.sflag [#allocation3], 1
    %7367 = vsyncpa %s7366, 1

</llo_original>
